<compile_context>
chip_gen: v7x
topology: tpu7x:2x2x1
jax: 0.10.0
libtpu: 0.0.40
codegen_flags: <defaults>
</compile_context>

<pallas_src>
import functools

import jax
import jax.numpy as jnp
from jax.experimental import pallas as pl
from jax.experimental.pallas import tpu as pltpu


# ---------------------------------------------------------------------------
# Fused kernel: Nb images per grid step.
#   x_ref   : (Nb, Cin, H, W)            raw NCHW input block (f32)
#   t1_ref  : (kh1*Cin*Wp1, W*C1)        conv1 stacked row-Toeplitz weights (bf16)
#   b1_ref  : (1, W*C1)                  conv1 bias, tiled per output column (f32)
#   w2_ref  : (C1, C2)                   conv2 1x1 weights (bf16)
#   b2_ref  : (1, C2)                    conv2 bias (f32)
#   t3_ref  : (kh3, C2*Wp3, C3*W)        conv3 row-Toeplitz weights (bf16)
#   b3_ref  : (1, C3*W)                  conv3 bias, repeated per column (f32)
#   o_ref   : (Nb, H, C3*W)              lane-dense output block (rows=(n,h), lanes=(co,w))
#   lhs1_ref: (Nb*H, kh1*Cin*Wp1)        stacked conv1 LHS scratch (bf16)
#   a1p_ref : (W*Nb*H, C1)               pixel-major conv1 activation scratch (bf16)
#   a2p_ref : (Nb, 8+H+8, C2*Wp3)        zero-halo conv3 input scratch (bf16)
# ---------------------------------------------------------------------------
def _srcnn_fused_kernel(x_ref, t1_ref, b1_ref, w2_ref, b2_ref, t3_ref, b3_ref,
                        o_ref, lhs1_ref, a1p_ref, a2p_ref, *,
                        Nb, H, W, cin, c1, c2, c3, kh1, kh3, p1, p3):
    bf16 = jnp.bfloat16
    Mb = Nb * H
    wp1 = W + 2 * p1
    wp3 = W + 2 * p3
    k1c = cin * wp1            # per-kh K block of the conv1 LHS
    top = 8                    # sublane-aligned top pad of the conv3 input scratch

    # ---- stage 0: build the stacked conv1 LHS (Mb, kh1*cin*wp1) in VMEM ----
    # Zeroing is re-done every step (cheap: ~27 KB) so correctness never
    # depends on which TensorCore ran the previous grid step.
    lhs1_ref[...] = jnp.zeros(lhs1_ref.shape, lhs1_ref.dtype)
    for n in range(Nb):
        for kh in range(kh1):
            dh = kh - p1
            h0 = max(0, -dh)
            h1 = min(H, H - dh)
            if h1 <= h0:
                continue
            src = h0 + dh
            for c in range(cin):
                lane0 = kh * k1c + c * wp1 + p1
                lhs1_ref[n * H + h0:n * H + h1, lane0:lane0 + W] = (
                    x_ref[n, c, src:src + (h1 - h0), :].astype(bf16))

    # ---- conv1 (9x9, cin->c1): ONE deep-K MXU matmul, M=Nb*H, K=kh1*cin*wp1.
    acc1 = jnp.dot(lhs1_ref[...], t1_ref[...],
                   preferred_element_type=jnp.float32)
    a1 = jnp.maximum(acc1 + b1_ref[...], 0.0).astype(bf16)   # bias+ReLU on VPU (f32)

    # Relayout to pixel-major (w-major rows) for conv2: W aligned 128-lane
    # slice stores into VMEM scratch — no value reshapes, frees the vregs.
    for w in range(W):
        a1p_ref[w * Mb:(w + 1) * Mb, :] = a1[:, w * c1:(w + 1) * c1]

    # ---- conv2 (1x1, c1->c2): ONE (W*Nb*H, c1) x (c1, c2) matmul.
    o2 = jnp.dot(a1p_ref[...], w2_ref[...], preferred_element_type=jnp.float32)
    o2 = jnp.maximum(o2 + b2_ref[...], 0.0).astype(bf16)

    # ---- scatter conv2 output into the zero-halo conv3 input scratch ----
    # Only the halo that conv3 actually reads is zeroed (rows top-p3..top-1 and
    # top+H..top+H+p3-1, plus p3*c2-wide lane strips); the interior is fully
    # overwritten below at a sublane-aligned offset (row `top`).
    z_rows = jnp.zeros((Nb, p3, c2 * wp3), bf16)
    z_lanes = jnp.zeros((Nb, H, p3 * c2), bf16)
    a2p_ref[:, top - p3:top, :] = z_rows
    a2p_ref[:, top + H:top + H + p3, :] = z_rows
    a2p_ref[:, top:top + H, 0:p3 * c2] = z_lanes
    a2p_ref[:, top:top + H, (p3 + W) * c2:wp3 * c2] = z_lanes
    for w in range(W):
        for n in range(Nb):
            a2p_ref[n, top:top + H, (p3 + w) * c2:(p3 + w + 1) * c2] = (
                o2[w * Mb + n * H:w * Mb + (n + 1) * H, :])

    # ---- conv3 (5x5, c2->c3): kh3 deep-K (K=c2*wp3) matmuls, M = Nb*H.
    acc3 = jnp.zeros((Mb, c3 * W), jnp.float32)
    for kh in range(kh3):
        r0 = top - p3 + kh
        rows = jnp.concatenate(
            [a2p_ref[n, r0:r0 + H, :] for n in range(Nb)], axis=0)   # (Mb, c2*wp3)
        acc3 = acc3 + jnp.dot(rows, t3_ref[kh],
                              preferred_element_type=jnp.float32)
    acc3 = acc3 + b3_ref[...]

    # ---- lane-dense output store: rows (n, h), lanes (co, w). ----
    for n in range(Nb):
        o_ref[n, :, :] = acc3[n * H:(n + 1) * H, :].astype(o_ref.dtype)


def srcnn_w128_forward(x_nchw, params, *, batch_block=None):
    """Fused SRCNN_W128 forward. Input/output are NCHW like the PyTorch module."""
    N, cin, H, W = x_nchw.shape
    w1, b1 = params["w1"], params["b1"]        # (9,9,2,128), (128,)
    w2, b2 = params["w2"], params["b2"]        # (1,1,128,64), (64,)
    w3, b3 = params["w3"], params["b3"]        # (5,5,64,2), (2,)
    kh1, kw1, _, c1 = w1.shape
    kh3, kw3, c2, c3 = w3.shape
    p1, p3 = kw1 // 2, kw3 // 2
    wp1, wp3 = W + 2 * p1, W + 2 * p3

    # Images per grid step: fill the MXU M dimension (up to ~256 rows).
    if batch_block is None:
        batch_block = 1
        for cand in range(1, N + 1):
            if N % cand == 0 and cand * H <= 256:
                batch_block = cand
    Nb = batch_block
    assert N % Nb == 0, (N, Nb)
    Mb = Nb * H

    # --- Exact (gather + mask, no matmul rounding) row-Toeplitz weight
    # expansion, built once per call in the wrapper; cast to bf16 for the MXU.
    wcol = jnp.arange(W)

    u1 = jnp.arange(wp1)
    kidx1 = u1[:, None] - wcol[None, :]                        # (wp1, W)
    w1g = w1[:, jnp.clip(kidx1, 0, kw1 - 1), :, :]             # (kh1,wp1,W,cin,c1)
    w1g = jnp.where(((kidx1 >= 0) & (kidx1 < kw1))[None, :, :, None, None],
                    w1g, 0.0)
    # rows: (kh, c, u); cols: (w, co) w-major — stacked over kh for one deep-K matmul.
    t1 = (w1g.transpose(0, 3, 1, 2, 4)
              .reshape(kh1 * cin * wp1, W * c1).astype(jnp.bfloat16))

    u3 = jnp.arange(wp3)
    kidx3 = u3[:, None] - wcol[None, :]                        # (wp3, W)
    w3g = w3[:, jnp.clip(kidx3, 0, kw3 - 1), :, :]             # (kh3,wp3,W,c2,c3)
    w3g = jnp.where(((kidx3 >= 0) & (kidx3 < kw3))[None, :, :, None, None],
                    w3g, 0.0)
    # rows: (u, ci) u-major; cols: (co, w) co-major -> per-channel output planes
    t3 = (w3g.transpose(0, 1, 3, 4, 2)
              .reshape(kh3, c2 * wp3, c3 * W).astype(jnp.bfloat16))

    w2m = w2.reshape(c1, c2).astype(jnp.bfloat16)
    b1f = jnp.tile(b1, W).reshape(1, W * c1)       # column w*c1+co -> b1[co]
    b2f = b2.reshape(1, c2)
    b3f = jnp.repeat(b3, W).reshape(1, c3 * W)     # column co*W+w -> b3[co]

    flops = 2 * N * H * W * (kh1 * kw1 * cin * c1 + c1 * c2 + kh3 * kw3 * c2 * c3)
    bytes_accessed = (4 * x_nchw.size + 4 * N * c3 * H * W
                      + 2 * (t1.size + t3.size + w2m.size)
                      + 4 * (b1f.size + b2f.size + b3f.size))

    kernel = functools.partial(
        _srcnn_fused_kernel,
        Nb=Nb, H=H, W=W, cin=cin, c1=c1, c2=c2, c3=c3,
        kh1=kh1, kh3=kh3, p1=p1, p3=p3)

    out_slab = pl.pallas_call(
        kernel,
        out_shape=jax.ShapeDtypeStruct((N, H, c3 * W), x_nchw.dtype),
        grid_spec=pltpu.PrefetchScalarGridSpec(
            num_scalar_prefetch=0,
            grid=(N // Nb,),
            in_specs=[
                pl.BlockSpec((Nb, cin, H, W), lambda g: (g, 0, 0, 0)),
                pl.BlockSpec(t1.shape, lambda g: (0, 0)),
                pl.BlockSpec(b1f.shape, lambda g: (0, 0)),
                pl.BlockSpec(w2m.shape, lambda g: (0, 0)),
                pl.BlockSpec(b2f.shape, lambda g: (0, 0)),
                pl.BlockSpec(t3.shape, lambda g: (0, 0, 0)),
                pl.BlockSpec(b3f.shape, lambda g: (0, 0)),
            ],
            out_specs=pl.BlockSpec((Nb, H, c3 * W), lambda g: (g, 0, 0)),
            scratch_shapes=[
                pltpu.VMEM((Mb, kh1 * cin * wp1), jnp.bfloat16),   # stacked conv1 LHS
                pltpu.VMEM((W * Mb, c1), jnp.bfloat16),            # pixel-major conv1 act
                pltpu.VMEM((Nb, 8 + H + 8, c2 * wp3), jnp.bfloat16),  # conv3 padded input
            ],
        ),
        compiler_params=pltpu.CompilerParams(
            dimension_semantics=("parallel",),
            vmem_limit_bytes=32 * 1024 * 1024,
        ),
        cost_estimate=pl.CostEstimate(
            flops=flops, transcendentals=0, bytes_accessed=bytes_accessed),
    )(x_nchw, t1, b1f, w2m, b2f, t3, b3f)

    # Lane-dense kernel output (N, H, c3*W) with lanes ordered (co, w) -> NCHW.
    return out_slab.reshape(N, H, c3, W).transpose(0, 2, 1, 3)


# ---------------------------------------------------------------------------
# Deterministic parameter init (shapes match the PyTorch module, HWIO layout).
# ---------------------------------------------------------------------------
def init_params(key):
    def conv_init(k, kh, kw, cin, cout):
        kw_key, kb_key = jax.random.split(k)
        fan_in = cin * kh * kw
        bound = 1.0 / jnp.sqrt(fan_in)
        w = jax.random.uniform(kw_key, (kh, kw, cin, cout), jnp.float32,
                               -bound, bound)
        b = jax.random.uniform(kb_key, (cout,), jnp.float32, -bound, bound)
        return w, b

    k1, k2, k3 = jax.random.split(key, 3)
    w1, b1 = conv_init(k1, 9, 9, 2, 128)
    w2, b2 = conv_init(k2, 1, 1, 128, 64)
    w3, b3 = conv_init(k3, 5, 5, 64, 2)
    return {"w1": w1, "b1": b1, "w2": w2, "b2": b2, "w3": w3, "b3": b3}


# Pure-JAX reference (XLA conv, f32) for correctness checking.
def _reference_forward(x_nchw, params):
    def conv(x, w, b, pad):
        y = jax.lax.conv_general_dilated(
            x, w, (1, 1), [(pad, pad), (pad, pad)],
            dimension_numbers=("NCHW", "HWIO", "NCHW"),
        )
        return y + b.reshape(1, -1, 1, 1)

    x = jax.nn.relu(conv(x_nchw, params["w1"], params["b1"], 4))
    x = jax.nn.relu(conv(x, params["w2"], params["b2"], 0))
    return conv(x, params["w3"], params["b3"], 2)


if __name__ == "__main__":
    key = jax.random.PRNGKey(0)
    pkey, xkey = jax.random.split(key)
    params = init_params(pkey)

    # Small input consistent with the module: batch=2, in-channels=2, 16x16.
    x = jax.random.normal(xkey, (2, 2, 16, 16), jnp.float32)

    fwd = jax.jit(srcnn_w128_forward)
    out = jax.block_until_ready(fwd(x, params))

    ref = _reference_forward(x, params)
    assert out.shape == (2, 2, 16, 16)
    err = float(jnp.max(jnp.abs(out - ref)))
    # bf16 MXU operands (f32 accumulation) -> loosened tolerance vs the f32 reference.
    assert jnp.allclose(out, ref, atol=2e-2, rtol=2e-2), f"max abs err {err}"

    print("KERNEL_OK")
</pallas_src>

<mosaic_0001>
module attributes {stable_mosaic.version = 11 : i64} {
  func.func @_srcnn_fused_kernel(%arg0: i32, %arg1: memref<2x2x16x16xf32, #tpu.memory_space<vmem>>, %arg2: memref<432x2048xbf16, #tpu.memory_space<vmem>>, %arg3: memref<1x2048xf32, #tpu.memory_space<vmem>>, %arg4: memref<128x64xbf16, #tpu.memory_space<vmem>>, %arg5: memref<1x64xf32, #tpu.memory_space<vmem>>, %arg6: memref<5x1280x32xbf16, #tpu.memory_space<vmem>>, %arg7: memref<1x32xf32, #tpu.memory_space<vmem>>, %arg8: memref<2x16x32xf32, #tpu.memory_space<vmem>>, %arg9: memref<32x432xbf16, #tpu.memory_space<vmem>>, %arg10: memref<512x128xbf16, #tpu.memory_space<vmem>>, %arg11: memref<2x32x1280xbf16, #tpu.memory_space<vmem>>) attributes {dimension_semantics = [#tpu.dimension_semantics<parallel>], iteration_bounds = array<i64: 1>, scalar_prefetch = 0 : i64, scratch_operands = 3 : i64, tpu.core_type = #tpu.core_type<tc>, window_params = [{transform_indices = @transform_0, window_bounds = array<i64: 2, 2, 16, 16>}, {pipeline_mode = #tpu.pipeline_mode<synchronous>, transform_indices = @transform_1, window_bounds = array<i64: 432, 2048>}, {pipeline_mode = #tpu.pipeline_mode<synchronous>, transform_indices = @transform_2, window_bounds = array<i64: 1, 2048>}, {pipeline_mode = #tpu.pipeline_mode<synchronous>, transform_indices = @transform_3, window_bounds = array<i64: 128, 64>}, {pipeline_mode = #tpu.pipeline_mode<synchronous>, transform_indices = @transform_4, window_bounds = array<i64: 1, 64>}, {pipeline_mode = #tpu.pipeline_mode<synchronous>, transform_indices = @transform_5, window_bounds = array<i64: 5, 1280, 32>}, {pipeline_mode = #tpu.pipeline_mode<synchronous>, transform_indices = @transform_6, window_bounds = array<i64: 1, 32>}, {transform_indices = @transform_7, window_bounds = array<i64: 2, 16, 32>}]} {
    %cst = arith.constant 0.000000e+00 : bf16
    %0 = vector.broadcast %cst : bf16 to vector<32x432xbf16>
    %c0 = arith.constant 0 : index
    %c0_0 = arith.constant 0 : index
    %1 = vector.load %arg9[%c0, %c0_0] : memref<32x432xbf16, #tpu.memory_space<vmem>>, vector<32x432xbf16>
    tpu.vector_store %arg9[%c0, %c0_0], %0 {strides = array<i32>} : memref<32x432xbf16, #tpu.memory_space<vmem>>, vector<32x432xbf16>,
    %c0_1 = arith.constant 0 : index
    %c0_2 = arith.constant 0 : index
    %c0_3 = arith.constant 0 : index
    %c0_4 = arith.constant 0 : index
    %2 = vector.load %arg1[%c0_1, %c0_2, %c0_3, %c0_4] : memref<2x2x16x16xf32, #tpu.memory_space<vmem>>, vector<1x1x12x16xf32>
    %3 = vector.shape_cast %2 : vector<1x1x12x16xf32> to vector<12x16xf32>
    %4 = arith.truncf %3 : vector<12x16xf32> to vector<12x16xbf16>
    %c4 = arith.constant 4 : index
    %c4_5 = arith.constant 4 : index
    %5 = vector.load %arg9[%c4, %c4_5] : memref<32x432xbf16, #tpu.memory_space<vmem>>, vector<12x16xbf16>
    tpu.vector_store %arg9[%c4, %c4_5], %4 {strides = array<i32>} : memref<32x432xbf16, #tpu.memory_space<vmem>>, vector<12x16xbf16>,
    %c0_6 = arith.constant 0 : index
    %c1 = arith.constant 1 : index
    %c0_7 = arith.constant 0 : index
    %c0_8 = arith.constant 0 : index
    %6 = vector.load %arg1[%c0_6, %c1, %c0_7, %c0_8] : memref<2x2x16x16xf32, #tpu.memory_space<vmem>>, vector<1x1x12x16xf32>
    %7 = vector.shape_cast %6 : vector<1x1x12x16xf32> to vector<12x16xf32>
    %8 = arith.truncf %7 : vector<12x16xf32> to vector<12x16xbf16>
    %c4_9 = arith.constant 4 : index
    %c28 = arith.constant 28 : index
    %9 = vector.load %arg9[%c4_9, %c28] : memref<32x432xbf16, #tpu.memory_space<vmem>>, vector<12x16xbf16>
    tpu.vector_store %arg9[%c4_9, %c28], %8 {strides = array<i32>} : memref<32x432xbf16, #tpu.memory_space<vmem>>, vector<12x16xbf16>,
    %c0_10 = arith.constant 0 : index
    %c0_11 = arith.constant 0 : index
    %c0_12 = arith.constant 0 : index
    %c0_13 = arith.constant 0 : index
    %10 = vector.load %arg1[%c0_10, %c0_11, %c0_12, %c0_13] : memref<2x2x16x16xf32, #tpu.memory_space<vmem>>, vector<1x1x13x16xf32>
    %11 = vector.shape_cast %10 : vector<1x1x13x16xf32> to vector<13x16xf32>
    %12 = arith.truncf %11 : vector<13x16xf32> to vector<13x16xbf16>
    %c3 = arith.constant 3 : index
    %c52 = arith.constant 52 : index
    %13 = vector.load %arg9[%c3, %c52] : memref<32x432xbf16, #tpu.memory_space<vmem>>, vector<13x16xbf16>
    tpu.vector_store %arg9[%c3, %c52], %12 {strides = array<i32>} : memref<32x432xbf16, #tpu.memory_space<vmem>>, vector<13x16xbf16>,
    %c0_14 = arith.constant 0 : index
    %c1_15 = arith.constant 1 : index
    %c0_16 = arith.constant 0 : index
    %c0_17 = arith.constant 0 : index
    %14 = vector.load %arg1[%c0_14, %c1_15, %c0_16, %c0_17] : memref<2x2x16x16xf32, #tpu.memory_space<vmem>>, vector<1x1x13x16xf32>
    %15 = vector.shape_cast %14 : vector<1x1x13x16xf32> to vector<13x16xf32>
    %16 = arith.truncf %15 : vector<13x16xf32> to vector<13x16xbf16>
    %c3_18 = arith.constant 3 : index
    %c76 = arith.constant 76 : index
    %17 = vector.load %arg9[%c3_18, %c76] : memref<32x432xbf16, #tpu.memory_space<vmem>>, vector<13x16xbf16>
    tpu.vector_store %arg9[%c3_18, %c76], %16 {strides = array<i32>} : memref<32x432xbf16, #tpu.memory_space<vmem>>, vector<13x16xbf16>,
    %c0_19 = arith.constant 0 : index
    %c0_20 = arith.constant 0 : index
    %c0_21 = arith.constant 0 : index
    %c0_22 = arith.constant 0 : index
    %18 = vector.load %arg1[%c0_19, %c0_20, %c0_21, %c0_22] : memref<2x2x16x16xf32, #tpu.memory_space<vmem>>, vector<1x1x14x16xf32>
    %19 = vector.shape_cast %18 : vector<1x1x14x16xf32> to vector<14x16xf32>
    %20 = arith.truncf %19 : vector<14x16xf32> to vector<14x16xbf16>
    %c2 = arith.constant 2 : index
    %c100 = arith.constant 100 : index
    %21 = vector.load %arg9[%c2, %c100] : memref<32x432xbf16, #tpu.memory_space<vmem>>, vector<14x16xbf16>
    tpu.vector_store %arg9[%c2, %c100], %20 {strides = array<i32>} : memref<32x432xbf16, #tpu.memory_space<vmem>>, vector<14x16xbf16>,
    %c0_23 = arith.constant 0 : index
    %c1_24 = arith.constant 1 : index
    %c0_25 = arith.constant 0 : index
    %c0_26 = arith.constant 0 : index
    %22 = vector.load %arg1[%c0_23, %c1_24, %c0_25, %c0_26] : memref<2x2x16x16xf32, #tpu.memory_space<vmem>>, vector<1x1x14x16xf32>
    %23 = vector.shape_cast %22 : vector<1x1x14x16xf32> to vector<14x16xf32>
    %24 = arith.truncf %23 : vector<14x16xf32> to vector<14x16xbf16>
    %c2_27 = arith.constant 2 : index
    %c124 = arith.constant 124 : index
    %25 = vector.load %arg9[%c2_27, %c124] : memref<32x432xbf16, #tpu.memory_space<vmem>>, vector<14x16xbf16>
    tpu.vector_store %arg9[%c2_27, %c124], %24 {strides = array<i32>} : memref<32x432xbf16, #tpu.memory_space<vmem>>, vector<14x16xbf16>,
    %c0_28 = arith.constant 0 : index
    %c0_29 = arith.constant 0 : index
    %c0_30 = arith.constant 0 : index
    %c0_31 = arith.constant 0 : index
    %26 = vector.load %arg1[%c0_28, %c0_29, %c0_30, %c0_31] : memref<2x2x16x16xf32, #tpu.memory_space<vmem>>, vector<1x1x15x16xf32>
    %27 = vector.shape_cast %26 : vector<1x1x15x16xf32> to vector<15x16xf32>
    %28 = arith.truncf %27 : vector<15x16xf32> to vector<15x16xbf16>
    %c1_32 = arith.constant 1 : index
    %c148 = arith.constant 148 : index
    %29 = vector.load %arg9[%c1_32, %c148] : memref<32x432xbf16, #tpu.memory_space<vmem>>, vector<15x16xbf16>
    tpu.vector_store %arg9[%c1_32, %c148], %28 {strides = array<i32>} : memref<32x432xbf16, #tpu.memory_space<vmem>>, vector<15x16xbf16>,
    %c0_33 = arith.constant 0 : index
    %c1_34 = arith.constant 1 : index
    %c0_35 = arith.constant 0 : index
    %c0_36 = arith.constant 0 : index
    %30 = vector.load %arg1[%c0_33, %c1_34, %c0_35, %c0_36] : memref<2x2x16x16xf32, #tpu.memory_space<vmem>>, vector<1x1x15x16xf32>
    %31 = vector.shape_cast %30 : vector<1x1x15x16xf32> to vector<15x16xf32>
    %32 = arith.truncf %31 : vector<15x16xf32> to vector<15x16xbf16>
    %c1_37 = arith.constant 1 : index
    %c172 = arith.constant 172 : index
    %33 = vector.load %arg9[%c1_37, %c172] : memref<32x432xbf16, #tpu.memory_space<vmem>>, vector<15x16xbf16>
    tpu.vector_store %arg9[%c1_37, %c172], %32 {strides = array<i32>} : memref<32x432xbf16, #tpu.memory_space<vmem>>, vector<15x16xbf16>,
    %c0_38 = arith.constant 0 : index
    %c0_39 = arith.constant 0 : index
    %c0_40 = arith.constant 0 : index
    %c0_41 = arith.constant 0 : index
    %34 = vector.load %arg1[%c0_38, %c0_39, %c0_40, %c0_41] : memref<2x2x16x16xf32, #tpu.memory_space<vmem>>, vector<1x1x16x16xf32>
    %35 = vector.shape_cast %34 : vector<1x1x16x16xf32> to vector<16x16xf32>
    %36 = arith.truncf %35 : vector<16x16xf32> to vector<16x16xbf16>
    %c0_42 = arith.constant 0 : index
    %c196 = arith.constant 196 : index
    %37 = vector.load %arg9[%c0_42, %c196] : memref<32x432xbf16, #tpu.memory_space<vmem>>, vector<16x16xbf16>
    tpu.vector_store %arg9[%c0_42, %c196], %36 {strides = array<i32>} : memref<32x432xbf16, #tpu.memory_space<vmem>>, vector<16x16xbf16>,
    %c0_43 = arith.constant 0 : index
    %c1_44 = arith.constant 1 : index
    %c0_45 = arith.constant 0 : index
    %c0_46 = arith.constant 0 : index
    %38 = vector.load %arg1[%c0_43, %c1_44, %c0_45, %c0_46] : memref<2x2x16x16xf32, #tpu.memory_space<vmem>>, vector<1x1x16x16xf32>
    %39 = vector.shape_cast %38 : vector<1x1x16x16xf32> to vector<16x16xf32>
    %40 = arith.truncf %39 : vector<16x16xf32> to vector<16x16xbf16>
    %c0_47 = arith.constant 0 : index
    %c220 = arith.constant 220 : index
    %41 = vector.load %arg9[%c0_47, %c220] : memref<32x432xbf16, #tpu.memory_space<vmem>>, vector<16x16xbf16>
    tpu.vector_store %arg9[%c0_47, %c220], %40 {strides = array<i32>} : memref<32x432xbf16, #tpu.memory_space<vmem>>, vector<16x16xbf16>,
    %c0_48 = arith.constant 0 : index
    %c0_49 = arith.constant 0 : index
    %c1_50 = arith.constant 1 : index
    %c0_51 = arith.constant 0 : index
    %42 = vector.load %arg1[%c0_48, %c0_49, %c1_50, %c0_51] : memref<2x2x16x16xf32, #tpu.memory_space<vmem>>, vector<1x1x15x16xf32>
    %43 = vector.shape_cast %42 : vector<1x1x15x16xf32> to vector<15x16xf32>
    %44 = arith.truncf %43 : vector<15x16xf32> to vector<15x16xbf16>
    %c0_52 = arith.constant 0 : index
    %c244 = arith.constant 244 : index
    %45 = vector.load %arg9[%c0_52, %c244] : memref<32x432xbf16, #tpu.memory_space<vmem>>, vector<15x16xbf16>
    tpu.vector_store %arg9[%c0_52, %c244], %44 {strides = array<i32>} : memref<32x432xbf16, #tpu.memory_space<vmem>>, vector<15x16xbf16>,
    %c0_53 = arith.constant 0 : index
    %c1_54 = arith.constant 1 : index
    %c1_55 = arith.constant 1 : index
    %c0_56 = arith.constant 0 : index
    %46 = vector.load %arg1[%c0_53, %c1_54, %c1_55, %c0_56] : memref<2x2x16x16xf32, #tpu.memory_space<vmem>>, vector<1x1x15x16xf32>
    %47 = vector.shape_cast %46 : vector<1x1x15x16xf32> to vector<15x16xf32>
    %48 = arith.truncf %47 : vector<15x16xf32> to vector<15x16xbf16>
    %c0_57 = arith.constant 0 : index
    %c268 = arith.constant 268 : index
    %49 = vector.load %arg9[%c0_57, %c268] : memref<32x432xbf16, #tpu.memory_space<vmem>>, vector<15x16xbf16>
    tpu.vector_store %arg9[%c0_57, %c268], %48 {strides = array<i32>} : memref<32x432xbf16, #tpu.memory_space<vmem>>, vector<15x16xbf16>,
    %c0_58 = arith.constant 0 : index
    %c0_59 = arith.constant 0 : index
    %c2_60 = arith.constant 2 : index
    %c0_61 = arith.constant 0 : index
    %50 = vector.load %arg1[%c0_58, %c0_59, %c2_60, %c0_61] : memref<2x2x16x16xf32, #tpu.memory_space<vmem>>, vector<1x1x14x16xf32>
    %51 = vector.shape_cast %50 : vector<1x1x14x16xf32> to vector<14x16xf32>
    %52 = arith.truncf %51 : vector<14x16xf32> to vector<14x16xbf16>
    %c0_62 = arith.constant 0 : index
    %c292 = arith.constant 292 : index
    %53 = vector.load %arg9[%c0_62, %c292] : memref<32x432xbf16, #tpu.memory_space<vmem>>, vector<14x16xbf16>
    tpu.vector_store %arg9[%c0_62, %c292], %52 {strides = array<i32>} : memref<32x432xbf16, #tpu.memory_space<vmem>>, vector<14x16xbf16>,
    %c0_63 = arith.constant 0 : index
    %c1_64 = arith.constant 1 : index
    %c2_65 = arith.constant 2 : index
    %c0_66 = arith.constant 0 : index
    %54 = vector.load %arg1[%c0_63, %c1_64, %c2_65, %c0_66] : memref<2x2x16x16xf32, #tpu.memory_space<vmem>>, vector<1x1x14x16xf32>
    %55 = vector.shape_cast %54 : vector<1x1x14x16xf32> to vector<14x16xf32>
    %56 = arith.truncf %55 : vector<14x16xf32> to vector<14x16xbf16>
    %c0_67 = arith.constant 0 : index
    %c316 = arith.constant 316 : index
    %57 = vector.load %arg9[%c0_67, %c316] : memref<32x432xbf16, #tpu.memory_space<vmem>>, vector<14x16xbf16>
    tpu.vector_store %arg9[%c0_67, %c316], %56 {strides = array<i32>} : memref<32x432xbf16, #tpu.memory_space<vmem>>, vector<14x16xbf16>,
    %c0_68 = arith.constant 0 : index
    %c0_69 = arith.constant 0 : index
    %c3_70 = arith.constant 3 : index
    %c0_71 = arith.constant 0 : index
    %58 = vector.load %arg1[%c0_68, %c0_69, %c3_70, %c0_71] : memref<2x2x16x16xf32, #tpu.memory_space<vmem>>, vector<1x1x13x16xf32>
    %59 = vector.shape_cast %58 : vector<1x1x13x16xf32> to vector<13x16xf32>
    %60 = arith.truncf %59 : vector<13x16xf32> to vector<13x16xbf16>
    %c0_72 = arith.constant 0 : index
    %c340 = arith.constant 340 : index
    %61 = vector.load %arg9[%c0_72, %c340] : memref<32x432xbf16, #tpu.memory_space<vmem>>, vector<13x16xbf16>
    tpu.vector_store %arg9[%c0_72, %c340], %60 {strides = array<i32>} : memref<32x432xbf16, #tpu.memory_space<vmem>>, vector<13x16xbf16>,
    %c0_73 = arith.constant 0 : index
    %c1_74 = arith.constant 1 : index
    %c3_75 = arith.constant 3 : index
    %c0_76 = arith.constant 0 : index
    %62 = vector.load %arg1[%c0_73, %c1_74, %c3_75, %c0_76] : memref<2x2x16x16xf32, #tpu.memory_space<vmem>>, vector<1x1x13x16xf32>
    %63 = vector.shape_cast %62 : vector<1x1x13x16xf32> to vector<13x16xf32>
    %64 = arith.truncf %63 : vector<13x16xf32> to vector<13x16xbf16>
    %c0_77 = arith.constant 0 : index
    %c364 = arith.constant 364 : index
    %65 = vector.load %arg9[%c0_77, %c364] : memref<32x432xbf16, #tpu.memory_space<vmem>>, vector<13x16xbf16>
    tpu.vector_store %arg9[%c0_77, %c364], %64 {strides = array<i32>} : memref<32x432xbf16, #tpu.memory_space<vmem>>, vector<13x16xbf16>,
    %c0_78 = arith.constant 0 : index
    %c0_79 = arith.constant 0 : index
    %c4_80 = arith.constant 4 : index
    %c0_81 = arith.constant 0 : index
    %66 = vector.load %arg1[%c0_78, %c0_79, %c4_80, %c0_81] : memref<2x2x16x16xf32, #tpu.memory_space<vmem>>, vector<1x1x12x16xf32>
    %67 = vector.shape_cast %66 : vector<1x1x12x16xf32> to vector<12x16xf32>
    %68 = arith.truncf %67 : vector<12x16xf32> to vector<12x16xbf16>
    %c0_82 = arith.constant 0 : index
    %c388 = arith.constant 388 : index
    %69 = vector.load %arg9[%c0_82, %c388] : memref<32x432xbf16, #tpu.memory_space<vmem>>, vector<12x16xbf16>
    tpu.vector_store %arg9[%c0_82, %c388], %68 {strides = array<i32>} : memref<32x432xbf16, #tpu.memory_space<vmem>>, vector<12x16xbf16>,
    %c0_83 = arith.constant 0 : index
    %c1_84 = arith.constant 1 : index
    %c4_85 = arith.constant 4 : index
    %c0_86 = arith.constant 0 : index
    %70 = vector.load %arg1[%c0_83, %c1_84, %c4_85, %c0_86] : memref<2x2x16x16xf32, #tpu.memory_space<vmem>>, vector<1x1x12x16xf32>
    %71 = vector.shape_cast %70 : vector<1x1x12x16xf32> to vector<12x16xf32>
    %72 = arith.truncf %71 : vector<12x16xf32> to vector<12x16xbf16>
    %c0_87 = arith.constant 0 : index
    %c412 = arith.constant 412 : index
    %73 = vector.load %arg9[%c0_87, %c412] : memref<32x432xbf16, #tpu.memory_space<vmem>>, vector<12x16xbf16>
    tpu.vector_store %arg9[%c0_87, %c412], %72 {strides = array<i32>} : memref<32x432xbf16, #tpu.memory_space<vmem>>, vector<12x16xbf16>,
    %c1_88 = arith.constant 1 : index
    %c0_89 = arith.constant 0 : index
    %c0_90 = arith.constant 0 : index
    %c0_91 = arith.constant 0 : index
    %74 = vector.load %arg1[%c1_88, %c0_89, %c0_90, %c0_91] : memref<2x2x16x16xf32, #tpu.memory_space<vmem>>, vector<1x1x12x16xf32>
    %75 = vector.shape_cast %74 : vector<1x1x12x16xf32> to vector<12x16xf32>
    %76 = arith.truncf %75 : vector<12x16xf32> to vector<12x16xbf16>
    %c20 = arith.constant 20 : index
    %c4_92 = arith.constant 4 : index
    %77 = vector.load %arg9[%c20, %c4_92] : memref<32x432xbf16, #tpu.memory_space<vmem>>, vector<12x16xbf16>
    tpu.vector_store %arg9[%c20, %c4_92], %76 {strides = array<i32>} : memref<32x432xbf16, #tpu.memory_space<vmem>>, vector<12x16xbf16>,
    %c1_93 = arith.constant 1 : index
    %c1_94 = arith.constant 1 : index
    %c0_95 = arith.constant 0 : index
    %c0_96 = arith.constant 0 : index
    %78 = vector.load %arg1[%c1_93, %c1_94, %c0_95, %c0_96] : memref<2x2x16x16xf32, #tpu.memory_space<vmem>>, vector<1x1x12x16xf32>
    %79 = vector.shape_cast %78 : vector<1x1x12x16xf32> to vector<12x16xf32>
    %80 = arith.truncf %79 : vector<12x16xf32> to vector<12x16xbf16>
    %c20_97 = arith.constant 20 : index
    %c28_98 = arith.constant 28 : index
    %81 = vector.load %arg9[%c20_97, %c28_98] : memref<32x432xbf16, #tpu.memory_space<vmem>>, vector<12x16xbf16>
    tpu.vector_store %arg9[%c20_97, %c28_98], %80 {strides = array<i32>} : memref<32x432xbf16, #tpu.memory_space<vmem>>, vector<12x16xbf16>,
    %c1_99 = arith.constant 1 : index
    %c0_100 = arith.constant 0 : index
    %c0_101 = arith.constant 0 : index
    %c0_102 = arith.constant 0 : index
    %82 = vector.load %arg1[%c1_99, %c0_100, %c0_101, %c0_102] : memref<2x2x16x16xf32, #tpu.memory_space<vmem>>, vector<1x1x13x16xf32>
    %83 = vector.shape_cast %82 : vector<1x1x13x16xf32> to vector<13x16xf32>
    %84 = arith.truncf %83 : vector<13x16xf32> to vector<13x16xbf16>
    %c19 = arith.constant 19 : index
    %c52_103 = arith.constant 52 : index
    %85 = vector.load %arg9[%c19, %c52_103] : memref<32x432xbf16, #tpu.memory_space<vmem>>, vector<13x16xbf16>
    tpu.vector_store %arg9[%c19, %c52_103], %84 {strides = array<i32>} : memref<32x432xbf16, #tpu.memory_space<vmem>>, vector<13x16xbf16>,
    %c1_104 = arith.constant 1 : index
    %c1_105 = arith.constant 1 : index
    %c0_106 = arith.constant 0 : index
    %c0_107 = arith.constant 0 : index
    %86 = vector.load %arg1[%c1_104, %c1_105, %c0_106, %c0_107] : memref<2x2x16x16xf32, #tpu.memory_space<vmem>>, vector<1x1x13x16xf32>
    %87 = vector.shape_cast %86 : vector<1x1x13x16xf32> to vector<13x16xf32>
    %88 = arith.truncf %87 : vector<13x16xf32> to vector<13x16xbf16>
    %c19_108 = arith.constant 19 : index
    %c76_109 = arith.constant 76 : index
    %89 = vector.load %arg9[%c19_108, %c76_109] : memref<32x432xbf16, #tpu.memory_space<vmem>>, vector<13x16xbf16>
    tpu.vector_store %arg9[%c19_108, %c76_109], %88 {strides = array<i32>} : memref<32x432xbf16, #tpu.memory_space<vmem>>, vector<13x16xbf16>,
    %c1_110 = arith.constant 1 : index
    %c0_111 = arith.constant 0 : index
    %c0_112 = arith.constant 0 : index
    %c0_113 = arith.constant 0 : index
    %90 = vector.load %arg1[%c1_110, %c0_111, %c0_112, %c0_113] : memref<2x2x16x16xf32, #tpu.memory_space<vmem>>, vector<1x1x14x16xf32>
    %91 = vector.shape_cast %90 : vector<1x1x14x16xf32> to vector<14x16xf32>
    %92 = arith.truncf %91 : vector<14x16xf32> to vector<14x16xbf16>
    %c18 = arith.constant 18 : index
    %c100_114 = arith.constant 100 : index
    %93 = vector.load %arg9[%c18, %c100_114] : memref<32x432xbf16, #tpu.memory_space<vmem>>, vector<14x16xbf16>
    tpu.vector_store %arg9[%c18, %c100_114], %92 {strides = array<i32>} : memref<32x432xbf16, #tpu.memory_space<vmem>>, vector<14x16xbf16>,
    %c1_115 = arith.constant 1 : index
    %c1_116 = arith.constant 1 : index
    %c0_117 = arith.constant 0 : index
    %c0_118 = arith.constant 0 : index
    %94 = vector.load %arg1[%c1_115, %c1_116, %c0_117, %c0_118] : memref<2x2x16x16xf32, #tpu.memory_space<vmem>>, vector<1x1x14x16xf32>
    %95 = vector.shape_cast %94 : vector<1x1x14x16xf32> to vector<14x16xf32>
    %96 = arith.truncf %95 : vector<14x16xf32> to vector<14x16xbf16>
    %c18_119 = arith.constant 18 : index
    %c124_120 = arith.constant 124 : index
    %97 = vector.load %arg9[%c18_119, %c124_120] : memref<32x432xbf16, #tpu.memory_space<vmem>>, vector<14x16xbf16>
    tpu.vector_store %arg9[%c18_119, %c124_120], %96 {strides = array<i32>} : memref<32x432xbf16, #tpu.memory_space<vmem>>, vector<14x16xbf16>,
    %c1_121 = arith.constant 1 : index
    %c0_122 = arith.constant 0 : index
    %c0_123 = arith.constant 0 : index
    %c0_124 = arith.constant 0 : index
    %98 = vector.load %arg1[%c1_121, %c0_122, %c0_123, %c0_124] : memref<2x2x16x16xf32, #tpu.memory_space<vmem>>, vector<1x1x15x16xf32>
    %99 = vector.shape_cast %98 : vector<1x1x15x16xf32> to vector<15x16xf32>
    %100 = arith.truncf %99 : vector<15x16xf32> to vector<15x16xbf16>
    %c17 = arith.constant 17 : index
    %c148_125 = arith.constant 148 : index
    %101 = vector.load %arg9[%c17, %c148_125] : memref<32x432xbf16, #tpu.memory_space<vmem>>, vector<15x16xbf16>
    tpu.vector_store %arg9[%c17, %c148_125], %100 {strides = array<i32>} : memref<32x432xbf16, #tpu.memory_space<vmem>>, vector<15x16xbf16>,
    %c1_126 = arith.constant 1 : index
    %c1_127 = arith.constant 1 : index
    %c0_128 = arith.constant 0 : index
    %c0_129 = arith.constant 0 : index
    %102 = vector.load %arg1[%c1_126, %c1_127, %c0_128, %c0_129] : memref<2x2x16x16xf32, #tpu.memory_space<vmem>>, vector<1x1x15x16xf32>
    %103 = vector.shape_cast %102 : vector<1x1x15x16xf32> to vector<15x16xf32>
    %104 = arith.truncf %103 : vector<15x16xf32> to vector<15x16xbf16>
    %c17_130 = arith.constant 17 : index
    %c172_131 = arith.constant 172 : index
    %105 = vector.load %arg9[%c17_130, %c172_131] : memref<32x432xbf16, #tpu.memory_space<vmem>>, vector<15x16xbf16>
    tpu.vector_store %arg9[%c17_130, %c172_131], %104 {strides = array<i32>} : memref<32x432xbf16, #tpu.memory_space<vmem>>, vector<15x16xbf16>,
    %c1_132 = arith.constant 1 : index
    %c0_133 = arith.constant 0 : index
    %c0_134 = arith.constant 0 : index
    %c0_135 = arith.constant 0 : index
    %106 = vector.load %arg1[%c1_132, %c0_133, %c0_134, %c0_135] : memref<2x2x16x16xf32, #tpu.memory_space<vmem>>, vector<1x1x16x16xf32>
    %107 = vector.shape_cast %106 : vector<1x1x16x16xf32> to vector<16x16xf32>
    %108 = arith.truncf %107 : vector<16x16xf32> to vector<16x16xbf16>
    %c16 = arith.constant 16 : index
    %c196_136 = arith.constant 196 : index
    %109 = vector.load %arg9[%c16, %c196_136] : memref<32x432xbf16, #tpu.memory_space<vmem>>, vector<16x16xbf16>
    tpu.vector_store %arg9[%c16, %c196_136], %108 {strides = array<i32>} : memref<32x432xbf16, #tpu.memory_space<vmem>>, vector<16x16xbf16>,
    %c1_137 = arith.constant 1 : index
    %c1_138 = arith.constant 1 : index
    %c0_139 = arith.constant 0 : index
    %c0_140 = arith.constant 0 : index
    %110 = vector.load %arg1[%c1_137, %c1_138, %c0_139, %c0_140] : memref<2x2x16x16xf32, #tpu.memory_space<vmem>>, vector<1x1x16x16xf32>
    %111 = vector.shape_cast %110 : vector<1x1x16x16xf32> to vector<16x16xf32>
    %112 = arith.truncf %111 : vector<16x16xf32> to vector<16x16xbf16>
    %c16_141 = arith.constant 16 : index
    %c220_142 = arith.constant 220 : index
    %113 = vector.load %arg9[%c16_141, %c220_142] : memref<32x432xbf16, #tpu.memory_space<vmem>>, vector<16x16xbf16>
    tpu.vector_store %arg9[%c16_141, %c220_142], %112 {strides = array<i32>} : memref<32x432xbf16, #tpu.memory_space<vmem>>, vector<16x16xbf16>,
    %c1_143 = arith.constant 1 : index
    %c0_144 = arith.constant 0 : index
    %c1_145 = arith.constant 1 : index
    %c0_146 = arith.constant 0 : index
    %114 = vector.load %arg1[%c1_143, %c0_144, %c1_145, %c0_146] : memref<2x2x16x16xf32, #tpu.memory_space<vmem>>, vector<1x1x15x16xf32>
    %115 = vector.shape_cast %114 : vector<1x1x15x16xf32> to vector<15x16xf32>
    %116 = arith.truncf %115 : vector<15x16xf32> to vector<15x16xbf16>
    %c16_147 = arith.constant 16 : index
    %c244_148 = arith.constant 244 : index
    %117 = vector.load %arg9[%c16_147, %c244_148] : memref<32x432xbf16, #tpu.memory_space<vmem>>, vector<15x16xbf16>
    tpu.vector_store %arg9[%c16_147, %c244_148], %116 {strides = array<i32>} : memref<32x432xbf16, #tpu.memory_space<vmem>>, vector<15x16xbf16>,
    %c1_149 = arith.constant 1 : index
    %c1_150 = arith.constant 1 : index
    %c1_151 = arith.constant 1 : index
    %c0_152 = arith.constant 0 : index
    %118 = vector.load %arg1[%c1_149, %c1_150, %c1_151, %c0_152] : memref<2x2x16x16xf32, #tpu.memory_space<vmem>>, vector<1x1x15x16xf32>
    %119 = vector.shape_cast %118 : vector<1x1x15x16xf32> to vector<15x16xf32>
    %120 = arith.truncf %119 : vector<15x16xf32> to vector<15x16xbf16>
    %c16_153 = arith.constant 16 : index
    %c268_154 = arith.constant 268 : index
    %121 = vector.load %arg9[%c16_153, %c268_154] : memref<32x432xbf16, #tpu.memory_space<vmem>>, vector<15x16xbf16>
    tpu.vector_store %arg9[%c16_153, %c268_154], %120 {strides = array<i32>} : memref<32x432xbf16, #tpu.memory_space<vmem>>, vector<15x16xbf16>,
    %c1_155 = arith.constant 1 : index
    %c0_156 = arith.constant 0 : index
    %c2_157 = arith.constant 2 : index
    %c0_158 = arith.constant 0 : index
    %122 = vector.load %arg1[%c1_155, %c0_156, %c2_157, %c0_158] : memref<2x2x16x16xf32, #tpu.memory_space<vmem>>, vector<1x1x14x16xf32>
    %123 = vector.shape_cast %122 : vector<1x1x14x16xf32> to vector<14x16xf32>
    %124 = arith.truncf %123 : vector<14x16xf32> to vector<14x16xbf16>
    %c16_159 = arith.constant 16 : index
    %c292_160 = arith.constant 292 : index
    %125 = vector.load %arg9[%c16_159, %c292_160] : memref<32x432xbf16, #tpu.memory_space<vmem>>, vector<14x16xbf16>
    tpu.vector_store %arg9[%c16_159, %c292_160], %124 {strides = array<i32>} : memref<32x432xbf16, #tpu.memory_space<vmem>>, vector<14x16xbf16>,
    %c1_161 = arith.constant 1 : index
    %c1_162 = arith.constant 1 : index
    %c2_163 = arith.constant 2 : index
    %c0_164 = arith.constant 0 : index
    %126 = vector.load %arg1[%c1_161, %c1_162, %c2_163, %c0_164] : memref<2x2x16x16xf32, #tpu.memory_space<vmem>>, vector<1x1x14x16xf32>
    %127 = vector.shape_cast %126 : vector<1x1x14x16xf32> to vector<14x16xf32>
    %128 = arith.truncf %127 : vector<14x16xf32> to vector<14x16xbf16>
    %c16_165 = arith.constant 16 : index
    %c316_166 = arith.constant 316 : index
    %129 = vector.load %arg9[%c16_165, %c316_166] : memref<32x432xbf16, #tpu.memory_space<vmem>>, vector<14x16xbf16>
    tpu.vector_store %arg9[%c16_165, %c316_166], %128 {strides = array<i32>} : memref<32x432xbf16, #tpu.memory_space<vmem>>, vector<14x16xbf16>,
    %c1_167 = arith.constant 1 : index
    %c0_168 = arith.constant 0 : index
    %c3_169 = arith.constant 3 : index
    %c0_170 = arith.constant 0 : index
    %130 = vector.load %arg1[%c1_167, %c0_168, %c3_169, %c0_170] : memref<2x2x16x16xf32, #tpu.memory_space<vmem>>, vector<1x1x13x16xf32>
    %131 = vector.shape_cast %130 : vector<1x1x13x16xf32> to vector<13x16xf32>
    %132 = arith.truncf %131 : vector<13x16xf32> to vector<13x16xbf16>
    %c16_171 = arith.constant 16 : index
    %c340_172 = arith.constant 340 : index
    %133 = vector.load %arg9[%c16_171, %c340_172] : memref<32x432xbf16, #tpu.memory_space<vmem>>, vector<13x16xbf16>
    tpu.vector_store %arg9[%c16_171, %c340_172], %132 {strides = array<i32>} : memref<32x432xbf16, #tpu.memory_space<vmem>>, vector<13x16xbf16>,
    %c1_173 = arith.constant 1 : index
    %c1_174 = arith.constant 1 : index
    %c3_175 = arith.constant 3 : index
    %c0_176 = arith.constant 0 : index
    %134 = vector.load %arg1[%c1_173, %c1_174, %c3_175, %c0_176] : memref<2x2x16x16xf32, #tpu.memory_space<vmem>>, vector<1x1x13x16xf32>
    %135 = vector.shape_cast %134 : vector<1x1x13x16xf32> to vector<13x16xf32>
    %136 = arith.truncf %135 : vector<13x16xf32> to vector<13x16xbf16>
    %c16_177 = arith.constant 16 : index
    %c364_178 = arith.constant 364 : index
    %137 = vector.load %arg9[%c16_177, %c364_178] : memref<32x432xbf16, #tpu.memory_space<vmem>>, vector<13x16xbf16>
    tpu.vector_store %arg9[%c16_177, %c364_178], %136 {strides = array<i32>} : memref<32x432xbf16, #tpu.memory_space<vmem>>, vector<13x16xbf16>,
    %c1_179 = arith.constant 1 : index
    %c0_180 = arith.constant 0 : index
    %c4_181 = arith.constant 4 : index
    %c0_182 = arith.constant 0 : index
    %138 = vector.load %arg1[%c1_179, %c0_180, %c4_181, %c0_182] : memref<2x2x16x16xf32, #tpu.memory_space<vmem>>, vector<1x1x12x16xf32>
    %139 = vector.shape_cast %138 : vector<1x1x12x16xf32> to vector<12x16xf32>
    %140 = arith.truncf %139 : vector<12x16xf32> to vector<12x16xbf16>
    %c16_183 = arith.constant 16 : index
    %c388_184 = arith.constant 388 : index
    %141 = vector.load %arg9[%c16_183, %c388_184] : memref<32x432xbf16, #tpu.memory_space<vmem>>, vector<12x16xbf16>
    tpu.vector_store %arg9[%c16_183, %c388_184], %140 {strides = array<i32>} : memref<32x432xbf16, #tpu.memory_space<vmem>>, vector<12x16xbf16>,
    %c1_185 = arith.constant 1 : index
    %c1_186 = arith.constant 1 : index
    %c4_187 = arith.constant 4 : index
    %c0_188 = arith.constant 0 : index
    %142 = vector.load %arg1[%c1_185, %c1_186, %c4_187, %c0_188] : memref<2x2x16x16xf32, #tpu.memory_space<vmem>>, vector<1x1x12x16xf32>
    %143 = vector.shape_cast %142 : vector<1x1x12x16xf32> to vector<12x16xf32>
    %144 = arith.truncf %143 : vector<12x16xf32> to vector<12x16xbf16>
    %c16_189 = arith.constant 16 : index
    %c412_190 = arith.constant 412 : index
    %145 = vector.load %arg9[%c16_189, %c412_190] : memref<32x432xbf16, #tpu.memory_space<vmem>>, vector<12x16xbf16>
    tpu.vector_store %arg9[%c16_189, %c412_190], %144 {strides = array<i32>} : memref<32x432xbf16, #tpu.memory_space<vmem>>, vector<12x16xbf16>,
    %c0_191 = arith.constant 0 : index
    %c0_192 = arith.constant 0 : index
    %146 = vector.load %arg9[%c0_191, %c0_192] : memref<32x432xbf16, #tpu.memory_space<vmem>>, vector<32x432xbf16>
    %c0_193 = arith.constant 0 : index
    %c0_194 = arith.constant 0 : index
    %147 = vector.load %arg2[%c0_193, %c0_194] : memref<432x2048xbf16, #tpu.memory_space<vmem>>, vector<432x2048xbf16>
    %cst_195 = arith.constant dense<0.000000e+00> : vector<32x2048xf32>
    %148 = tpu.matmul %146, %147, %cst_195 {dimension_numbers = #tpu.dot_dimension_numbers<[1], [0], [0], [1], [0, 0, 1, 1], [], []>} : vector<32x432xbf16>, vector<432x2048xbf16>, vector<32x2048xf32> -> vector<32x2048xf32>
    %c0_196 = arith.constant 0 : index
    %c0_197 = arith.constant 0 : index
    %149 = vector.load %arg3[%c0_196, %c0_197] : memref<1x2048xf32, #tpu.memory_space<vmem>>, vector<1x2048xf32>
    %150 = vector.broadcast %149 : vector<1x2048xf32> to vector<32x2048xf32>
    %151 = arith.addf %148, %150 : vector<32x2048xf32>
    %cst_198 = arith.constant 0.000000e+00 : f32
    %152 = vector.broadcast %cst_198 : f32 to vector<32x2048xf32>
    %153 = arith.maximumf %151, %152 : vector<32x2048xf32>
    %154 = arith.truncf %153 : vector<32x2048xf32> to vector<32x2048xbf16>
    %155 = vector.extract_strided_slice %154 {offsets = [0, 0], sizes = [32, 128], strides = [1, 1]} : vector<32x2048xbf16> to vector<32x128xbf16>
    %c0_199 = arith.constant 0 : index
    %c0_200 = arith.constant 0 : index
    %156 = vector.load %arg10[%c0_199, %c0_200] : memref<512x128xbf16, #tpu.memory_space<vmem>>, vector<32x128xbf16>
    tpu.vector_store %arg10[%c0_199, %c0_200], %155 {strides = array<i32>} : memref<512x128xbf16, #tpu.memory_space<vmem>>, vector<32x128xbf16>,
    %157 = vector.extract_strided_slice %154 {offsets = [0, 128], sizes = [32, 128], strides = [1, 1]} : vector<32x2048xbf16> to vector<32x128xbf16>
    %c32 = arith.constant 32 : index
    %c0_201 = arith.constant 0 : index
    %158 = vector.load %arg10[%c32, %c0_201] : memref<512x128xbf16, #tpu.memory_space<vmem>>, vector<32x128xbf16>
    tpu.vector_store %arg10[%c32, %c0_201], %157 {strides = array<i32>} : memref<512x128xbf16, #tpu.memory_space<vmem>>, vector<32x128xbf16>,
    %159 = vector.extract_strided_slice %154 {offsets = [0, 256], sizes = [32, 128], strides = [1, 1]} : vector<32x2048xbf16> to vector<32x128xbf16>
    %c64 = arith.constant 64 : index
    %c0_202 = arith.constant 0 : index
    %160 = vector.load %arg10[%c64, %c0_202] : memref<512x128xbf16, #tpu.memory_space<vmem>>, vector<32x128xbf16>
    tpu.vector_store %arg10[%c64, %c0_202], %159 {strides = array<i32>} : memref<512x128xbf16, #tpu.memory_space<vmem>>, vector<32x128xbf16>,
    %161 = vector.extract_strided_slice %154 {offsets = [0, 384], sizes = [32, 128], strides = [1, 1]} : vector<32x2048xbf16> to vector<32x128xbf16>
    %c96 = arith.constant 96 : index
    %c0_203 = arith.constant 0 : index
    %162 = vector.load %arg10[%c96, %c0_203] : memref<512x128xbf16, #tpu.memory_space<vmem>>, vector<32x128xbf16>
    tpu.vector_store %arg10[%c96, %c0_203], %161 {strides = array<i32>} : memref<512x128xbf16, #tpu.memory_space<vmem>>, vector<32x128xbf16>,
    %163 = vector.extract_strided_slice %154 {offsets = [0, 512], sizes = [32, 128], strides = [1, 1]} : vector<32x2048xbf16> to vector<32x128xbf16>
    %c128 = arith.constant 128 : index
    %c0_204 = arith.constant 0 : index
    %164 = vector.load %arg10[%c128, %c0_204] : memref<512x128xbf16, #tpu.memory_space<vmem>>, vector<32x128xbf16>
    tpu.vector_store %arg10[%c128, %c0_204], %163 {strides = array<i32>} : memref<512x128xbf16, #tpu.memory_space<vmem>>, vector<32x128xbf16>,
    %165 = vector.extract_strided_slice %154 {offsets = [0, 640], sizes = [32, 128], strides = [1, 1]} : vector<32x2048xbf16> to vector<32x128xbf16>
    %c160 = arith.constant 160 : index
    %c0_205 = arith.constant 0 : index
    %166 = vector.load %arg10[%c160, %c0_205] : memref<512x128xbf16, #tpu.memory_space<vmem>>, vector<32x128xbf16>
    tpu.vector_store %arg10[%c160, %c0_205], %165 {strides = array<i32>} : memref<512x128xbf16, #tpu.memory_space<vmem>>, vector<32x128xbf16>,
    %167 = vector.extract_strided_slice %154 {offsets = [0, 768], sizes = [32, 128], strides = [1, 1]} : vector<32x2048xbf16> to vector<32x128xbf16>
    %c192 = arith.constant 192 : index
    %c0_206 = arith.constant 0 : index
    %168 = vector.load %arg10[%c192, %c0_206] : memref<512x128xbf16, #tpu.memory_space<vmem>>, vector<32x128xbf16>
    tpu.vector_store %arg10[%c192, %c0_206], %167 {strides = array<i32>} : memref<512x128xbf16, #tpu.memory_space<vmem>>, vector<32x128xbf16>,
    %169 = vector.extract_strided_slice %154 {offsets = [0, 896], sizes = [32, 128], strides = [1, 1]} : vector<32x2048xbf16> to vector<32x128xbf16>
    %c224 = arith.constant 224 : index
    %c0_207 = arith.constant 0 : index
    %170 = vector.load %arg10[%c224, %c0_207] : memref<512x128xbf16, #tpu.memory_space<vmem>>, vector<32x128xbf16>
    tpu.vector_store %arg10[%c224, %c0_207], %169 {strides = array<i32>} : memref<512x128xbf16, #tpu.memory_space<vmem>>, vector<32x128xbf16>,
    %171 = vector.extract_strided_slice %154 {offsets = [0, 1024], sizes = [32, 128], strides = [1, 1]} : vector<32x2048xbf16> to vector<32x128xbf16>
    %c256 = arith.constant 256 : index
    %c0_208 = arith.constant 0 : index
    %172 = vector.load %arg10[%c256, %c0_208] : memref<512x128xbf16, #tpu.memory_space<vmem>>, vector<32x128xbf16>
    tpu.vector_store %arg10[%c256, %c0_208], %171 {strides = array<i32>} : memref<512x128xbf16, #tpu.memory_space<vmem>>, vector<32x128xbf16>,
    %173 = vector.extract_strided_slice %154 {offsets = [0, 1152], sizes = [32, 128], strides = [1, 1]} : vector<32x2048xbf16> to vector<32x128xbf16>
    %c288 = arith.constant 288 : index
    %c0_209 = arith.constant 0 : index
    %174 = vector.load %arg10[%c288, %c0_209] : memref<512x128xbf16, #tpu.memory_space<vmem>>, vector<32x128xbf16>
    tpu.vector_store %arg10[%c288, %c0_209], %173 {strides = array<i32>} : memref<512x128xbf16, #tpu.memory_space<vmem>>, vector<32x128xbf16>,
    %175 = vector.extract_strided_slice %154 {offsets = [0, 1280], sizes = [32, 128], strides = [1, 1]} : vector<32x2048xbf16> to vector<32x128xbf16>
    %c320 = arith.constant 320 : index
    %c0_210 = arith.constant 0 : index
    %176 = vector.load %arg10[%c320, %c0_210] : memref<512x128xbf16, #tpu.memory_space<vmem>>, vector<32x128xbf16>
    tpu.vector_store %arg10[%c320, %c0_210], %175 {strides = array<i32>} : memref<512x128xbf16, #tpu.memory_space<vmem>>, vector<32x128xbf16>,
    %177 = vector.extract_strided_slice %154 {offsets = [0, 1408], sizes = [32, 128], strides = [1, 1]} : vector<32x2048xbf16> to vector<32x128xbf16>
    %c352 = arith.constant 352 : index
    %c0_211 = arith.constant 0 : index
    %178 = vector.load %arg10[%c352, %c0_211] : memref<512x128xbf16, #tpu.memory_space<vmem>>, vector<32x128xbf16>
    tpu.vector_store %arg10[%c352, %c0_211], %177 {strides = array<i32>} : memref<512x128xbf16, #tpu.memory_space<vmem>>, vector<32x128xbf16>,
    %179 = vector.extract_strided_slice %154 {offsets = [0, 1536], sizes = [32, 128], strides = [1, 1]} : vector<32x2048xbf16> to vector<32x128xbf16>
    %c384 = arith.constant 384 : index
    %c0_212 = arith.constant 0 : index
    %180 = vector.load %arg10[%c384, %c0_212] : memref<512x128xbf16, #tpu.memory_space<vmem>>, vector<32x128xbf16>
    tpu.vector_store %arg10[%c384, %c0_212], %179 {strides = array<i32>} : memref<512x128xbf16, #tpu.memory_space<vmem>>, vector<32x128xbf16>,
    %181 = vector.extract_strided_slice %154 {offsets = [0, 1664], sizes = [32, 128], strides = [1, 1]} : vector<32x2048xbf16> to vector<32x128xbf16>
    %c416 = arith.constant 416 : index
    %c0_213 = arith.constant 0 : index
    %182 = vector.load %arg10[%c416, %c0_213] : memref<512x128xbf16, #tpu.memory_space<vmem>>, vector<32x128xbf16>
    tpu.vector_store %arg10[%c416, %c0_213], %181 {strides = array<i32>} : memref<512x128xbf16, #tpu.memory_space<vmem>>, vector<32x128xbf16>,
    %183 = vector.extract_strided_slice %154 {offsets = [0, 1792], sizes = [32, 128], strides = [1, 1]} : vector<32x2048xbf16> to vector<32x128xbf16>
    %c448 = arith.constant 448 : index
    %c0_214 = arith.constant 0 : index
    %184 = vector.load %arg10[%c448, %c0_214] : memref<512x128xbf16, #tpu.memory_space<vmem>>, vector<32x128xbf16>
    tpu.vector_store %arg10[%c448, %c0_214], %183 {strides = array<i32>} : memref<512x128xbf16, #tpu.memory_space<vmem>>, vector<32x128xbf16>,
    %185 = vector.extract_strided_slice %154 {offsets = [0, 1920], sizes = [32, 128], strides = [1, 1]} : vector<32x2048xbf16> to vector<32x128xbf16>
    %c480 = arith.constant 480 : index
    %c0_215 = arith.constant 0 : index
    %186 = vector.load %arg10[%c480, %c0_215] : memref<512x128xbf16, #tpu.memory_space<vmem>>, vector<32x128xbf16>
    tpu.vector_store %arg10[%c480, %c0_215], %185 {strides = array<i32>} : memref<512x128xbf16, #tpu.memory_space<vmem>>, vector<32x128xbf16>,
    %c0_216 = arith.constant 0 : index
    %c0_217 = arith.constant 0 : index
    %187 = vector.load %arg10[%c0_216, %c0_217] : memref<512x128xbf16, #tpu.memory_space<vmem>>, vector<512x128xbf16>
    %c0_218 = arith.constant 0 : index
    %c0_219 = arith.constant 0 : index
    %188 = vector.load %arg4[%c0_218, %c0_219] : memref<128x64xbf16, #tpu.memory_space<vmem>>, vector<128x64xbf16>
    %cst_220 = arith.constant dense<0.000000e+00> : vector<512x64xf32>
    %189 = tpu.matmul %187, %188, %cst_220 {dimension_numbers = #tpu.dot_dimension_numbers<[1], [0], [0], [1], [0, 0, 1, 1], [], []>} : vector<512x128xbf16>, vector<128x64xbf16>, vector<512x64xf32> -> vector<512x64xf32>
    %c0_221 = arith.constant 0 : index
    %c0_222 = arith.constant 0 : index
    %190 = vector.load %arg5[%c0_221, %c0_222] : memref<1x64xf32, #tpu.memory_space<vmem>>, vector<1x64xf32>
    %191 = vector.broadcast %190 : vector<1x64xf32> to vector<512x64xf32>
    %192 = arith.addf %189, %191 : vector<512x64xf32>
    %cst_223 = arith.constant 0.000000e+00 : f32
    %193 = vector.broadcast %cst_223 : f32 to vector<512x64xf32>
    %194 = arith.maximumf %192, %193 : vector<512x64xf32>
    %195 = arith.truncf %194 : vector<512x64xf32> to vector<512x64xbf16>
    %cst_224 = arith.constant 0.000000e+00 : bf16
    %196 = vector.broadcast %cst_224 : bf16 to vector<2x2x1280xbf16>
    %cst_225 = arith.constant 0.000000e+00 : bf16
    %197 = vector.broadcast %cst_225 : bf16 to vector<2x16x128xbf16>
    %c0_226 = arith.constant 0 : index
    %c6 = arith.constant 6 : index
    %c0_227 = arith.constant 0 : index
    %198 = vector.load %arg11[%c0_226, %c6, %c0_227] : memref<2x32x1280xbf16, #tpu.memory_space<vmem>>, vector<2x2x1280xbf16>
    tpu.vector_store %arg11[%c0_226, %c6, %c0_227], %196 {strides = array<i32>} : memref<2x32x1280xbf16, #tpu.memory_space<vmem>>, vector<2x2x1280xbf16>,
    %c0_228 = arith.constant 0 : index
    %c24 = arith.constant 24 : index
    %c0_229 = arith.constant 0 : index
    %199 = vector.load %arg11[%c0_228, %c24, %c0_229] : memref<2x32x1280xbf16, #tpu.memory_space<vmem>>, vector<2x2x1280xbf16>
    tpu.vector_store %arg11[%c0_228, %c24, %c0_229], %196 {strides = array<i32>} : memref<2x32x1280xbf16, #tpu.memory_space<vmem>>, vector<2x2x1280xbf16>,
    %c0_230 = arith.constant 0 : index
    %c8 = arith.constant 8 : index
    %c0_231 = arith.constant 0 : index
    %200 = vector.load %arg11[%c0_230, %c8, %c0_231] : memref<2x32x1280xbf16, #tpu.memory_space<vmem>>, vector<2x16x128xbf16>
    tpu.vector_store %arg11[%c0_230, %c8, %c0_231], %197 {strides = array<i32>} : memref<2x32x1280xbf16, #tpu.memory_space<vmem>>, vector<2x16x128xbf16>,
    %c0_232 = arith.constant 0 : index
    %c8_233 = arith.constant 8 : index
    %c1152 = arith.constant 1152 : index
    %201 = vector.load %arg11[%c0_232, %c8_233, %c1152] : memref<2x32x1280xbf16, #tpu.memory_space<vmem>>, vector<2x16x128xbf16>
    tpu.vector_store %arg11[%c0_232, %c8_233, %c1152], %197 {strides = array<i32>} : memref<2x32x1280xbf16, #tpu.memory_space<vmem>>, vector<2x16x128xbf16>,
    %202 = vector.extract_strided_slice %195 {offsets = [0, 0], sizes = [16, 64], strides = [1, 1]} : vector<512x64xbf16> to vector<16x64xbf16>
    %c0_234 = arith.constant 0 : index
    %c8_235 = arith.constant 8 : index
    %c128_236 = arith.constant 128 : index
    %203 = vector.load %arg11[%c0_234, %c8_235, %c128_236] : memref<2x32x1280xbf16, #tpu.memory_space<vmem>>, vector<1x16x64xbf16>
    %204 = vector.shape_cast %203 : vector<1x16x64xbf16> to vector<16x64xbf16>
    %205 = vector.shape_cast %202 : vector<16x64xbf16> to vector<1x16x64xbf16>
    tpu.vector_store %arg11[%c0_234, %c8_235, %c128_236], %205 {strides = array<i32>} : memref<2x32x1280xbf16, #tpu.memory_space<vmem>>, vector<1x16x64xbf16>,
    %206 = vector.extract_strided_slice %195 {offsets = [16, 0], sizes = [16, 64], strides = [1, 1]} : vector<512x64xbf16> to vector<16x64xbf16>
    %c1_237 = arith.constant 1 : index
    %c8_238 = arith.constant 8 : index
    %c128_239 = arith.constant 128 : index
    %207 = vector.load %arg11[%c1_237, %c8_238, %c128_239] : memref<2x32x1280xbf16, #tpu.memory_space<vmem>>, vector<1x16x64xbf16>
    %208 = vector.shape_cast %207 : vector<1x16x64xbf16> to vector<16x64xbf16>
    %209 = vector.shape_cast %206 : vector<16x64xbf16> to vector<1x16x64xbf16>
    tpu.vector_store %arg11[%c1_237, %c8_238, %c128_239], %209 {strides = array<i32>} : memref<2x32x1280xbf16, #tpu.memory_space<vmem>>, vector<1x16x64xbf16>,
    %210 = vector.extract_strided_slice %195 {offsets = [32, 0], sizes = [16, 64], strides = [1, 1]} : vector<512x64xbf16> to vector<16x64xbf16>
    %c0_240 = arith.constant 0 : index
    %c8_241 = arith.constant 8 : index
    %c192_242 = arith.constant 192 : index
    %211 = vector.load %arg11[%c0_240, %c8_241, %c192_242] : memref<2x32x1280xbf16, #tpu.memory_space<vmem>>, vector<1x16x64xbf16>
    %212 = vector.shape_cast %211 : vector<1x16x64xbf16> to vector<16x64xbf16>
    %213 = vector.shape_cast %210 : vector<16x64xbf16> to vector<1x16x64xbf16>
    tpu.vector_store %arg11[%c0_240, %c8_241, %c192_242], %213 {strides = array<i32>} : memref<2x32x1280xbf16, #tpu.memory_space<vmem>>, vector<1x16x64xbf16>,
    %214 = vector.extract_strided_slice %195 {offsets = [48, 0], sizes = [16, 64], strides = [1, 1]} : vector<512x64xbf16> to vector<16x64xbf16>
    %c1_243 = arith.constant 1 : index
    %c8_244 = arith.constant 8 : index
    %c192_245 = arith.constant 192 : index
    %215 = vector.load %arg11[%c1_243, %c8_244, %c192_245] : memref<2x32x1280xbf16, #tpu.memory_space<vmem>>, vector<1x16x64xbf16>
    %216 = vector.shape_cast %215 : vector<1x16x64xbf16> to vector<16x64xbf16>
    %217 = vector.shape_cast %214 : vector<16x64xbf16> to vector<1x16x64xbf16>
    tpu.vector_store %arg11[%c1_243, %c8_244, %c192_245], %217 {strides = array<i32>} : memref<2x32x1280xbf16, #tpu.memory_space<vmem>>, vector<1x16x64xbf16>,
    %218 = vector.extract_strided_slice %195 {offsets = [64, 0], sizes = [16, 64], strides = [1, 1]} : vector<512x64xbf16> to vector<16x64xbf16>
    %c0_246 = arith.constant 0 : index
    %c8_247 = arith.constant 8 : index
    %c256_248 = arith.constant 256 : index
    %219 = vector.load %arg11[%c0_246, %c8_247, %c256_248] : memref<2x32x1280xbf16, #tpu.memory_space<vmem>>, vector<1x16x64xbf16>
    %220 = vector.shape_cast %219 : vector<1x16x64xbf16> to vector<16x64xbf16>
    %221 = vector.shape_cast %218 : vector<16x64xbf16> to vector<1x16x64xbf16>
    tpu.vector_store %arg11[%c0_246, %c8_247, %c256_248], %221 {strides = array<i32>} : memref<2x32x1280xbf16, #tpu.memory_space<vmem>>, vector<1x16x64xbf16>,
    %222 = vector.extract_strided_slice %195 {offsets = [80, 0], sizes = [16, 64], strides = [1, 1]} : vector<512x64xbf16> to vector<16x64xbf16>
    %c1_249 = arith.constant 1 : index
    %c8_250 = arith.constant 8 : index
    %c256_251 = arith.constant 256 : index
    %223 = vector.load %arg11[%c1_249, %c8_250, %c256_251] : memref<2x32x1280xbf16, #tpu.memory_space<vmem>>, vector<1x16x64xbf16>
    %224 = vector.shape_cast %223 : vector<1x16x64xbf16> to vector<16x64xbf16>
    %225 = vector.shape_cast %222 : vector<16x64xbf16> to vector<1x16x64xbf16>
    tpu.vector_store %arg11[%c1_249, %c8_250, %c256_251], %225 {strides = array<i32>} : memref<2x32x1280xbf16, #tpu.memory_space<vmem>>, vector<1x16x64xbf16>,
    %226 = vector.extract_strided_slice %195 {offsets = [96, 0], sizes = [16, 64], strides = [1, 1]} : vector<512x64xbf16> to vector<16x64xbf16>
    %c0_252 = arith.constant 0 : index
    %c8_253 = arith.constant 8 : index
    %c320_254 = arith.constant 320 : index
    %227 = vector.load %arg11[%c0_252, %c8_253, %c320_254] : memref<2x32x1280xbf16, #tpu.memory_space<vmem>>, vector<1x16x64xbf16>
    %228 = vector.shape_cast %227 : vector<1x16x64xbf16> to vector<16x64xbf16>
    %229 = vector.shape_cast %226 : vector<16x64xbf16> to vector<1x16x64xbf16>
    tpu.vector_store %arg11[%c0_252, %c8_253, %c320_254], %229 {strides = array<i32>} : memref<2x32x1280xbf16, #tpu.memory_space<vmem>>, vector<1x16x64xbf16>,
    %230 = vector.extract_strided_slice %195 {offsets = [112, 0], sizes = [16, 64], strides = [1, 1]} : vector<512x64xbf16> to vector<16x64xbf16>
    %c1_255 = arith.constant 1 : index
    %c8_256 = arith.constant 8 : index
    %c320_257 = arith.constant 320 : index
    %231 = vector.load %arg11[%c1_255, %c8_256, %c320_257] : memref<2x32x1280xbf16, #tpu.memory_space<vmem>>, vector<1x16x64xbf16>
    %232 = vector.shape_cast %231 : vector<1x16x64xbf16> to vector<16x64xbf16>
    %233 = vector.shape_cast %230 : vector<16x64xbf16> to vector<1x16x64xbf16>
    tpu.vector_store %arg11[%c1_255, %c8_256, %c320_257], %233 {strides = array<i32>} : memref<2x32x1280xbf16, #tpu.memory_space<vmem>>, vector<1x16x64xbf16>,
    %234 = vector.extract_strided_slice %195 {offsets = [128, 0], sizes = [16, 64], strides = [1, 1]} : vector<512x64xbf16> to vector<16x64xbf16>
    %c0_258 = arith.constant 0 : index
    %c8_259 = arith.constant 8 : index
    %c384_260 = arith.constant 384 : index
    %235 = vector.load %arg11[%c0_258, %c8_259, %c384_260] : memref<2x32x1280xbf16, #tpu.memory_space<vmem>>, vector<1x16x64xbf16>
    %236 = vector.shape_cast %235 : vector<1x16x64xbf16> to vector<16x64xbf16>
    %237 = vector.shape_cast %234 : vector<16x64xbf16> to vector<1x16x64xbf16>
    tpu.vector_store %arg11[%c0_258, %c8_259, %c384_260], %237 {strides = array<i32>} : memref<2x32x1280xbf16, #tpu.memory_space<vmem>>, vector<1x16x64xbf16>,
    %238 = vector.extract_strided_slice %195 {offsets = [144, 0], sizes = [16, 64], strides = [1, 1]} : vector<512x64xbf16> to vector<16x64xbf16>
    %c1_261 = arith.constant 1 : index
    %c8_262 = arith.constant 8 : index
    %c384_263 = arith.constant 384 : index
    %239 = vector.load %arg11[%c1_261, %c8_262, %c384_263] : memref<2x32x1280xbf16, #tpu.memory_space<vmem>>, vector<1x16x64xbf16>
    %240 = vector.shape_cast %239 : vector<1x16x64xbf16> to vector<16x64xbf16>
    %241 = vector.shape_cast %238 : vector<16x64xbf16> to vector<1x16x64xbf16>
    tpu.vector_store %arg11[%c1_261, %c8_262, %c384_263], %241 {strides = array<i32>} : memref<2x32x1280xbf16, #tpu.memory_space<vmem>>, vector<1x16x64xbf16>,
    %242 = vector.extract_strided_slice %195 {offsets = [160, 0], sizes = [16, 64], strides = [1, 1]} : vector<512x64xbf16> to vector<16x64xbf16>
    %c0_264 = arith.constant 0 : index
    %c8_265 = arith.constant 8 : index
    %c448_266 = arith.constant 448 : index
    %243 = vector.load %arg11[%c0_264, %c8_265, %c448_266] : memref<2x32x1280xbf16, #tpu.memory_space<vmem>>, vector<1x16x64xbf16>
    %244 = vector.shape_cast %243 : vector<1x16x64xbf16> to vector<16x64xbf16>
    %245 = vector.shape_cast %242 : vector<16x64xbf16> to vector<1x16x64xbf16>
    tpu.vector_store %arg11[%c0_264, %c8_265, %c448_266], %245 {strides = array<i32>} : memref<2x32x1280xbf16, #tpu.memory_space<vmem>>, vector<1x16x64xbf16>,
    %246 = vector.extract_strided_slice %195 {offsets = [176, 0], sizes = [16, 64], strides = [1, 1]} : vector<512x64xbf16> to vector<16x64xbf16>
    %c1_267 = arith.constant 1 : index
    %c8_268 = arith.constant 8 : index
    %c448_269 = arith.constant 448 : index
    %247 = vector.load %arg11[%c1_267, %c8_268, %c448_269] : memref<2x32x1280xbf16, #tpu.memory_space<vmem>>, vector<1x16x64xbf16>
    %248 = vector.shape_cast %247 : vector<1x16x64xbf16> to vector<16x64xbf16>
    %249 = vector.shape_cast %246 : vector<16x64xbf16> to vector<1x16x64xbf16>
    tpu.vector_store %arg11[%c1_267, %c8_268, %c448_269], %249 {strides = array<i32>} : memref<2x32x1280xbf16, #tpu.memory_space<vmem>>, vector<1x16x64xbf16>,
    %250 = vector.extract_strided_slice %195 {offsets = [192, 0], sizes = [16, 64], strides = [1, 1]} : vector<512x64xbf16> to vector<16x64xbf16>
    %c0_270 = arith.constant 0 : index
    %c8_271 = arith.constant 8 : index
    %c512 = arith.constant 512 : index
    %251 = vector.load %arg11[%c0_270, %c8_271, %c512] : memref<2x32x1280xbf16, #tpu.memory_space<vmem>>, vector<1x16x64xbf16>
    %252 = vector.shape_cast %251 : vector<1x16x64xbf16> to vector<16x64xbf16>
    %253 = vector.shape_cast %250 : vector<16x64xbf16> to vector<1x16x64xbf16>
    tpu.vector_store %arg11[%c0_270, %c8_271, %c512], %253 {strides = array<i32>} : memref<2x32x1280xbf16, #tpu.memory_space<vmem>>, vector<1x16x64xbf16>,
    %254 = vector.extract_strided_slice %195 {offsets = [208, 0], sizes = [16, 64], strides = [1, 1]} : vector<512x64xbf16> to vector<16x64xbf16>
    %c1_272 = arith.constant 1 : index
    %c8_273 = arith.constant 8 : index
    %c512_274 = arith.constant 512 : index
    %255 = vector.load %arg11[%c1_272, %c8_273, %c512_274] : memref<2x32x1280xbf16, #tpu.memory_space<vmem>>, vector<1x16x64xbf16>
    %256 = vector.shape_cast %255 : vector<1x16x64xbf16> to vector<16x64xbf16>
    %257 = vector.shape_cast %254 : vector<16x64xbf16> to vector<1x16x64xbf16>
    tpu.vector_store %arg11[%c1_272, %c8_273, %c512_274], %257 {strides = array<i32>} : memref<2x32x1280xbf16, #tpu.memory_space<vmem>>, vector<1x16x64xbf16>,
    %258 = vector.extract_strided_slice %195 {offsets = [224, 0], sizes = [16, 64], strides = [1, 1]} : vector<512x64xbf16> to vector<16x64xbf16>
    %c0_275 = arith.constant 0 : index
    %c8_276 = arith.constant 8 : index
    %c576 = arith.constant 576 : index
    %259 = vector.load %arg11[%c0_275, %c8_276, %c576] : memref<2x32x1280xbf16, #tpu.memory_space<vmem>>, vector<1x16x64xbf16>
    %260 = vector.shape_cast %259 : vector<1x16x64xbf16> to vector<16x64xbf16>
    %261 = vector.shape_cast %258 : vector<16x64xbf16> to vector<1x16x64xbf16>
    tpu.vector_store %arg11[%c0_275, %c8_276, %c576], %261 {strides = array<i32>} : memref<2x32x1280xbf16, #tpu.memory_space<vmem>>, vector<1x16x64xbf16>,
    %262 = vector.extract_strided_slice %195 {offsets = [240, 0], sizes = [16, 64], strides = [1, 1]} : vector<512x64xbf16> to vector<16x64xbf16>
    %c1_277 = arith.constant 1 : index
    %c8_278 = arith.constant 8 : index
    %c576_279 = arith.constant 576 : index
    %263 = vector.load %arg11[%c1_277, %c8_278, %c576_279] : memref<2x32x1280xbf16, #tpu.memory_space<vmem>>, vector<1x16x64xbf16>
    %264 = vector.shape_cast %263 : vector<1x16x64xbf16> to vector<16x64xbf16>
    %265 = vector.shape_cast %262 : vector<16x64xbf16> to vector<1x16x64xbf16>
    tpu.vector_store %arg11[%c1_277, %c8_278, %c576_279], %265 {strides = array<i32>} : memref<2x32x1280xbf16, #tpu.memory_space<vmem>>, vector<1x16x64xbf16>,
    %266 = vector.extract_strided_slice %195 {offsets = [256, 0], sizes = [16, 64], strides = [1, 1]} : vector<512x64xbf16> to vector<16x64xbf16>
    %c0_280 = arith.constant 0 : index
    %c8_281 = arith.constant 8 : index
    %c640 = arith.constant 640 : index
    %267 = vector.load %arg11[%c0_280, %c8_281, %c640] : memref<2x32x1280xbf16, #tpu.memory_space<vmem>>, vector<1x16x64xbf16>
    %268 = vector.shape_cast %267 : vector<1x16x64xbf16> to vector<16x64xbf16>
    %269 = vector.shape_cast %266 : vector<16x64xbf16> to vector<1x16x64xbf16>
    tpu.vector_store %arg11[%c0_280, %c8_281, %c640], %269 {strides = array<i32>} : memref<2x32x1280xbf16, #tpu.memory_space<vmem>>, vector<1x16x64xbf16>,
    %270 = vector.extract_strided_slice %195 {offsets = [272, 0], sizes = [16, 64], strides = [1, 1]} : vector<512x64xbf16> to vector<16x64xbf16>
    %c1_282 = arith.constant 1 : index
    %c8_283 = arith.constant 8 : index
    %c640_284 = arith.constant 640 : index
    %271 = vector.load %arg11[%c1_282, %c8_283, %c640_284] : memref<2x32x1280xbf16, #tpu.memory_space<vmem>>, vector<1x16x64xbf16>
    %272 = vector.shape_cast %271 : vector<1x16x64xbf16> to vector<16x64xbf16>
    %273 = vector.shape_cast %270 : vector<16x64xbf16> to vector<1x16x64xbf16>
    tpu.vector_store %arg11[%c1_282, %c8_283, %c640_284], %273 {strides = array<i32>} : memref<2x32x1280xbf16, #tpu.memory_space<vmem>>, vector<1x16x64xbf16>,
    %274 = vector.extract_strided_slice %195 {offsets = [288, 0], sizes = [16, 64], strides = [1, 1]} : vector<512x64xbf16> to vector<16x64xbf16>
    %c0_285 = arith.constant 0 : index
    %c8_286 = arith.constant 8 : index
    %c704 = arith.constant 704 : index
    %275 = vector.load %arg11[%c0_285, %c8_286, %c704] : memref<2x32x1280xbf16, #tpu.memory_space<vmem>>, vector<1x16x64xbf16>
    %276 = vector.shape_cast %275 : vector<1x16x64xbf16> to vector<16x64xbf16>
    %277 = vector.shape_cast %274 : vector<16x64xbf16> to vector<1x16x64xbf16>
    tpu.vector_store %arg11[%c0_285, %c8_286, %c704], %277 {strides = array<i32>} : memref<2x32x1280xbf16, #tpu.memory_space<vmem>>, vector<1x16x64xbf16>,
    %278 = vector.extract_strided_slice %195 {offsets = [304, 0], sizes = [16, 64], strides = [1, 1]} : vector<512x64xbf16> to vector<16x64xbf16>
    %c1_287 = arith.constant 1 : index
    %c8_288 = arith.constant 8 : index
    %c704_289 = arith.constant 704 : index
    %279 = vector.load %arg11[%c1_287, %c8_288, %c704_289] : memref<2x32x1280xbf16, #tpu.memory_space<vmem>>, vector<1x16x64xbf16>
    %280 = vector.shape_cast %279 : vector<1x16x64xbf16> to vector<16x64xbf16>
    %281 = vector.shape_cast %278 : vector<16x64xbf16> to vector<1x16x64xbf16>
    tpu.vector_store %arg11[%c1_287, %c8_288, %c704_289], %281 {strides = array<i32>} : memref<2x32x1280xbf16, #tpu.memory_space<vmem>>, vector<1x16x64xbf16>,
    %282 = vector.extract_strided_slice %195 {offsets = [320, 0], sizes = [16, 64], strides = [1, 1]} : vector<512x64xbf16> to vector<16x64xbf16>
    %c0_290 = arith.constant 0 : index
    %c8_291 = arith.constant 8 : index
    %c768 = arith.constant 768 : index
    %283 = vector.load %arg11[%c0_290, %c8_291, %c768] : memref<2x32x1280xbf16, #tpu.memory_space<vmem>>, vector<1x16x64xbf16>
    %284 = vector.shape_cast %283 : vector<1x16x64xbf16> to vector<16x64xbf16>
    %285 = vector.shape_cast %282 : vector<16x64xbf16> to vector<1x16x64xbf16>
    tpu.vector_store %arg11[%c0_290, %c8_291, %c768], %285 {strides = array<i32>} : memref<2x32x1280xbf16, #tpu.memory_space<vmem>>, vector<1x16x64xbf16>,
    %286 = vector.extract_strided_slice %195 {offsets = [336, 0], sizes = [16, 64], strides = [1, 1]} : vector<512x64xbf16> to vector<16x64xbf16>
    %c1_292 = arith.constant 1 : index
    %c8_293 = arith.constant 8 : index
    %c768_294 = arith.constant 768 : index
    %287 = vector.load %arg11[%c1_292, %c8_293, %c768_294] : memref<2x32x1280xbf16, #tpu.memory_space<vmem>>, vector<1x16x64xbf16>
    %288 = vector.shape_cast %287 : vector<1x16x64xbf16> to vector<16x64xbf16>
    %289 = vector.shape_cast %286 : vector<16x64xbf16> to vector<1x16x64xbf16>
    tpu.vector_store %arg11[%c1_292, %c8_293, %c768_294], %289 {strides = array<i32>} : memref<2x32x1280xbf16, #tpu.memory_space<vmem>>, vector<1x16x64xbf16>,
    %290 = vector.extract_strided_slice %195 {offsets = [352, 0], sizes = [16, 64], strides = [1, 1]} : vector<512x64xbf16> to vector<16x64xbf16>
    %c0_295 = arith.constant 0 : index
    %c8_296 = arith.constant 8 : index
    %c832 = arith.constant 832 : index
    %291 = vector.load %arg11[%c0_295, %c8_296, %c832] : memref<2x32x1280xbf16, #tpu.memory_space<vmem>>, vector<1x16x64xbf16>
    %292 = vector.shape_cast %291 : vector<1x16x64xbf16> to vector<16x64xbf16>
    %293 = vector.shape_cast %290 : vector<16x64xbf16> to vector<1x16x64xbf16>
    tpu.vector_store %arg11[%c0_295, %c8_296, %c832], %293 {strides = array<i32>} : memref<2x32x1280xbf16, #tpu.memory_space<vmem>>, vector<1x16x64xbf16>,
    %294 = vector.extract_strided_slice %195 {offsets = [368, 0], sizes = [16, 64], strides = [1, 1]} : vector<512x64xbf16> to vector<16x64xbf16>
    %c1_297 = arith.constant 1 : index
    %c8_298 = arith.constant 8 : index
    %c832_299 = arith.constant 832 : index
    %295 = vector.load %arg11[%c1_297, %c8_298, %c832_299] : memref<2x32x1280xbf16, #tpu.memory_space<vmem>>, vector<1x16x64xbf16>
    %296 = vector.shape_cast %295 : vector<1x16x64xbf16> to vector<16x64xbf16>
    %297 = vector.shape_cast %294 : vector<16x64xbf16> to vector<1x16x64xbf16>
    tpu.vector_store %arg11[%c1_297, %c8_298, %c832_299], %297 {strides = array<i32>} : memref<2x32x1280xbf16, #tpu.memory_space<vmem>>, vector<1x16x64xbf16>,
    %298 = vector.extract_strided_slice %195 {offsets = [384, 0], sizes = [16, 64], strides = [1, 1]} : vector<512x64xbf16> to vector<16x64xbf16>
    %c0_300 = arith.constant 0 : index
    %c8_301 = arith.constant 8 : index
    %c896 = arith.constant 896 : index
    %299 = vector.load %arg11[%c0_300, %c8_301, %c896] : memref<2x32x1280xbf16, #tpu.memory_space<vmem>>, vector<1x16x64xbf16>
    %300 = vector.shape_cast %299 : vector<1x16x64xbf16> to vector<16x64xbf16>
    %301 = vector.shape_cast %298 : vector<16x64xbf16> to vector<1x16x64xbf16>
    tpu.vector_store %arg11[%c0_300, %c8_301, %c896], %301 {strides = array<i32>} : memref<2x32x1280xbf16, #tpu.memory_space<vmem>>, vector<1x16x64xbf16>,
    %302 = vector.extract_strided_slice %195 {offsets = [400, 0], sizes = [16, 64], strides = [1, 1]} : vector<512x64xbf16> to vector<16x64xbf16>
    %c1_302 = arith.constant 1 : index
    %c8_303 = arith.constant 8 : index
    %c896_304 = arith.constant 896 : index
    %303 = vector.load %arg11[%c1_302, %c8_303, %c896_304] : memref<2x32x1280xbf16, #tpu.memory_space<vmem>>, vector<1x16x64xbf16>
    %304 = vector.shape_cast %303 : vector<1x16x64xbf16> to vector<16x64xbf16>
    %305 = vector.shape_cast %302 : vector<16x64xbf16> to vector<1x16x64xbf16>
    tpu.vector_store %arg11[%c1_302, %c8_303, %c896_304], %305 {strides = array<i32>} : memref<2x32x1280xbf16, #tpu.memory_space<vmem>>, vector<1x16x64xbf16>,
    %306 = vector.extract_strided_slice %195 {offsets = [416, 0], sizes = [16, 64], strides = [1, 1]} : vector<512x64xbf16> to vector<16x64xbf16>
    %c0_305 = arith.constant 0 : index
    %c8_306 = arith.constant 8 : index
    %c960 = arith.constant 960 : index
    %307 = vector.load %arg11[%c0_305, %c8_306, %c960] : memref<2x32x1280xbf16, #tpu.memory_space<vmem>>, vector<1x16x64xbf16>
    %308 = vector.shape_cast %307 : vector<1x16x64xbf16> to vector<16x64xbf16>
    %309 = vector.shape_cast %306 : vector<16x64xbf16> to vector<1x16x64xbf16>
    tpu.vector_store %arg11[%c0_305, %c8_306, %c960], %309 {strides = array<i32>} : memref<2x32x1280xbf16, #tpu.memory_space<vmem>>, vector<1x16x64xbf16>,
    %310 = vector.extract_strided_slice %195 {offsets = [432, 0], sizes = [16, 64], strides = [1, 1]} : vector<512x64xbf16> to vector<16x64xbf16>
    %c1_307 = arith.constant 1 : index
    %c8_308 = arith.constant 8 : index
    %c960_309 = arith.constant 960 : index
    %311 = vector.load %arg11[%c1_307, %c8_308, %c960_309] : memref<2x32x1280xbf16, #tpu.memory_space<vmem>>, vector<1x16x64xbf16>
    %312 = vector.shape_cast %311 : vector<1x16x64xbf16> to vector<16x64xbf16>
    %313 = vector.shape_cast %310 : vector<16x64xbf16> to vector<1x16x64xbf16>
    tpu.vector_store %arg11[%c1_307, %c8_308, %c960_309], %313 {strides = array<i32>} : memref<2x32x1280xbf16, #tpu.memory_space<vmem>>, vector<1x16x64xbf16>,
    %314 = vector.extract_strided_slice %195 {offsets = [448, 0], sizes = [16, 64], strides = [1, 1]} : vector<512x64xbf16> to vector<16x64xbf16>
    %c0_310 = arith.constant 0 : index
    %c8_311 = arith.constant 8 : index
    %c1024 = arith.constant 1024 : index
    %315 = vector.load %arg11[%c0_310, %c8_311, %c1024] : memref<2x32x1280xbf16, #tpu.memory_space<vmem>>, vector<1x16x64xbf16>
    %316 = vector.shape_cast %315 : vector<1x16x64xbf16> to vector<16x64xbf16>
    %317 = vector.shape_cast %314 : vector<16x64xbf16> to vector<1x16x64xbf16>
    tpu.vector_store %arg11[%c0_310, %c8_311, %c1024], %317 {strides = array<i32>} : memref<2x32x1280xbf16, #tpu.memory_space<vmem>>, vector<1x16x64xbf16>,
    %318 = vector.extract_strided_slice %195 {offsets = [464, 0], sizes = [16, 64], strides = [1, 1]} : vector<512x64xbf16> to vector<16x64xbf16>
    %c1_312 = arith.constant 1 : index
    %c8_313 = arith.constant 8 : index
    %c1024_314 = arith.constant 1024 : index
    %319 = vector.load %arg11[%c1_312, %c8_313, %c1024_314] : memref<2x32x1280xbf16, #tpu.memory_space<vmem>>, vector<1x16x64xbf16>
    %320 = vector.shape_cast %319 : vector<1x16x64xbf16> to vector<16x64xbf16>
    %321 = vector.shape_cast %318 : vector<16x64xbf16> to vector<1x16x64xbf16>
    tpu.vector_store %arg11[%c1_312, %c8_313, %c1024_314], %321 {strides = array<i32>} : memref<2x32x1280xbf16, #tpu.memory_space<vmem>>, vector<1x16x64xbf16>,
    %322 = vector.extract_strided_slice %195 {offsets = [480, 0], sizes = [16, 64], strides = [1, 1]} : vector<512x64xbf16> to vector<16x64xbf16>
    %c0_315 = arith.constant 0 : index
    %c8_316 = arith.constant 8 : index
    %c1088 = arith.constant 1088 : index
    %323 = vector.load %arg11[%c0_315, %c8_316, %c1088] : memref<2x32x1280xbf16, #tpu.memory_space<vmem>>, vector<1x16x64xbf16>
    %324 = vector.shape_cast %323 : vector<1x16x64xbf16> to vector<16x64xbf16>
    %325 = vector.shape_cast %322 : vector<16x64xbf16> to vector<1x16x64xbf16>
    tpu.vector_store %arg11[%c0_315, %c8_316, %c1088], %325 {strides = array<i32>} : memref<2x32x1280xbf16, #tpu.memory_space<vmem>>, vector<1x16x64xbf16>,
    %326 = vector.extract_strided_slice %195 {offsets = [496, 0], sizes = [16, 64], strides = [1, 1]} : vector<512x64xbf16> to vector<16x64xbf16>
    %c1_317 = arith.constant 1 : index
    %c8_318 = arith.constant 8 : index
    %c1088_319 = arith.constant 1088 : index
    %327 = vector.load %arg11[%c1_317, %c8_318, %c1088_319] : memref<2x32x1280xbf16, #tpu.memory_space<vmem>>, vector<1x16x64xbf16>
    %328 = vector.shape_cast %327 : vector<1x16x64xbf16> to vector<16x64xbf16>
    %329 = vector.shape_cast %326 : vector<16x64xbf16> to vector<1x16x64xbf16>
    tpu.vector_store %arg11[%c1_317, %c8_318, %c1088_319], %329 {strides = array<i32>} : memref<2x32x1280xbf16, #tpu.memory_space<vmem>>, vector<1x16x64xbf16>,
    %cst_320 = arith.constant 0.000000e+00 : f32
    %330 = vector.broadcast %cst_320 : f32 to vector<32x32xf32>
    %c0_321 = arith.constant 0 : index
    %c6_322 = arith.constant 6 : index
    %c0_323 = arith.constant 0 : index
    %331 = vector.load %arg11[%c0_321, %c6_322, %c0_323] : memref<2x32x1280xbf16, #tpu.memory_space<vmem>>, vector<1x16x1280xbf16>
    %332 = vector.shape_cast %331 : vector<1x16x1280xbf16> to vector<16x1280xbf16>
    %c1_324 = arith.constant 1 : index
    %c6_325 = arith.constant 6 : index
    %c0_326 = arith.constant 0 : index
    %333 = vector.load %arg11[%c1_324, %c6_325, %c0_326] : memref<2x32x1280xbf16, #tpu.memory_space<vmem>>, vector<1x16x1280xbf16>
    %334 = vector.shape_cast %333 : vector<1x16x1280xbf16> to vector<16x1280xbf16>
    %335 = tpu.concatenate %332, %334 in 0 : vector<16x1280xbf16>, vector<16x1280xbf16> -> vector<32x1280xbf16>
    %c0_327 = arith.constant 0 : index
    %c0_328 = arith.constant 0 : index
    %c0_329 = arith.constant 0 : index
    %336 = vector.load %arg6[%c0_327, %c0_328, %c0_329] : memref<5x1280x32xbf16, #tpu.memory_space<vmem>>, vector<1x1280x32xbf16>
    %337 = vector.shape_cast %336 : vector<1x1280x32xbf16> to vector<1280x32xbf16>
    %cst_330 = arith.constant dense<0.000000e+00> : vector<32x32xf32>
    %338 = tpu.matmul %335, %337, %cst_330 {dimension_numbers = #tpu.dot_dimension_numbers<[1], [0], [0], [1], [0, 0, 1, 1], [], []>} : vector<32x1280xbf16>, vector<1280x32xbf16>, vector<32x32xf32> -> vector<32x32xf32>
    %339 = arith.addf %330, %338 : vector<32x32xf32>
    %c0_331 = arith.constant 0 : index
    %c7 = arith.constant 7 : index
    %c0_332 = arith.constant 0 : index
    %340 = vector.load %arg11[%c0_331, %c7, %c0_332] : memref<2x32x1280xbf16, #tpu.memory_space<vmem>>, vector<1x16x1280xbf16>
    %341 = vector.shape_cast %340 : vector<1x16x1280xbf16> to vector<16x1280xbf16>
    %c1_333 = arith.constant 1 : index
    %c7_334 = arith.constant 7 : index
    %c0_335 = arith.constant 0 : index
    %342 = vector.load %arg11[%c1_333, %c7_334, %c0_335] : memref<2x32x1280xbf16, #tpu.memory_space<vmem>>, vector<1x16x1280xbf16>
    %343 = vector.shape_cast %342 : vector<1x16x1280xbf16> to vector<16x1280xbf16>
    %344 = tpu.concatenate %341, %343 in 0 : vector<16x1280xbf16>, vector<16x1280xbf16> -> vector<32x1280xbf16>
    %c1_336 = arith.constant 1 : index
    %c0_337 = arith.constant 0 : index
    %c0_338 = arith.constant 0 : index
    %345 = vector.load %arg6[%c1_336, %c0_337, %c0_338] : memref<5x1280x32xbf16, #tpu.memory_space<vmem>>, vector<1x1280x32xbf16>
    %346 = vector.shape_cast %345 : vector<1x1280x32xbf16> to vector<1280x32xbf16>
    %cst_339 = arith.constant dense<0.000000e+00> : vector<32x32xf32>
    %347 = tpu.matmul %344, %346, %cst_339 {dimension_numbers = #tpu.dot_dimension_numbers<[1], [0], [0], [1], [0, 0, 1, 1], [], []>} : vector<32x1280xbf16>, vector<1280x32xbf16>, vector<32x32xf32> -> vector<32x32xf32>
    %348 = arith.addf %339, %347 : vector<32x32xf32>
    %c0_340 = arith.constant 0 : index
    %c8_341 = arith.constant 8 : index
    %c0_342 = arith.constant 0 : index
    %349 = vector.load %arg11[%c0_340, %c8_341, %c0_342] : memref<2x32x1280xbf16, #tpu.memory_space<vmem>>, vector<1x16x1280xbf16>
    %350 = vector.shape_cast %349 : vector<1x16x1280xbf16> to vector<16x1280xbf16>
    %c1_343 = arith.constant 1 : index
    %c8_344 = arith.constant 8 : index
    %c0_345 = arith.constant 0 : index
    %351 = vector.load %arg11[%c1_343, %c8_344, %c0_345] : memref<2x32x1280xbf16, #tpu.memory_space<vmem>>, vector<1x16x1280xbf16>
    %352 = vector.shape_cast %351 : vector<1x16x1280xbf16> to vector<16x1280xbf16>
    %353 = tpu.concatenate %350, %352 in 0 : vector<16x1280xbf16>, vector<16x1280xbf16> -> vector<32x1280xbf16>
    %c2_346 = arith.constant 2 : index
    %c0_347 = arith.constant 0 : index
    %c0_348 = arith.constant 0 : index
    %354 = vector.load %arg6[%c2_346, %c0_347, %c0_348] : memref<5x1280x32xbf16, #tpu.memory_space<vmem>>, vector<1x1280x32xbf16>
    %355 = vector.shape_cast %354 : vector<1x1280x32xbf16> to vector<1280x32xbf16>
    %cst_349 = arith.constant dense<0.000000e+00> : vector<32x32xf32>
    %356 = tpu.matmul %353, %355, %cst_349 {dimension_numbers = #tpu.dot_dimension_numbers<[1], [0], [0], [1], [0, 0, 1, 1], [], []>} : vector<32x1280xbf16>, vector<1280x32xbf16>, vector<32x32xf32> -> vector<32x32xf32>
    %357 = arith.addf %348, %356 : vector<32x32xf32>
    %c0_350 = arith.constant 0 : index
    %c9 = arith.constant 9 : index
    %c0_351 = arith.constant 0 : index
    %358 = vector.load %arg11[%c0_350, %c9, %c0_351] : memref<2x32x1280xbf16, #tpu.memory_space<vmem>>, vector<1x16x1280xbf16>
    %359 = vector.shape_cast %358 : vector<1x16x1280xbf16> to vector<16x1280xbf16>
    %c1_352 = arith.constant 1 : index
    %c9_353 = arith.constant 9 : index
    %c0_354 = arith.constant 0 : index
    %360 = vector.load %arg11[%c1_352, %c9_353, %c0_354] : memref<2x32x1280xbf16, #tpu.memory_space<vmem>>, vector<1x16x1280xbf16>
    %361 = vector.shape_cast %360 : vector<1x16x1280xbf16> to vector<16x1280xbf16>
    %362 = tpu.concatenate %359, %361 in 0 : vector<16x1280xbf16>, vector<16x1280xbf16> -> vector<32x1280xbf16>
    %c3_355 = arith.constant 3 : index
    %c0_356 = arith.constant 0 : index
    %c0_357 = arith.constant 0 : index
    %363 = vector.load %arg6[%c3_355, %c0_356, %c0_357] : memref<5x1280x32xbf16, #tpu.memory_space<vmem>>, vector<1x1280x32xbf16>
    %364 = vector.shape_cast %363 : vector<1x1280x32xbf16> to vector<1280x32xbf16>
    %cst_358 = arith.constant dense<0.000000e+00> : vector<32x32xf32>
    %365 = tpu.matmul %362, %364, %cst_358 {dimension_numbers = #tpu.dot_dimension_numbers<[1], [0], [0], [1], [0, 0, 1, 1], [], []>} : vector<32x1280xbf16>, vector<1280x32xbf16>, vector<32x32xf32> -> vector<32x32xf32>
    %366 = arith.addf %357, %365 : vector<32x32xf32>
    %c0_359 = arith.constant 0 : index
    %c10 = arith.constant 10 : index
    %c0_360 = arith.constant 0 : index
    %367 = vector.load %arg11[%c0_359, %c10, %c0_360] : memref<2x32x1280xbf16, #tpu.memory_space<vmem>>, vector<1x16x1280xbf16>
    %368 = vector.shape_cast %367 : vector<1x16x1280xbf16> to vector<16x1280xbf16>
    %c1_361 = arith.constant 1 : index
    %c10_362 = arith.constant 10 : index
    %c0_363 = arith.constant 0 : index
    %369 = vector.load %arg11[%c1_361, %c10_362, %c0_363] : memref<2x32x1280xbf16, #tpu.memory_space<vmem>>, vector<1x16x1280xbf16>
    %370 = vector.shape_cast %369 : vector<1x16x1280xbf16> to vector<16x1280xbf16>
    %371 = tpu.concatenate %368, %370 in 0 : vector<16x1280xbf16>, vector<16x1280xbf16> -> vector<32x1280xbf16>
    %c4_364 = arith.constant 4 : index
    %c0_365 = arith.constant 0 : index
    %c0_366 = arith.constant 0 : index
    %372 = vector.load %arg6[%c4_364, %c0_365, %c0_366] : memref<5x1280x32xbf16, #tpu.memory_space<vmem>>, vector<1x1280x32xbf16>
    %373 = vector.shape_cast %372 : vector<1x1280x32xbf16> to vector<1280x32xbf16>
    %cst_367 = arith.constant dense<0.000000e+00> : vector<32x32xf32>
    %374 = tpu.matmul %371, %373, %cst_367 {dimension_numbers = #tpu.dot_dimension_numbers<[1], [0], [0], [1], [0, 0, 1, 1], [], []>} : vector<32x1280xbf16>, vector<1280x32xbf16>, vector<32x32xf32> -> vector<32x32xf32>
    %375 = arith.addf %366, %374 : vector<32x32xf32>
    %c0_368 = arith.constant 0 : index
    %c0_369 = arith.constant 0 : index
    %376 = vector.load %arg7[%c0_368, %c0_369] : memref<1x32xf32, #tpu.memory_space<vmem>>, vector<1x32xf32>
    %377 = vector.broadcast %376 : vector<1x32xf32> to vector<32x32xf32>
    %378 = arith.addf %375, %377 : vector<32x32xf32>
    %379 = vector.extract_strided_slice %378 {offsets = [0, 0], sizes = [16, 32], strides = [1, 1]} : vector<32x32xf32> to vector<16x32xf32>
    %c0_370 = arith.constant 0 : index
    %c0_371 = arith.constant 0 : index
    %c0_372 = arith.constant 0 : index
    %380 = vector.load %arg8[%c0_370, %c0_371, %c0_372] : memref<2x16x32xf32, #tpu.memory_space<vmem>>, vector<1x16x32xf32>
    %381 = vector.shape_cast %380 : vector<1x16x32xf32> to vector<16x32xf32>
    %382 = vector.shape_cast %379 : vector<16x32xf32> to vector<1x16x32xf32>
    tpu.vector_store %arg8[%c0_370, %c0_371, %c0_372], %382 {strides = array<i32>} : memref<2x16x32xf32, #tpu.memory_space<vmem>>, vector<1x16x32xf32>,
    %383 = vector.extract_strided_slice %378 {offsets = [16, 0], sizes = [16, 32], strides = [1, 1]} : vector<32x32xf32> to vector<16x32xf32>
    %c1_373 = arith.constant 1 : index
    %c0_374 = arith.constant 0 : index
    %c0_375 = arith.constant 0 : index
    %384 = vector.load %arg8[%c1_373, %c0_374, %c0_375] : memref<2x16x32xf32, #tpu.memory_space<vmem>>, vector<1x16x32xf32>
    %385 = vector.shape_cast %384 : vector<1x16x32xf32> to vector<16x32xf32>
    %386 = vector.shape_cast %383 : vector<16x32xf32> to vector<1x16x32xf32>
    tpu.vector_store %arg8[%c1_373, %c0_374, %c0_375], %386 {strides = array<i32>} : memref<2x16x32xf32, #tpu.memory_space<vmem>>, vector<1x16x32xf32>,
    return
  }
  func.func @transform_0(%arg0: i32) -> (i32, i32, i32, i32) {
    %c0_i32 = arith.constant 0 : i32
    %c0_i32_0 = arith.constant 0 : i32
    %c0_i32_1 = arith.constant 0 : i32
    %c0_i32_2 = arith.constant 0 : i32
    return %arg0, %c0_i32, %c0_i32_0, %c0_i32_1 : i32, i32, i32, i32
  }
  func.func @transform_1(%arg0: i32) -> (i32, i32) {
    %c0_i32 = arith.constant 0 : i32
    %c0_i32_0 = arith.constant 0 : i32
    %c0_i32_1 = arith.constant 0 : i32
    return %c0_i32, %c0_i32_0 : i32, i32
  }
  func.func @transform_2(%arg0: i32) -> (i32, i32) {
    %c0_i32 = arith.constant 0 : i32
    %c0_i32_0 = arith.constant 0 : i32
    %c0_i32_1 = arith.constant 0 : i32
    return %c0_i32, %c0_i32_0 : i32, i32
  }
  func.func @transform_3(%arg0: i32) -> (i32, i32) {
    %c0_i32 = arith.constant 0 : i32
    %c0_i32_0 = arith.constant 0 : i32
    %c0_i32_1 = arith.constant 0 : i32
    return %c0_i32, %c0_i32_0 : i32, i32
  }
  func.func @transform_4(%arg0: i32) -> (i32, i32) {
    %c0_i32 = arith.constant 0 : i32
    %c0_i32_0 = arith.constant 0 : i32
    %c0_i32_1 = arith.constant 0 : i32
    return %c0_i32, %c0_i32_0 : i32, i32
  }
  func.func @transform_5(%arg0: i32) -> (i32, i32, i32) {
    %c0_i32 = arith.constant 0 : i32
    %c0_i32_0 = arith.constant 0 : i32
    %c0_i32_1 = arith.constant 0 : i32
    %c0_i32_2 = arith.constant 0 : i32
    return %c0_i32, %c0_i32_0, %c0_i32_1 : i32, i32, i32
  }
  func.func @transform_6(%arg0: i32) -> (i32, i32) {
    %c0_i32 = arith.constant 0 : i32
    %c0_i32_0 = arith.constant 0 : i32
    %c0_i32_1 = arith.constant 0 : i32
    return %c0_i32, %c0_i32_0 : i32, i32
  }
  func.func @transform_7(%arg0: i32) -> (i32, i32, i32) {
    %c0_i32 = arith.constant 0 : i32
    %c0_i32_0 = arith.constant 0 : i32
    %c0_i32_1 = arith.constant 0 : i32
    return %arg0, %c0_i32, %c0_i32_0 : i32, i32, i32
  }
}

</mosaic_0001>

<llo_original>
// kernel: tile.8
$region0: #{tile.8}
  #allocation0 [shape = 's32[1]{0}', space=sflag, size = 0x4, scoped, tag = 'scoped memory for tile.8']
  %s0 = inlined_call_operand.vmem [shape: f32[128], index: 0, kind: input, shape index: {}]
  %s1 = inlined_call_operand.vmem [shape: f32[16,128], index: 1, kind: output, shape index: {}]
  // Predicated region
  $region2: #{tile.8} parent=0 // pred_check
    _
  $region3: #{tile.8} parent=0 // pred_check_branch
    %3 = sbr.rel (0) target = $region5
  $region4: #{tile.8} parent=0 // pred_region
    _
  $region5: #{tile.8} parent=0 // pred_fallthru
    _
  %v4 = vld [vmem:[%s0] ss:$0 sm:$0xff]
  %5 = vst [vmem:[%s1] sm:$0xff] %v4
  %s6 = scalar_lea.vmem %s1, 8
  %7 = vst [vmem:[%s6] sm:$0xff] %v4

// kernel: srcnn_w128_forward.1
$region0: #{srcnn_w128_forward.1}
  #allocation0 [shape = 'u32[]', space=smem, size = 0x4, offset = 0x4, fixed_abs, tag = 'smem constant byte address 0x4 - core index']
  #allocation1 [shape = 'u32[144,128]{1,0:T(1,128)}', space=vmem, size = 0x12000, scoped, tag = 'internal scratch']
  #allocation2 [shape = 'bf16[32,432]{1,0:T(16,128)(2,1)}', space=vmem, size = 0x8000, scoped, tag = 'scratch operand']
  #allocation3 [shape = 'bf16[512,128]{1,0:T(16,128)(2,1)}', space=vmem, size = 0x20000, scoped, tag = 'scratch operand']
  #allocation4 [shape = 'bf16[2,32,1280]{2,1,0:T(16,128)(2,1)}', space=vmem, size = 0x28000, scoped, tag = 'scratch operand']
  %s0 = inlined_call_operand.vmem [shape: f32[2,2,16,16], index: 0, kind: input, shape index: {}]
  %s1 = inlined_call_operand.vmem [shape: bf16[432,2048], index: 1, kind: input, shape index: {}]
  %s2 = inlined_call_operand.vmem [shape: f32[1,2048], index: 2, kind: input, shape index: {}]
  %s3 = inlined_call_operand.vmem [shape: bf16[128,64], index: 3, kind: input, shape index: {}]
  %s4 = inlined_call_operand.vmem [shape: f32[1,64], index: 4, kind: input, shape index: {}]
  %s5 = inlined_call_operand.vmem [shape: bf16[5,1280,32], index: 5, kind: input, shape index: {}]
  %s6 = inlined_call_operand.vmem [shape: f32[1,32], index: 6, kind: input, shape index: {}]
  %s7 = inlined_call_operand.vmem [shape: f32[2,16,32], index: 7, kind: output, shape index: {}]
  %s8 = sld [smem:[#allocation0]]
  $region38: #{srcnn_w128_forward.1} parent=0
    _
  %s10 = ssub.s32 1, %s8
  %s11 = scalar_select 0, %s10, %s8
  // Predicated region
  $region2: #{srcnn_w128_forward.1} parent=0 // pred_check
    _
  $region3: #{srcnn_w128_forward.1} parent=0 // pred_check_branch
    %13 = sbr.rel (0) target = $region5
  $region4: #{srcnn_w128_forward.1} parent=0 // pred_region
    _
  $region5: #{srcnn_w128_forward.1} parent=0 // pred_fallthru
    _
  // Predicated region
  $region6: #{srcnn_w128_forward.1} parent=0 // pred_check
    _
  $region7: #{srcnn_w128_forward.1} parent=0 // pred_check_branch
    %15 = sbr.rel (0) target = $region9
  $region8: #{srcnn_w128_forward.1} parent=0 // pred_region
    _
  $region9: #{srcnn_w128_forward.1} parent=0 // pred_fallthru
    _
  // Predicated region
  $region10: #{srcnn_w128_forward.1} parent=0 // pred_check
    _
  $region11: #{srcnn_w128_forward.1} parent=0 // pred_check_branch
    %17 = sbr.rel (0) target = $region13
  $region12: #{srcnn_w128_forward.1} parent=0 // pred_region
    _
  $region13: #{srcnn_w128_forward.1} parent=0 // pred_fallthru
    _
  // Predicated region
  $region14: #{srcnn_w128_forward.1} parent=0 // pred_check
    _
  $region15: #{srcnn_w128_forward.1} parent=0 // pred_check_branch
    %19 = sbr.rel (0) target = $region17
  $region16: #{srcnn_w128_forward.1} parent=0 // pred_region
    _
  $region17: #{srcnn_w128_forward.1} parent=0 // pred_fallthru
    _
  // Predicated region
  $region18: #{srcnn_w128_forward.1} parent=0 // pred_check
    _
  $region19: #{srcnn_w128_forward.1} parent=0 // pred_check_branch
    %21 = sbr.rel (0) target = $region21
  $region20: #{srcnn_w128_forward.1} parent=0 // pred_region
    _
  $region21: #{srcnn_w128_forward.1} parent=0 // pred_fallthru
    _
  // Predicated region
  $region22: #{srcnn_w128_forward.1} parent=0 // pred_check
    _
  $region23: #{srcnn_w128_forward.1} parent=0 // pred_check_branch
    %23 = sbr.rel (0) target = $region25
  $region24: #{srcnn_w128_forward.1} parent=0 // pred_region
    _
  $region25: #{srcnn_w128_forward.1} parent=0 // pred_fallthru
    _
  // Predicated region
  $region26: #{srcnn_w128_forward.1} parent=0 // pred_check
    _
  $region27: #{srcnn_w128_forward.1} parent=0 // pred_check_branch
    %25 = sbr.rel (0) target = $region29
  $region28: #{srcnn_w128_forward.1} parent=0 // pred_region
    _
  $region29: #{srcnn_w128_forward.1} parent=0 // pred_fallthru
    _
  %27 = vst [vmem:[#allocation2] sm:$0xff] 0
  %28 = vst [vmem:[#allocation2 + $0x8] sm:$0xff] 0
  %29 = vst [vmem:[#allocation2 + $0x10] sm:$0xff] 0
  %vm30 = vcmask 392192
  %31 = vst.msk [vmem:[#allocation2 + $0x18] sm:$0xff] %vm30, 0
  %32 = vst [vmem:[#allocation2 + $0x20] sm:$0xff] 0
  %33 = vst [vmem:[#allocation2 + $0x28] sm:$0xff] 0
  %34 = vst [vmem:[#allocation2 + $0x30] sm:$0xff] 0
  %35 = vst.msk [vmem:[#allocation2 + $0x38] sm:$0xff] %vm30, 0
  %v36 = vld [vmem:[%s0] sm:$0xff]
  %v37 = vld [vmem:[%s0 + $0x8] sm:$0xf]
  %v38 = vpack.c.bf16 %v37, %v36
  %v40 = vrot.slane %v38, 6
  %41 = vrot.lane.b32.xlu0 %v40, 4
  %v42 = vpop.permute.xlu0 %41
  %vm44 = vcmask 162850
  %45 = vst.msk [vmem:[#allocation2] sm:$0xfc] %vm44, %v42
  %s46 = scalar_lea.vmem %s0, 16
  %v47 = vld [vmem:[%s46] sm:$0xff]
  %v48 = vld [vmem:[%s46 + $0x8] sm:$0xf]
  %v49 = vpack.c.bf16 %v48, %v47
  %v51 = vrot.slane %v49, 6
  %52 = vrot.lane.b32.xlu0 %v51, 28
  %v53 = vpop.permute.xlu0 %52
  %vm55 = vcmask 359650
  %56 = vst.msk [vmem:[#allocation2] sm:$0xfc] %vm55, %v53
  %v57 = vld [vmem:[%s0] sm:$0xff]
  %v58 = vld [vmem:[%s0 + $0x8] sm:$0x1f]
  %v59 = vpack.c.bf16 %v58, %v57
  %v61 = vshrl.u32 %v59, 16
  %v63 = vrot.slane %v61, 6
  %v64 = vshll.u32 %v59, 16
  %v66 = vrot.slane %v64, 7
  %v67 = vor.u32 %v63, %v66
  %68 = vrot.lane.b32.xlu0 %v67, 52
  %v69 = vpop.permute.xlu0 %68
  %vm71 = vcmask 556449
  %vm72 = vsmask.f32 7942
  %vm73 = vmand %vm71, %vm72
  %v74 = vld [vmem:[#allocation2] sm:$0xfe]
  %v75 = vsel %vm73, %v69, %v74
  %76 = vst [vmem:[#allocation2] sm:$0xfe] %v75
  %v77 = vld [vmem:[%s46] sm:$0xff]
  %v78 = vld [vmem:[%s46 + $0x8] sm:$0x1f]
  %v79 = vpack.c.bf16 %v78, %v77
  %v81 = vshrl.u32 %v79, 16
  %v83 = vrot.slane %v81, 6
  %v84 = vshll.u32 %v79, 16
  %v86 = vrot.slane %v84, 7
  %v87 = vor.u32 %v83, %v86
  %88 = vrot.lane.b32.xlu0 %v87, 76
  %v89 = vpop.permute.xlu0 %88
  %vm91 = vcmask 753249
  %vm92 = vmand %vm91, %vm72
  %v93 = vld [vmem:[#allocation2] sm:$0xfe]
  %v94 = vsel %vm92, %v89, %v93
  %95 = vst [vmem:[#allocation2] sm:$0xfe] %v94
  %v96 = vld [vmem:[%s0] sm:$0xff]
  %v97 = vld [vmem:[%s0 + $0x8] sm:$0x3f]
  %v98 = vpack.c.bf16 %v97, %v96
  %v100 = vrot.slane %v98, 7
  %101 = vrot.lane.b32.xlu0 %v100, 100
  %v102 = vpop.permute.xlu0 %101
  %vm104 = vcmask 950049
  %105 = vst.msk [vmem:[#allocation2] sm:$0xfe] %vm104, %v102
  %v106 = vld [vmem:[%s46] sm:$0xff]
  %v107 = vld [vmem:[%s46 + $0x8] sm:$0x3f]
  %v108 = vpack.c.bf16 %v107, %v106
  %v110 = vrot.slane %v108, 7
  %111 = vrot.lane.b32.xlu0 %v110, 124
  %v112 = vpop.permute.xlu0 %111
  %vm114 = vcmask 1048545
  %115 = vst.msk [vmem:[#allocation2] sm:$0xfe] %vm114, %v112
  %vm116 = vcmask 97281
  %117 = vst.msk [vmem:[#allocation2 + $0x8] sm:$0xfe] %vm116, %v112
  %v118 = vld [vmem:[%s0] sm:$0xff]
  %v119 = vld [vmem:[%s0 + $0x8] sm:$0x7f]
  %v120 = vpack.c.bf16 %v119, %v118
  %v122 = vshrl.u32 %v120, 16
  %v124 = vrot.slane %v122, 7
  %v125 = vshll.u32 %v120, 16
  %v127 = vor.u32 %v124, %v125
  %128 = vrot.lane.b32.xlu0 %v127, 20
  %v129 = vpop.permute.xlu0 %128
  %vm131 = vcmask 294048
  %vm132 = vsmask.f32 7938
  %vm133 = vmand %vm131, %vm132
  %v134 = vld [vmem:[#allocation2 + $0x8] sm:$0xff]
  %v135 = vsel %vm133, %v129, %v134
  %136 = vst [vmem:[#allocation2 + $0x8] sm:$0xff] %v135
  %v137 = vld [vmem:[%s46] sm:$0xff]
  %v138 = vld [vmem:[%s46 + $0x8] sm:$0x7f]
  %v139 = vpack.c.bf16 %v138, %v137
  %v141 = vshrl.u32 %v139, 16
  %v143 = vrot.slane %v141, 7
  %v144 = vshll.u32 %v139, 16
  %v146 = vor.u32 %v143, %v144
  %147 = vrot.lane.b32.xlu0 %v146, 44
  %v148 = vpop.permute.xlu0 %147
  %vm150 = vcmask 490848
  %vm151 = vmand %vm150, %vm132
  %v152 = vld [vmem:[#allocation2 + $0x8] sm:$0xff]
  %v153 = vsel %vm151, %v148, %v152
  %154 = vst [vmem:[#allocation2 + $0x8] sm:$0xff] %v153
  %v155 = vld [vmem:[%s0] sm:$0xff]
  %v156 = vld [vmem:[%s0 + $0x8] sm:$0xff]
  %v157 = vpack.c.bf16 %v156, %v155
  %159 = vrot.lane.b32.xlu0 %v157, 68
  %v160 = vpop.permute.xlu0 %159
  %vm162 = vcmask 687648
  %163 = vst.msk [vmem:[#allocation2 + $0x8] sm:$0xff] %vm162, %v160
  %v164 = vld [vmem:[%s46] sm:$0xff]
  %v165 = vld [vmem:[%s46 + $0x8] sm:$0xff]
  %v166 = vpack.c.bf16 %v165, %v164
  %168 = vrot.lane.b32.xlu0 %v166, 92
  %v169 = vpop.permute.xlu0 %168
  %vm171 = vcmask 884448
  %172 = vst.msk [vmem:[#allocation2 + $0x8] sm:$0xff] %vm171, %v169
  %v173 = vld [vmem:[%s0 + $0x1] sm:$0xff]
  %v174 = vld [vmem:[%s0 + $0x9] sm:$0x7f]
  %v175 = vpack.c.bf16 %v174, %v173
  %177 = vrot.lane.b32.xlu0 %v175, 116
  %v178 = vpop.permute.xlu0 %177
  %vm180 = vcmask 1048480
  %vm181 = vsmask.f32 7424
  %vm182 = vmand %vm180, %vm181
  %v183 = vld [vmem:[#allocation2 + $0x8] sm:$0xff]
  %v184 = vsel %vm182, %v178, %v183
  %185 = vst [vmem:[#allocation2 + $0x8] sm:$0xff] %v184
  %vm186 = vcmask 31744
  %vm187 = vmand %vm186, %vm181
  %v188 = vld [vmem:[#allocation2 + $0x10] sm:$0xff]
  %v189 = vsel %vm187, %v178, %v188
  %190 = vst [vmem:[#allocation2 + $0x10] sm:$0xff] %v189
  %v191 = vld [vmem:[%s46 + $0x1] sm:$0xff]
  %v192 = vld [vmem:[%s46 + $0x9] sm:$0x7f]
  %v193 = vpack.c.bf16 %v192, %v191
  %195 = vrot.lane.b32.xlu0 %v193, 12
  %v196 = vpop.permute.xlu0 %195
  %vm198 = vcmask 228448
  %vm199 = vmand %vm198, %vm181
  %v200 = vld [vmem:[#allocation2 + $0x10] sm:$0xff]
  %v201 = vsel %vm199, %v196, %v200
  %202 = vst [vmem:[#allocation2 + $0x10] sm:$0xff] %v201
  %v203 = vld [vmem:[%s0 + $0x2] sm:$0xff]
  %v204 = vld [vmem:[%s0 + $0xa] sm:$0x3f]
  %v205 = vpack.c.bf16 %v204, %v203
  %207 = vrot.lane.b32.xlu0 %v205, 36
  %v208 = vpop.permute.xlu0 %207
  %vm210 = vcmask 424224
  %211 = vst.msk [vmem:[#allocation2 + $0x10] sm:$0x7f] %vm210, %v208
  %v212 = vld [vmem:[%s46 + $0x2] sm:$0xff]
  %v213 = vld [vmem:[%s46 + $0xa] sm:$0x3f]
  %v214 = vpack.c.bf16 %v213, %v212
  %216 = vrot.lane.b32.xlu0 %v214, 60
  %v217 = vpop.permute.xlu0 %216
  %vm219 = vcmask 621024
  %220 = vst.msk [vmem:[#allocation2 + $0x10] sm:$0x7f] %vm219, %v217
  %v221 = vld [vmem:[%s0 + $0x3] sm:$0xff]
  %v222 = vld [vmem:[%s0 + $0xb] sm:$0x1f]
  %v223 = vpack.c.bf16 %v222, %v221
  %225 = vrot.lane.b32.xlu0 %v223, 84
  %v226 = vpop.permute.xlu0 %225
  %vm228 = vcmask 817824
  %vm229 = vsmask.f32 6400
  %vm230 = vmand %vm228, %vm229
  %v231 = vld [vmem:[#allocation2 + $0x10] sm:$0x7f]
  %v232 = vsel %vm230, %v226, %v231
  %233 = vst [vmem:[#allocation2 + $0x10] sm:$0x7f] %v232
  %v234 = vld [vmem:[%s46 + $0x3] sm:$0xff]
  %v235 = vld [vmem:[%s46 + $0xb] sm:$0x1f]
  %v236 = vpack.c.bf16 %v235, %v234
  %238 = vrot.lane.b32.xlu0 %v236, 108
  %v239 = vpop.permute.xlu0 %238
  %vm241 = vcmask 1014624
  %vm242 = vmand %vm241, %vm229
  %v243 = vld [vmem:[#allocation2 + $0x10] sm:$0x7f]
  %v244 = vsel %vm242, %v239, %v243
  %245 = vst [vmem:[#allocation2 + $0x10] sm:$0x7f] %v244
  %v246 = vld [vmem:[%s0 + $0x4] sm:$0xff]
  %v247 = vld [vmem:[%s0 + $0xc] sm:$0xf]
  %v248 = vpack.c.bf16 %v247, %v246
  %250 = vrot.lane.b32.xlu0 %v248, 4
  %v251 = vpop.permute.xlu0 %250
  %vm253 = vcmask 160800
  %254 = vst.msk [vmem:[#allocation2 + $0x18] sm:$0x3f] %vm253, %v251
  %v255 = vld [vmem:[%s46 + $0x4] sm:$0xff]
  %v256 = vld [vmem:[%s46 + $0xc] sm:$0xf]
  %v257 = vpack.c.bf16 %v256, %v255
  %259 = vrot.lane.b32.xlu0 %v257, 28
  %v260 = vpop.permute.xlu0 %259
  %vm262 = vcmask 357600
  %263 = vst.msk [vmem:[#allocation2 + $0x18] sm:$0x3f] %vm262, %v260
  %s264 = scalar_lea.vmem %s0, 32
  %v265 = vld [vmem:[%s264] sm:$0xff]
  %v266 = vld [vmem:[%s264 + $0x8] sm:$0xf]
  %v267 = vpack.c.bf16 %v266, %v265
  %v269 = vrot.slane %v267, 6
  %270 = vrot.lane.b32.xlu0 %v269, 4
  %v271 = vpop.permute.xlu0 %270
  %273 = vst.msk [vmem:[#allocation2 + $0x20] sm:$0xfc] %vm44, %v271
  %s274 = scalar_lea.vmem %s0, 48
  %v275 = vld [vmem:[%s274] sm:$0xff]
  %v276 = vld [vmem:[%s274 + $0x8] sm:$0xf]
  %v277 = vpack.c.bf16 %v276, %v275
  %v279 = vrot.slane %v277, 6
  %280 = vrot.lane.b32.xlu0 %v279, 28
  %v281 = vpop.permute.xlu0 %280
  %283 = vst.msk [vmem:[#allocation2 + $0x20] sm:$0xfc] %vm55, %v281
  %v284 = vld [vmem:[%s264] sm:$0xff]
  %v285 = vld [vmem:[%s264 + $0x8] sm:$0x1f]
  %v286 = vpack.c.bf16 %v285, %v284
  %v288 = vshrl.u32 %v286, 16
  %v290 = vrot.slane %v288, 6
  %v291 = vshll.u32 %v286, 16
  %v293 = vrot.slane %v291, 7
  %v294 = vor.u32 %v290, %v293
  %295 = vrot.lane.b32.xlu0 %v294, 52
  %v296 = vpop.permute.xlu0 %295
  %v298 = vld [vmem:[#allocation2 + $0x20] sm:$0xfe]
  %v299 = vsel %vm73, %v296, %v298
  %300 = vst [vmem:[#allocation2 + $0x20] sm:$0xfe] %v299
  %v301 = vld [vmem:[%s274] sm:$0xff]
  %v302 = vld [vmem:[%s274 + $0x8] sm:$0x1f]
  %v303 = vpack.c.bf16 %v302, %v301
  %v305 = vshrl.u32 %v303, 16
  %v307 = vrot.slane %v305, 6
  %v308 = vshll.u32 %v303, 16
  %v310 = vrot.slane %v308, 7
  %v311 = vor.u32 %v307, %v310
  %312 = vrot.lane.b32.xlu0 %v311, 76
  %v313 = vpop.permute.xlu0 %312
  %v315 = vld [vmem:[#allocation2 + $0x20] sm:$0xfe]
  %v316 = vsel %vm92, %v313, %v315
  %317 = vst [vmem:[#allocation2 + $0x20] sm:$0xfe] %v316
  %v318 = vld [vmem:[%s264] sm:$0xff]
  %v319 = vld [vmem:[%s264 + $0x8] sm:$0x3f]
  %v320 = vpack.c.bf16 %v319, %v318
  %v322 = vrot.slane %v320, 7
  %323 = vrot.lane.b32.xlu0 %v322, 100
  %v324 = vpop.permute.xlu0 %323
  %326 = vst.msk [vmem:[#allocation2 + $0x20] sm:$0xfe] %vm104, %v324
  %v327 = vld [vmem:[%s274] sm:$0xff]
  %v328 = vld [vmem:[%s274 + $0x8] sm:$0x3f]
  %v329 = vpack.c.bf16 %v328, %v327
  %v331 = vrot.slane %v329, 7
  %332 = vrot.lane.b32.xlu0 %v331, 124
  %v333 = vpop.permute.xlu0 %332
  %335 = vst.msk [vmem:[#allocation2 + $0x20] sm:$0xfe] %vm114, %v333
  %336 = vst.msk [vmem:[#allocation2 + $0x28] sm:$0xfe] %vm116, %v333
  %v337 = vld [vmem:[%s264] sm:$0xff]
  %v338 = vld [vmem:[%s264 + $0x8] sm:$0x7f]
  %v339 = vpack.c.bf16 %v338, %v337
  %v341 = vshrl.u32 %v339, 16
  %v343 = vrot.slane %v341, 7
  %v344 = vshll.u32 %v339, 16
  %v346 = vor.u32 %v343, %v344
  %347 = vrot.lane.b32.xlu0 %v346, 20
  %v348 = vpop.permute.xlu0 %347
  %v350 = vld [vmem:[#allocation2 + $0x28] sm:$0xff]
  %v351 = vsel %vm133, %v348, %v350
  %352 = vst [vmem:[#allocation2 + $0x28] sm:$0xff] %v351
  %v353 = vld [vmem:[%s274] sm:$0xff]
  %v354 = vld [vmem:[%s274 + $0x8] sm:$0x7f]
  %v355 = vpack.c.bf16 %v354, %v353
  %v357 = vshrl.u32 %v355, 16
  %v359 = vrot.slane %v357, 7
  %v360 = vshll.u32 %v355, 16
  %v362 = vor.u32 %v359, %v360
  %363 = vrot.lane.b32.xlu0 %v362, 44
  %v364 = vpop.permute.xlu0 %363
  %v366 = vld [vmem:[#allocation2 + $0x28] sm:$0xff]
  %v367 = vsel %vm151, %v364, %v366
  %368 = vst [vmem:[#allocation2 + $0x28] sm:$0xff] %v367
  %v369 = vld [vmem:[%s264] sm:$0xff]
  %v370 = vld [vmem:[%s264 + $0x8] sm:$0xff]
  %v371 = vpack.c.bf16 %v370, %v369
  %373 = vrot.lane.b32.xlu0 %v371, 68
  %v374 = vpop.permute.xlu0 %373
  %376 = vst.msk [vmem:[#allocation2 + $0x28] sm:$0xff] %vm162, %v374
  %v377 = vld [vmem:[%s274] sm:$0xff]
  %v378 = vld [vmem:[%s274 + $0x8] sm:$0xff]
  %v379 = vpack.c.bf16 %v378, %v377
  %381 = vrot.lane.b32.xlu0 %v379, 92
  %v382 = vpop.permute.xlu0 %381
  %384 = vst.msk [vmem:[#allocation2 + $0x28] sm:$0xff] %vm171, %v382
  %v385 = vld [vmem:[%s264 + $0x1] sm:$0xff]
  %v386 = vld [vmem:[%s264 + $0x9] sm:$0x7f]
  %v387 = vpack.c.bf16 %v386, %v385
  %389 = vrot.lane.b32.xlu0 %v387, 116
  %v390 = vpop.permute.xlu0 %389
  %v392 = vld [vmem:[#allocation2 + $0x28] sm:$0xff]
  %v393 = vsel %vm182, %v390, %v392
  %394 = vst [vmem:[#allocation2 + $0x28] sm:$0xff] %v393
  %v395 = vld [vmem:[#allocation2 + $0x30] sm:$0xff]
  %v396 = vsel %vm187, %v390, %v395
  %397 = vst [vmem:[#allocation2 + $0x30] sm:$0xff] %v396
  %v398 = vld [vmem:[%s274 + $0x1] sm:$0xff]
  %v399 = vld [vmem:[%s274 + $0x9] sm:$0x7f]
  %v400 = vpack.c.bf16 %v399, %v398
  %402 = vrot.lane.b32.xlu0 %v400, 12
  %v403 = vpop.permute.xlu0 %402
  %v405 = vld [vmem:[#allocation2 + $0x30] sm:$0xff]
  %v406 = vsel %vm199, %v403, %v405
  %407 = vst [vmem:[#allocation2 + $0x30] sm:$0xff] %v406
  %v408 = vld [vmem:[%s264 + $0x2] sm:$0xff]
  %v409 = vld [vmem:[%s264 + $0xa] sm:$0x3f]
  %v410 = vpack.c.bf16 %v409, %v408
  %412 = vrot.lane.b32.xlu0 %v410, 36
  %v413 = vpop.permute.xlu0 %412
  %415 = vst.msk [vmem:[#allocation2 + $0x30] sm:$0x7f] %vm210, %v413
  %v416 = vld [vmem:[%s274 + $0x2] sm:$0xff]
  %v417 = vld [vmem:[%s274 + $0xa] sm:$0x3f]
  %v418 = vpack.c.bf16 %v417, %v416
  %420 = vrot.lane.b32.xlu0 %v418, 60
  %v421 = vpop.permute.xlu0 %420
  %423 = vst.msk [vmem:[#allocation2 + $0x30] sm:$0x7f] %vm219, %v421
  %v424 = vld [vmem:[%s264 + $0x3] sm:$0xff]
  %v425 = vld [vmem:[%s264 + $0xb] sm:$0x1f]
  %v426 = vpack.c.bf16 %v425, %v424
  %428 = vrot.lane.b32.xlu0 %v426, 84
  %v429 = vpop.permute.xlu0 %428
  %v431 = vld [vmem:[#allocation2 + $0x30] sm:$0x7f]
  %v432 = vsel %vm230, %v429, %v431
  %433 = vst [vmem:[#allocation2 + $0x30] sm:$0x7f] %v432
  %v434 = vld [vmem:[%s274 + $0x3] sm:$0xff]
  %v435 = vld [vmem:[%s274 + $0xb] sm:$0x1f]
  %v436 = vpack.c.bf16 %v435, %v434
  %438 = vrot.lane.b32.xlu0 %v436, 108
  %v439 = vpop.permute.xlu0 %438
  %v441 = vld [vmem:[#allocation2 + $0x30] sm:$0x7f]
  %v442 = vsel %vm242, %v439, %v441
  %443 = vst [vmem:[#allocation2 + $0x30] sm:$0x7f] %v442
  %v444 = vld [vmem:[%s264 + $0x4] sm:$0xff]
  %v445 = vld [vmem:[%s264 + $0xc] sm:$0xf]
  %v446 = vpack.c.bf16 %v445, %v444
  %448 = vrot.lane.b32.xlu0 %v446, 4
  %v449 = vpop.permute.xlu0 %448
  %451 = vst.msk [vmem:[#allocation2 + $0x38] sm:$0x3f] %vm253, %v449
  %v452 = vld [vmem:[%s274 + $0x4] sm:$0xff]
  %v453 = vld [vmem:[%s274 + $0xc] sm:$0xf]
  %v454 = vpack.c.bf16 %v453, %v452
  %456 = vrot.lane.b32.xlu0 %v454, 28
  %v457 = vpop.permute.xlu0 %456
  %459 = vst.msk [vmem:[#allocation2 + $0x38] sm:$0x3f] %vm262, %v457
  %v460 = vld [vmem:[#allocation2] sm:$0xff]
  %v461 = vld [vmem:[#allocation2 + $0x8] sm:$0xff]
  %v462 = vld [vmem:[#allocation2 + $0x10] sm:$0xff]
  %v463 = vld [vmem:[#allocation2 + $0x18] sm:$0xff]
  %v464 = vld [vmem:[#allocation2 + $0x20] sm:$0xff]
  %v465 = vld [vmem:[#allocation2 + $0x28] sm:$0xff]
  %v466 = vld [vmem:[#allocation2 + $0x30] sm:$0xff]
  %v467 = vld [vmem:[#allocation2 + $0x38] sm:$0xff]
  %v468 = vld [vmem:[%s1] sm:$0xff]
  %v469 = vld [vmem:[%s1 + $0x8] sm:$0xff]
  %v470 = vld [vmem:[%s1 + $0x10] sm:$0xff]
  %v471 = vld [vmem:[%s1 + $0x18] sm:$0xff]
  %v472 = vld [vmem:[%s1 + $0x20] sm:$0xff]
  %v473 = vld [vmem:[%s1 + $0x28] sm:$0xff]
  %v474 = vld [vmem:[%s1 + $0x30] sm:$0xff]
  %v475 = vld [vmem:[%s1 + $0x38] sm:$0xff]
  %v476 = vld [vmem:[%s1 + $0x40] sm:$0xff]
  %v477 = vld [vmem:[%s1 + $0x48] sm:$0xff]
  %v478 = vld [vmem:[%s1 + $0x50] sm:$0xff]
  %v479 = vld [vmem:[%s1 + $0x58] sm:$0xff]
  %v480 = vld [vmem:[%s1 + $0x60] sm:$0xff]
  %v481 = vld [vmem:[%s1 + $0x68] sm:$0xff]
  %v482 = vld [vmem:[%s1 + $0x70] sm:$0xff]
  %v483 = vld [vmem:[%s1 + $0x78] sm:$0xff]
  %v484 = vld [vmem:[%s1 + $0x80] sm:$0xff]
  %v485 = vld [vmem:[%s1 + $0x88] sm:$0xff]
  %v486 = vld [vmem:[%s1 + $0x90] sm:$0xff]
  %v487 = vld [vmem:[%s1 + $0x98] sm:$0xff]
  %v488 = vld [vmem:[%s1 + $0xa0] sm:$0xff]
  %v489 = vld [vmem:[%s1 + $0xa8] sm:$0xff]
  %v490 = vld [vmem:[%s1 + $0xb0] sm:$0xff]
  %v491 = vld [vmem:[%s1 + $0xb8] sm:$0xff]
  %v492 = vld [vmem:[%s1 + $0xc0] sm:$0xff]
  %v493 = vld [vmem:[%s1 + $0xc8] sm:$0xff]
  %v494 = vld [vmem:[%s1 + $0xd0] sm:$0xff]
  %v495 = vld [vmem:[%s1 + $0xd8] sm:$0xff]
  %v496 = vld [vmem:[%s1 + $0xe0] sm:$0xff]
  %v497 = vld [vmem:[%s1 + $0xe8] sm:$0xff]
  %v498 = vld [vmem:[%s1 + $0xf0] sm:$0xff]
  %v499 = vld [vmem:[%s1 + $0xf8] sm:$0xff]
  %v500 = vld [vmem:[%s1 + $0x100] sm:$0xff]
  %v501 = vld [vmem:[%s1 + $0x108] sm:$0xff]
  %v502 = vld [vmem:[%s1 + $0x110] sm:$0xff]
  %v503 = vld [vmem:[%s1 + $0x118] sm:$0xff]
  %v504 = vld [vmem:[%s1 + $0x120] sm:$0xff]
  %v505 = vld [vmem:[%s1 + $0x128] sm:$0xff]
  %v506 = vld [vmem:[%s1 + $0x130] sm:$0xff]
  %v507 = vld [vmem:[%s1 + $0x138] sm:$0xff]
  %v508 = vld [vmem:[%s1 + $0x140] sm:$0xff]
  %v509 = vld [vmem:[%s1 + $0x148] sm:$0xff]
  %v510 = vld [vmem:[%s1 + $0x150] sm:$0xff]
  %v511 = vld [vmem:[%s1 + $0x158] sm:$0xff]
  %v512 = vld [vmem:[%s1 + $0x160] sm:$0xff]
  %v513 = vld [vmem:[%s1 + $0x168] sm:$0xff]
  %v514 = vld [vmem:[%s1 + $0x170] sm:$0xff]
  %v515 = vld [vmem:[%s1 + $0x178] sm:$0xff]
  %v516 = vld [vmem:[%s1 + $0x180] sm:$0xff]
  %v517 = vld [vmem:[%s1 + $0x188] sm:$0xff]
  %v518 = vld [vmem:[%s1 + $0x190] sm:$0xff]
  %v519 = vld [vmem:[%s1 + $0x198] sm:$0xff]
  %v520 = vld [vmem:[%s1 + $0x1a0] sm:$0xff]
  %v521 = vld [vmem:[%s1 + $0x1a8] sm:$0xff]
  %v522 = vld [vmem:[%s1 + $0x1b0] sm:$0xff]
  %v523 = vld [vmem:[%s1 + $0x1b8] sm:$0xff]
  %v524 = vld [vmem:[%s1 + $0x1c0] sm:$0xff]
  %v525 = vld [vmem:[%s1 + $0x1c8] sm:$0xff]
  %v526 = vld [vmem:[%s1 + $0x1d0] sm:$0xff]
  %v527 = vld [vmem:[%s1 + $0x1d8] sm:$0xff]
  %v528 = vld [vmem:[%s1 + $0x1e0] sm:$0xff]
  %v529 = vld [vmem:[%s1 + $0x1e8] sm:$0xff]
  %v530 = vld [vmem:[%s1 + $0x1f0] sm:$0xff]
  %v531 = vld [vmem:[%s1 + $0x1f8] sm:$0xff]
  %v532 = vld [vmem:[%s1 + $0x200] sm:$0xff]
  %v533 = vld [vmem:[%s1 + $0x208] sm:$0xff]
  %v534 = vld [vmem:[%s1 + $0x210] sm:$0xff]
  %v535 = vld [vmem:[%s1 + $0x218] sm:$0xff]
  %v536 = vld [vmem:[%s1 + $0x220] sm:$0xff]
  %v537 = vld [vmem:[%s1 + $0x228] sm:$0xff]
  %v538 = vld [vmem:[%s1 + $0x230] sm:$0xff]
  %v539 = vld [vmem:[%s1 + $0x238] sm:$0xff]
  %v540 = vld [vmem:[%s1 + $0x240] sm:$0xff]
  %v541 = vld [vmem:[%s1 + $0x248] sm:$0xff]
  %v542 = vld [vmem:[%s1 + $0x250] sm:$0xff]
  %v543 = vld [vmem:[%s1 + $0x258] sm:$0xff]
  %v544 = vld [vmem:[%s1 + $0x260] sm:$0xff]
  %v545 = vld [vmem:[%s1 + $0x268] sm:$0xff]
  %v546 = vld [vmem:[%s1 + $0x270] sm:$0xff]
  %v547 = vld [vmem:[%s1 + $0x278] sm:$0xff]
  %v548 = vld [vmem:[%s1 + $0x280] sm:$0xff]
  %v549 = vld [vmem:[%s1 + $0x288] sm:$0xff]
  %v550 = vld [vmem:[%s1 + $0x290] sm:$0xff]
  %v551 = vld [vmem:[%s1 + $0x298] sm:$0xff]
  %v552 = vld [vmem:[%s1 + $0x2a0] sm:$0xff]
  %v553 = vld [vmem:[%s1 + $0x2a8] sm:$0xff]
  %v554 = vld [vmem:[%s1 + $0x2b0] sm:$0xff]
  %v555 = vld [vmem:[%s1 + $0x2b8] sm:$0xff]
  %v556 = vld [vmem:[%s1 + $0x2c0] sm:$0xff]
  %v557 = vld [vmem:[%s1 + $0x2c8] sm:$0xff]
  %v558 = vld [vmem:[%s1 + $0x2d0] sm:$0xff]
  %v559 = vld [vmem:[%s1 + $0x2d8] sm:$0xff]
  %v560 = vld [vmem:[%s1 + $0x2e0] sm:$0xff]
  %v561 = vld [vmem:[%s1 + $0x2e8] sm:$0xff]
  %v562 = vld [vmem:[%s1 + $0x2f0] sm:$0xff]
  %v563 = vld [vmem:[%s1 + $0x2f8] sm:$0xff]
  %v564 = vld [vmem:[%s1 + $0x300] sm:$0xff]
  %v565 = vld [vmem:[%s1 + $0x308] sm:$0xff]
  %v566 = vld [vmem:[%s1 + $0x310] sm:$0xff]
  %v567 = vld [vmem:[%s1 + $0x318] sm:$0xff]
  %v568 = vld [vmem:[%s1 + $0x320] sm:$0xff]
  %v569 = vld [vmem:[%s1 + $0x328] sm:$0xff]
  %v570 = vld [vmem:[%s1 + $0x330] sm:$0xff]
  %v571 = vld [vmem:[%s1 + $0x338] sm:$0xff]
  %v572 = vld [vmem:[%s1 + $0x340] sm:$0xff]
  %v573 = vld [vmem:[%s1 + $0x348] sm:$0xff]
  %v574 = vld [vmem:[%s1 + $0x350] sm:$0xff]
  %v575 = vld [vmem:[%s1 + $0x358] sm:$0xff]
  %v576 = vld [vmem:[%s1 + $0x360] sm:$0xff]
  %v577 = vld [vmem:[%s1 + $0x368] sm:$0xff]
  %v578 = vld [vmem:[%s1 + $0x370] sm:$0xff]
  %v579 = vld [vmem:[%s1 + $0x378] sm:$0xff]
  %v580 = vld [vmem:[%s1 + $0x380] sm:$0xff]
  %v581 = vld [vmem:[%s1 + $0x388] sm:$0xff]
  %v582 = vld [vmem:[%s1 + $0x390] sm:$0xff]
  %v583 = vld [vmem:[%s1 + $0x398] sm:$0xff]
  %v584 = vld [vmem:[%s1 + $0x3a0] sm:$0xff]
  %v585 = vld [vmem:[%s1 + $0x3a8] sm:$0xff]
  %v586 = vld [vmem:[%s1 + $0x3b0] sm:$0xff]
  %v587 = vld [vmem:[%s1 + $0x3b8] sm:$0xff]
  %v588 = vld [vmem:[%s1 + $0x3c0] sm:$0xff]
  %v589 = vld [vmem:[%s1 + $0x3c8] sm:$0xff]
  %v590 = vld [vmem:[%s1 + $0x3d0] sm:$0xff]
  %v591 = vld [vmem:[%s1 + $0x3d8] sm:$0xff]
  %v592 = vld [vmem:[%s1 + $0x3e0] sm:$0xff]
  %v593 = vld [vmem:[%s1 + $0x3e8] sm:$0xff]
  %v594 = vld [vmem:[%s1 + $0x3f0] sm:$0xff]
  %v595 = vld [vmem:[%s1 + $0x3f8] sm:$0xff]
  %v596 = vld [vmem:[%s1 + $0x400] sm:$0xff]
  %v597 = vld [vmem:[%s1 + $0x408] sm:$0xff]
  %v598 = vld [vmem:[%s1 + $0x410] sm:$0xff]
  %v599 = vld [vmem:[%s1 + $0x418] sm:$0xff]
  %v600 = vld [vmem:[%s1 + $0x420] sm:$0xff]
  %v601 = vld [vmem:[%s1 + $0x428] sm:$0xff]
  %v602 = vld [vmem:[%s1 + $0x430] sm:$0xff]
  %v603 = vld [vmem:[%s1 + $0x438] sm:$0xff]
  %v604 = vld [vmem:[%s1 + $0x440] sm:$0xff]
  %v605 = vld [vmem:[%s1 + $0x448] sm:$0xff]
  %v606 = vld [vmem:[%s1 + $0x450] sm:$0xff]
  %v607 = vld [vmem:[%s1 + $0x458] sm:$0xff]
  %v608 = vld [vmem:[%s1 + $0x460] sm:$0xff]
  %v609 = vld [vmem:[%s1 + $0x468] sm:$0xff]
  %v610 = vld [vmem:[%s1 + $0x470] sm:$0xff]
  %v611 = vld [vmem:[%s1 + $0x478] sm:$0xff]
  %v612 = vld [vmem:[%s1 + $0x480] sm:$0xff]
  %v613 = vld [vmem:[%s1 + $0x488] sm:$0xff]
  %v614 = vld [vmem:[%s1 + $0x490] sm:$0xff]
  %v615 = vld [vmem:[%s1 + $0x498] sm:$0xff]
  %v616 = vld [vmem:[%s1 + $0x4a0] sm:$0xff]
  %v617 = vld [vmem:[%s1 + $0x4a8] sm:$0xff]
  %v618 = vld [vmem:[%s1 + $0x4b0] sm:$0xff]
  %v619 = vld [vmem:[%s1 + $0x4b8] sm:$0xff]
  %v620 = vld [vmem:[%s1 + $0x4c0] sm:$0xff]
  %v621 = vld [vmem:[%s1 + $0x4c8] sm:$0xff]
  %v622 = vld [vmem:[%s1 + $0x4d0] sm:$0xff]
  %v623 = vld [vmem:[%s1 + $0x4d8] sm:$0xff]
  %v624 = vld [vmem:[%s1 + $0x4e0] sm:$0xff]
  %v625 = vld [vmem:[%s1 + $0x4e8] sm:$0xff]
  %v626 = vld [vmem:[%s1 + $0x4f0] sm:$0xff]
  %v627 = vld [vmem:[%s1 + $0x4f8] sm:$0xff]
  %v628 = vld [vmem:[%s1 + $0x500] sm:$0xff]
  %v629 = vld [vmem:[%s1 + $0x508] sm:$0xff]
  %v630 = vld [vmem:[%s1 + $0x510] sm:$0xff]
  %v631 = vld [vmem:[%s1 + $0x518] sm:$0xff]
  %v632 = vld [vmem:[%s1 + $0x520] sm:$0xff]
  %v633 = vld [vmem:[%s1 + $0x528] sm:$0xff]
  %v634 = vld [vmem:[%s1 + $0x530] sm:$0xff]
  %v635 = vld [vmem:[%s1 + $0x538] sm:$0xff]
  %v636 = vld [vmem:[%s1 + $0x540] sm:$0xff]
  %v637 = vld [vmem:[%s1 + $0x548] sm:$0xff]
  %v638 = vld [vmem:[%s1 + $0x550] sm:$0xff]
  %v639 = vld [vmem:[%s1 + $0x558] sm:$0xff]
  %v640 = vld [vmem:[%s1 + $0x560] sm:$0xff]
  %v641 = vld [vmem:[%s1 + $0x568] sm:$0xff]
  %v642 = vld [vmem:[%s1 + $0x570] sm:$0xff]
  %v643 = vld [vmem:[%s1 + $0x578] sm:$0xff]
  %v644 = vld [vmem:[%s1 + $0x580] sm:$0xff]
  %v645 = vld [vmem:[%s1 + $0x588] sm:$0xff]
  %v646 = vld [vmem:[%s1 + $0x590] sm:$0xff]
  %v647 = vld [vmem:[%s1 + $0x598] sm:$0xff]
  %v648 = vld [vmem:[%s1 + $0x5a0] sm:$0xff]
  %v649 = vld [vmem:[%s1 + $0x5a8] sm:$0xff]
  %v650 = vld [vmem:[%s1 + $0x5b0] sm:$0xff]
  %v651 = vld [vmem:[%s1 + $0x5b8] sm:$0xff]
  %v652 = vld [vmem:[%s1 + $0x5c0] sm:$0xff]
  %v653 = vld [vmem:[%s1 + $0x5c8] sm:$0xff]
  %v654 = vld [vmem:[%s1 + $0x5d0] sm:$0xff]
  %v655 = vld [vmem:[%s1 + $0x5d8] sm:$0xff]
  %v656 = vld [vmem:[%s1 + $0x5e0] sm:$0xff]
  %v657 = vld [vmem:[%s1 + $0x5e8] sm:$0xff]
  %v658 = vld [vmem:[%s1 + $0x5f0] sm:$0xff]
  %v659 = vld [vmem:[%s1 + $0x5f8] sm:$0xff]
  %v660 = vld [vmem:[%s1 + $0x600] sm:$0xff]
  %v661 = vld [vmem:[%s1 + $0x608] sm:$0xff]
  %v662 = vld [vmem:[%s1 + $0x610] sm:$0xff]
  %v663 = vld [vmem:[%s1 + $0x618] sm:$0xff]
  %v664 = vld [vmem:[%s1 + $0x620] sm:$0xff]
  %v665 = vld [vmem:[%s1 + $0x628] sm:$0xff]
  %v666 = vld [vmem:[%s1 + $0x630] sm:$0xff]
  %v667 = vld [vmem:[%s1 + $0x638] sm:$0xff]
  %v668 = vld [vmem:[%s1 + $0x640] sm:$0xff]
  %v669 = vld [vmem:[%s1 + $0x648] sm:$0xff]
  %v670 = vld [vmem:[%s1 + $0x650] sm:$0xff]
  %v671 = vld [vmem:[%s1 + $0x658] sm:$0xff]
  %v672 = vld [vmem:[%s1 + $0x660] sm:$0xff]
  %v673 = vld [vmem:[%s1 + $0x668] sm:$0xff]
  %v674 = vld [vmem:[%s1 + $0x670] sm:$0xff]
  %v675 = vld [vmem:[%s1 + $0x678] sm:$0xff]
  %v676 = vld [vmem:[%s1 + $0x680] sm:$0xff]
  %v677 = vld [vmem:[%s1 + $0x688] sm:$0xff]
  %v678 = vld [vmem:[%s1 + $0x690] sm:$0xff]
  %v679 = vld [vmem:[%s1 + $0x698] sm:$0xff]
  %v680 = vld [vmem:[%s1 + $0x6a0] sm:$0xff]
  %v681 = vld [vmem:[%s1 + $0x6a8] sm:$0xff]
  %v682 = vld [vmem:[%s1 + $0x6b0] sm:$0xff]
  %v683 = vld [vmem:[%s1 + $0x6b8] sm:$0xff]
  %v684 = vld [vmem:[%s1 + $0x6c0] sm:$0xff]
  %v685 = vld [vmem:[%s1 + $0x6c8] sm:$0xff]
  %v686 = vld [vmem:[%s1 + $0x6d0] sm:$0xff]
  %v687 = vld [vmem:[%s1 + $0x6d8] sm:$0xff]
  %v688 = vld [vmem:[%s1 + $0x6e0] sm:$0xff]
  %v689 = vld [vmem:[%s1 + $0x6e8] sm:$0xff]
  %v690 = vld [vmem:[%s1 + $0x6f0] sm:$0xff]
  %v691 = vld [vmem:[%s1 + $0x6f8] sm:$0xff]
  %v692 = vld [vmem:[%s1 + $0x700] sm:$0xff]
  %v693 = vld [vmem:[%s1 + $0x708] sm:$0xff]
  %v694 = vld [vmem:[%s1 + $0x710] sm:$0xff]
  %v695 = vld [vmem:[%s1 + $0x718] sm:$0xff]
  %v696 = vld [vmem:[%s1 + $0x720] sm:$0xff]
  %v697 = vld [vmem:[%s1 + $0x728] sm:$0xff]
  %v698 = vld [vmem:[%s1 + $0x730] sm:$0xff]
  %v699 = vld [vmem:[%s1 + $0x738] sm:$0xff]
  %v700 = vld [vmem:[%s1 + $0x740] sm:$0xff]
  %v701 = vld [vmem:[%s1 + $0x748] sm:$0xff]
  %v702 = vld [vmem:[%s1 + $0x750] sm:$0xff]
  %v703 = vld [vmem:[%s1 + $0x758] sm:$0xff]
  %v704 = vld [vmem:[%s1 + $0x760] sm:$0xff]
  %v705 = vld [vmem:[%s1 + $0x768] sm:$0xff]
  %v706 = vld [vmem:[%s1 + $0x770] sm:$0xff]
  %v707 = vld [vmem:[%s1 + $0x778] sm:$0xff]
  %v708 = vld [vmem:[%s1 + $0x780] sm:$0xff]
  %v709 = vld [vmem:[%s1 + $0x788] sm:$0xff]
  %v710 = vld [vmem:[%s1 + $0x790] sm:$0xff]
  %v711 = vld [vmem:[%s1 + $0x798] sm:$0xff]
  %v712 = vld [vmem:[%s1 + $0x7a0] sm:$0xff]
  %v713 = vld [vmem:[%s1 + $0x7a8] sm:$0xff]
  %v714 = vld [vmem:[%s1 + $0x7b0] sm:$0xff]
  %v715 = vld [vmem:[%s1 + $0x7b8] sm:$0xff]
  %v716 = vld [vmem:[%s1 + $0x7c0] sm:$0xff]
  %v717 = vld [vmem:[%s1 + $0x7c8] sm:$0xff]
  %v718 = vld [vmem:[%s1 + $0x7d0] sm:$0xff]
  %v719 = vld [vmem:[%s1 + $0x7d8] sm:$0xff]
  %v720 = vld [vmem:[%s1 + $0x7e0] sm:$0xff]
  %v721 = vld [vmem:[%s1 + $0x7e8] sm:$0xff]
  %v722 = vld [vmem:[%s1 + $0x7f0] sm:$0xff]
  %v723 = vld [vmem:[%s1 + $0x7f8] sm:$0xff]
  %v724 = vld [vmem:[%s1 + $0x800] sm:$0xff]
  %v725 = vld [vmem:[%s1 + $0x808] sm:$0xff]
  %v726 = vld [vmem:[%s1 + $0x810] sm:$0xff]
  %v727 = vld [vmem:[%s1 + $0x818] sm:$0xff]
  %v728 = vld [vmem:[%s1 + $0x820] sm:$0xff]
  %v729 = vld [vmem:[%s1 + $0x828] sm:$0xff]
  %v730 = vld [vmem:[%s1 + $0x830] sm:$0xff]
  %v731 = vld [vmem:[%s1 + $0x838] sm:$0xff]
  %v732 = vld [vmem:[%s1 + $0x840] sm:$0xff]
  %v733 = vld [vmem:[%s1 + $0x848] sm:$0xff]
  %v734 = vld [vmem:[%s1 + $0x850] sm:$0xff]
  %v735 = vld [vmem:[%s1 + $0x858] sm:$0xff]
  %v736 = vld [vmem:[%s1 + $0x860] sm:$0xff]
  %v737 = vld [vmem:[%s1 + $0x868] sm:$0xff]
  %v738 = vld [vmem:[%s1 + $0x870] sm:$0xff]
  %v739 = vld [vmem:[%s1 + $0x878] sm:$0xff]
  %v740 = vld [vmem:[%s1 + $0x880] sm:$0xff]
  %v741 = vld [vmem:[%s1 + $0x888] sm:$0xff]
  %v742 = vld [vmem:[%s1 + $0x890] sm:$0xff]
  %v743 = vld [vmem:[%s1 + $0x898] sm:$0xff]
  %v744 = vld [vmem:[%s1 + $0x8a0] sm:$0xff]
  %v745 = vld [vmem:[%s1 + $0x8a8] sm:$0xff]
  %v746 = vld [vmem:[%s1 + $0x8b0] sm:$0xff]
  %v747 = vld [vmem:[%s1 + $0x8b8] sm:$0xff]
  %v748 = vld [vmem:[%s1 + $0x8c0] sm:$0xff]
  %v749 = vld [vmem:[%s1 + $0x8c8] sm:$0xff]
  %v750 = vld [vmem:[%s1 + $0x8d0] sm:$0xff]
  %v751 = vld [vmem:[%s1 + $0x8d8] sm:$0xff]
  %v752 = vld [vmem:[%s1 + $0x8e0] sm:$0xff]
  %v753 = vld [vmem:[%s1 + $0x8e8] sm:$0xff]
  %v754 = vld [vmem:[%s1 + $0x8f0] sm:$0xff]
  %v755 = vld [vmem:[%s1 + $0x8f8] sm:$0xff]
  %v756 = vld [vmem:[%s1 + $0x900] sm:$0xff]
  %v757 = vld [vmem:[%s1 + $0x908] sm:$0xff]
  %v758 = vld [vmem:[%s1 + $0x910] sm:$0xff]
  %v759 = vld [vmem:[%s1 + $0x918] sm:$0xff]
  %v760 = vld [vmem:[%s1 + $0x920] sm:$0xff]
  %v761 = vld [vmem:[%s1 + $0x928] sm:$0xff]
  %v762 = vld [vmem:[%s1 + $0x930] sm:$0xff]
  %v763 = vld [vmem:[%s1 + $0x938] sm:$0xff]
  %v764 = vld [vmem:[%s1 + $0x940] sm:$0xff]
  %v765 = vld [vmem:[%s1 + $0x948] sm:$0xff]
  %v766 = vld [vmem:[%s1 + $0x950] sm:$0xff]
  %v767 = vld [vmem:[%s1 + $0x958] sm:$0xff]
  %v768 = vld [vmem:[%s1 + $0x960] sm:$0xff]
  %v769 = vld [vmem:[%s1 + $0x968] sm:$0xff]
  %v770 = vld [vmem:[%s1 + $0x970] sm:$0xff]
  %v771 = vld [vmem:[%s1 + $0x978] sm:$0xff]
  %v772 = vld [vmem:[%s1 + $0x980] sm:$0xff]
  %v773 = vld [vmem:[%s1 + $0x988] sm:$0xff]
  %v774 = vld [vmem:[%s1 + $0x990] sm:$0xff]
  %v775 = vld [vmem:[%s1 + $0x998] sm:$0xff]
  %v776 = vld [vmem:[%s1 + $0x9a0] sm:$0xff]
  %v777 = vld [vmem:[%s1 + $0x9a8] sm:$0xff]
  %v778 = vld [vmem:[%s1 + $0x9b0] sm:$0xff]
  %v779 = vld [vmem:[%s1 + $0x9b8] sm:$0xff]
  %v780 = vld [vmem:[%s1 + $0x9c0] sm:$0xff]
  %v781 = vld [vmem:[%s1 + $0x9c8] sm:$0xff]
  %v782 = vld [vmem:[%s1 + $0x9d0] sm:$0xff]
  %v783 = vld [vmem:[%s1 + $0x9d8] sm:$0xff]
  %v784 = vld [vmem:[%s1 + $0x9e0] sm:$0xff]
  %v785 = vld [vmem:[%s1 + $0x9e8] sm:$0xff]
  %v786 = vld [vmem:[%s1 + $0x9f0] sm:$0xff]
  %v787 = vld [vmem:[%s1 + $0x9f8] sm:$0xff]
  %v788 = vld [vmem:[%s1 + $0xa00] sm:$0xff]
  %v789 = vld [vmem:[%s1 + $0xa08] sm:$0xff]
  %v790 = vld [vmem:[%s1 + $0xa10] sm:$0xff]
  %v791 = vld [vmem:[%s1 + $0xa18] sm:$0xff]
  %v792 = vld [vmem:[%s1 + $0xa20] sm:$0xff]
  %v793 = vld [vmem:[%s1 + $0xa28] sm:$0xff]
  %v794 = vld [vmem:[%s1 + $0xa30] sm:$0xff]
  %v795 = vld [vmem:[%s1 + $0xa38] sm:$0xff]
  %v796 = vld [vmem:[%s1 + $0xa40] sm:$0xff]
  %v797 = vld [vmem:[%s1 + $0xa48] sm:$0xff]
  %v798 = vld [vmem:[%s1 + $0xa50] sm:$0xff]
  %v799 = vld [vmem:[%s1 + $0xa58] sm:$0xff]
  %v800 = vld [vmem:[%s1 + $0xa60] sm:$0xff]
  %v801 = vld [vmem:[%s1 + $0xa68] sm:$0xff]
  %v802 = vld [vmem:[%s1 + $0xa70] sm:$0xff]
  %v803 = vld [vmem:[%s1 + $0xa78] sm:$0xff]
  %v804 = vld [vmem:[%s1 + $0xa80] sm:$0xff]
  %v805 = vld [vmem:[%s1 + $0xa88] sm:$0xff]
  %v806 = vld [vmem:[%s1 + $0xa90] sm:$0xff]
  %v807 = vld [vmem:[%s1 + $0xa98] sm:$0xff]
  %v808 = vld [vmem:[%s1 + $0xaa0] sm:$0xff]
  %v809 = vld [vmem:[%s1 + $0xaa8] sm:$0xff]
  %v810 = vld [vmem:[%s1 + $0xab0] sm:$0xff]
  %v811 = vld [vmem:[%s1 + $0xab8] sm:$0xff]
  %v812 = vld [vmem:[%s1 + $0xac0] sm:$0xff]
  %v813 = vld [vmem:[%s1 + $0xac8] sm:$0xff]
  %v814 = vld [vmem:[%s1 + $0xad0] sm:$0xff]
  %v815 = vld [vmem:[%s1 + $0xad8] sm:$0xff]
  %v816 = vld [vmem:[%s1 + $0xae0] sm:$0xff]
  %v817 = vld [vmem:[%s1 + $0xae8] sm:$0xff]
  %v818 = vld [vmem:[%s1 + $0xaf0] sm:$0xff]
  %v819 = vld [vmem:[%s1 + $0xaf8] sm:$0xff]
  %v820 = vld [vmem:[%s1 + $0xb00] sm:$0xff]
  %v821 = vld [vmem:[%s1 + $0xb08] sm:$0xff]
  %v822 = vld [vmem:[%s1 + $0xb10] sm:$0xff]
  %v823 = vld [vmem:[%s1 + $0xb18] sm:$0xff]
  %v824 = vld [vmem:[%s1 + $0xb20] sm:$0xff]
  %v825 = vld [vmem:[%s1 + $0xb28] sm:$0xff]
  %v826 = vld [vmem:[%s1 + $0xb30] sm:$0xff]
  %v827 = vld [vmem:[%s1 + $0xb38] sm:$0xff]
  %v828 = vld [vmem:[%s1 + $0xb40] sm:$0xff]
  %v829 = vld [vmem:[%s1 + $0xb48] sm:$0xff]
  %v830 = vld [vmem:[%s1 + $0xb50] sm:$0xff]
  %v831 = vld [vmem:[%s1 + $0xb58] sm:$0xff]
  %v832 = vld [vmem:[%s1 + $0xb60] sm:$0xff]
  %v833 = vld [vmem:[%s1 + $0xb68] sm:$0xff]
  %v834 = vld [vmem:[%s1 + $0xb70] sm:$0xff]
  %v835 = vld [vmem:[%s1 + $0xb78] sm:$0xff]
  %v836 = vld [vmem:[%s1 + $0xb80] sm:$0xff]
  %v837 = vld [vmem:[%s1 + $0xb88] sm:$0xff]
  %v838 = vld [vmem:[%s1 + $0xb90] sm:$0xff]
  %v839 = vld [vmem:[%s1 + $0xb98] sm:$0xff]
  %v840 = vld [vmem:[%s1 + $0xba0] sm:$0xff]
  %v841 = vld [vmem:[%s1 + $0xba8] sm:$0xff]
  %v842 = vld [vmem:[%s1 + $0xbb0] sm:$0xff]
  %v843 = vld [vmem:[%s1 + $0xbb8] sm:$0xff]
  %v844 = vld [vmem:[%s1 + $0xbc0] sm:$0xff]
  %v845 = vld [vmem:[%s1 + $0xbc8] sm:$0xff]
  %v846 = vld [vmem:[%s1 + $0xbd0] sm:$0xff]
  %v847 = vld [vmem:[%s1 + $0xbd8] sm:$0xff]
  %v848 = vld [vmem:[%s1 + $0xbe0] sm:$0xff]
  %v849 = vld [vmem:[%s1 + $0xbe8] sm:$0xff]
  %v850 = vld [vmem:[%s1 + $0xbf0] sm:$0xff]
  %v851 = vld [vmem:[%s1 + $0xbf8] sm:$0xff]
  %v852 = vld [vmem:[%s1 + $0xc00] sm:$0xff]
  %v853 = vld [vmem:[%s1 + $0xc08] sm:$0xff]
  %v854 = vld [vmem:[%s1 + $0xc10] sm:$0xff]
  %v855 = vld [vmem:[%s1 + $0xc18] sm:$0xff]
  %v856 = vld [vmem:[%s1 + $0xc20] sm:$0xff]
  %v857 = vld [vmem:[%s1 + $0xc28] sm:$0xff]
  %v858 = vld [vmem:[%s1 + $0xc30] sm:$0xff]
  %v859 = vld [vmem:[%s1 + $0xc38] sm:$0xff]
  %v860 = vld [vmem:[%s1 + $0xc40] sm:$0xff]
  %v861 = vld [vmem:[%s1 + $0xc48] sm:$0xff]
  %v862 = vld [vmem:[%s1 + $0xc50] sm:$0xff]
  %v863 = vld [vmem:[%s1 + $0xc58] sm:$0xff]
  %v864 = vld [vmem:[%s1 + $0xc60] sm:$0xff]
  %v865 = vld [vmem:[%s1 + $0xc68] sm:$0xff]
  %v866 = vld [vmem:[%s1 + $0xc70] sm:$0xff]
  %v867 = vld [vmem:[%s1 + $0xc78] sm:$0xff]
  %v868 = vld [vmem:[%s1 + $0xc80] sm:$0xff]
  %v869 = vld [vmem:[%s1 + $0xc88] sm:$0xff]
  %v870 = vld [vmem:[%s1 + $0xc90] sm:$0xff]
  %v871 = vld [vmem:[%s1 + $0xc98] sm:$0xff]
  %v872 = vld [vmem:[%s1 + $0xca0] sm:$0xff]
  %v873 = vld [vmem:[%s1 + $0xca8] sm:$0xff]
  %v874 = vld [vmem:[%s1 + $0xcb0] sm:$0xff]
  %v875 = vld [vmem:[%s1 + $0xcb8] sm:$0xff]
  %v876 = vld [vmem:[%s1 + $0xcc0] sm:$0xff]
  %v877 = vld [vmem:[%s1 + $0xcc8] sm:$0xff]
  %v878 = vld [vmem:[%s1 + $0xcd0] sm:$0xff]
  %v879 = vld [vmem:[%s1 + $0xcd8] sm:$0xff]
  %v880 = vld [vmem:[%s1 + $0xce0] sm:$0xff]
  %v881 = vld [vmem:[%s1 + $0xce8] sm:$0xff]
  %v882 = vld [vmem:[%s1 + $0xcf0] sm:$0xff]
  %v883 = vld [vmem:[%s1 + $0xcf8] sm:$0xff]
  %v884 = vld [vmem:[%s1 + $0xd00] sm:$0xff]
  %v885 = vld [vmem:[%s1 + $0xd08] sm:$0xff]
  %v886 = vld [vmem:[%s1 + $0xd10] sm:$0xff]
  %v887 = vld [vmem:[%s1 + $0xd18] sm:$0xff]
  %v888 = vld [vmem:[%s1 + $0xd20] sm:$0xff]
  %v889 = vld [vmem:[%s1 + $0xd28] sm:$0xff]
  %v890 = vld [vmem:[%s1 + $0xd30] sm:$0xff]
  %v891 = vld [vmem:[%s1 + $0xd38] sm:$0xff]
  %v892 = vld [vmem:[%s1 + $0xd40] sm:$0xff]
  %v893 = vld [vmem:[%s1 + $0xd48] sm:$0xff]
  %v894 = vld [vmem:[%s1 + $0xd50] sm:$0xff]
  %v895 = vld [vmem:[%s1 + $0xd58] sm:$0xff]
  %v896 = vld [vmem:[%s1 + $0xd60] sm:$0xff]
  %v897 = vld [vmem:[%s1 + $0xd68] sm:$0xff]
  %v898 = vld [vmem:[%s1 + $0xd70] sm:$0xff]
  %v899 = vld [vmem:[%s1 + $0xd78] sm:$0xff]
  %v900 = vld [vmem:[%s2] sm:$0xff]
  %v901 = vld [vmem:[%s2 + $0x8] sm:$0xff]
  %v904 = vlaneseq
  %v905 = vshrl.u32 %v904, 7
  %v906 = vsub.s32 0, %v905
  %v907 = vrot.slane %v900, %v906
  %v908 = vlaneseq
  %v909 = vshrl.u32 %v908, 7
  %v910 = vsub.s32 1, %v909
  %v911 = vrot.slane %v900, %v910
  %v912 = vlaneseq
  %v913 = vshrl.u32 %v912, 7
  %v914 = vsub.s32 2, %v913
  %v915 = vrot.slane %v900, %v914
  %v916 = vlaneseq
  %v917 = vshrl.u32 %v916, 7
  %v918 = vsub.s32 3, %v917
  %v919 = vrot.slane %v900, %v918
  %v920 = vlaneseq
  %v921 = vshrl.u32 %v920, 7
  %v922 = vsub.s32 4, %v921
  %v923 = vrot.slane %v900, %v922
  %v924 = vlaneseq
  %v925 = vshrl.u32 %v924, 7
  %v926 = vsub.s32 5, %v925
  %v927 = vrot.slane %v900, %v926
  %v928 = vlaneseq
  %v929 = vshrl.u32 %v928, 7
  %v930 = vsub.s32 6, %v929
  %v931 = vrot.slane %v900, %v930
  %v932 = vlaneseq
  %v933 = vshrl.u32 %v932, 7
  %v934 = vsub.s32 7, %v933
  %v935 = vrot.slane %v900, %v934
  %v936 = vlaneseq
  %v937 = vshrl.u32 %v936, 7
  %v938 = vsub.s32 0, %v937
  %v939 = vrot.slane %v901, %v938
  %v940 = vlaneseq
  %v941 = vshrl.u32 %v940, 7
  %v942 = vsub.s32 1, %v941
  %v943 = vrot.slane %v901, %v942
  %v944 = vlaneseq
  %v945 = vshrl.u32 %v944, 7
  %v946 = vsub.s32 2, %v945
  %v947 = vrot.slane %v901, %v946
  %v948 = vlaneseq
  %v949 = vshrl.u32 %v948, 7
  %v950 = vsub.s32 3, %v949
  %v951 = vrot.slane %v901, %v950
  %v952 = vlaneseq
  %v953 = vshrl.u32 %v952, 7
  %v954 = vsub.s32 4, %v953
  %v955 = vrot.slane %v901, %v954
  %v956 = vlaneseq
  %v957 = vshrl.u32 %v956, 7
  %v958 = vsub.s32 5, %v957
  %v959 = vrot.slane %v901, %v958
  %v960 = vlaneseq
  %v961 = vshrl.u32 %v960, 7
  %v962 = vsub.s32 6, %v961
  %v963 = vrot.slane %v901, %v962
  %v964 = vlaneseq
  %v965 = vshrl.u32 %v964, 7
  %v966 = vsub.s32 7, %v965
  %v967 = vrot.slane %v901, %v966
  %v1416 = vunpack.c.l.b16 %v468
  %v1417 = vunpack.c.h.b16 %v468
  %v1418 = vunpack.c.l.b16 %v469
  %v1419 = vunpack.c.h.b16 %v469
  %v1420 = vunpack.c.l.b16 %v470
  %v1421 = vunpack.c.h.b16 %v470
  %v1422 = vunpack.c.l.b16 %v471
  %v1423 = vunpack.c.h.b16 %v471
  %v1424 = vunpack.c.l.b16 %v472
  %v1425 = vunpack.c.h.b16 %v472
  %v1426 = vunpack.c.l.b16 %v473
  %v1427 = vunpack.c.h.b16 %v473
  %v1428 = vunpack.c.l.b16 %v474
  %v1429 = vunpack.c.h.b16 %v474
  %v1430 = vunpack.c.l.b16 %v475
  %v1431 = vunpack.c.h.b16 %v475
  %v1432 = vunpack.c.l.b16 %v476
  %v1433 = vunpack.c.h.b16 %v476
  %v1434 = vunpack.c.l.b16 %v477
  %v1435 = vunpack.c.h.b16 %v477
  %v1436 = vunpack.c.l.b16 %v478
  %v1437 = vunpack.c.h.b16 %v478
  %v1438 = vunpack.c.l.b16 %v479
  %v1439 = vunpack.c.h.b16 %v479
  %v1440 = vunpack.c.l.b16 %v480
  %v1441 = vunpack.c.h.b16 %v480
  %v1442 = vunpack.c.l.b16 %v481
  %v1443 = vunpack.c.h.b16 %v481
  %v1444 = vunpack.c.l.b16 %v482
  %v1445 = vunpack.c.h.b16 %v482
  %v1446 = vunpack.c.l.b16 %v483
  %v1447 = vunpack.c.h.b16 %v483
  %v1448 = vunpack.c.l.b16 %v484
  %v1449 = vunpack.c.h.b16 %v484
  %v1450 = vunpack.c.l.b16 %v485
  %v1451 = vunpack.c.h.b16 %v485
  %v1452 = vunpack.c.l.b16 %v486
  %v1453 = vunpack.c.h.b16 %v486
  %v1454 = vunpack.c.l.b16 %v487
  %v1455 = vunpack.c.h.b16 %v487
  %v1456 = vunpack.c.l.b16 %v488
  %v1457 = vunpack.c.h.b16 %v488
  %v1458 = vunpack.c.l.b16 %v489
  %v1459 = vunpack.c.h.b16 %v489
  %v1460 = vunpack.c.l.b16 %v490
  %v1461 = vunpack.c.h.b16 %v490
  %v1462 = vunpack.c.l.b16 %v491
  %v1463 = vunpack.c.h.b16 %v491
  %v1464 = vunpack.c.l.b16 %v492
  %v1465 = vunpack.c.h.b16 %v492
  %v1466 = vunpack.c.l.b16 %v493
  %v1467 = vunpack.c.h.b16 %v493
  %v1468 = vunpack.c.l.b16 %v494
  %v1469 = vunpack.c.h.b16 %v494
  %v1470 = vunpack.c.l.b16 %v495
  %v1471 = vunpack.c.h.b16 %v495
  %v1472 = vunpack.c.l.b16 %v496
  %v1473 = vunpack.c.h.b16 %v496
  %v1474 = vunpack.c.l.b16 %v497
  %v1475 = vunpack.c.h.b16 %v497
  %v1476 = vunpack.c.l.b16 %v498
  %v1477 = vunpack.c.h.b16 %v498
  %v1478 = vunpack.c.l.b16 %v499
  %v1479 = vunpack.c.h.b16 %v499
  %v1480 = vunpack.c.l.b16 %v500
  %v1481 = vunpack.c.h.b16 %v500
  %v1482 = vunpack.c.l.b16 %v501
  %v1483 = vunpack.c.h.b16 %v501
  %v1484 = vunpack.c.l.b16 %v502
  %v1485 = vunpack.c.h.b16 %v502
  %v1486 = vunpack.c.l.b16 %v503
  %v1487 = vunpack.c.h.b16 %v503
  %v1488 = vunpack.c.l.b16 %v504
  %v1489 = vunpack.c.h.b16 %v504
  %v1490 = vunpack.c.l.b16 %v505
  %v1491 = vunpack.c.h.b16 %v505
  %v1492 = vunpack.c.l.b16 %v506
  %v1493 = vunpack.c.h.b16 %v506
  %v1494 = vunpack.c.l.b16 %v507
  %v1495 = vunpack.c.h.b16 %v507
  %v1496 = vunpack.c.l.b16 %v508
  %v1497 = vunpack.c.h.b16 %v508
  %v1498 = vunpack.c.l.b16 %v509
  %v1499 = vunpack.c.h.b16 %v509
  %v1500 = vunpack.c.l.b16 %v510
  %v1501 = vunpack.c.h.b16 %v510
  %v1502 = vunpack.c.l.b16 %v511
  %v1503 = vunpack.c.h.b16 %v511
  %v1504 = vunpack.c.l.b16 %v512
  %v1505 = vunpack.c.h.b16 %v512
  %v1506 = vunpack.c.l.b16 %v513
  %v1507 = vunpack.c.h.b16 %v513
  %v1508 = vunpack.c.l.b16 %v514
  %v1509 = vunpack.c.h.b16 %v514
  %v1510 = vunpack.c.l.b16 %v515
  %v1511 = vunpack.c.h.b16 %v515
  %v1512 = vunpack.c.l.b16 %v516
  %v1513 = vunpack.c.h.b16 %v516
  %v1514 = vunpack.c.l.b16 %v517
  %v1515 = vunpack.c.h.b16 %v517
  %v1516 = vunpack.c.l.b16 %v518
  %v1517 = vunpack.c.h.b16 %v518
  %v1518 = vunpack.c.l.b16 %v519
  %v1519 = vunpack.c.h.b16 %v519
  %v1520 = vunpack.c.l.b16 %v520
  %v1521 = vunpack.c.h.b16 %v520
  %v1522 = vunpack.c.l.b16 %v521
  %v1523 = vunpack.c.h.b16 %v521
  %v1524 = vunpack.c.l.b16 %v522
  %v1525 = vunpack.c.h.b16 %v522
  %v1526 = vunpack.c.l.b16 %v523
  %v1527 = vunpack.c.h.b16 %v523
  %v1528 = vunpack.c.l.b16 %v524
  %v1529 = vunpack.c.h.b16 %v524
  %v1530 = vunpack.c.l.b16 %v525
  %v1531 = vunpack.c.h.b16 %v525
  %v1532 = vunpack.c.l.b16 %v526
  %v1533 = vunpack.c.h.b16 %v526
  %v1534 = vunpack.c.l.b16 %v527
  %v1535 = vunpack.c.h.b16 %v527
  %v1536 = vunpack.c.l.b16 %v528
  %v1537 = vunpack.c.h.b16 %v528
  %v1538 = vunpack.c.l.b16 %v529
  %v1539 = vunpack.c.h.b16 %v529
  %v1540 = vunpack.c.l.b16 %v530
  %v1541 = vunpack.c.h.b16 %v530
  %v1542 = vunpack.c.l.b16 %v531
  %v1543 = vunpack.c.h.b16 %v531
  %v1544 = vunpack.c.l.b16 %v532
  %v1545 = vunpack.c.h.b16 %v532
  %v1546 = vunpack.c.l.b16 %v533
  %v1547 = vunpack.c.h.b16 %v533
  %v1548 = vunpack.c.l.b16 %v534
  %v1549 = vunpack.c.h.b16 %v534
  %v1550 = vunpack.c.l.b16 %v535
  %v1551 = vunpack.c.h.b16 %v535
  %v1552 = vunpack.c.l.b16 %v536
  %v1553 = vunpack.c.h.b16 %v536
  %v1554 = vunpack.c.l.b16 %v537
  %v1555 = vunpack.c.h.b16 %v537
  %v1556 = vunpack.c.l.b16 %v538
  %v1557 = vunpack.c.h.b16 %v538
  %v1558 = vunpack.c.l.b16 %v539
  %v1559 = vunpack.c.h.b16 %v539
  %v1560 = vunpack.c.l.b16 %v540
  %v1561 = vunpack.c.h.b16 %v540
  %v1562 = vunpack.c.l.b16 %v541
  %v1563 = vunpack.c.h.b16 %v541
  %v1564 = vunpack.c.l.b16 %v542
  %v1565 = vunpack.c.h.b16 %v542
  %v1566 = vunpack.c.l.b16 %v543
  %v1567 = vunpack.c.h.b16 %v543
  %v1568 = vunpack.c.l.b16 %v544
  %v1569 = vunpack.c.h.b16 %v544
  %v1570 = vunpack.c.l.b16 %v545
  %v1571 = vunpack.c.h.b16 %v545
  %v1572 = vunpack.c.l.b16 %v546
  %v1573 = vunpack.c.h.b16 %v546
  %v1574 = vunpack.c.l.b16 %v547
  %v1575 = vunpack.c.h.b16 %v547
  %v1576 = vunpack.c.l.b16 %v548
  %v1577 = vunpack.c.h.b16 %v548
  %v1578 = vunpack.c.l.b16 %v549
  %v1579 = vunpack.c.h.b16 %v549
  %v1580 = vunpack.c.l.b16 %v550
  %v1581 = vunpack.c.h.b16 %v550
  %v1582 = vunpack.c.l.b16 %v551
  %v1583 = vunpack.c.h.b16 %v551
  %v1584 = vunpack.c.l.b16 %v552
  %v1585 = vunpack.c.h.b16 %v552
  %v1586 = vunpack.c.l.b16 %v553
  %v1587 = vunpack.c.h.b16 %v553
  %v1588 = vunpack.c.l.b16 %v554
  %v1589 = vunpack.c.h.b16 %v554
  %v1590 = vunpack.c.l.b16 %v555
  %v1591 = vunpack.c.h.b16 %v555
  %v1592 = vunpack.c.l.b16 %v556
  %v1593 = vunpack.c.h.b16 %v556
  %v1594 = vunpack.c.l.b16 %v557
  %v1595 = vunpack.c.h.b16 %v557
  %v1596 = vunpack.c.l.b16 %v558
  %v1597 = vunpack.c.h.b16 %v558
  %v1598 = vunpack.c.l.b16 %v559
  %v1599 = vunpack.c.h.b16 %v559
  %v1600 = vunpack.c.l.b16 %v560
  %v1601 = vunpack.c.h.b16 %v560
  %v1602 = vunpack.c.l.b16 %v561
  %v1603 = vunpack.c.h.b16 %v561
  %v1604 = vunpack.c.l.b16 %v562
  %v1605 = vunpack.c.h.b16 %v562
  %v1606 = vunpack.c.l.b16 %v563
  %v1607 = vunpack.c.h.b16 %v563
  %v1608 = vunpack.c.l.b16 %v564
  %v1609 = vunpack.c.h.b16 %v564
  %v1610 = vunpack.c.l.b16 %v565
  %v1611 = vunpack.c.h.b16 %v565
  %v1612 = vunpack.c.l.b16 %v566
  %v1613 = vunpack.c.h.b16 %v566
  %v1614 = vunpack.c.l.b16 %v567
  %v1615 = vunpack.c.h.b16 %v567
  %v1616 = vunpack.c.l.b16 %v568
  %v1617 = vunpack.c.h.b16 %v568
  %v1618 = vunpack.c.l.b16 %v569
  %v1619 = vunpack.c.h.b16 %v569
  %v1620 = vunpack.c.l.b16 %v570
  %v1621 = vunpack.c.h.b16 %v570
  %v1622 = vunpack.c.l.b16 %v571
  %v1623 = vunpack.c.h.b16 %v571
  %v1624 = vunpack.c.l.b16 %v572
  %v1625 = vunpack.c.h.b16 %v572
  %v1626 = vunpack.c.l.b16 %v573
  %v1627 = vunpack.c.h.b16 %v573
  %v1628 = vunpack.c.l.b16 %v574
  %v1629 = vunpack.c.h.b16 %v574
  %v1630 = vunpack.c.l.b16 %v575
  %v1631 = vunpack.c.h.b16 %v575
  %v1632 = vunpack.c.l.b16 %v576
  %v1633 = vunpack.c.h.b16 %v576
  %v1634 = vunpack.c.l.b16 %v577
  %v1635 = vunpack.c.h.b16 %v577
  %v1636 = vunpack.c.l.b16 %v578
  %v1637 = vunpack.c.h.b16 %v578
  %v1638 = vunpack.c.l.b16 %v579
  %v1639 = vunpack.c.h.b16 %v579
  %v1640 = vunpack.c.l.b16 %v580
  %v1641 = vunpack.c.h.b16 %v580
  %v1642 = vunpack.c.l.b16 %v581
  %v1643 = vunpack.c.h.b16 %v581
  %v1644 = vunpack.c.l.b16 %v582
  %v1645 = vunpack.c.h.b16 %v582
  %v1646 = vunpack.c.l.b16 %v583
  %v1647 = vunpack.c.h.b16 %v583
  %v1648 = vunpack.c.l.b16 %v584
  %v1649 = vunpack.c.h.b16 %v584
  %v1650 = vunpack.c.l.b16 %v585
  %v1651 = vunpack.c.h.b16 %v585
  %v1652 = vunpack.c.l.b16 %v586
  %v1653 = vunpack.c.h.b16 %v586
  %v1654 = vunpack.c.l.b16 %v587
  %v1655 = vunpack.c.h.b16 %v587
  %v1656 = vunpack.c.l.b16 %v588
  %v1657 = vunpack.c.h.b16 %v588
  %v1658 = vunpack.c.l.b16 %v589
  %v1659 = vunpack.c.h.b16 %v589
  %v1660 = vunpack.c.l.b16 %v590
  %v1661 = vunpack.c.h.b16 %v590
  %v1662 = vunpack.c.l.b16 %v591
  %v1663 = vunpack.c.h.b16 %v591
  %v1664 = vunpack.c.l.b16 %v592
  %v1665 = vunpack.c.h.b16 %v592
  %v1666 = vunpack.c.l.b16 %v593
  %v1667 = vunpack.c.h.b16 %v593
  %v1668 = vunpack.c.l.b16 %v594
  %v1669 = vunpack.c.h.b16 %v594
  %v1670 = vunpack.c.l.b16 %v595
  %v1671 = vunpack.c.h.b16 %v595
  %v1672 = vunpack.c.l.b16 %v596
  %v1673 = vunpack.c.h.b16 %v596
  %v1674 = vunpack.c.l.b16 %v597
  %v1675 = vunpack.c.h.b16 %v597
  %v1676 = vunpack.c.l.b16 %v598
  %v1677 = vunpack.c.h.b16 %v598
  %v1678 = vunpack.c.l.b16 %v599
  %v1679 = vunpack.c.h.b16 %v599
  %v1680 = vunpack.c.l.b16 %v600
  %v1681 = vunpack.c.h.b16 %v600
  %v1682 = vunpack.c.l.b16 %v601
  %v1683 = vunpack.c.h.b16 %v601
  %v1684 = vunpack.c.l.b16 %v602
  %v1685 = vunpack.c.h.b16 %v602
  %v1686 = vunpack.c.l.b16 %v603
  %v1687 = vunpack.c.h.b16 %v603
  %v1688 = vunpack.c.l.b16 %v604
  %v1689 = vunpack.c.h.b16 %v604
  %v1690 = vunpack.c.l.b16 %v605
  %v1691 = vunpack.c.h.b16 %v605
  %v1692 = vunpack.c.l.b16 %v606
  %v1693 = vunpack.c.h.b16 %v606
  %v1694 = vunpack.c.l.b16 %v607
  %v1695 = vunpack.c.h.b16 %v607
  %v1696 = vunpack.c.l.b16 %v608
  %v1697 = vunpack.c.h.b16 %v608
  %v1698 = vunpack.c.l.b16 %v609
  %v1699 = vunpack.c.h.b16 %v609
  %v1700 = vunpack.c.l.b16 %v610
  %v1701 = vunpack.c.h.b16 %v610
  %v1702 = vunpack.c.l.b16 %v611
  %v1703 = vunpack.c.h.b16 %v611
  %v1704 = vunpack.c.l.b16 %v612
  %v1705 = vunpack.c.h.b16 %v612
  %v1706 = vunpack.c.l.b16 %v613
  %v1707 = vunpack.c.h.b16 %v613
  %v1708 = vunpack.c.l.b16 %v614
  %v1709 = vunpack.c.h.b16 %v614
  %v1710 = vunpack.c.l.b16 %v615
  %v1711 = vunpack.c.h.b16 %v615
  %v1712 = vunpack.c.l.b16 %v616
  %v1713 = vunpack.c.h.b16 %v616
  %v1714 = vunpack.c.l.b16 %v617
  %v1715 = vunpack.c.h.b16 %v617
  %v1716 = vunpack.c.l.b16 %v618
  %v1717 = vunpack.c.h.b16 %v618
  %v1718 = vunpack.c.l.b16 %v619
  %v1719 = vunpack.c.h.b16 %v619
  %v1720 = vunpack.c.l.b16 %v620
  %v1721 = vunpack.c.h.b16 %v620
  %v1722 = vunpack.c.l.b16 %v621
  %v1723 = vunpack.c.h.b16 %v621
  %v1724 = vunpack.c.l.b16 %v622
  %v1725 = vunpack.c.h.b16 %v622
  %v1726 = vunpack.c.l.b16 %v623
  %v1727 = vunpack.c.h.b16 %v623
  %v1728 = vunpack.c.l.b16 %v624
  %v1729 = vunpack.c.h.b16 %v624
  %v1730 = vunpack.c.l.b16 %v625
  %v1731 = vunpack.c.h.b16 %v625
  %v1732 = vunpack.c.l.b16 %v626
  %v1733 = vunpack.c.h.b16 %v626
  %v1734 = vunpack.c.l.b16 %v627
  %v1735 = vunpack.c.h.b16 %v627
  %v1736 = vunpack.c.l.b16 %v628
  %v1737 = vunpack.c.h.b16 %v628
  %v1738 = vunpack.c.l.b16 %v629
  %v1739 = vunpack.c.h.b16 %v629
  %v1740 = vunpack.c.l.b16 %v630
  %v1741 = vunpack.c.h.b16 %v630
  %v1742 = vunpack.c.l.b16 %v631
  %v1743 = vunpack.c.h.b16 %v631
  %v1744 = vunpack.c.l.b16 %v632
  %v1745 = vunpack.c.h.b16 %v632
  %v1746 = vunpack.c.l.b16 %v633
  %v1747 = vunpack.c.h.b16 %v633
  %v1748 = vunpack.c.l.b16 %v634
  %v1749 = vunpack.c.h.b16 %v634
  %v1750 = vunpack.c.l.b16 %v635
  %v1751 = vunpack.c.h.b16 %v635
  %v1752 = vunpack.c.l.b16 %v636
  %v1753 = vunpack.c.h.b16 %v636
  %v1754 = vunpack.c.l.b16 %v637
  %v1755 = vunpack.c.h.b16 %v637
  %v1756 = vunpack.c.l.b16 %v638
  %v1757 = vunpack.c.h.b16 %v638
  %v1758 = vunpack.c.l.b16 %v639
  %v1759 = vunpack.c.h.b16 %v639
  %v1760 = vunpack.c.l.b16 %v640
  %v1761 = vunpack.c.h.b16 %v640
  %v1762 = vunpack.c.l.b16 %v641
  %v1763 = vunpack.c.h.b16 %v641
  %v1764 = vunpack.c.l.b16 %v642
  %v1765 = vunpack.c.h.b16 %v642
  %v1766 = vunpack.c.l.b16 %v643
  %v1767 = vunpack.c.h.b16 %v643
  %v1768 = vunpack.c.l.b16 %v644
  %v1769 = vunpack.c.h.b16 %v644
  %v1770 = vunpack.c.l.b16 %v645
  %v1771 = vunpack.c.h.b16 %v645
  %v1772 = vunpack.c.l.b16 %v646
  %v1773 = vunpack.c.h.b16 %v646
  %v1774 = vunpack.c.l.b16 %v647
  %v1775 = vunpack.c.h.b16 %v647
  %v1776 = vunpack.c.l.b16 %v648
  %v1777 = vunpack.c.h.b16 %v648
  %v1778 = vunpack.c.l.b16 %v649
  %v1779 = vunpack.c.h.b16 %v649
  %v1780 = vunpack.c.l.b16 %v650
  %v1781 = vunpack.c.h.b16 %v650
  %v1782 = vunpack.c.l.b16 %v651
  %v1783 = vunpack.c.h.b16 %v651
  %v1784 = vunpack.c.l.b16 %v652
  %v1785 = vunpack.c.h.b16 %v652
  %v1786 = vunpack.c.l.b16 %v653
  %v1787 = vunpack.c.h.b16 %v653
  %v1788 = vunpack.c.l.b16 %v654
  %v1789 = vunpack.c.h.b16 %v654
  %v1790 = vunpack.c.l.b16 %v655
  %v1791 = vunpack.c.h.b16 %v655
  %v1792 = vunpack.c.l.b16 %v656
  %v1793 = vunpack.c.h.b16 %v656
  %v1794 = vunpack.c.l.b16 %v657
  %v1795 = vunpack.c.h.b16 %v657
  %v1796 = vunpack.c.l.b16 %v658
  %v1797 = vunpack.c.h.b16 %v658
  %v1798 = vunpack.c.l.b16 %v659
  %v1799 = vunpack.c.h.b16 %v659
  %v1800 = vunpack.c.l.b16 %v660
  %v1801 = vunpack.c.h.b16 %v660
  %v1802 = vunpack.c.l.b16 %v661
  %v1803 = vunpack.c.h.b16 %v661
  %v1804 = vunpack.c.l.b16 %v662
  %v1805 = vunpack.c.h.b16 %v662
  %v1806 = vunpack.c.l.b16 %v663
  %v1807 = vunpack.c.h.b16 %v663
  %v1808 = vunpack.c.l.b16 %v664
  %v1809 = vunpack.c.h.b16 %v664
  %v1810 = vunpack.c.l.b16 %v665
  %v1811 = vunpack.c.h.b16 %v665
  %v1812 = vunpack.c.l.b16 %v666
  %v1813 = vunpack.c.h.b16 %v666
  %v1814 = vunpack.c.l.b16 %v667
  %v1815 = vunpack.c.h.b16 %v667
  %v1816 = vunpack.c.l.b16 %v668
  %v1817 = vunpack.c.h.b16 %v668
  %v1818 = vunpack.c.l.b16 %v669
  %v1819 = vunpack.c.h.b16 %v669
  %v1820 = vunpack.c.l.b16 %v670
  %v1821 = vunpack.c.h.b16 %v670
  %v1822 = vunpack.c.l.b16 %v671
  %v1823 = vunpack.c.h.b16 %v671
  %v1824 = vunpack.c.l.b16 %v672
  %v1825 = vunpack.c.h.b16 %v672
  %v1826 = vunpack.c.l.b16 %v673
  %v1827 = vunpack.c.h.b16 %v673
  %v1828 = vunpack.c.l.b16 %v674
  %v1829 = vunpack.c.h.b16 %v674
  %v1830 = vunpack.c.l.b16 %v675
  %v1831 = vunpack.c.h.b16 %v675
  %v1832 = vunpack.c.l.b16 %v676
  %v1833 = vunpack.c.h.b16 %v676
  %v1834 = vunpack.c.l.b16 %v677
  %v1835 = vunpack.c.h.b16 %v677
  %v1836 = vunpack.c.l.b16 %v678
  %v1837 = vunpack.c.h.b16 %v678
  %v1838 = vunpack.c.l.b16 %v679
  %v1839 = vunpack.c.h.b16 %v679
  %v1840 = vunpack.c.l.b16 %v680
  %v1841 = vunpack.c.h.b16 %v680
  %v1842 = vunpack.c.l.b16 %v681
  %v1843 = vunpack.c.h.b16 %v681
  %v1844 = vunpack.c.l.b16 %v682
  %v1845 = vunpack.c.h.b16 %v682
  %v1846 = vunpack.c.l.b16 %v683
  %v1847 = vunpack.c.h.b16 %v683
  %v1848 = vunpack.c.l.b16 %v684
  %v1849 = vunpack.c.h.b16 %v684
  %v1850 = vunpack.c.l.b16 %v685
  %v1851 = vunpack.c.h.b16 %v685
  %v1852 = vunpack.c.l.b16 %v686
  %v1853 = vunpack.c.h.b16 %v686
  %v1854 = vunpack.c.l.b16 %v687
  %v1855 = vunpack.c.h.b16 %v687
  %v1856 = vunpack.c.l.b16 %v688
  %v1857 = vunpack.c.h.b16 %v688
  %v1858 = vunpack.c.l.b16 %v689
  %v1859 = vunpack.c.h.b16 %v689
  %v1860 = vunpack.c.l.b16 %v690
  %v1861 = vunpack.c.h.b16 %v690
  %v1862 = vunpack.c.l.b16 %v691
  %v1863 = vunpack.c.h.b16 %v691
  %v1864 = vunpack.c.l.b16 %v692
  %v1865 = vunpack.c.h.b16 %v692
  %v1866 = vunpack.c.l.b16 %v693
  %v1867 = vunpack.c.h.b16 %v693
  %v1868 = vunpack.c.l.b16 %v694
  %v1869 = vunpack.c.h.b16 %v694
  %v1870 = vunpack.c.l.b16 %v695
  %v1871 = vunpack.c.h.b16 %v695
  %v1872 = vunpack.c.l.b16 %v696
  %v1873 = vunpack.c.h.b16 %v696
  %v1874 = vunpack.c.l.b16 %v697
  %v1875 = vunpack.c.h.b16 %v697
  %v1876 = vunpack.c.l.b16 %v698
  %v1877 = vunpack.c.h.b16 %v698
  %v1878 = vunpack.c.l.b16 %v699
  %v1879 = vunpack.c.h.b16 %v699
  %v1880 = vunpack.c.l.b16 %v700
  %v1881 = vunpack.c.h.b16 %v700
  %v1882 = vunpack.c.l.b16 %v701
  %v1883 = vunpack.c.h.b16 %v701
  %v1884 = vunpack.c.l.b16 %v702
  %v1885 = vunpack.c.h.b16 %v702
  %v1886 = vunpack.c.l.b16 %v703
  %v1887 = vunpack.c.h.b16 %v703
  %v1888 = vunpack.c.l.b16 %v704
  %v1889 = vunpack.c.h.b16 %v704
  %v1890 = vunpack.c.l.b16 %v705
  %v1891 = vunpack.c.h.b16 %v705
  %v1892 = vunpack.c.l.b16 %v706
  %v1893 = vunpack.c.h.b16 %v706
  %v1894 = vunpack.c.l.b16 %v707
  %v1895 = vunpack.c.h.b16 %v707
  %v1896 = vunpack.c.l.b16 %v708
  %v1897 = vunpack.c.h.b16 %v708
  %v1898 = vunpack.c.l.b16 %v709
  %v1899 = vunpack.c.h.b16 %v709
  %v1900 = vunpack.c.l.b16 %v710
  %v1901 = vunpack.c.h.b16 %v710
  %v1902 = vunpack.c.l.b16 %v711
  %v1903 = vunpack.c.h.b16 %v711
  %v1904 = vunpack.c.l.b16 %v712
  %v1905 = vunpack.c.h.b16 %v712
  %v1906 = vunpack.c.l.b16 %v713
  %v1907 = vunpack.c.h.b16 %v713
  %v1908 = vunpack.c.l.b16 %v714
  %v1909 = vunpack.c.h.b16 %v714
  %v1910 = vunpack.c.l.b16 %v715
  %v1911 = vunpack.c.h.b16 %v715
  %v1912 = vunpack.c.l.b16 %v716
  %v1913 = vunpack.c.h.b16 %v716
  %v1914 = vunpack.c.l.b16 %v717
  %v1915 = vunpack.c.h.b16 %v717
  %v1916 = vunpack.c.l.b16 %v718
  %v1917 = vunpack.c.h.b16 %v718
  %v1918 = vunpack.c.l.b16 %v719
  %v1919 = vunpack.c.h.b16 %v719
  %v1920 = vunpack.c.l.b16 %v720
  %v1921 = vunpack.c.h.b16 %v720
  %v1922 = vunpack.c.l.b16 %v721
  %v1923 = vunpack.c.h.b16 %v721
  %v1924 = vunpack.c.l.b16 %v722
  %v1925 = vunpack.c.h.b16 %v722
  %v1926 = vunpack.c.l.b16 %v723
  %v1927 = vunpack.c.h.b16 %v723
  %v1928 = vunpack.c.l.b16 %v724
  %v1929 = vunpack.c.h.b16 %v724
  %v1930 = vunpack.c.l.b16 %v725
  %v1931 = vunpack.c.h.b16 %v725
  %v1932 = vunpack.c.l.b16 %v726
  %v1933 = vunpack.c.h.b16 %v726
  %v1934 = vunpack.c.l.b16 %v727
  %v1935 = vunpack.c.h.b16 %v727
  %v1936 = vunpack.c.l.b16 %v728
  %v1937 = vunpack.c.h.b16 %v728
  %v1938 = vunpack.c.l.b16 %v729
  %v1939 = vunpack.c.h.b16 %v729
  %v1940 = vunpack.c.l.b16 %v730
  %v1941 = vunpack.c.h.b16 %v730
  %v1942 = vunpack.c.l.b16 %v731
  %v1943 = vunpack.c.h.b16 %v731
  %v1944 = vunpack.c.l.b16 %v732
  %v1945 = vunpack.c.h.b16 %v732
  %v1946 = vunpack.c.l.b16 %v733
  %v1947 = vunpack.c.h.b16 %v733
  %v1948 = vunpack.c.l.b16 %v734
  %v1949 = vunpack.c.h.b16 %v734
  %v1950 = vunpack.c.l.b16 %v735
  %v1951 = vunpack.c.h.b16 %v735
  %v1952 = vunpack.c.l.b16 %v736
  %v1953 = vunpack.c.h.b16 %v736
  %v1954 = vunpack.c.l.b16 %v737
  %v1955 = vunpack.c.h.b16 %v737
  %v1956 = vunpack.c.l.b16 %v738
  %v1957 = vunpack.c.h.b16 %v738
  %v1958 = vunpack.c.l.b16 %v739
  %v1959 = vunpack.c.h.b16 %v739
  %v1960 = vunpack.c.l.b16 %v740
  %v1961 = vunpack.c.h.b16 %v740
  %v1962 = vunpack.c.l.b16 %v741
  %v1963 = vunpack.c.h.b16 %v741
  %v1964 = vunpack.c.l.b16 %v742
  %v1965 = vunpack.c.h.b16 %v742
  %v1966 = vunpack.c.l.b16 %v743
  %v1967 = vunpack.c.h.b16 %v743
  %v1968 = vunpack.c.l.b16 %v744
  %v1969 = vunpack.c.h.b16 %v744
  %v1970 = vunpack.c.l.b16 %v745
  %v1971 = vunpack.c.h.b16 %v745
  %v1972 = vunpack.c.l.b16 %v746
  %v1973 = vunpack.c.h.b16 %v746
  %v1974 = vunpack.c.l.b16 %v747
  %v1975 = vunpack.c.h.b16 %v747
  %v1976 = vunpack.c.l.b16 %v748
  %v1977 = vunpack.c.h.b16 %v748
  %v1978 = vunpack.c.l.b16 %v749
  %v1979 = vunpack.c.h.b16 %v749
  %v1980 = vunpack.c.l.b16 %v750
  %v1981 = vunpack.c.h.b16 %v750
  %v1982 = vunpack.c.l.b16 %v751
  %v1983 = vunpack.c.h.b16 %v751
  %v1984 = vunpack.c.l.b16 %v752
  %v1985 = vunpack.c.h.b16 %v752
  %v1986 = vunpack.c.l.b16 %v753
  %v1987 = vunpack.c.h.b16 %v753
  %v1988 = vunpack.c.l.b16 %v754
  %v1989 = vunpack.c.h.b16 %v754
  %v1990 = vunpack.c.l.b16 %v755
  %v1991 = vunpack.c.h.b16 %v755
  %v1992 = vunpack.c.l.b16 %v756
  %v1993 = vunpack.c.h.b16 %v756
  %v1994 = vunpack.c.l.b16 %v757
  %v1995 = vunpack.c.h.b16 %v757
  %v1996 = vunpack.c.l.b16 %v758
  %v1997 = vunpack.c.h.b16 %v758
  %v1998 = vunpack.c.l.b16 %v759
  %v1999 = vunpack.c.h.b16 %v759
  %v2000 = vunpack.c.l.b16 %v760
  %v2001 = vunpack.c.h.b16 %v760
  %v2002 = vunpack.c.l.b16 %v761
  %v2003 = vunpack.c.h.b16 %v761
  %v2004 = vunpack.c.l.b16 %v762
  %v2005 = vunpack.c.h.b16 %v762
  %v2006 = vunpack.c.l.b16 %v763
  %v2007 = vunpack.c.h.b16 %v763
  %v2008 = vunpack.c.l.b16 %v764
  %v2009 = vunpack.c.h.b16 %v764
  %v2010 = vunpack.c.l.b16 %v765
  %v2011 = vunpack.c.h.b16 %v765
  %v2012 = vunpack.c.l.b16 %v766
  %v2013 = vunpack.c.h.b16 %v766
  %v2014 = vunpack.c.l.b16 %v767
  %v2015 = vunpack.c.h.b16 %v767
  %v2016 = vunpack.c.l.b16 %v768
  %v2017 = vunpack.c.h.b16 %v768
  %v2018 = vunpack.c.l.b16 %v769
  %v2019 = vunpack.c.h.b16 %v769
  %v2020 = vunpack.c.l.b16 %v770
  %v2021 = vunpack.c.h.b16 %v770
  %v2022 = vunpack.c.l.b16 %v771
  %v2023 = vunpack.c.h.b16 %v771
  %v2024 = vunpack.c.l.b16 %v772
  %v2025 = vunpack.c.h.b16 %v772
  %v2026 = vunpack.c.l.b16 %v773
  %v2027 = vunpack.c.h.b16 %v773
  %v2028 = vunpack.c.l.b16 %v774
  %v2029 = vunpack.c.h.b16 %v774
  %v2030 = vunpack.c.l.b16 %v775
  %v2031 = vunpack.c.h.b16 %v775
  %v2032 = vunpack.c.l.b16 %v776
  %v2033 = vunpack.c.h.b16 %v776
  %v2034 = vunpack.c.l.b16 %v777
  %v2035 = vunpack.c.h.b16 %v777
  %v2036 = vunpack.c.l.b16 %v778
  %v2037 = vunpack.c.h.b16 %v778
  %v2038 = vunpack.c.l.b16 %v779
  %v2039 = vunpack.c.h.b16 %v779
  %v2040 = vunpack.c.l.b16 %v780
  %v2041 = vunpack.c.h.b16 %v780
  %v2042 = vunpack.c.l.b16 %v781
  %v2043 = vunpack.c.h.b16 %v781
  %v2044 = vunpack.c.l.b16 %v782
  %v2045 = vunpack.c.h.b16 %v782
  %v2046 = vunpack.c.l.b16 %v783
  %v2047 = vunpack.c.h.b16 %v783
  %v2048 = vunpack.c.l.b16 %v784
  %v2049 = vunpack.c.h.b16 %v784
  %v2050 = vunpack.c.l.b16 %v785
  %v2051 = vunpack.c.h.b16 %v785
  %v2052 = vunpack.c.l.b16 %v786
  %v2053 = vunpack.c.h.b16 %v786
  %v2054 = vunpack.c.l.b16 %v787
  %v2055 = vunpack.c.h.b16 %v787
  %v2056 = vunpack.c.l.b16 %v788
  %v2057 = vunpack.c.h.b16 %v788
  %v2058 = vunpack.c.l.b16 %v789
  %v2059 = vunpack.c.h.b16 %v789
  %v2060 = vunpack.c.l.b16 %v790
  %v2061 = vunpack.c.h.b16 %v790
  %v2062 = vunpack.c.l.b16 %v791
  %v2063 = vunpack.c.h.b16 %v791
  %v2064 = vunpack.c.l.b16 %v792
  %v2065 = vunpack.c.h.b16 %v792
  %v2066 = vunpack.c.l.b16 %v793
  %v2067 = vunpack.c.h.b16 %v793
  %v2068 = vunpack.c.l.b16 %v794
  %v2069 = vunpack.c.h.b16 %v794
  %v2070 = vunpack.c.l.b16 %v795
  %v2071 = vunpack.c.h.b16 %v795
  %v2072 = vunpack.c.l.b16 %v796
  %v2073 = vunpack.c.h.b16 %v796
  %v2074 = vunpack.c.l.b16 %v797
  %v2075 = vunpack.c.h.b16 %v797
  %v2076 = vunpack.c.l.b16 %v798
  %v2077 = vunpack.c.h.b16 %v798
  %v2078 = vunpack.c.l.b16 %v799
  %v2079 = vunpack.c.h.b16 %v799
  %v2080 = vunpack.c.l.b16 %v800
  %v2081 = vunpack.c.h.b16 %v800
  %v2082 = vunpack.c.l.b16 %v801
  %v2083 = vunpack.c.h.b16 %v801
  %v2084 = vunpack.c.l.b16 %v802
  %v2085 = vunpack.c.h.b16 %v802
  %v2086 = vunpack.c.l.b16 %v803
  %v2087 = vunpack.c.h.b16 %v803
  %v2088 = vunpack.c.l.b16 %v804
  %v2089 = vunpack.c.h.b16 %v804
  %v2090 = vunpack.c.l.b16 %v805
  %v2091 = vunpack.c.h.b16 %v805
  %v2092 = vunpack.c.l.b16 %v806
  %v2093 = vunpack.c.h.b16 %v806
  %v2094 = vunpack.c.l.b16 %v807
  %v2095 = vunpack.c.h.b16 %v807
  %v2096 = vunpack.c.l.b16 %v808
  %v2097 = vunpack.c.h.b16 %v808
  %v2098 = vunpack.c.l.b16 %v809
  %v2099 = vunpack.c.h.b16 %v809
  %v2100 = vunpack.c.l.b16 %v810
  %v2101 = vunpack.c.h.b16 %v810
  %v2102 = vunpack.c.l.b16 %v811
  %v2103 = vunpack.c.h.b16 %v811
  %v2104 = vunpack.c.l.b16 %v812
  %v2105 = vunpack.c.h.b16 %v812
  %v2106 = vunpack.c.l.b16 %v813
  %v2107 = vunpack.c.h.b16 %v813
  %v2108 = vunpack.c.l.b16 %v814
  %v2109 = vunpack.c.h.b16 %v814
  %v2110 = vunpack.c.l.b16 %v815
  %v2111 = vunpack.c.h.b16 %v815
  %v2112 = vunpack.c.l.b16 %v816
  %v2113 = vunpack.c.h.b16 %v816
  %v2114 = vunpack.c.l.b16 %v817
  %v2115 = vunpack.c.h.b16 %v817
  %v2116 = vunpack.c.l.b16 %v818
  %v2117 = vunpack.c.h.b16 %v818
  %v2118 = vunpack.c.l.b16 %v819
  %v2119 = vunpack.c.h.b16 %v819
  %v2120 = vunpack.c.l.b16 %v820
  %v2121 = vunpack.c.h.b16 %v820
  %v2122 = vunpack.c.l.b16 %v821
  %v2123 = vunpack.c.h.b16 %v821
  %v2124 = vunpack.c.l.b16 %v822
  %v2125 = vunpack.c.h.b16 %v822
  %v2126 = vunpack.c.l.b16 %v823
  %v2127 = vunpack.c.h.b16 %v823
  %v2128 = vunpack.c.l.b16 %v824
  %v2129 = vunpack.c.h.b16 %v824
  %v2130 = vunpack.c.l.b16 %v825
  %v2131 = vunpack.c.h.b16 %v825
  %v2132 = vunpack.c.l.b16 %v826
  %v2133 = vunpack.c.h.b16 %v826
  %v2134 = vunpack.c.l.b16 %v827
  %v2135 = vunpack.c.h.b16 %v827
  %v2136 = vunpack.c.l.b16 %v828
  %v2137 = vunpack.c.h.b16 %v828
  %v2138 = vunpack.c.l.b16 %v829
  %v2139 = vunpack.c.h.b16 %v829
  %v2140 = vunpack.c.l.b16 %v830
  %v2141 = vunpack.c.h.b16 %v830
  %v2142 = vunpack.c.l.b16 %v831
  %v2143 = vunpack.c.h.b16 %v831
  %v2144 = vunpack.c.l.b16 %v832
  %v2145 = vunpack.c.h.b16 %v832
  %v2146 = vunpack.c.l.b16 %v833
  %v2147 = vunpack.c.h.b16 %v833
  %v2148 = vunpack.c.l.b16 %v834
  %v2149 = vunpack.c.h.b16 %v834
  %v2150 = vunpack.c.l.b16 %v835
  %v2151 = vunpack.c.h.b16 %v835
  %v2152 = vunpack.c.l.b16 %v836
  %v2153 = vunpack.c.h.b16 %v836
  %v2154 = vunpack.c.l.b16 %v837
  %v2155 = vunpack.c.h.b16 %v837
  %v2156 = vunpack.c.l.b16 %v838
  %v2157 = vunpack.c.h.b16 %v838
  %v2158 = vunpack.c.l.b16 %v839
  %v2159 = vunpack.c.h.b16 %v839
  %v2160 = vunpack.c.l.b16 %v840
  %v2161 = vunpack.c.h.b16 %v840
  %v2162 = vunpack.c.l.b16 %v841
  %v2163 = vunpack.c.h.b16 %v841
  %v2164 = vunpack.c.l.b16 %v842
  %v2165 = vunpack.c.h.b16 %v842
  %v2166 = vunpack.c.l.b16 %v843
  %v2167 = vunpack.c.h.b16 %v843
  %v2168 = vunpack.c.l.b16 %v844
  %v2169 = vunpack.c.h.b16 %v844
  %v2170 = vunpack.c.l.b16 %v845
  %v2171 = vunpack.c.h.b16 %v845
  %v2172 = vunpack.c.l.b16 %v846
  %v2173 = vunpack.c.h.b16 %v846
  %v2174 = vunpack.c.l.b16 %v847
  %v2175 = vunpack.c.h.b16 %v847
  %v2176 = vunpack.c.l.b16 %v848
  %v2177 = vunpack.c.h.b16 %v848
  %v2178 = vunpack.c.l.b16 %v849
  %v2179 = vunpack.c.h.b16 %v849
  %v2180 = vunpack.c.l.b16 %v850
  %v2181 = vunpack.c.h.b16 %v850
  %v2182 = vunpack.c.l.b16 %v851
  %v2183 = vunpack.c.h.b16 %v851
  %v2184 = vunpack.c.l.b16 %v852
  %v2185 = vunpack.c.h.b16 %v852
  %v2186 = vunpack.c.l.b16 %v853
  %v2187 = vunpack.c.h.b16 %v853
  %v2188 = vunpack.c.l.b16 %v854
  %v2189 = vunpack.c.h.b16 %v854
  %v2190 = vunpack.c.l.b16 %v855
  %v2191 = vunpack.c.h.b16 %v855
  %v2192 = vunpack.c.l.b16 %v856
  %v2193 = vunpack.c.h.b16 %v856
  %v2194 = vunpack.c.l.b16 %v857
  %v2195 = vunpack.c.h.b16 %v857
  %v2196 = vunpack.c.l.b16 %v858
  %v2197 = vunpack.c.h.b16 %v858
  %v2198 = vunpack.c.l.b16 %v859
  %v2199 = vunpack.c.h.b16 %v859
  %v2200 = vunpack.c.l.b16 %v860
  %v2201 = vunpack.c.h.b16 %v860
  %v2202 = vunpack.c.l.b16 %v861
  %v2203 = vunpack.c.h.b16 %v861
  %v2204 = vunpack.c.l.b16 %v862
  %v2205 = vunpack.c.h.b16 %v862
  %v2206 = vunpack.c.l.b16 %v863
  %v2207 = vunpack.c.h.b16 %v863
  %v2208 = vunpack.c.l.b16 %v864
  %v2209 = vunpack.c.h.b16 %v864
  %v2210 = vunpack.c.l.b16 %v865
  %v2211 = vunpack.c.h.b16 %v865
  %v2212 = vunpack.c.l.b16 %v866
  %v2213 = vunpack.c.h.b16 %v866
  %v2214 = vunpack.c.l.b16 %v867
  %v2215 = vunpack.c.h.b16 %v867
  %v2216 = vunpack.c.l.b16 %v868
  %v2217 = vunpack.c.h.b16 %v868
  %v2218 = vunpack.c.l.b16 %v869
  %v2219 = vunpack.c.h.b16 %v869
  %v2220 = vunpack.c.l.b16 %v870
  %v2221 = vunpack.c.h.b16 %v870
  %v2222 = vunpack.c.l.b16 %v871
  %v2223 = vunpack.c.h.b16 %v871
  %v2224 = vunpack.c.l.b16 %v872
  %v2225 = vunpack.c.h.b16 %v872
  %v2226 = vunpack.c.l.b16 %v873
  %v2227 = vunpack.c.h.b16 %v873
  %v2228 = vunpack.c.l.b16 %v874
  %v2229 = vunpack.c.h.b16 %v874
  %v2230 = vunpack.c.l.b16 %v875
  %v2231 = vunpack.c.h.b16 %v875
  %v2232 = vunpack.c.l.b16 %v876
  %v2233 = vunpack.c.h.b16 %v876
  %v2234 = vunpack.c.l.b16 %v877
  %v2235 = vunpack.c.h.b16 %v877
  %v2236 = vunpack.c.l.b16 %v878
  %v2237 = vunpack.c.h.b16 %v878
  %v2238 = vunpack.c.l.b16 %v879
  %v2239 = vunpack.c.h.b16 %v879
  %v2240 = vunpack.c.l.b16 %v880
  %v2241 = vunpack.c.h.b16 %v880
  %v2242 = vunpack.c.l.b16 %v881
  %v2243 = vunpack.c.h.b16 %v881
  %v2244 = vunpack.c.l.b16 %v882
  %v2245 = vunpack.c.h.b16 %v882
  %v2246 = vunpack.c.l.b16 %v883
  %v2247 = vunpack.c.h.b16 %v883
  %v2248 = vunpack.c.l.b16 %v884
  %v2249 = vunpack.c.h.b16 %v884
  %v2250 = vunpack.c.l.b16 %v885
  %v2251 = vunpack.c.h.b16 %v885
  %v2252 = vunpack.c.l.b16 %v886
  %v2253 = vunpack.c.h.b16 %v886
  %v2254 = vunpack.c.l.b16 %v887
  %v2255 = vunpack.c.h.b16 %v887
  %v2256 = vunpack.c.l.b16 %v888
  %v2257 = vunpack.c.h.b16 %v888
  %v2258 = vunpack.c.l.b16 %v889
  %v2259 = vunpack.c.h.b16 %v889
  %v2260 = vunpack.c.l.b16 %v890
  %v2261 = vunpack.c.h.b16 %v890
  %v2262 = vunpack.c.l.b16 %v891
  %v2263 = vunpack.c.h.b16 %v891
  %v2264 = vunpack.c.l.b16 %v892
  %v2265 = vunpack.c.h.b16 %v892
  %v2266 = vunpack.c.l.b16 %v893
  %v2267 = vunpack.c.h.b16 %v893
  %v2268 = vunpack.c.l.b16 %v894
  %v2269 = vunpack.c.h.b16 %v894
  %v2270 = vunpack.c.l.b16 %v895
  %v2271 = vunpack.c.h.b16 %v895
  %v2272 = vunpack.c.l.b16 %v896
  %v2273 = vunpack.c.h.b16 %v896
  %v2274 = vunpack.c.l.b16 %v897
  %v2275 = vunpack.c.h.b16 %v897
  %v2276 = vunpack.c.l.b16 %v898
  %v2277 = vunpack.c.h.b16 %v898
  %v2278 = vunpack.c.l.b16 %v899
  %v2279 = vunpack.c.h.b16 %v899
  %v2280 = vpack.c.b16 %v1432, %v1416
  %v2281 = vpack.c.b16 %v1433, %v1417
  %v2282 = vpack.c.b16 %v1434, %v1418
  %v2283 = vpack.c.b16 %v1435, %v1419
  %v2284 = vpack.c.b16 %v1436, %v1420
  %v2285 = vpack.c.b16 %v1437, %v1421
  %v2286 = vpack.c.b16 %v1438, %v1422
  %v2287 = vpack.c.b16 %v1439, %v1423
  %v2288 = vpack.c.b16 %v1440, %v1424
  %v2289 = vpack.c.b16 %v1441, %v1425
  %v2290 = vpack.c.b16 %v1442, %v1426
  %v2291 = vpack.c.b16 %v1443, %v1427
  %v2292 = vpack.c.b16 %v1444, %v1428
  %v2293 = vpack.c.b16 %v1445, %v1429
  %v2294 = vpack.c.b16 %v1446, %v1430
  %v2295 = vpack.c.b16 %v1447, %v1431
  %v2296 = vpack.c.b16 %v1464, %v1448
  %v2297 = vpack.c.b16 %v1465, %v1449
  %v2298 = vpack.c.b16 %v1466, %v1450
  %v2299 = vpack.c.b16 %v1467, %v1451
  %v2300 = vpack.c.b16 %v1468, %v1452
  %v2301 = vpack.c.b16 %v1469, %v1453
  %v2302 = vpack.c.b16 %v1470, %v1454
  %v2303 = vpack.c.b16 %v1471, %v1455
  %v2304 = vpack.c.b16 %v1472, %v1456
  %v2305 = vpack.c.b16 %v1473, %v1457
  %v2306 = vpack.c.b16 %v1474, %v1458
  %v2307 = vpack.c.b16 %v1475, %v1459
  %v2308 = vpack.c.b16 %v1476, %v1460
  %v2309 = vpack.c.b16 %v1477, %v1461
  %v2310 = vpack.c.b16 %v1478, %v1462
  %v2311 = vpack.c.b16 %v1479, %v1463
  %v2312 = vpack.c.b16 %v1496, %v1480
  %v2313 = vpack.c.b16 %v1497, %v1481
  %v2314 = vpack.c.b16 %v1498, %v1482
  %v2315 = vpack.c.b16 %v1499, %v1483
  %v2316 = vpack.c.b16 %v1500, %v1484
  %v2317 = vpack.c.b16 %v1501, %v1485
  %v2318 = vpack.c.b16 %v1502, %v1486
  %v2319 = vpack.c.b16 %v1503, %v1487
  %v2320 = vpack.c.b16 %v1504, %v1488
  %v2321 = vpack.c.b16 %v1505, %v1489
  %v2322 = vpack.c.b16 %v1506, %v1490
  %v2323 = vpack.c.b16 %v1507, %v1491
  %v2324 = vpack.c.b16 %v1508, %v1492
  %v2325 = vpack.c.b16 %v1509, %v1493
  %v2326 = vpack.c.b16 %v1510, %v1494
  %v2327 = vpack.c.b16 %v1511, %v1495
  %v2328 = vpack.c.b16 %v1528, %v1512
  %v2329 = vpack.c.b16 %v1529, %v1513
  %v2330 = vpack.c.b16 %v1530, %v1514
  %v2331 = vpack.c.b16 %v1531, %v1515
  %v2332 = vpack.c.b16 %v1532, %v1516
  %v2333 = vpack.c.b16 %v1533, %v1517
  %v2334 = vpack.c.b16 %v1534, %v1518
  %v2335 = vpack.c.b16 %v1535, %v1519
  %v2336 = vpack.c.b16 %v1536, %v1520
  %v2337 = vpack.c.b16 %v1537, %v1521
  %v2338 = vpack.c.b16 %v1538, %v1522
  %v2339 = vpack.c.b16 %v1539, %v1523
  %v2340 = vpack.c.b16 %v1540, %v1524
  %v2341 = vpack.c.b16 %v1541, %v1525
  %v2342 = vpack.c.b16 %v1542, %v1526
  %v2343 = vpack.c.b16 %v1543, %v1527
  %v2344 = vpack.c.b16 %v1560, %v1544
  %v2345 = vpack.c.b16 %v1561, %v1545
  %v2346 = vpack.c.b16 %v1562, %v1546
  %v2347 = vpack.c.b16 %v1563, %v1547
  %v2348 = vpack.c.b16 %v1564, %v1548
  %v2349 = vpack.c.b16 %v1565, %v1549
  %v2350 = vpack.c.b16 %v1566, %v1550
  %v2351 = vpack.c.b16 %v1567, %v1551
  %v2352 = vpack.c.b16 %v1568, %v1552
  %v2353 = vpack.c.b16 %v1569, %v1553
  %v2354 = vpack.c.b16 %v1570, %v1554
  %v2355 = vpack.c.b16 %v1571, %v1555
  %v2356 = vpack.c.b16 %v1572, %v1556
  %v2357 = vpack.c.b16 %v1573, %v1557
  %v2358 = vpack.c.b16 %v1574, %v1558
  %v2359 = vpack.c.b16 %v1575, %v1559
  %v2360 = vpack.c.b16 %v1592, %v1576
  %v2361 = vpack.c.b16 %v1593, %v1577
  %v2362 = vpack.c.b16 %v1594, %v1578
  %v2363 = vpack.c.b16 %v1595, %v1579
  %v2364 = vpack.c.b16 %v1596, %v1580
  %v2365 = vpack.c.b16 %v1597, %v1581
  %v2366 = vpack.c.b16 %v1598, %v1582
  %v2367 = vpack.c.b16 %v1599, %v1583
  %v2368 = vpack.c.b16 %v1600, %v1584
  %v2369 = vpack.c.b16 %v1601, %v1585
  %v2370 = vpack.c.b16 %v1602, %v1586
  %v2371 = vpack.c.b16 %v1603, %v1587
  %v2372 = vpack.c.b16 %v1604, %v1588
  %v2373 = vpack.c.b16 %v1605, %v1589
  %v2374 = vpack.c.b16 %v1606, %v1590
  %v2375 = vpack.c.b16 %v1607, %v1591
  %v2376 = vpack.c.b16 %v1624, %v1608
  %v2377 = vpack.c.b16 %v1625, %v1609
  %v2378 = vpack.c.b16 %v1626, %v1610
  %v2379 = vpack.c.b16 %v1627, %v1611
  %v2380 = vpack.c.b16 %v1628, %v1612
  %v2381 = vpack.c.b16 %v1629, %v1613
  %v2382 = vpack.c.b16 %v1630, %v1614
  %v2383 = vpack.c.b16 %v1631, %v1615
  %v2384 = vpack.c.b16 %v1632, %v1616
  %v2385 = vpack.c.b16 %v1633, %v1617
  %v2386 = vpack.c.b16 %v1634, %v1618
  %v2387 = vpack.c.b16 %v1635, %v1619
  %v2388 = vpack.c.b16 %v1636, %v1620
  %v2389 = vpack.c.b16 %v1637, %v1621
  %v2390 = vpack.c.b16 %v1638, %v1622
  %v2391 = vpack.c.b16 %v1639, %v1623
  %v2392 = vpack.c.b16 %v1656, %v1640
  %v2393 = vpack.c.b16 %v1657, %v1641
  %v2394 = vpack.c.b16 %v1658, %v1642
  %v2395 = vpack.c.b16 %v1659, %v1643
  %v2396 = vpack.c.b16 %v1660, %v1644
  %v2397 = vpack.c.b16 %v1661, %v1645
  %v2398 = vpack.c.b16 %v1662, %v1646
  %v2399 = vpack.c.b16 %v1663, %v1647
  %v2400 = vpack.c.b16 %v1664, %v1648
  %v2401 = vpack.c.b16 %v1665, %v1649
  %v2402 = vpack.c.b16 %v1666, %v1650
  %v2403 = vpack.c.b16 %v1667, %v1651
  %v2404 = vpack.c.b16 %v1668, %v1652
  %v2405 = vpack.c.b16 %v1669, %v1653
  %v2406 = vpack.c.b16 %v1670, %v1654
  %v2407 = vpack.c.b16 %v1671, %v1655
  %v2408 = vpack.c.b16 %v1688, %v1672
  %v2409 = vpack.c.b16 %v1689, %v1673
  %v2410 = vpack.c.b16 %v1690, %v1674
  %v2411 = vpack.c.b16 %v1691, %v1675
  %v2412 = vpack.c.b16 %v1692, %v1676
  %v2413 = vpack.c.b16 %v1693, %v1677
  %v2414 = vpack.c.b16 %v1694, %v1678
  %v2415 = vpack.c.b16 %v1695, %v1679
  %v2416 = vpack.c.b16 %v1696, %v1680
  %v2417 = vpack.c.b16 %v1697, %v1681
  %v2418 = vpack.c.b16 %v1698, %v1682
  %v2419 = vpack.c.b16 %v1699, %v1683
  %v2420 = vpack.c.b16 %v1700, %v1684
  %v2421 = vpack.c.b16 %v1701, %v1685
  %v2422 = vpack.c.b16 %v1702, %v1686
  %v2423 = vpack.c.b16 %v1703, %v1687
  %v2424 = vpack.c.b16 %v1720, %v1704
  %v2425 = vpack.c.b16 %v1721, %v1705
  %v2426 = vpack.c.b16 %v1722, %v1706
  %v2427 = vpack.c.b16 %v1723, %v1707
  %v2428 = vpack.c.b16 %v1724, %v1708
  %v2429 = vpack.c.b16 %v1725, %v1709
  %v2430 = vpack.c.b16 %v1726, %v1710
  %v2431 = vpack.c.b16 %v1727, %v1711
  %v2432 = vpack.c.b16 %v1728, %v1712
  %v2433 = vpack.c.b16 %v1729, %v1713
  %v2434 = vpack.c.b16 %v1730, %v1714
  %v2435 = vpack.c.b16 %v1731, %v1715
  %v2436 = vpack.c.b16 %v1732, %v1716
  %v2437 = vpack.c.b16 %v1733, %v1717
  %v2438 = vpack.c.b16 %v1734, %v1718
  %v2439 = vpack.c.b16 %v1735, %v1719
  %v2440 = vpack.c.b16 %v1752, %v1736
  %v2441 = vpack.c.b16 %v1753, %v1737
  %v2442 = vpack.c.b16 %v1754, %v1738
  %v2443 = vpack.c.b16 %v1755, %v1739
  %v2444 = vpack.c.b16 %v1756, %v1740
  %v2445 = vpack.c.b16 %v1757, %v1741
  %v2446 = vpack.c.b16 %v1758, %v1742
  %v2447 = vpack.c.b16 %v1759, %v1743
  %v2448 = vpack.c.b16 %v1760, %v1744
  %v2449 = vpack.c.b16 %v1761, %v1745
  %v2450 = vpack.c.b16 %v1762, %v1746
  %v2451 = vpack.c.b16 %v1763, %v1747
  %v2452 = vpack.c.b16 %v1764, %v1748
  %v2453 = vpack.c.b16 %v1765, %v1749
  %v2454 = vpack.c.b16 %v1766, %v1750
  %v2455 = vpack.c.b16 %v1767, %v1751
  %v2456 = vpack.c.b16 %v1784, %v1768
  %v2457 = vpack.c.b16 %v1785, %v1769
  %v2458 = vpack.c.b16 %v1786, %v1770
  %v2459 = vpack.c.b16 %v1787, %v1771
  %v2460 = vpack.c.b16 %v1788, %v1772
  %v2461 = vpack.c.b16 %v1789, %v1773
  %v2462 = vpack.c.b16 %v1790, %v1774
  %v2463 = vpack.c.b16 %v1791, %v1775
  %v2464 = vpack.c.b16 %v1792, %v1776
  %v2465 = vpack.c.b16 %v1793, %v1777
  %v2466 = vpack.c.b16 %v1794, %v1778
  %v2467 = vpack.c.b16 %v1795, %v1779
  %v2468 = vpack.c.b16 %v1796, %v1780
  %v2469 = vpack.c.b16 %v1797, %v1781
  %v2470 = vpack.c.b16 %v1798, %v1782
  %v2471 = vpack.c.b16 %v1799, %v1783
  %v2472 = vpack.c.b16 %v1816, %v1800
  %v2473 = vpack.c.b16 %v1817, %v1801
  %v2474 = vpack.c.b16 %v1818, %v1802
  %v2475 = vpack.c.b16 %v1819, %v1803
  %v2476 = vpack.c.b16 %v1820, %v1804
  %v2477 = vpack.c.b16 %v1821, %v1805
  %v2478 = vpack.c.b16 %v1822, %v1806
  %v2479 = vpack.c.b16 %v1823, %v1807
  %v2480 = vpack.c.b16 %v1824, %v1808
  %v2481 = vpack.c.b16 %v1825, %v1809
  %v2482 = vpack.c.b16 %v1826, %v1810
  %v2483 = vpack.c.b16 %v1827, %v1811
  %v2484 = vpack.c.b16 %v1828, %v1812
  %v2485 = vpack.c.b16 %v1829, %v1813
  %v2486 = vpack.c.b16 %v1830, %v1814
  %v2487 = vpack.c.b16 %v1831, %v1815
  %v2488 = vpack.c.b16 %v1848, %v1832
  %v2489 = vpack.c.b16 %v1849, %v1833
  %v2490 = vpack.c.b16 %v1850, %v1834
  %v2491 = vpack.c.b16 %v1851, %v1835
  %v2492 = vpack.c.b16 %v1852, %v1836
  %v2493 = vpack.c.b16 %v1853, %v1837
  %v2494 = vpack.c.b16 %v1854, %v1838
  %v2495 = vpack.c.b16 %v1855, %v1839
  %v2496 = vpack.c.b16 %v1856, %v1840
  %v2497 = vpack.c.b16 %v1857, %v1841
  %v2498 = vpack.c.b16 %v1858, %v1842
  %v2499 = vpack.c.b16 %v1859, %v1843
  %v2500 = vpack.c.b16 %v1860, %v1844
  %v2501 = vpack.c.b16 %v1861, %v1845
  %v2502 = vpack.c.b16 %v1862, %v1846
  %v2503 = vpack.c.b16 %v1863, %v1847
  %v2504 = vpack.c.b16 %v1880, %v1864
  %v2505 = vpack.c.b16 %v1881, %v1865
  %v2506 = vpack.c.b16 %v1882, %v1866
  %v2507 = vpack.c.b16 %v1883, %v1867
  %v2508 = vpack.c.b16 %v1884, %v1868
  %v2509 = vpack.c.b16 %v1885, %v1869
  %v2510 = vpack.c.b16 %v1886, %v1870
  %v2511 = vpack.c.b16 %v1887, %v1871
  %v2512 = vpack.c.b16 %v1888, %v1872
  %v2513 = vpack.c.b16 %v1889, %v1873
  %v2514 = vpack.c.b16 %v1890, %v1874
  %v2515 = vpack.c.b16 %v1891, %v1875
  %v2516 = vpack.c.b16 %v1892, %v1876
  %v2517 = vpack.c.b16 %v1893, %v1877
  %v2518 = vpack.c.b16 %v1894, %v1878
  %v2519 = vpack.c.b16 %v1895, %v1879
  %v2520 = vpack.c.b16 %v1912, %v1896
  %v2521 = vpack.c.b16 %v1913, %v1897
  %v2522 = vpack.c.b16 %v1914, %v1898
  %v2523 = vpack.c.b16 %v1915, %v1899
  %v2524 = vpack.c.b16 %v1916, %v1900
  %v2525 = vpack.c.b16 %v1917, %v1901
  %v2526 = vpack.c.b16 %v1918, %v1902
  %v2527 = vpack.c.b16 %v1919, %v1903
  %v2528 = vpack.c.b16 %v1920, %v1904
  %v2529 = vpack.c.b16 %v1921, %v1905
  %v2530 = vpack.c.b16 %v1922, %v1906
  %v2531 = vpack.c.b16 %v1923, %v1907
  %v2532 = vpack.c.b16 %v1924, %v1908
  %v2533 = vpack.c.b16 %v1925, %v1909
  %v2534 = vpack.c.b16 %v1926, %v1910
  %v2535 = vpack.c.b16 %v1927, %v1911
  %v2536 = vpack.c.b16 %v1944, %v1928
  %v2537 = vpack.c.b16 %v1945, %v1929
  %v2538 = vpack.c.b16 %v1946, %v1930
  %v2539 = vpack.c.b16 %v1947, %v1931
  %v2540 = vpack.c.b16 %v1948, %v1932
  %v2541 = vpack.c.b16 %v1949, %v1933
  %v2542 = vpack.c.b16 %v1950, %v1934
  %v2543 = vpack.c.b16 %v1951, %v1935
  %v2544 = vpack.c.b16 %v1952, %v1936
  %v2545 = vpack.c.b16 %v1953, %v1937
  %v2546 = vpack.c.b16 %v1954, %v1938
  %v2547 = vpack.c.b16 %v1955, %v1939
  %v2548 = vpack.c.b16 %v1956, %v1940
  %v2549 = vpack.c.b16 %v1957, %v1941
  %v2550 = vpack.c.b16 %v1958, %v1942
  %v2551 = vpack.c.b16 %v1959, %v1943
  %v2552 = vpack.c.b16 %v1976, %v1960
  %v2553 = vpack.c.b16 %v1977, %v1961
  %v2554 = vpack.c.b16 %v1978, %v1962
  %v2555 = vpack.c.b16 %v1979, %v1963
  %v2556 = vpack.c.b16 %v1980, %v1964
  %v2557 = vpack.c.b16 %v1981, %v1965
  %v2558 = vpack.c.b16 %v1982, %v1966
  %v2559 = vpack.c.b16 %v1983, %v1967
  %v2560 = vpack.c.b16 %v1984, %v1968
  %v2561 = vpack.c.b16 %v1985, %v1969
  %v2562 = vpack.c.b16 %v1986, %v1970
  %v2563 = vpack.c.b16 %v1987, %v1971
  %v2564 = vpack.c.b16 %v1988, %v1972
  %v2565 = vpack.c.b16 %v1989, %v1973
  %v2566 = vpack.c.b16 %v1990, %v1974
  %v2567 = vpack.c.b16 %v1991, %v1975
  %v2568 = vpack.c.b16 %v2008, %v1992
  %v2569 = vpack.c.b16 %v2009, %v1993
  %v2570 = vpack.c.b16 %v2010, %v1994
  %v2571 = vpack.c.b16 %v2011, %v1995
  %v2572 = vpack.c.b16 %v2012, %v1996
  %v2573 = vpack.c.b16 %v2013, %v1997
  %v2574 = vpack.c.b16 %v2014, %v1998
  %v2575 = vpack.c.b16 %v2015, %v1999
  %v2576 = vpack.c.b16 %v2016, %v2000
  %v2577 = vpack.c.b16 %v2017, %v2001
  %v2578 = vpack.c.b16 %v2018, %v2002
  %v2579 = vpack.c.b16 %v2019, %v2003
  %v2580 = vpack.c.b16 %v2020, %v2004
  %v2581 = vpack.c.b16 %v2021, %v2005
  %v2582 = vpack.c.b16 %v2022, %v2006
  %v2583 = vpack.c.b16 %v2023, %v2007
  %v2584 = vpack.c.b16 %v2040, %v2024
  %v2585 = vpack.c.b16 %v2041, %v2025
  %v2586 = vpack.c.b16 %v2042, %v2026
  %v2587 = vpack.c.b16 %v2043, %v2027
  %v2588 = vpack.c.b16 %v2044, %v2028
  %v2589 = vpack.c.b16 %v2045, %v2029
  %v2590 = vpack.c.b16 %v2046, %v2030
  %v2591 = vpack.c.b16 %v2047, %v2031
  %v2592 = vpack.c.b16 %v2048, %v2032
  %v2593 = vpack.c.b16 %v2049, %v2033
  %v2594 = vpack.c.b16 %v2050, %v2034
  %v2595 = vpack.c.b16 %v2051, %v2035
  %v2596 = vpack.c.b16 %v2052, %v2036
  %v2597 = vpack.c.b16 %v2053, %v2037
  %v2598 = vpack.c.b16 %v2054, %v2038
  %v2599 = vpack.c.b16 %v2055, %v2039
  %v2600 = vpack.c.b16 %v2072, %v2056
  %v2601 = vpack.c.b16 %v2073, %v2057
  %v2602 = vpack.c.b16 %v2074, %v2058
  %v2603 = vpack.c.b16 %v2075, %v2059
  %v2604 = vpack.c.b16 %v2076, %v2060
  %v2605 = vpack.c.b16 %v2077, %v2061
  %v2606 = vpack.c.b16 %v2078, %v2062
  %v2607 = vpack.c.b16 %v2079, %v2063
  %v2608 = vpack.c.b16 %v2080, %v2064
  %v2609 = vpack.c.b16 %v2081, %v2065
  %v2610 = vpack.c.b16 %v2082, %v2066
  %v2611 = vpack.c.b16 %v2083, %v2067
  %v2612 = vpack.c.b16 %v2084, %v2068
  %v2613 = vpack.c.b16 %v2085, %v2069
  %v2614 = vpack.c.b16 %v2086, %v2070
  %v2615 = vpack.c.b16 %v2087, %v2071
  %v2616 = vpack.c.b16 %v2104, %v2088
  %v2617 = vpack.c.b16 %v2105, %v2089
  %v2618 = vpack.c.b16 %v2106, %v2090
  %v2619 = vpack.c.b16 %v2107, %v2091
  %v2620 = vpack.c.b16 %v2108, %v2092
  %v2621 = vpack.c.b16 %v2109, %v2093
  %v2622 = vpack.c.b16 %v2110, %v2094
  %v2623 = vpack.c.b16 %v2111, %v2095
  %v2624 = vpack.c.b16 %v2112, %v2096
  %v2625 = vpack.c.b16 %v2113, %v2097
  %v2626 = vpack.c.b16 %v2114, %v2098
  %v2627 = vpack.c.b16 %v2115, %v2099
  %v2628 = vpack.c.b16 %v2116, %v2100
  %v2629 = vpack.c.b16 %v2117, %v2101
  %v2630 = vpack.c.b16 %v2118, %v2102
  %v2631 = vpack.c.b16 %v2119, %v2103
  %v2632 = vpack.c.b16 %v2136, %v2120
  %v2633 = vpack.c.b16 %v2137, %v2121
  %v2634 = vpack.c.b16 %v2138, %v2122
  %v2635 = vpack.c.b16 %v2139, %v2123
  %v2636 = vpack.c.b16 %v2140, %v2124
  %v2637 = vpack.c.b16 %v2141, %v2125
  %v2638 = vpack.c.b16 %v2142, %v2126
  %v2639 = vpack.c.b16 %v2143, %v2127
  %v2640 = vpack.c.b16 %v2144, %v2128
  %v2641 = vpack.c.b16 %v2145, %v2129
  %v2642 = vpack.c.b16 %v2146, %v2130
  %v2643 = vpack.c.b16 %v2147, %v2131
  %v2644 = vpack.c.b16 %v2148, %v2132
  %v2645 = vpack.c.b16 %v2149, %v2133
  %v2646 = vpack.c.b16 %v2150, %v2134
  %v2647 = vpack.c.b16 %v2151, %v2135
  %v2648 = vpack.c.b16 %v2168, %v2152
  %v2649 = vpack.c.b16 %v2169, %v2153
  %v2650 = vpack.c.b16 %v2170, %v2154
  %v2651 = vpack.c.b16 %v2171, %v2155
  %v2652 = vpack.c.b16 %v2172, %v2156
  %v2653 = vpack.c.b16 %v2173, %v2157
  %v2654 = vpack.c.b16 %v2174, %v2158
  %v2655 = vpack.c.b16 %v2175, %v2159
  %v2656 = vpack.c.b16 %v2176, %v2160
  %v2657 = vpack.c.b16 %v2177, %v2161
  %v2658 = vpack.c.b16 %v2178, %v2162
  %v2659 = vpack.c.b16 %v2179, %v2163
  %v2660 = vpack.c.b16 %v2180, %v2164
  %v2661 = vpack.c.b16 %v2181, %v2165
  %v2662 = vpack.c.b16 %v2182, %v2166
  %v2663 = vpack.c.b16 %v2183, %v2167
  %v2664 = vpack.c.b16 %v2200, %v2184
  %v2665 = vpack.c.b16 %v2201, %v2185
  %v2666 = vpack.c.b16 %v2202, %v2186
  %v2667 = vpack.c.b16 %v2203, %v2187
  %v2668 = vpack.c.b16 %v2204, %v2188
  %v2669 = vpack.c.b16 %v2205, %v2189
  %v2670 = vpack.c.b16 %v2206, %v2190
  %v2671 = vpack.c.b16 %v2207, %v2191
  %v2672 = vpack.c.b16 %v2208, %v2192
  %v2673 = vpack.c.b16 %v2209, %v2193
  %v2674 = vpack.c.b16 %v2210, %v2194
  %v2675 = vpack.c.b16 %v2211, %v2195
  %v2676 = vpack.c.b16 %v2212, %v2196
  %v2677 = vpack.c.b16 %v2213, %v2197
  %v2678 = vpack.c.b16 %v2214, %v2198
  %v2679 = vpack.c.b16 %v2215, %v2199
  %v2680 = vpack.c.b16 %v2232, %v2216
  %v2681 = vpack.c.b16 %v2233, %v2217
  %v2682 = vpack.c.b16 %v2234, %v2218
  %v2683 = vpack.c.b16 %v2235, %v2219
  %v2684 = vpack.c.b16 %v2236, %v2220
  %v2685 = vpack.c.b16 %v2237, %v2221
  %v2686 = vpack.c.b16 %v2238, %v2222
  %v2687 = vpack.c.b16 %v2239, %v2223
  %v2688 = vpack.c.b16 %v2240, %v2224
  %v2689 = vpack.c.b16 %v2241, %v2225
  %v2690 = vpack.c.b16 %v2242, %v2226
  %v2691 = vpack.c.b16 %v2243, %v2227
  %v2692 = vpack.c.b16 %v2244, %v2228
  %v2693 = vpack.c.b16 %v2245, %v2229
  %v2694 = vpack.c.b16 %v2246, %v2230
  %v2695 = vpack.c.b16 %v2247, %v2231
  %v2696 = vpack.c.b16 %v2264, %v2248
  %v2697 = vpack.c.b16 %v2265, %v2249
  %v2698 = vpack.c.b16 %v2266, %v2250
  %v2699 = vpack.c.b16 %v2267, %v2251
  %v2700 = vpack.c.b16 %v2268, %v2252
  %v2701 = vpack.c.b16 %v2269, %v2253
  %v2702 = vpack.c.b16 %v2270, %v2254
  %v2703 = vpack.c.b16 %v2271, %v2255
  %v2704 = vpack.c.b16 %v2272, %v2256
  %v2705 = vpack.c.b16 %v2273, %v2257
  %v2706 = vpack.c.b16 %v2274, %v2258
  %v2707 = vpack.c.b16 %v2275, %v2259
  %v2708 = vpack.c.b16 %v2276, %v2260
  %v2709 = vpack.c.b16 %v2277, %v2261
  %v2710 = vpack.c.b16 %v2278, %v2262
  %v2711 = vpack.c.b16 %v2279, %v2263
  %v3145 = vsel %vm30, %v463, 0
  %v3148 = vsel %vm30, %v467, 0
  %3150 = vmatprep.subr.bf16.mxu0 %v2281
  %3151 = vmatpush1.bf16.msra.mxu0 %v2280
  %3152 = vmatprep.subr.bf16.mxu0 %v2297
  %3153 = vmatpush1.bf16.msra.mxu0 %v2296
  %3154 = vmatprep.subr.bf16.mxu0 %v2313
  %3155 = vmatpush1.bf16.msra.mxu0 %v2312
  %3156 = vmatprep.subr.bf16.mxu0 %v2329
  %3157 = vmatpush1.bf16.msra.mxu0 %v2328
  %3158 = vmatprep.subr.bf16.mxu0 %v2345
  %3159 = vmatpush1.bf16.msra.mxu0 %v2344
  %3160 = vmatprep.subr.bf16.mxu0 %v2361
  %3161 = vmatpush1.bf16.msra.mxu0 %v2360
  %3162 = vmatprep.subr.bf16.mxu0 %v2377
  %3163 = vmatpush1.bf16.msra.mxu0 %v2376
  %3164 = vmatprep.subr.bf16.mxu0 %v2393
  %3165 = vmatpush1.bf16.msra.mxu0 %v2392
  %3166 = vmatprep.subr.bf16.mxu0 %v2409
  %3167 = vmatpush1.bf16.msra.mxu0 %v2408
  %3168 = vmatprep.subr.bf16.mxu0 %v2425
  %3169 = vmatpush1.bf16.msra.mxu0 %v2424
  %3170 = vmatprep.subr.bf16.mxu0 %v2441
  %3171 = vmatpush1.bf16.msra.mxu0 %v2440
  %3172 = vmatprep.subr.bf16.mxu0 %v2457
  %3173 = vmatpush1.bf16.msra.mxu0 %v2456
  %3174 = vmatprep.subr.bf16.mxu0 %v2473
  %3175 = vmatpush1.bf16.msra.mxu0 %v2472
  %3176 = vmatprep.subr.bf16.mxu0 %v2489
  %3177 = vmatpush1.bf16.msra.mxu0 %v2488
  %3178 = vmatprep.subr.bf16.mxu0 %v2505
  %3179 = vmatpush1.bf16.msra.mxu0 %v2504
  %3180 = vmatprep.subr.bf16.mxu0 %v2521
  %3181 = vmatpush1.bf16.msra.mxu0 %v2520
  %3182 = vmatprep.mubr.bf16.mxu0 %v461
  %3183 = vmatmul.mubr.bf16.gmra.mrb[0].mxu0 %v460
  %v3184 = vpop.f32.mrb[0].mxu0
  %v3185 = vadd.f32 %v907, %v3184
  %v3186 = vpop.f32.mrb[0].mxu0
  %v3187 = vadd.f32 %v911, %v3186
  %v3188 = vpop.f32.mrb[0].mxu0
  %v3189 = vadd.f32 %v907, %v3188
  %v3190 = vpop.f32.mrb[0].mxu0
  %v3191 = vadd.f32 %v911, %v3190
  %3192 = vmatprep.mubr.bf16.mxu0 %v465
  %3193 = vmatmul.mubr.bf16.gmra.mrb[0].mxu0 %v464
  %v3194 = vpop.f32.mrb[0].mxu0
  %v3195 = vadd.f32 %v907, %v3194
  %v3196 = vpop.f32.mrb[0].mxu0
  %v3197 = vadd.f32 %v911, %v3196
  %v3198 = vpop.f32.mrb[0].mxu0
  %v3199 = vadd.f32 %v907, %v3198
  %v3200 = vpop.f32.mrb[0].mxu0
  %v3201 = vadd.f32 %v911, %v3200
  %3202 = vdwg.mxu0
  %3203 = vmatprep.subr.bf16.mxu0 %v2537
  %3204 = vmatpush1.bf16.msra.mxu0 %v2536
  %3205 = vmatprep.subr.bf16.mxu0 %v2553
  %3206 = vmatpush1.bf16.msra.mxu0 %v2552
  %3207 = vmatprep.subr.bf16.mxu0 %v2569
  %3208 = vmatpush1.bf16.msra.mxu0 %v2568
  %3209 = vmatprep.subr.bf16.mxu0 %v2585
  %3210 = vmatpush1.bf16.msra.mxu0 %v2584
  %3211 = vmatprep.subr.bf16.mxu0 %v2601
  %3212 = vmatpush1.bf16.msra.mxu0 %v2600
  %3213 = vmatprep.subr.bf16.mxu0 %v2617
  %3214 = vmatpush1.bf16.msra.mxu0 %v2616
  %3215 = vmatprep.subr.bf16.mxu0 %v2633
  %3216 = vmatpush1.bf16.msra.mxu0 %v2632
  %3217 = vmatprep.subr.bf16.mxu0 %v2649
  %3218 = vmatpush1.bf16.msra.mxu0 %v2648
  %3219 = vmatprep.subr.bf16.mxu0 %v2665
  %3220 = vmatpush1.bf16.msra.mxu0 %v2664
  %3221 = vmatprep.subr.bf16.mxu0 %v2681
  %3222 = vmatpush1.bf16.msra.mxu0 %v2680
  %3223 = vmatprep.subr.bf16.mxu0 %v2697
  %3224 = vmatpush1.bf16.msra.mxu0 %v2696
  %3225 = vmatprep.subr.bf16.mxu0 0
  %3226 = vmatpush1.bf16.msra.mxu0 0
  %3227 = vmatprep.subr.bf16.mxu0 0
  %3228 = vmatpush1.bf16.msra.mxu0 0
  %3229 = vmatprep.subr.bf16.mxu0 0
  %3230 = vmatpush1.bf16.msra.mxu0 0
  %3231 = vmatprep.subr.bf16.mxu0 0
  %3232 = vmatpush1.bf16.msra.mxu0 0
  %3233 = vmatprep.subr.bf16.mxu0 0
  %3234 = vmatpush1.bf16.msra.mxu0 0
  %3235 = vmatprep.mubr.bf16.mxu0 %v3145
  %3236 = vmatmul.mubr.bf16.gmra.mrb[0].mxu0 %v462
  %v3237 = vpop.f32.mrb[0].mxu0
  %v3238 = vadd.f32 %v3185, %v3237
  %v3239 = vpop.f32.mrb[0].mxu0
  %v3240 = vadd.f32 %v3187, %v3239
  %v3241 = vpop.f32.mrb[0].mxu0
  %v3242 = vadd.f32 %v3189, %v3241
  %v3243 = vpop.f32.mrb[0].mxu0
  %v3244 = vadd.f32 %v3191, %v3243
  %3245 = vmatprep.mubr.bf16.mxu0 %v3148
  %3246 = vmatmul.mubr.bf16.gmra.mrb[0].mxu0 %v466
  %v3247 = vpop.f32.mrb[0].mxu0
  %v3248 = vadd.f32 %v3195, %v3247
  %v3249 = vpop.f32.mrb[0].mxu0
  %v3250 = vadd.f32 %v3197, %v3249
  %v3251 = vpop.f32.mrb[0].mxu0
  %v3252 = vadd.f32 %v3199, %v3251
  %v3253 = vpop.f32.mrb[0].mxu0
  %v3254 = vadd.f32 %v3201, %v3253
  %3255 = vdwg.mxu0
  %3256 = vmatprep.subr.bf16.mxu0 %v2283
  %3257 = vmatpush1.bf16.msra.mxu0 %v2282
  %3258 = vmatprep.subr.bf16.mxu0 %v2299
  %3259 = vmatpush1.bf16.msra.mxu0 %v2298
  %3260 = vmatprep.subr.bf16.mxu0 %v2315
  %3261 = vmatpush1.bf16.msra.mxu0 %v2314
  %3262 = vmatprep.subr.bf16.mxu0 %v2331
  %3263 = vmatpush1.bf16.msra.mxu0 %v2330
  %3264 = vmatprep.subr.bf16.mxu0 %v2347
  %3265 = vmatpush1.bf16.msra.mxu0 %v2346
  %3266 = vmatprep.subr.bf16.mxu0 %v2363
  %3267 = vmatpush1.bf16.msra.mxu0 %v2362
  %3268 = vmatprep.subr.bf16.mxu0 %v2379
  %3269 = vmatpush1.bf16.msra.mxu0 %v2378
  %3270 = vmatprep.subr.bf16.mxu0 %v2395
  %3271 = vmatpush1.bf16.msra.mxu0 %v2394
  %3272 = vmatprep.subr.bf16.mxu0 %v2411
  %3273 = vmatpush1.bf16.msra.mxu0 %v2410
  %3274 = vmatprep.subr.bf16.mxu0 %v2427
  %3275 = vmatpush1.bf16.msra.mxu0 %v2426
  %3276 = vmatprep.subr.bf16.mxu0 %v2443
  %3277 = vmatpush1.bf16.msra.mxu0 %v2442
  %3278 = vmatprep.subr.bf16.mxu0 %v2459
  %3279 = vmatpush1.bf16.msra.mxu0 %v2458
  %3280 = vmatprep.subr.bf16.mxu0 %v2475
  %3281 = vmatpush1.bf16.msra.mxu0 %v2474
  %3282 = vmatprep.subr.bf16.mxu0 %v2491
  %3283 = vmatpush1.bf16.msra.mxu0 %v2490
  %3284 = vmatprep.subr.bf16.mxu0 %v2507
  %3285 = vmatpush1.bf16.msra.mxu0 %v2506
  %3286 = vmatprep.subr.bf16.mxu0 %v2523
  %3287 = vmatpush1.bf16.msra.mxu0 %v2522
  %3288 = vmatprep.mubr.bf16.mxu0 %v461
  %3289 = vmatmul.mubr.bf16.gmra.mrb[0].mxu0 %v460
  %v3290 = vpop.f32.mrb[0].mxu0
  %v3291 = vadd.f32 %v915, %v3290
  %v3292 = vpop.f32.mrb[0].mxu0
  %v3293 = vadd.f32 %v919, %v3292
  %v3294 = vpop.f32.mrb[0].mxu0
  %v3295 = vadd.f32 %v915, %v3294
  %v3296 = vpop.f32.mrb[0].mxu0
  %v3297 = vadd.f32 %v919, %v3296
  %3298 = vmatprep.mubr.bf16.mxu0 %v465
  %3299 = vmatmul.mubr.bf16.gmra.mrb[0].mxu0 %v464
  %v3300 = vpop.f32.mrb[0].mxu0
  %v3301 = vadd.f32 %v915, %v3300
  %v3302 = vpop.f32.mrb[0].mxu0
  %v3303 = vadd.f32 %v919, %v3302
  %v3304 = vpop.f32.mrb[0].mxu0
  %v3305 = vadd.f32 %v915, %v3304
  %v3306 = vpop.f32.mrb[0].mxu0
  %v3307 = vadd.f32 %v919, %v3306
  %3308 = vdwg.mxu0
  %3309 = vmatprep.subr.bf16.mxu0 %v2539
  %3310 = vmatpush1.bf16.msra.mxu0 %v2538
  %3311 = vmatprep.subr.bf16.mxu0 %v2555
  %3312 = vmatpush1.bf16.msra.mxu0 %v2554
  %3313 = vmatprep.subr.bf16.mxu0 %v2571
  %3314 = vmatpush1.bf16.msra.mxu0 %v2570
  %3315 = vmatprep.subr.bf16.mxu0 %v2587
  %3316 = vmatpush1.bf16.msra.mxu0 %v2586
  %3317 = vmatprep.subr.bf16.mxu0 %v2603
  %3318 = vmatpush1.bf16.msra.mxu0 %v2602
  %3319 = vmatprep.subr.bf16.mxu0 %v2619
  %3320 = vmatpush1.bf16.msra.mxu0 %v2618
  %3321 = vmatprep.subr.bf16.mxu0 %v2635
  %3322 = vmatpush1.bf16.msra.mxu0 %v2634
  %3323 = vmatprep.subr.bf16.mxu0 %v2651
  %3324 = vmatpush1.bf16.msra.mxu0 %v2650
  %3325 = vmatprep.subr.bf16.mxu0 %v2667
  %3326 = vmatpush1.bf16.msra.mxu0 %v2666
  %3327 = vmatprep.subr.bf16.mxu0 %v2683
  %3328 = vmatpush1.bf16.msra.mxu0 %v2682
  %3329 = vmatprep.subr.bf16.mxu0 %v2699
  %3330 = vmatpush1.bf16.msra.mxu0 %v2698
  %3331 = vmatprep.subr.bf16.mxu0 0
  %3332 = vmatpush1.bf16.msra.mxu0 0
  %3333 = vmatprep.subr.bf16.mxu0 0
  %3334 = vmatpush1.bf16.msra.mxu0 0
  %3335 = vmatprep.subr.bf16.mxu0 0
  %3336 = vmatpush1.bf16.msra.mxu0 0
  %3337 = vmatprep.subr.bf16.mxu0 0
  %3338 = vmatpush1.bf16.msra.mxu0 0
  %3339 = vmatprep.subr.bf16.mxu0 0
  %3340 = vmatpush1.bf16.msra.mxu0 0
  %3341 = vmatprep.mubr.bf16.mxu0 %v3145
  %3342 = vmatmul.mubr.bf16.gmra.mrb[0].mxu0 %v462
  %v3343 = vpop.f32.mrb[0].mxu0
  %v3344 = vadd.f32 %v3291, %v3343
  %v3345 = vpop.f32.mrb[0].mxu0
  %v3346 = vadd.f32 %v3293, %v3345
  %v3347 = vpop.f32.mrb[0].mxu0
  %v3348 = vadd.f32 %v3295, %v3347
  %v3349 = vpop.f32.mrb[0].mxu0
  %v3350 = vadd.f32 %v3297, %v3349
  %3351 = vmatprep.mubr.bf16.mxu0 %v3148
  %3352 = vmatmul.mubr.bf16.gmra.mrb[0].mxu0 %v466
  %v3353 = vpop.f32.mrb[0].mxu0
  %v3354 = vadd.f32 %v3301, %v3353
  %v3355 = vpop.f32.mrb[0].mxu0
  %v3356 = vadd.f32 %v3303, %v3355
  %v3357 = vpop.f32.mrb[0].mxu0
  %v3358 = vadd.f32 %v3305, %v3357
  %v3359 = vpop.f32.mrb[0].mxu0
  %v3360 = vadd.f32 %v3307, %v3359
  %3361 = vdwg.mxu0
  %3362 = vmatprep.subr.bf16.mxu0 %v2285
  %3363 = vmatpush1.bf16.msra.mxu0 %v2284
  %3364 = vmatprep.subr.bf16.mxu0 %v2301
  %3365 = vmatpush1.bf16.msra.mxu0 %v2300
  %3366 = vmatprep.subr.bf16.mxu0 %v2317
  %3367 = vmatpush1.bf16.msra.mxu0 %v2316
  %3368 = vmatprep.subr.bf16.mxu0 %v2333
  %3369 = vmatpush1.bf16.msra.mxu0 %v2332
  %3370 = vmatprep.subr.bf16.mxu0 %v2349
  %3371 = vmatpush1.bf16.msra.mxu0 %v2348
  %3372 = vmatprep.subr.bf16.mxu0 %v2365
  %3373 = vmatpush1.bf16.msra.mxu0 %v2364
  %3374 = vmatprep.subr.bf16.mxu0 %v2381
  %3375 = vmatpush1.bf16.msra.mxu0 %v2380
  %3376 = vmatprep.subr.bf16.mxu0 %v2397
  %3377 = vmatpush1.bf16.msra.mxu0 %v2396
  %3378 = vmatprep.subr.bf16.mxu0 %v2413
  %3379 = vmatpush1.bf16.msra.mxu0 %v2412
  %3380 = vmatprep.subr.bf16.mxu0 %v2429
  %3381 = vmatpush1.bf16.msra.mxu0 %v2428
  %3382 = vmatprep.subr.bf16.mxu0 %v2445
  %3383 = vmatpush1.bf16.msra.mxu0 %v2444
  %3384 = vmatprep.subr.bf16.mxu0 %v2461
  %3385 = vmatpush1.bf16.msra.mxu0 %v2460
  %3386 = vmatprep.subr.bf16.mxu0 %v2477
  %3387 = vmatpush1.bf16.msra.mxu0 %v2476
  %3388 = vmatprep.subr.bf16.mxu0 %v2493
  %3389 = vmatpush1.bf16.msra.mxu0 %v2492
  %3390 = vmatprep.subr.bf16.mxu0 %v2509
  %3391 = vmatpush1.bf16.msra.mxu0 %v2508
  %3392 = vmatprep.subr.bf16.mxu0 %v2525
  %3393 = vmatpush1.bf16.msra.mxu0 %v2524
  %3394 = vmatprep.mubr.bf16.mxu0 %v461
  %3395 = vmatmul.mubr.bf16.gmra.mrb[0].mxu0 %v460
  %v3396 = vpop.f32.mrb[0].mxu0
  %v3397 = vadd.f32 %v923, %v3396
  %v3398 = vpop.f32.mrb[0].mxu0
  %v3399 = vadd.f32 %v927, %v3398
  %v3400 = vpop.f32.mrb[0].mxu0
  %v3401 = vadd.f32 %v923, %v3400
  %v3402 = vpop.f32.mrb[0].mxu0
  %v3403 = vadd.f32 %v927, %v3402
  %3404 = vmatprep.mubr.bf16.mxu0 %v465
  %3405 = vmatmul.mubr.bf16.gmra.mrb[0].mxu0 %v464
  %v3406 = vpop.f32.mrb[0].mxu0
  %v3407 = vadd.f32 %v923, %v3406
  %v3408 = vpop.f32.mrb[0].mxu0
  %v3409 = vadd.f32 %v927, %v3408
  %v3410 = vpop.f32.mrb[0].mxu0
  %v3411 = vadd.f32 %v923, %v3410
  %v3412 = vpop.f32.mrb[0].mxu0
  %v3413 = vadd.f32 %v927, %v3412
  %3414 = vdwg.mxu0
  %3415 = vmatprep.subr.bf16.mxu0 %v2541
  %3416 = vmatpush1.bf16.msra.mxu0 %v2540
  %3417 = vmatprep.subr.bf16.mxu0 %v2557
  %3418 = vmatpush1.bf16.msra.mxu0 %v2556
  %3419 = vmatprep.subr.bf16.mxu0 %v2573
  %3420 = vmatpush1.bf16.msra.mxu0 %v2572
  %3421 = vmatprep.subr.bf16.mxu0 %v2589
  %3422 = vmatpush1.bf16.msra.mxu0 %v2588
  %3423 = vmatprep.subr.bf16.mxu0 %v2605
  %3424 = vmatpush1.bf16.msra.mxu0 %v2604
  %3425 = vmatprep.subr.bf16.mxu0 %v2621
  %3426 = vmatpush1.bf16.msra.mxu0 %v2620
  %3427 = vmatprep.subr.bf16.mxu0 %v2637
  %3428 = vmatpush1.bf16.msra.mxu0 %v2636
  %3429 = vmatprep.subr.bf16.mxu0 %v2653
  %3430 = vmatpush1.bf16.msra.mxu0 %v2652
  %3431 = vmatprep.subr.bf16.mxu0 %v2669
  %3432 = vmatpush1.bf16.msra.mxu0 %v2668
  %3433 = vmatprep.subr.bf16.mxu0 %v2685
  %3434 = vmatpush1.bf16.msra.mxu0 %v2684
  %3435 = vmatprep.subr.bf16.mxu0 %v2701
  %3436 = vmatpush1.bf16.msra.mxu0 %v2700
  %3437 = vmatprep.subr.bf16.mxu0 0
  %3438 = vmatpush1.bf16.msra.mxu0 0
  %3439 = vmatprep.subr.bf16.mxu0 0
  %3440 = vmatpush1.bf16.msra.mxu0 0
  %3441 = vmatprep.subr.bf16.mxu0 0
  %3442 = vmatpush1.bf16.msra.mxu0 0
  %3443 = vmatprep.subr.bf16.mxu0 0
  %3444 = vmatpush1.bf16.msra.mxu0 0
  %3445 = vmatprep.subr.bf16.mxu0 0
  %3446 = vmatpush1.bf16.msra.mxu0 0
  %3447 = vmatprep.mubr.bf16.mxu0 %v3145
  %3448 = vmatmul.mubr.bf16.gmra.mrb[0].mxu0 %v462
  %v3449 = vpop.f32.mrb[0].mxu0
  %v3450 = vadd.f32 %v3397, %v3449
  %v3451 = vpop.f32.mrb[0].mxu0
  %v3452 = vadd.f32 %v3399, %v3451
  %v3453 = vpop.f32.mrb[0].mxu0
  %v3454 = vadd.f32 %v3401, %v3453
  %v3455 = vpop.f32.mrb[0].mxu0
  %v3456 = vadd.f32 %v3403, %v3455
  %3457 = vmatprep.mubr.bf16.mxu0 %v3148
  %3458 = vmatmul.mubr.bf16.gmra.mrb[0].mxu0 %v466
  %v3459 = vpop.f32.mrb[0].mxu0
  %v3460 = vadd.f32 %v3407, %v3459
  %v3461 = vpop.f32.mrb[0].mxu0
  %v3462 = vadd.f32 %v3409, %v3461
  %v3463 = vpop.f32.mrb[0].mxu0
  %v3464 = vadd.f32 %v3411, %v3463
  %v3465 = vpop.f32.mrb[0].mxu0
  %v3466 = vadd.f32 %v3413, %v3465
  %3467 = vdwg.mxu0
  %3468 = vmatprep.subr.bf16.mxu0 %v2287
  %3469 = vmatpush1.bf16.msra.mxu0 %v2286
  %3470 = vmatprep.subr.bf16.mxu0 %v2303
  %3471 = vmatpush1.bf16.msra.mxu0 %v2302
  %3472 = vmatprep.subr.bf16.mxu0 %v2319
  %3473 = vmatpush1.bf16.msra.mxu0 %v2318
  %3474 = vmatprep.subr.bf16.mxu0 %v2335
  %3475 = vmatpush1.bf16.msra.mxu0 %v2334
  %3476 = vmatprep.subr.bf16.mxu0 %v2351
  %3477 = vmatpush1.bf16.msra.mxu0 %v2350
  %3478 = vmatprep.subr.bf16.mxu0 %v2367
  %3479 = vmatpush1.bf16.msra.mxu0 %v2366
  %3480 = vmatprep.subr.bf16.mxu0 %v2383
  %3481 = vmatpush1.bf16.msra.mxu0 %v2382
  %3482 = vmatprep.subr.bf16.mxu0 %v2399
  %3483 = vmatpush1.bf16.msra.mxu0 %v2398
  %3484 = vmatprep.subr.bf16.mxu0 %v2415
  %3485 = vmatpush1.bf16.msra.mxu0 %v2414
  %3486 = vmatprep.subr.bf16.mxu0 %v2431
  %3487 = vmatpush1.bf16.msra.mxu0 %v2430
  %3488 = vmatprep.subr.bf16.mxu0 %v2447
  %3489 = vmatpush1.bf16.msra.mxu0 %v2446
  %3490 = vmatprep.subr.bf16.mxu0 %v2463
  %3491 = vmatpush1.bf16.msra.mxu0 %v2462
  %3492 = vmatprep.subr.bf16.mxu0 %v2479
  %3493 = vmatpush1.bf16.msra.mxu0 %v2478
  %3494 = vmatprep.subr.bf16.mxu0 %v2495
  %3495 = vmatpush1.bf16.msra.mxu0 %v2494
  %3496 = vmatprep.subr.bf16.mxu0 %v2511
  %3497 = vmatpush1.bf16.msra.mxu0 %v2510
  %3498 = vmatprep.subr.bf16.mxu0 %v2527
  %3499 = vmatpush1.bf16.msra.mxu0 %v2526
  %3500 = vmatprep.mubr.bf16.mxu0 %v461
  %3501 = vmatmul.mubr.bf16.gmra.mrb[0].mxu0 %v460
  %v3502 = vpop.f32.mrb[0].mxu0
  %v3503 = vadd.f32 %v931, %v3502
  %v3504 = vpop.f32.mrb[0].mxu0
  %v3505 = vadd.f32 %v935, %v3504
  %v3506 = vpop.f32.mrb[0].mxu0
  %v3507 = vadd.f32 %v931, %v3506
  %v3508 = vpop.f32.mrb[0].mxu0
  %v3509 = vadd.f32 %v935, %v3508
  %3510 = vmatprep.mubr.bf16.mxu0 %v465
  %3511 = vmatmul.mubr.bf16.gmra.mrb[0].mxu0 %v464
  %v3512 = vpop.f32.mrb[0].mxu0
  %v3513 = vadd.f32 %v931, %v3512
  %v3514 = vpop.f32.mrb[0].mxu0
  %v3515 = vadd.f32 %v935, %v3514
  %v3516 = vpop.f32.mrb[0].mxu0
  %v3517 = vadd.f32 %v931, %v3516
  %v3518 = vpop.f32.mrb[0].mxu0
  %v3519 = vadd.f32 %v935, %v3518
  %3520 = vdwg.mxu0
  %3521 = vmatprep.subr.bf16.mxu0 %v2543
  %3522 = vmatpush1.bf16.msra.mxu0 %v2542
  %3523 = vmatprep.subr.bf16.mxu0 %v2559
  %3524 = vmatpush1.bf16.msra.mxu0 %v2558
  %3525 = vmatprep.subr.bf16.mxu0 %v2575
  %3526 = vmatpush1.bf16.msra.mxu0 %v2574
  %3527 = vmatprep.subr.bf16.mxu0 %v2591
  %3528 = vmatpush1.bf16.msra.mxu0 %v2590
  %3529 = vmatprep.subr.bf16.mxu0 %v2607
  %3530 = vmatpush1.bf16.msra.mxu0 %v2606
  %3531 = vmatprep.subr.bf16.mxu0 %v2623
  %3532 = vmatpush1.bf16.msra.mxu0 %v2622
  %3533 = vmatprep.subr.bf16.mxu0 %v2639
  %3534 = vmatpush1.bf16.msra.mxu0 %v2638
  %3535 = vmatprep.subr.bf16.mxu0 %v2655
  %3536 = vmatpush1.bf16.msra.mxu0 %v2654
  %3537 = vmatprep.subr.bf16.mxu0 %v2671
  %3538 = vmatpush1.bf16.msra.mxu0 %v2670
  %3539 = vmatprep.subr.bf16.mxu0 %v2687
  %3540 = vmatpush1.bf16.msra.mxu0 %v2686
  %3541 = vmatprep.subr.bf16.mxu0 %v2703
  %3542 = vmatpush1.bf16.msra.mxu0 %v2702
  %3543 = vmatprep.subr.bf16.mxu0 0
  %3544 = vmatpush1.bf16.msra.mxu0 0
  %3545 = vmatprep.subr.bf16.mxu0 0
  %3546 = vmatpush1.bf16.msra.mxu0 0
  %3547 = vmatprep.subr.bf16.mxu0 0
  %3548 = vmatpush1.bf16.msra.mxu0 0
  %3549 = vmatprep.subr.bf16.mxu0 0
  %3550 = vmatpush1.bf16.msra.mxu0 0
  %3551 = vmatprep.subr.bf16.mxu0 0
  %3552 = vmatpush1.bf16.msra.mxu0 0
  %3553 = vmatprep.mubr.bf16.mxu0 %v3145
  %3554 = vmatmul.mubr.bf16.gmra.mrb[0].mxu0 %v462
  %v3555 = vpop.f32.mrb[0].mxu0
  %v3556 = vadd.f32 %v3503, %v3555
  %v3557 = vpop.f32.mrb[0].mxu0
  %v3558 = vadd.f32 %v3505, %v3557
  %v3559 = vpop.f32.mrb[0].mxu0
  %v3560 = vadd.f32 %v3507, %v3559
  %v3561 = vpop.f32.mrb[0].mxu0
  %v3562 = vadd.f32 %v3509, %v3561
  %3563 = vmatprep.mubr.bf16.mxu0 %v3148
  %3564 = vmatmul.mubr.bf16.gmra.mrb[0].mxu0 %v466
  %v3565 = vpop.f32.mrb[0].mxu0
  %v3566 = vadd.f32 %v3513, %v3565
  %v3567 = vpop.f32.mrb[0].mxu0
  %v3568 = vadd.f32 %v3515, %v3567
  %v3569 = vpop.f32.mrb[0].mxu0
  %v3570 = vadd.f32 %v3517, %v3569
  %v3571 = vpop.f32.mrb[0].mxu0
  %v3572 = vadd.f32 %v3519, %v3571
  %3573 = vdwg.mxu0
  %3574 = vmatprep.subr.bf16.mxu0 %v2289
  %3575 = vmatpush1.bf16.msra.mxu0 %v2288
  %3576 = vmatprep.subr.bf16.mxu0 %v2305
  %3577 = vmatpush1.bf16.msra.mxu0 %v2304
  %3578 = vmatprep.subr.bf16.mxu0 %v2321
  %3579 = vmatpush1.bf16.msra.mxu0 %v2320
  %3580 = vmatprep.subr.bf16.mxu0 %v2337
  %3581 = vmatpush1.bf16.msra.mxu0 %v2336
  %3582 = vmatprep.subr.bf16.mxu0 %v2353
  %3583 = vmatpush1.bf16.msra.mxu0 %v2352
  %3584 = vmatprep.subr.bf16.mxu0 %v2369
  %3585 = vmatpush1.bf16.msra.mxu0 %v2368
  %3586 = vmatprep.subr.bf16.mxu0 %v2385
  %3587 = vmatpush1.bf16.msra.mxu0 %v2384
  %3588 = vmatprep.subr.bf16.mxu0 %v2401
  %3589 = vmatpush1.bf16.msra.mxu0 %v2400
  %3590 = vmatprep.subr.bf16.mxu0 %v2417
  %3591 = vmatpush1.bf16.msra.mxu0 %v2416
  %3592 = vmatprep.subr.bf16.mxu0 %v2433
  %3593 = vmatpush1.bf16.msra.mxu0 %v2432
  %3594 = vmatprep.subr.bf16.mxu0 %v2449
  %3595 = vmatpush1.bf16.msra.mxu0 %v2448
  %3596 = vmatprep.subr.bf16.mxu0 %v2465
  %3597 = vmatpush1.bf16.msra.mxu0 %v2464
  %3598 = vmatprep.subr.bf16.mxu0 %v2481
  %3599 = vmatpush1.bf16.msra.mxu0 %v2480
  %3600 = vmatprep.subr.bf16.mxu0 %v2497
  %3601 = vmatpush1.bf16.msra.mxu0 %v2496
  %3602 = vmatprep.subr.bf16.mxu0 %v2513
  %3603 = vmatpush1.bf16.msra.mxu0 %v2512
  %3604 = vmatprep.subr.bf16.mxu0 %v2529
  %3605 = vmatpush1.bf16.msra.mxu0 %v2528
  %3606 = vmatprep.mubr.bf16.mxu0 %v461
  %3607 = vmatmul.mubr.bf16.gmra.mrb[0].mxu0 %v460
  %v3608 = vpop.f32.mrb[0].mxu0
  %v3609 = vadd.f32 %v939, %v3608
  %v3610 = vpop.f32.mrb[0].mxu0
  %v3611 = vadd.f32 %v943, %v3610
  %v3612 = vpop.f32.mrb[0].mxu0
  %v3613 = vadd.f32 %v939, %v3612
  %v3614 = vpop.f32.mrb[0].mxu0
  %v3615 = vadd.f32 %v943, %v3614
  %3616 = vmatprep.mubr.bf16.mxu0 %v465
  %3617 = vmatmul.mubr.bf16.gmra.mrb[0].mxu0 %v464
  %v3618 = vpop.f32.mrb[0].mxu0
  %v3619 = vadd.f32 %v939, %v3618
  %v3620 = vpop.f32.mrb[0].mxu0
  %v3621 = vadd.f32 %v943, %v3620
  %v3622 = vpop.f32.mrb[0].mxu0
  %v3623 = vadd.f32 %v939, %v3622
  %v3624 = vpop.f32.mrb[0].mxu0
  %v3625 = vadd.f32 %v943, %v3624
  %3626 = vdwg.mxu0
  %3627 = vmatprep.subr.bf16.mxu0 %v2545
  %3628 = vmatpush1.bf16.msra.mxu0 %v2544
  %3629 = vmatprep.subr.bf16.mxu0 %v2561
  %3630 = vmatpush1.bf16.msra.mxu0 %v2560
  %3631 = vmatprep.subr.bf16.mxu0 %v2577
  %3632 = vmatpush1.bf16.msra.mxu0 %v2576
  %3633 = vmatprep.subr.bf16.mxu0 %v2593
  %3634 = vmatpush1.bf16.msra.mxu0 %v2592
  %3635 = vmatprep.subr.bf16.mxu0 %v2609
  %3636 = vmatpush1.bf16.msra.mxu0 %v2608
  %3637 = vmatprep.subr.bf16.mxu0 %v2625
  %3638 = vmatpush1.bf16.msra.mxu0 %v2624
  %3639 = vmatprep.subr.bf16.mxu0 %v2641
  %3640 = vmatpush1.bf16.msra.mxu0 %v2640
  %3641 = vmatprep.subr.bf16.mxu0 %v2657
  %3642 = vmatpush1.bf16.msra.mxu0 %v2656
  %3643 = vmatprep.subr.bf16.mxu0 %v2673
  %3644 = vmatpush1.bf16.msra.mxu0 %v2672
  %3645 = vmatprep.subr.bf16.mxu0 %v2689
  %3646 = vmatpush1.bf16.msra.mxu0 %v2688
  %3647 = vmatprep.subr.bf16.mxu0 %v2705
  %3648 = vmatpush1.bf16.msra.mxu0 %v2704
  %3649 = vmatprep.subr.bf16.mxu0 0
  %3650 = vmatpush1.bf16.msra.mxu0 0
  %3651 = vmatprep.subr.bf16.mxu0 0
  %3652 = vmatpush1.bf16.msra.mxu0 0
  %3653 = vmatprep.subr.bf16.mxu0 0
  %3654 = vmatpush1.bf16.msra.mxu0 0
  %3655 = vmatprep.subr.bf16.mxu0 0
  %3656 = vmatpush1.bf16.msra.mxu0 0
  %3657 = vmatprep.subr.bf16.mxu0 0
  %3658 = vmatpush1.bf16.msra.mxu0 0
  %3659 = vmatprep.mubr.bf16.mxu0 %v3145
  %3660 = vmatmul.mubr.bf16.gmra.mrb[0].mxu0 %v462
  %v3661 = vpop.f32.mrb[0].mxu0
  %v3662 = vadd.f32 %v3609, %v3661
  %v3663 = vpop.f32.mrb[0].mxu0
  %v3664 = vadd.f32 %v3611, %v3663
  %v3665 = vpop.f32.mrb[0].mxu0
  %v3666 = vadd.f32 %v3613, %v3665
  %v3667 = vpop.f32.mrb[0].mxu0
  %v3668 = vadd.f32 %v3615, %v3667
  %3669 = vmatprep.mubr.bf16.mxu0 %v3148
  %3670 = vmatmul.mubr.bf16.gmra.mrb[0].mxu0 %v466
  %v3671 = vpop.f32.mrb[0].mxu0
  %v3672 = vadd.f32 %v3619, %v3671
  %v3673 = vpop.f32.mrb[0].mxu0
  %v3674 = vadd.f32 %v3621, %v3673
  %v3675 = vpop.f32.mrb[0].mxu0
  %v3676 = vadd.f32 %v3623, %v3675
  %v3677 = vpop.f32.mrb[0].mxu0
  %v3678 = vadd.f32 %v3625, %v3677
  %3679 = vdwg.mxu0
  %3680 = vmatprep.subr.bf16.mxu0 %v2291
  %3681 = vmatpush1.bf16.msra.mxu0 %v2290
  %3682 = vmatprep.subr.bf16.mxu0 %v2307
  %3683 = vmatpush1.bf16.msra.mxu0 %v2306
  %3684 = vmatprep.subr.bf16.mxu0 %v2323
  %3685 = vmatpush1.bf16.msra.mxu0 %v2322
  %3686 = vmatprep.subr.bf16.mxu0 %v2339
  %3687 = vmatpush1.bf16.msra.mxu0 %v2338
  %3688 = vmatprep.subr.bf16.mxu0 %v2355
  %3689 = vmatpush1.bf16.msra.mxu0 %v2354
  %3690 = vmatprep.subr.bf16.mxu0 %v2371
  %3691 = vmatpush1.bf16.msra.mxu0 %v2370
  %3692 = vmatprep.subr.bf16.mxu0 %v2387
  %3693 = vmatpush1.bf16.msra.mxu0 %v2386
  %3694 = vmatprep.subr.bf16.mxu0 %v2403
  %3695 = vmatpush1.bf16.msra.mxu0 %v2402
  %3696 = vmatprep.subr.bf16.mxu0 %v2419
  %3697 = vmatpush1.bf16.msra.mxu0 %v2418
  %3698 = vmatprep.subr.bf16.mxu0 %v2435
  %3699 = vmatpush1.bf16.msra.mxu0 %v2434
  %3700 = vmatprep.subr.bf16.mxu0 %v2451
  %3701 = vmatpush1.bf16.msra.mxu0 %v2450
  %3702 = vmatprep.subr.bf16.mxu0 %v2467
  %3703 = vmatpush1.bf16.msra.mxu0 %v2466
  %3704 = vmatprep.subr.bf16.mxu0 %v2483
  %3705 = vmatpush1.bf16.msra.mxu0 %v2482
  %3706 = vmatprep.subr.bf16.mxu0 %v2499
  %3707 = vmatpush1.bf16.msra.mxu0 %v2498
  %3708 = vmatprep.subr.bf16.mxu0 %v2515
  %3709 = vmatpush1.bf16.msra.mxu0 %v2514
  %3710 = vmatprep.subr.bf16.mxu0 %v2531
  %3711 = vmatpush1.bf16.msra.mxu0 %v2530
  %3712 = vmatprep.mubr.bf16.mxu0 %v461
  %3713 = vmatmul.mubr.bf16.gmra.mrb[0].mxu0 %v460
  %v3714 = vpop.f32.mrb[0].mxu0
  %v3715 = vadd.f32 %v947, %v3714
  %v3716 = vpop.f32.mrb[0].mxu0
  %v3717 = vadd.f32 %v951, %v3716
  %v3718 = vpop.f32.mrb[0].mxu0
  %v3719 = vadd.f32 %v947, %v3718
  %v3720 = vpop.f32.mrb[0].mxu0
  %v3721 = vadd.f32 %v951, %v3720
  %3722 = vmatprep.mubr.bf16.mxu0 %v465
  %3723 = vmatmul.mubr.bf16.gmra.mrb[0].mxu0 %v464
  %v3724 = vpop.f32.mrb[0].mxu0
  %v3725 = vadd.f32 %v947, %v3724
  %v3726 = vpop.f32.mrb[0].mxu0
  %v3727 = vadd.f32 %v951, %v3726
  %v3728 = vpop.f32.mrb[0].mxu0
  %v3729 = vadd.f32 %v947, %v3728
  %v3730 = vpop.f32.mrb[0].mxu0
  %v3731 = vadd.f32 %v951, %v3730
  %3732 = vdwg.mxu0
  %3733 = vmatprep.subr.bf16.mxu0 %v2547
  %3734 = vmatpush1.bf16.msra.mxu0 %v2546
  %3735 = vmatprep.subr.bf16.mxu0 %v2563
  %3736 = vmatpush1.bf16.msra.mxu0 %v2562
  %3737 = vmatprep.subr.bf16.mxu0 %v2579
  %3738 = vmatpush1.bf16.msra.mxu0 %v2578
  %3739 = vmatprep.subr.bf16.mxu0 %v2595
  %3740 = vmatpush1.bf16.msra.mxu0 %v2594
  %3741 = vmatprep.subr.bf16.mxu0 %v2611
  %3742 = vmatpush1.bf16.msra.mxu0 %v2610
  %3743 = vmatprep.subr.bf16.mxu0 %v2627
  %3744 = vmatpush1.bf16.msra.mxu0 %v2626
  %3745 = vmatprep.subr.bf16.mxu0 %v2643
  %3746 = vmatpush1.bf16.msra.mxu0 %v2642
  %3747 = vmatprep.subr.bf16.mxu0 %v2659
  %3748 = vmatpush1.bf16.msra.mxu0 %v2658
  %3749 = vmatprep.subr.bf16.mxu0 %v2675
  %3750 = vmatpush1.bf16.msra.mxu0 %v2674
  %3751 = vmatprep.subr.bf16.mxu0 %v2691
  %3752 = vmatpush1.bf16.msra.mxu0 %v2690
  %3753 = vmatprep.subr.bf16.mxu0 %v2707
  %3754 = vmatpush1.bf16.msra.mxu0 %v2706
  %3755 = vmatprep.subr.bf16.mxu0 0
  %3756 = vmatpush1.bf16.msra.mxu0 0
  %3757 = vmatprep.subr.bf16.mxu0 0
  %3758 = vmatpush1.bf16.msra.mxu0 0
  %3759 = vmatprep.subr.bf16.mxu0 0
  %3760 = vmatpush1.bf16.msra.mxu0 0
  %3761 = vmatprep.subr.bf16.mxu0 0
  %3762 = vmatpush1.bf16.msra.mxu0 0
  %3763 = vmatprep.subr.bf16.mxu0 0
  %3764 = vmatpush1.bf16.msra.mxu0 0
  %3765 = vmatprep.mubr.bf16.mxu0 %v3145
  %3766 = vmatmul.mubr.bf16.gmra.mrb[0].mxu0 %v462
  %v3767 = vpop.f32.mrb[0].mxu0
  %v3768 = vadd.f32 %v3715, %v3767
  %v3769 = vpop.f32.mrb[0].mxu0
  %v3770 = vadd.f32 %v3717, %v3769
  %v3771 = vpop.f32.mrb[0].mxu0
  %v3772 = vadd.f32 %v3719, %v3771
  %v3773 = vpop.f32.mrb[0].mxu0
  %v3774 = vadd.f32 %v3721, %v3773
  %3775 = vmatprep.mubr.bf16.mxu0 %v3148
  %3776 = vmatmul.mubr.bf16.gmra.mrb[0].mxu0 %v466
  %v3777 = vpop.f32.mrb[0].mxu0
  %v3778 = vadd.f32 %v3725, %v3777
  %v3779 = vpop.f32.mrb[0].mxu0
  %v3780 = vadd.f32 %v3727, %v3779
  %v3781 = vpop.f32.mrb[0].mxu0
  %v3782 = vadd.f32 %v3729, %v3781
  %v3783 = vpop.f32.mrb[0].mxu0
  %v3784 = vadd.f32 %v3731, %v3783
  %3785 = vdwg.mxu0
  %3786 = vmatprep.subr.bf16.mxu0 %v2293
  %3787 = vmatpush1.bf16.msra.mxu0 %v2292
  %3788 = vmatprep.subr.bf16.mxu0 %v2309
  %3789 = vmatpush1.bf16.msra.mxu0 %v2308
  %3790 = vmatprep.subr.bf16.mxu0 %v2325
  %3791 = vmatpush1.bf16.msra.mxu0 %v2324
  %3792 = vmatprep.subr.bf16.mxu0 %v2341
  %3793 = vmatpush1.bf16.msra.mxu0 %v2340
  %3794 = vmatprep.subr.bf16.mxu0 %v2357
  %3795 = vmatpush1.bf16.msra.mxu0 %v2356
  %3796 = vmatprep.subr.bf16.mxu0 %v2373
  %3797 = vmatpush1.bf16.msra.mxu0 %v2372
  %3798 = vmatprep.subr.bf16.mxu0 %v2389
  %3799 = vmatpush1.bf16.msra.mxu0 %v2388
  %3800 = vmatprep.subr.bf16.mxu0 %v2405
  %3801 = vmatpush1.bf16.msra.mxu0 %v2404
  %3802 = vmatprep.subr.bf16.mxu0 %v2421
  %3803 = vmatpush1.bf16.msra.mxu0 %v2420
  %3804 = vmatprep.subr.bf16.mxu0 %v2437
  %3805 = vmatpush1.bf16.msra.mxu0 %v2436
  %3806 = vmatprep.subr.bf16.mxu0 %v2453
  %3807 = vmatpush1.bf16.msra.mxu0 %v2452
  %3808 = vmatprep.subr.bf16.mxu0 %v2469
  %3809 = vmatpush1.bf16.msra.mxu0 %v2468
  %3810 = vmatprep.subr.bf16.mxu0 %v2485
  %3811 = vmatpush1.bf16.msra.mxu0 %v2484
  %3812 = vmatprep.subr.bf16.mxu0 %v2501
  %3813 = vmatpush1.bf16.msra.mxu0 %v2500
  %3814 = vmatprep.subr.bf16.mxu0 %v2517
  %3815 = vmatpush1.bf16.msra.mxu0 %v2516
  %3816 = vmatprep.subr.bf16.mxu0 %v2533
  %3817 = vmatpush1.bf16.msra.mxu0 %v2532
  %3818 = vmatprep.mubr.bf16.mxu0 %v461
  %3819 = vmatmul.mubr.bf16.gmra.mrb[0].mxu0 %v460
  %v3820 = vpop.f32.mrb[0].mxu0
  %v3821 = vadd.f32 %v955, %v3820
  %v3822 = vpop.f32.mrb[0].mxu0
  %v3823 = vadd.f32 %v959, %v3822
  %v3824 = vpop.f32.mrb[0].mxu0
  %v3825 = vadd.f32 %v955, %v3824
  %v3826 = vpop.f32.mrb[0].mxu0
  %v3827 = vadd.f32 %v959, %v3826
  %3828 = vmatprep.mubr.bf16.mxu0 %v465
  %3829 = vmatmul.mubr.bf16.gmra.mrb[0].mxu0 %v464
  %v3830 = vpop.f32.mrb[0].mxu0
  %v3831 = vadd.f32 %v955, %v3830
  %v3832 = vpop.f32.mrb[0].mxu0
  %v3833 = vadd.f32 %v959, %v3832
  %v3834 = vpop.f32.mrb[0].mxu0
  %v3835 = vadd.f32 %v955, %v3834
  %v3836 = vpop.f32.mrb[0].mxu0
  %v3837 = vadd.f32 %v959, %v3836
  %3838 = vdwg.mxu0
  %3839 = vmatprep.subr.bf16.mxu0 %v2549
  %3840 = vmatpush1.bf16.msra.mxu0 %v2548
  %3841 = vmatprep.subr.bf16.mxu0 %v2565
  %3842 = vmatpush1.bf16.msra.mxu0 %v2564
  %3843 = vmatprep.subr.bf16.mxu0 %v2581
  %3844 = vmatpush1.bf16.msra.mxu0 %v2580
  %3845 = vmatprep.subr.bf16.mxu0 %v2597
  %3846 = vmatpush1.bf16.msra.mxu0 %v2596
  %3847 = vmatprep.subr.bf16.mxu0 %v2613
  %3848 = vmatpush1.bf16.msra.mxu0 %v2612
  %3849 = vmatprep.subr.bf16.mxu0 %v2629
  %3850 = vmatpush1.bf16.msra.mxu0 %v2628
  %3851 = vmatprep.subr.bf16.mxu0 %v2645
  %3852 = vmatpush1.bf16.msra.mxu0 %v2644
  %3853 = vmatprep.subr.bf16.mxu0 %v2661
  %3854 = vmatpush1.bf16.msra.mxu0 %v2660
  %3855 = vmatprep.subr.bf16.mxu0 %v2677
  %3856 = vmatpush1.bf16.msra.mxu0 %v2676
  %3857 = vmatprep.subr.bf16.mxu0 %v2693
  %3858 = vmatpush1.bf16.msra.mxu0 %v2692
  %3859 = vmatprep.subr.bf16.mxu0 %v2709
  %3860 = vmatpush1.bf16.msra.mxu0 %v2708
  %3861 = vmatprep.subr.bf16.mxu0 0
  %3862 = vmatpush1.bf16.msra.mxu0 0
  %3863 = vmatprep.subr.bf16.mxu0 0
  %3864 = vmatpush1.bf16.msra.mxu0 0
  %3865 = vmatprep.subr.bf16.mxu0 0
  %3866 = vmatpush1.bf16.msra.mxu0 0
  %3867 = vmatprep.subr.bf16.mxu0 0
  %3868 = vmatpush1.bf16.msra.mxu0 0
  %3869 = vmatprep.subr.bf16.mxu0 0
  %3870 = vmatpush1.bf16.msra.mxu0 0
  %3871 = vmatprep.mubr.bf16.mxu0 %v3145
  %3872 = vmatmul.mubr.bf16.gmra.mrb[0].mxu0 %v462
  %v3873 = vpop.f32.mrb[0].mxu0
  %v3874 = vadd.f32 %v3821, %v3873
  %v3875 = vpop.f32.mrb[0].mxu0
  %v3876 = vadd.f32 %v3823, %v3875
  %v3877 = vpop.f32.mrb[0].mxu0
  %v3878 = vadd.f32 %v3825, %v3877
  %v3879 = vpop.f32.mrb[0].mxu0
  %v3880 = vadd.f32 %v3827, %v3879
  %3881 = vmatprep.mubr.bf16.mxu0 %v3148
  %3882 = vmatmul.mubr.bf16.gmra.mrb[0].mxu0 %v466
  %v3883 = vpop.f32.mrb[0].mxu0
  %v3884 = vadd.f32 %v3831, %v3883
  %v3885 = vpop.f32.mrb[0].mxu0
  %v3886 = vadd.f32 %v3833, %v3885
  %v3887 = vpop.f32.mrb[0].mxu0
  %v3888 = vadd.f32 %v3835, %v3887
  %v3889 = vpop.f32.mrb[0].mxu0
  %v3890 = vadd.f32 %v3837, %v3889
  %3891 = vdwg.mxu0
  %3892 = vmatprep.subr.bf16.mxu0 %v2295
  %3893 = vmatpush1.bf16.msra.mxu0 %v2294
  %3894 = vmatprep.subr.bf16.mxu0 %v2311
  %3895 = vmatpush1.bf16.msra.mxu0 %v2310
  %3896 = vmatprep.subr.bf16.mxu0 %v2327
  %3897 = vmatpush1.bf16.msra.mxu0 %v2326
  %3898 = vmatprep.subr.bf16.mxu0 %v2343
  %3899 = vmatpush1.bf16.msra.mxu0 %v2342
  %3900 = vmatprep.subr.bf16.mxu0 %v2359
  %3901 = vmatpush1.bf16.msra.mxu0 %v2358
  %3902 = vmatprep.subr.bf16.mxu0 %v2375
  %3903 = vmatpush1.bf16.msra.mxu0 %v2374
  %3904 = vmatprep.subr.bf16.mxu0 %v2391
  %3905 = vmatpush1.bf16.msra.mxu0 %v2390
  %3906 = vmatprep.subr.bf16.mxu0 %v2407
  %3907 = vmatpush1.bf16.msra.mxu0 %v2406
  %3908 = vmatprep.subr.bf16.mxu0 %v2423
  %3909 = vmatpush1.bf16.msra.mxu0 %v2422
  %3910 = vmatprep.subr.bf16.mxu0 %v2439
  %3911 = vmatpush1.bf16.msra.mxu0 %v2438
  %3912 = vmatprep.subr.bf16.mxu0 %v2455
  %3913 = vmatpush1.bf16.msra.mxu0 %v2454
  %3914 = vmatprep.subr.bf16.mxu0 %v2471
  %3915 = vmatpush1.bf16.msra.mxu0 %v2470
  %3916 = vmatprep.subr.bf16.mxu0 %v2487
  %3917 = vmatpush1.bf16.msra.mxu0 %v2486
  %3918 = vmatprep.subr.bf16.mxu0 %v2503
  %3919 = vmatpush1.bf16.msra.mxu0 %v2502
  %3920 = vmatprep.subr.bf16.mxu0 %v2519
  %3921 = vmatpush1.bf16.msra.mxu0 %v2518
  %3922 = vmatprep.subr.bf16.mxu0 %v2535
  %3923 = vmatpush1.bf16.msra.mxu0 %v2534
  %3924 = vmatprep.mubr.bf16.mxu0 %v461
  %3925 = vmatmul.mubr.bf16.gmra.mrb[0].mxu0 %v460
  %v3926 = vpop.f32.mrb[0].mxu0
  %v3927 = vadd.f32 %v963, %v3926
  %v3928 = vpop.f32.mrb[0].mxu0
  %v3929 = vadd.f32 %v967, %v3928
  %v3930 = vpop.f32.mrb[0].mxu0
  %v3931 = vadd.f32 %v963, %v3930
  %v3932 = vpop.f32.mrb[0].mxu0
  %v3933 = vadd.f32 %v967, %v3932
  %3934 = vmatprep.mubr.bf16.mxu0 %v465
  %3935 = vmatmul.mubr.bf16.gmra.mrb[0].mxu0 %v464
  %v3936 = vpop.f32.mrb[0].mxu0
  %v3937 = vadd.f32 %v963, %v3936
  %v3938 = vpop.f32.mrb[0].mxu0
  %v3939 = vadd.f32 %v967, %v3938
  %v3940 = vpop.f32.mrb[0].mxu0
  %v3941 = vadd.f32 %v963, %v3940
  %v3942 = vpop.f32.mrb[0].mxu0
  %v3943 = vadd.f32 %v967, %v3942
  %3944 = vdwg.mxu0
  %3945 = vmatprep.subr.bf16.mxu0 %v2551
  %3946 = vmatpush1.bf16.msra.mxu0 %v2550
  %3947 = vmatprep.subr.bf16.mxu0 %v2567
  %3948 = vmatpush1.bf16.msra.mxu0 %v2566
  %3949 = vmatprep.subr.bf16.mxu0 %v2583
  %3950 = vmatpush1.bf16.msra.mxu0 %v2582
  %3951 = vmatprep.subr.bf16.mxu0 %v2599
  %3952 = vmatpush1.bf16.msra.mxu0 %v2598
  %3953 = vmatprep.subr.bf16.mxu0 %v2615
  %3954 = vmatpush1.bf16.msra.mxu0 %v2614
  %3955 = vmatprep.subr.bf16.mxu0 %v2631
  %3956 = vmatpush1.bf16.msra.mxu0 %v2630
  %3957 = vmatprep.subr.bf16.mxu0 %v2647
  %3958 = vmatpush1.bf16.msra.mxu0 %v2646
  %3959 = vmatprep.subr.bf16.mxu0 %v2663
  %3960 = vmatpush1.bf16.msra.mxu0 %v2662
  %3961 = vmatprep.subr.bf16.mxu0 %v2679
  %3962 = vmatpush1.bf16.msra.mxu0 %v2678
  %3963 = vmatprep.subr.bf16.mxu0 %v2695
  %3964 = vmatpush1.bf16.msra.mxu0 %v2694
  %3965 = vmatprep.subr.bf16.mxu0 %v2711
  %3966 = vmatpush1.bf16.msra.mxu0 %v2710
  %3967 = vmatprep.subr.bf16.mxu0 0
  %3968 = vmatpush1.bf16.msra.mxu0 0
  %3969 = vmatprep.subr.bf16.mxu0 0
  %3970 = vmatpush1.bf16.msra.mxu0 0
  %3971 = vmatprep.subr.bf16.mxu0 0
  %3972 = vmatpush1.bf16.msra.mxu0 0
  %3973 = vmatprep.subr.bf16.mxu0 0
  %3974 = vmatpush1.bf16.msra.mxu0 0
  %3975 = vmatprep.subr.bf16.mxu0 0
  %3976 = vmatpush1.bf16.msra.mxu0 0
  %3977 = vmatprep.mubr.bf16.mxu0 %v3145
  %3978 = vmatmul.mubr.bf16.gmra.mrb[0].mxu0 %v462
  %v3979 = vpop.f32.mrb[0].mxu0
  %v3980 = vadd.f32 %v3927, %v3979
  %v3981 = vpop.f32.mrb[0].mxu0
  %v3982 = vadd.f32 %v3929, %v3981
  %v3983 = vpop.f32.mrb[0].mxu0
  %v3984 = vadd.f32 %v3931, %v3983
  %v3985 = vpop.f32.mrb[0].mxu0
  %v3986 = vadd.f32 %v3933, %v3985
  %3987 = vmatprep.mubr.bf16.mxu0 %v3148
  %3988 = vmatmul.mubr.bf16.gmra.mrb[0].mxu0 %v466
  %v3989 = vpop.f32.mrb[0].mxu0
  %v3990 = vadd.f32 %v3937, %v3989
  %v3991 = vpop.f32.mrb[0].mxu0
  %v3992 = vadd.f32 %v3939, %v3991
  %v3993 = vpop.f32.mrb[0].mxu0
  %v3994 = vadd.f32 %v3941, %v3993
  %v3995 = vpop.f32.mrb[0].mxu0
  %v3996 = vadd.f32 %v3943, %v3995
  %3997 = vdwg.mxu0
  %v3998 = vmax.f32 %v3238, 0.0
  %v3999 = vmax.f32 %v3240, 0.0
  %v4000 = vmax.f32 %v3344, 0.0
  %v4001 = vmax.f32 %v3346, 0.0
  %v4002 = vmax.f32 %v3450, 0.0
  %v4003 = vmax.f32 %v3452, 0.0
  %v4004 = vmax.f32 %v3556, 0.0
  %v4005 = vmax.f32 %v3558, 0.0
  %v4006 = vmax.f32 %v3662, 0.0
  %v4007 = vmax.f32 %v3664, 0.0
  %v4008 = vmax.f32 %v3768, 0.0
  %v4009 = vmax.f32 %v3770, 0.0
  %v4010 = vmax.f32 %v3874, 0.0
  %v4011 = vmax.f32 %v3876, 0.0
  %v4012 = vmax.f32 %v3980, 0.0
  %v4013 = vmax.f32 %v3982, 0.0
  %v4014 = vmax.f32 %v3242, 0.0
  %v4015 = vmax.f32 %v3244, 0.0
  %v4016 = vmax.f32 %v3348, 0.0
  %v4017 = vmax.f32 %v3350, 0.0
  %v4018 = vmax.f32 %v3454, 0.0
  %v4019 = vmax.f32 %v3456, 0.0
  %v4020 = vmax.f32 %v3560, 0.0
  %v4021 = vmax.f32 %v3562, 0.0
  %v4022 = vmax.f32 %v3666, 0.0
  %v4023 = vmax.f32 %v3668, 0.0
  %v4024 = vmax.f32 %v3772, 0.0
  %v4025 = vmax.f32 %v3774, 0.0
  %v4026 = vmax.f32 %v3878, 0.0
  %v4027 = vmax.f32 %v3880, 0.0
  %v4028 = vmax.f32 %v3984, 0.0
  %v4029 = vmax.f32 %v3986, 0.0
  %v4030 = vmax.f32 %v3248, 0.0
  %v4031 = vmax.f32 %v3250, 0.0
  %v4032 = vmax.f32 %v3354, 0.0
  %v4033 = vmax.f32 %v3356, 0.0
  %v4034 = vmax.f32 %v3460, 0.0
  %v4035 = vmax.f32 %v3462, 0.0
  %v4036 = vmax.f32 %v3566, 0.0
  %v4037 = vmax.f32 %v3568, 0.0
  %v4038 = vmax.f32 %v3672, 0.0
  %v4039 = vmax.f32 %v3674, 0.0
  %v4040 = vmax.f32 %v3778, 0.0
  %v4041 = vmax.f32 %v3780, 0.0
  %v4042 = vmax.f32 %v3884, 0.0
  %v4043 = vmax.f32 %v3886, 0.0
  %v4044 = vmax.f32 %v3990, 0.0
  %v4045 = vmax.f32 %v3992, 0.0
  %v4046 = vmax.f32 %v3252, 0.0
  %v4047 = vmax.f32 %v3254, 0.0
  %v4048 = vmax.f32 %v3358, 0.0
  %v4049 = vmax.f32 %v3360, 0.0
  %v4050 = vmax.f32 %v3464, 0.0
  %v4051 = vmax.f32 %v3466, 0.0
  %v4052 = vmax.f32 %v3570, 0.0
  %v4053 = vmax.f32 %v3572, 0.0
  %v4054 = vmax.f32 %v3676, 0.0
  %v4055 = vmax.f32 %v3678, 0.0
  %v4056 = vmax.f32 %v3782, 0.0
  %v4057 = vmax.f32 %v3784, 0.0
  %v4058 = vmax.f32 %v3888, 0.0
  %v4059 = vmax.f32 %v3890, 0.0
  %v4060 = vmax.f32 %v3994, 0.0
  %v4061 = vmax.f32 %v3996, 0.0
  %v4062 = vpack.c.bf16 %v4014, %v3998
  %v4063 = vpack.c.bf16 %v4015, %v3999
  %v4064 = vpack.c.bf16 %v4016, %v4000
  %v4065 = vpack.c.bf16 %v4017, %v4001
  %v4066 = vpack.c.bf16 %v4018, %v4002
  %v4067 = vpack.c.bf16 %v4019, %v4003
  %v4068 = vpack.c.bf16 %v4020, %v4004
  %v4069 = vpack.c.bf16 %v4021, %v4005
  %v4070 = vpack.c.bf16 %v4022, %v4006
  %v4071 = vpack.c.bf16 %v4023, %v4007
  %v4072 = vpack.c.bf16 %v4024, %v4008
  %v4073 = vpack.c.bf16 %v4025, %v4009
  %v4074 = vpack.c.bf16 %v4026, %v4010
  %v4075 = vpack.c.bf16 %v4027, %v4011
  %v4076 = vpack.c.bf16 %v4028, %v4012
  %v4077 = vpack.c.bf16 %v4029, %v4013
  %v4078 = vpack.c.bf16 %v4046, %v4030
  %v4079 = vpack.c.bf16 %v4047, %v4031
  %v4080 = vpack.c.bf16 %v4048, %v4032
  %v4081 = vpack.c.bf16 %v4049, %v4033
  %v4082 = vpack.c.bf16 %v4050, %v4034
  %v4083 = vpack.c.bf16 %v4051, %v4035
  %v4084 = vpack.c.bf16 %v4052, %v4036
  %v4085 = vpack.c.bf16 %v4053, %v4037
  %v4086 = vpack.c.bf16 %v4054, %v4038
  %v4087 = vpack.c.bf16 %v4055, %v4039
  %v4088 = vpack.c.bf16 %v4056, %v4040
  %v4089 = vpack.c.bf16 %v4057, %v4041
  %v4090 = vpack.c.bf16 %v4058, %v4042
  %v4091 = vpack.c.bf16 %v4059, %v4043
  %v4092 = vpack.c.bf16 %v4060, %v4044
  %v4093 = vpack.c.bf16 %v4061, %v4045
  %4094 = vst [vmem:[#allocation3] sm:$0xff] %v4062
  %4095 = vst [vmem:[#allocation3 + $0x8] sm:$0xff] %v4078
  %4096 = vst [vmem:[#allocation3 + $0x10] sm:$0xff] %v4063
  %4097 = vst [vmem:[#allocation3 + $0x18] sm:$0xff] %v4079
  %4098 = vst [vmem:[#allocation3 + $0x20] sm:$0xff] %v4064
  %4099 = vst [vmem:[#allocation3 + $0x28] sm:$0xff] %v4080
  %4100 = vst [vmem:[#allocation3 + $0x30] sm:$0xff] %v4065
  %4101 = vst [vmem:[#allocation3 + $0x38] sm:$0xff] %v4081
  %4102 = vst [vmem:[#allocation3 + $0x40] sm:$0xff] %v4066
  %4103 = vst [vmem:[#allocation3 + $0x48] sm:$0xff] %v4082
  %4104 = vst [vmem:[#allocation3 + $0x50] sm:$0xff] %v4067
  %4105 = vst [vmem:[#allocation3 + $0x58] sm:$0xff] %v4083
  %4106 = vst [vmem:[#allocation3 + $0x60] sm:$0xff] %v4068
  %4107 = vst [vmem:[#allocation3 + $0x68] sm:$0xff] %v4084
  %4108 = vst [vmem:[#allocation3 + $0x70] sm:$0xff] %v4069
  %4109 = vst [vmem:[#allocation3 + $0x78] sm:$0xff] %v4085
  %4110 = vst [vmem:[#allocation3 + $0x80] sm:$0xff] %v4070
  %4111 = vst [vmem:[#allocation3 + $0x88] sm:$0xff] %v4086
  %4112 = vst [vmem:[#allocation3 + $0x90] sm:$0xff] %v4071
  %4113 = vst [vmem:[#allocation3 + $0x98] sm:$0xff] %v4087
  %4114 = vst [vmem:[#allocation3 + $0xa0] sm:$0xff] %v4072
  %4115 = vst [vmem:[#allocation3 + $0xa8] sm:$0xff] %v4088
  %4116 = vst [vmem:[#allocation3 + $0xb0] sm:$0xff] %v4073
  %4117 = vst [vmem:[#allocation3 + $0xb8] sm:$0xff] %v4089
  %4118 = vst [vmem:[#allocation3 + $0xc0] sm:$0xff] %v4074
  %4119 = vst [vmem:[#allocation3 + $0xc8] sm:$0xff] %v4090
  %4120 = vst [vmem:[#allocation3 + $0xd0] sm:$0xff] %v4075
  %4121 = vst [vmem:[#allocation3 + $0xd8] sm:$0xff] %v4091
  %4122 = vst [vmem:[#allocation3 + $0xe0] sm:$0xff] %v4076
  %4123 = vst [vmem:[#allocation3 + $0xe8] sm:$0xff] %v4092
  %4124 = vst [vmem:[#allocation3 + $0xf0] sm:$0xff] %v4077
  %4125 = vst [vmem:[#allocation3 + $0xf8] sm:$0xff] %v4093
  %v4126 = vld [vmem:[#allocation3] sm:$0xff]
  %v4127 = vld [vmem:[#allocation3 + $0x8] sm:$0xff]
  %v4128 = vld [vmem:[#allocation3 + $0x10] sm:$0xff]
  %v4129 = vld [vmem:[#allocation3 + $0x18] sm:$0xff]
  %v4130 = vld [vmem:[#allocation3 + $0x20] sm:$0xff]
  %v4131 = vld [vmem:[#allocation3 + $0x28] sm:$0xff]
  %v4132 = vld [vmem:[#allocation3 + $0x30] sm:$0xff]
  %v4133 = vld [vmem:[#allocation3 + $0x38] sm:$0xff]
  %v4134 = vld [vmem:[#allocation3 + $0x40] sm:$0xff]
  %v4135 = vld [vmem:[#allocation3 + $0x48] sm:$0xff]
  %v4136 = vld [vmem:[#allocation3 + $0x50] sm:$0xff]
  %v4137 = vld [vmem:[#allocation3 + $0x58] sm:$0xff]
  %v4138 = vld [vmem:[#allocation3 + $0x60] sm:$0xff]
  %v4139 = vld [vmem:[#allocation3 + $0x68] sm:$0xff]
  %v4140 = vld [vmem:[#allocation3 + $0x70] sm:$0xff]
  %v4141 = vld [vmem:[#allocation3 + $0x78] sm:$0xff]
  %v4142 = vld [vmem:[#allocation3 + $0x80] sm:$0xff]
  %v4143 = vld [vmem:[#allocation3 + $0x88] sm:$0xff]
  %v4144 = vld [vmem:[#allocation3 + $0x90] sm:$0xff]
  %v4145 = vld [vmem:[#allocation3 + $0x98] sm:$0xff]
  %v4146 = vld [vmem:[#allocation3 + $0xa0] sm:$0xff]
  %v4147 = vld [vmem:[#allocation3 + $0xa8] sm:$0xff]
  %v4148 = vld [vmem:[#allocation3 + $0xb0] sm:$0xff]
  %v4149 = vld [vmem:[#allocation3 + $0xb8] sm:$0xff]
  %v4150 = vld [vmem:[#allocation3 + $0xc0] sm:$0xff]
  %v4151 = vld [vmem:[#allocation3 + $0xc8] sm:$0xff]
  %v4152 = vld [vmem:[#allocation3 + $0xd0] sm:$0xff]
  %v4153 = vld [vmem:[#allocation3 + $0xd8] sm:$0xff]
  %v4154 = vld [vmem:[#allocation3 + $0xe0] sm:$0xff]
  %v4155 = vld [vmem:[#allocation3 + $0xe8] sm:$0xff]
  %v4156 = vld [vmem:[#allocation3 + $0xf0] sm:$0xff]
  %v4157 = vld [vmem:[#allocation3 + $0xf8] sm:$0xff]
  %v4158 = vld [vmem:[%s3] sm:$0xf]
  %v4159 = vld [vmem:[%s3 + $0x4] sm:$0xf]
  %v4160 = vld [vmem:[%s3 + $0x8] sm:$0xf]
  %v4161 = vld [vmem:[%s3 + $0xc] sm:$0xf]
  %v4162 = vld [vmem:[%s3 + $0x10] sm:$0xf]
  %v4163 = vld [vmem:[%s3 + $0x14] sm:$0xf]
  %v4164 = vld [vmem:[%s3 + $0x18] sm:$0xf]
  %v4165 = vld [vmem:[%s3 + $0x1c] sm:$0xf]
  %v4166 = vld [vmem:[%s3 + $0x20] sm:$0xf]
  %v4167 = vld [vmem:[%s3 + $0x24] sm:$0xf]
  %v4168 = vld [vmem:[%s3 + $0x28] sm:$0xf]
  %v4169 = vld [vmem:[%s3 + $0x2c] sm:$0xf]
  %v4170 = vld [vmem:[%s3 + $0x30] sm:$0xf]
  %v4171 = vld [vmem:[%s3 + $0x34] sm:$0xf]
  %v4172 = vld [vmem:[%s3 + $0x38] sm:$0xf]
  %v4173 = vld [vmem:[%s3 + $0x3c] sm:$0xf]
  %v4174 = vld [vmem:[%s4] sm:$0x1]
  %v4176 = vlaneseq
  %v4177 = vshrl.u32 %v4176, 7
  %v4178 = vsub.s32 0, %v4177
  %v4179 = vrot.slane %v4174, %v4178
  %v4197 = vunpack.c.l.b16 %v4158
  %v4198 = vunpack.c.l.b16 %v4159
  %v4199 = vunpack.c.l.b16 %v4160
  %v4200 = vunpack.c.l.b16 %v4161
  %v4201 = vunpack.c.l.b16 %v4162
  %v4202 = vunpack.c.l.b16 %v4163
  %v4203 = vunpack.c.l.b16 %v4164
  %v4204 = vunpack.c.l.b16 %v4165
  %v4205 = vunpack.c.l.b16 %v4166
  %v4206 = vunpack.c.l.b16 %v4167
  %v4207 = vunpack.c.l.b16 %v4168
  %v4208 = vunpack.c.l.b16 %v4169
  %v4209 = vunpack.c.l.b16 %v4170
  %v4210 = vunpack.c.l.b16 %v4171
  %v4211 = vunpack.c.l.b16 %v4172
  %v4212 = vunpack.c.l.b16 %v4173
  %v4213 = vpack.c.b16 %v4198, %v4197
  %v4214 = vpack.c.b16 %v4200, %v4199
  %v4215 = vpack.c.b16 %v4202, %v4201
  %v4216 = vpack.c.b16 %v4204, %v4203
  %v4217 = vpack.c.b16 %v4206, %v4205
  %v4218 = vpack.c.b16 %v4208, %v4207
  %v4219 = vpack.c.b16 %v4210, %v4209
  %v4220 = vpack.c.b16 %v4212, %v4211
  %4229 = vmatprep.subr.bf16.mxu0 0
  %4230 = vmatpush1.bf16.msra.mxu0 %v4213
  %4231 = vmatprep.subr.bf16.mxu0 0
  %4232 = vmatpush1.bf16.msra.mxu0 %v4214
  %4233 = vmatprep.subr.bf16.mxu0 0
  %4234 = vmatpush1.bf16.msra.mxu0 %v4215
  %4235 = vmatprep.subr.bf16.mxu0 0
  %4236 = vmatpush1.bf16.msra.mxu0 %v4216
  %4237 = vmatprep.subr.bf16.mxu0 0
  %4238 = vmatpush1.bf16.msra.mxu0 %v4217
  %4239 = vmatprep.subr.bf16.mxu0 0
  %4240 = vmatpush1.bf16.msra.mxu0 %v4218
  %4241 = vmatprep.subr.bf16.mxu0 0
  %4242 = vmatpush1.bf16.msra.mxu0 %v4219
  %4243 = vmatprep.subr.bf16.mxu0 0
  %4244 = vmatpush1.bf16.msra.mxu0 %v4220
  %4245 = vmatprep.subr.bf16.mxu0 0
  %4246 = vmatpush1.bf16.msra.mxu0 0
  %4247 = vmatprep.subr.bf16.mxu0 0
  %4248 = vmatpush1.bf16.msra.mxu0 0
  %4249 = vmatprep.subr.bf16.mxu0 0
  %4250 = vmatpush1.bf16.msra.mxu0 0
  %4251 = vmatprep.subr.bf16.mxu0 0
  %4252 = vmatpush1.bf16.msra.mxu0 0
  %4253 = vmatprep.subr.bf16.mxu0 0
  %4254 = vmatpush1.bf16.msra.mxu0 0
  %4255 = vmatprep.subr.bf16.mxu0 0
  %4256 = vmatpush1.bf16.msra.mxu0 0
  %4257 = vmatprep.subr.bf16.mxu0 0
  %4258 = vmatpush1.bf16.msra.mxu0 0
  %4259 = vmatprep.subr.bf16.mxu0 0
  %4260 = vmatpush1.bf16.msra.mxu0 0
  %4261 = vmatprep.mubr.bf16.mxu0 0
  %4262 = vmatmul.mubr.bf16.gmra.mrb[0].mxu0 %v4126
  %v4263 = vpop.f32.mrb[0].mxu0
  %v4264 = vadd.f32 %v4179, %v4263
  %v4265 = vpop.f32.mrb[0].mxu0
  %v4266 = vpop.f32.mrb[0].mxu0
  %v4267 = vadd.f32 %v4179, %v4266
  %v4268 = vpop.f32.mrb[0].mxu0
  %4269 = vmatprep.mubr.bf16.mxu0 0
  %4270 = vmatmul.mubr.bf16.gmra.mrb[0].mxu0 %v4127
  %v4271 = vpop.f32.mrb[0].mxu0
  %v4272 = vadd.f32 %v4179, %v4271
  %v4273 = vpop.f32.mrb[0].mxu0
  %v4274 = vpop.f32.mrb[0].mxu0
  %v4275 = vadd.f32 %v4179, %v4274
  %v4276 = vpop.f32.mrb[0].mxu0
  %4277 = vmatprep.mubr.bf16.mxu0 0
  %4278 = vmatmul.mubr.bf16.gmra.mrb[0].mxu0 %v4128
  %v4279 = vpop.f32.mrb[0].mxu0
  %v4280 = vadd.f32 %v4179, %v4279
  %v4281 = vpop.f32.mrb[0].mxu0
  %v4282 = vpop.f32.mrb[0].mxu0
  %v4283 = vadd.f32 %v4179, %v4282
  %v4284 = vpop.f32.mrb[0].mxu0
  %4285 = vmatprep.mubr.bf16.mxu0 0
  %4286 = vmatmul.mubr.bf16.gmra.mrb[0].mxu0 %v4129
  %v4287 = vpop.f32.mrb[0].mxu0
  %v4288 = vadd.f32 %v4179, %v4287
  %v4289 = vpop.f32.mrb[0].mxu0
  %v4290 = vpop.f32.mrb[0].mxu0
  %v4291 = vadd.f32 %v4179, %v4290
  %v4292 = vpop.f32.mrb[0].mxu0
  %4293 = vmatprep.mubr.bf16.mxu0 0
  %4294 = vmatmul.mubr.bf16.gmra.mrb[0].mxu0 %v4130
  %v4295 = vpop.f32.mrb[0].mxu0
  %v4296 = vadd.f32 %v4179, %v4295
  %v4297 = vpop.f32.mrb[0].mxu0
  %v4298 = vpop.f32.mrb[0].mxu0
  %v4299 = vadd.f32 %v4179, %v4298
  %v4300 = vpop.f32.mrb[0].mxu0
  %4301 = vmatprep.mubr.bf16.mxu0 0
  %4302 = vmatmul.mubr.bf16.gmra.mrb[0].mxu0 %v4131
  %v4303 = vpop.f32.mrb[0].mxu0
  %v4304 = vadd.f32 %v4179, %v4303
  %v4305 = vpop.f32.mrb[0].mxu0
  %v4306 = vpop.f32.mrb[0].mxu0
  %v4307 = vadd.f32 %v4179, %v4306
  %v4308 = vpop.f32.mrb[0].mxu0
  %4309 = vmatprep.mubr.bf16.mxu0 0
  %4310 = vmatmul.mubr.bf16.gmra.mrb[0].mxu0 %v4132
  %v4311 = vpop.f32.mrb[0].mxu0
  %v4312 = vadd.f32 %v4179, %v4311
  %v4313 = vpop.f32.mrb[0].mxu0
  %v4314 = vpop.f32.mrb[0].mxu0
  %v4315 = vadd.f32 %v4179, %v4314
  %v4316 = vpop.f32.mrb[0].mxu0
  %4317 = vmatprep.mubr.bf16.mxu0 0
  %4318 = vmatmul.mubr.bf16.gmra.mrb[0].mxu0 %v4133
  %v4319 = vpop.f32.mrb[0].mxu0
  %v4320 = vadd.f32 %v4179, %v4319
  %v4321 = vpop.f32.mrb[0].mxu0
  %v4322 = vpop.f32.mrb[0].mxu0
  %v4323 = vadd.f32 %v4179, %v4322
  %v4324 = vpop.f32.mrb[0].mxu0
  %4325 = vmatprep.mubr.bf16.mxu0 0
  %4326 = vmatmul.mubr.bf16.gmra.mrb[0].mxu0 %v4134
  %v4327 = vpop.f32.mrb[0].mxu0
  %v4328 = vadd.f32 %v4179, %v4327
  %v4329 = vpop.f32.mrb[0].mxu0
  %v4330 = vpop.f32.mrb[0].mxu0
  %v4331 = vadd.f32 %v4179, %v4330
  %v4332 = vpop.f32.mrb[0].mxu0
  %4333 = vmatprep.mubr.bf16.mxu0 0
  %4334 = vmatmul.mubr.bf16.gmra.mrb[0].mxu0 %v4135
  %v4335 = vpop.f32.mrb[0].mxu0
  %v4336 = vadd.f32 %v4179, %v4335
  %v4337 = vpop.f32.mrb[0].mxu0
  %v4338 = vpop.f32.mrb[0].mxu0
  %v4339 = vadd.f32 %v4179, %v4338
  %v4340 = vpop.f32.mrb[0].mxu0
  %4341 = vmatprep.mubr.bf16.mxu0 0
  %4342 = vmatmul.mubr.bf16.gmra.mrb[0].mxu0 %v4136
  %v4343 = vpop.f32.mrb[0].mxu0
  %v4344 = vadd.f32 %v4179, %v4343
  %v4345 = vpop.f32.mrb[0].mxu0
  %v4346 = vpop.f32.mrb[0].mxu0
  %v4347 = vadd.f32 %v4179, %v4346
  %v4348 = vpop.f32.mrb[0].mxu0
  %4349 = vmatprep.mubr.bf16.mxu0 0
  %4350 = vmatmul.mubr.bf16.gmra.mrb[0].mxu0 %v4137
  %v4351 = vpop.f32.mrb[0].mxu0
  %v4352 = vadd.f32 %v4179, %v4351
  %v4353 = vpop.f32.mrb[0].mxu0
  %v4354 = vpop.f32.mrb[0].mxu0
  %v4355 = vadd.f32 %v4179, %v4354
  %v4356 = vpop.f32.mrb[0].mxu0
  %4357 = vmatprep.mubr.bf16.mxu0 0
  %4358 = vmatmul.mubr.bf16.gmra.mrb[0].mxu0 %v4138
  %v4359 = vpop.f32.mrb[0].mxu0
  %v4360 = vadd.f32 %v4179, %v4359
  %v4361 = vpop.f32.mrb[0].mxu0
  %v4362 = vpop.f32.mrb[0].mxu0
  %v4363 = vadd.f32 %v4179, %v4362
  %v4364 = vpop.f32.mrb[0].mxu0
  %4365 = vmatprep.mubr.bf16.mxu0 0
  %4366 = vmatmul.mubr.bf16.gmra.mrb[0].mxu0 %v4139
  %v4367 = vpop.f32.mrb[0].mxu0
  %v4368 = vadd.f32 %v4179, %v4367
  %v4369 = vpop.f32.mrb[0].mxu0
  %v4370 = vpop.f32.mrb[0].mxu0
  %v4371 = vadd.f32 %v4179, %v4370
  %v4372 = vpop.f32.mrb[0].mxu0
  %4373 = vmatprep.mubr.bf16.mxu0 0
  %4374 = vmatmul.mubr.bf16.gmra.mrb[0].mxu0 %v4140
  %v4375 = vpop.f32.mrb[0].mxu0
  %v4376 = vadd.f32 %v4179, %v4375
  %v4377 = vpop.f32.mrb[0].mxu0
  %v4378 = vpop.f32.mrb[0].mxu0
  %v4379 = vadd.f32 %v4179, %v4378
  %v4380 = vpop.f32.mrb[0].mxu0
  %4381 = vmatprep.mubr.bf16.mxu0 0
  %4382 = vmatmul.mubr.bf16.gmra.mrb[0].mxu0 %v4141
  %v4383 = vpop.f32.mrb[0].mxu0
  %v4384 = vadd.f32 %v4179, %v4383
  %v4385 = vpop.f32.mrb[0].mxu0
  %v4386 = vpop.f32.mrb[0].mxu0
  %v4387 = vadd.f32 %v4179, %v4386
  %v4388 = vpop.f32.mrb[0].mxu0
  %4389 = vmatprep.mubr.bf16.mxu0 0
  %4390 = vmatmul.mubr.bf16.gmra.mrb[0].mxu0 %v4142
  %v4391 = vpop.f32.mrb[0].mxu0
  %v4392 = vadd.f32 %v4179, %v4391
  %v4393 = vpop.f32.mrb[0].mxu0
  %v4394 = vpop.f32.mrb[0].mxu0
  %v4395 = vadd.f32 %v4179, %v4394
  %v4396 = vpop.f32.mrb[0].mxu0
  %4397 = vmatprep.mubr.bf16.mxu0 0
  %4398 = vmatmul.mubr.bf16.gmra.mrb[0].mxu0 %v4143
  %v4399 = vpop.f32.mrb[0].mxu0
  %v4400 = vadd.f32 %v4179, %v4399
  %v4401 = vpop.f32.mrb[0].mxu0
  %v4402 = vpop.f32.mrb[0].mxu0
  %v4403 = vadd.f32 %v4179, %v4402
  %v4404 = vpop.f32.mrb[0].mxu0
  %4405 = vmatprep.mubr.bf16.mxu0 0
  %4406 = vmatmul.mubr.bf16.gmra.mrb[0].mxu0 %v4144
  %v4407 = vpop.f32.mrb[0].mxu0
  %v4408 = vadd.f32 %v4179, %v4407
  %v4409 = vpop.f32.mrb[0].mxu0
  %v4410 = vpop.f32.mrb[0].mxu0
  %v4411 = vadd.f32 %v4179, %v4410
  %v4412 = vpop.f32.mrb[0].mxu0
  %4413 = vmatprep.mubr.bf16.mxu0 0
  %4414 = vmatmul.mubr.bf16.gmra.mrb[0].mxu0 %v4145
  %v4415 = vpop.f32.mrb[0].mxu0
  %v4416 = vadd.f32 %v4179, %v4415
  %v4417 = vpop.f32.mrb[0].mxu0
  %v4418 = vpop.f32.mrb[0].mxu0
  %v4419 = vadd.f32 %v4179, %v4418
  %v4420 = vpop.f32.mrb[0].mxu0
  %4421 = vmatprep.mubr.bf16.mxu0 0
  %4422 = vmatmul.mubr.bf16.gmra.mrb[0].mxu0 %v4146
  %v4423 = vpop.f32.mrb[0].mxu0
  %v4424 = vadd.f32 %v4179, %v4423
  %v4425 = vpop.f32.mrb[0].mxu0
  %v4426 = vpop.f32.mrb[0].mxu0
  %v4427 = vadd.f32 %v4179, %v4426
  %v4428 = vpop.f32.mrb[0].mxu0
  %4429 = vmatprep.mubr.bf16.mxu0 0
  %4430 = vmatmul.mubr.bf16.gmra.mrb[0].mxu0 %v4147
  %v4431 = vpop.f32.mrb[0].mxu0
  %v4432 = vadd.f32 %v4179, %v4431
  %v4433 = vpop.f32.mrb[0].mxu0
  %v4434 = vpop.f32.mrb[0].mxu0
  %v4435 = vadd.f32 %v4179, %v4434
  %v4436 = vpop.f32.mrb[0].mxu0
  %4437 = vmatprep.mubr.bf16.mxu0 0
  %4438 = vmatmul.mubr.bf16.gmra.mrb[0].mxu0 %v4148
  %v4439 = vpop.f32.mrb[0].mxu0
  %v4440 = vadd.f32 %v4179, %v4439
  %v4441 = vpop.f32.mrb[0].mxu0
  %v4442 = vpop.f32.mrb[0].mxu0
  %v4443 = vadd.f32 %v4179, %v4442
  %v4444 = vpop.f32.mrb[0].mxu0
  %4445 = vmatprep.mubr.bf16.mxu0 0
  %4446 = vmatmul.mubr.bf16.gmra.mrb[0].mxu0 %v4149
  %v4447 = vpop.f32.mrb[0].mxu0
  %v4448 = vadd.f32 %v4179, %v4447
  %v4449 = vpop.f32.mrb[0].mxu0
  %v4450 = vpop.f32.mrb[0].mxu0
  %v4451 = vadd.f32 %v4179, %v4450
  %v4452 = vpop.f32.mrb[0].mxu0
  %4453 = vmatprep.mubr.bf16.mxu0 0
  %4454 = vmatmul.mubr.bf16.gmra.mrb[0].mxu0 %v4150
  %v4455 = vpop.f32.mrb[0].mxu0
  %v4456 = vadd.f32 %v4179, %v4455
  %v4457 = vpop.f32.mrb[0].mxu0
  %v4458 = vpop.f32.mrb[0].mxu0
  %v4459 = vadd.f32 %v4179, %v4458
  %v4460 = vpop.f32.mrb[0].mxu0
  %4461 = vmatprep.mubr.bf16.mxu0 0
  %4462 = vmatmul.mubr.bf16.gmra.mrb[0].mxu0 %v4151
  %v4463 = vpop.f32.mrb[0].mxu0
  %v4464 = vadd.f32 %v4179, %v4463
  %v4465 = vpop.f32.mrb[0].mxu0
  %v4466 = vpop.f32.mrb[0].mxu0
  %v4467 = vadd.f32 %v4179, %v4466
  %v4468 = vpop.f32.mrb[0].mxu0
  %4469 = vmatprep.mubr.bf16.mxu0 0
  %4470 = vmatmul.mubr.bf16.gmra.mrb[0].mxu0 %v4152
  %v4471 = vpop.f32.mrb[0].mxu0
  %v4472 = vadd.f32 %v4179, %v4471
  %v4473 = vpop.f32.mrb[0].mxu0
  %v4474 = vpop.f32.mrb[0].mxu0
  %v4475 = vadd.f32 %v4179, %v4474
  %v4476 = vpop.f32.mrb[0].mxu0
  %4477 = vmatprep.mubr.bf16.mxu0 0
  %4478 = vmatmul.mubr.bf16.gmra.mrb[0].mxu0 %v4153
  %v4479 = vpop.f32.mrb[0].mxu0
  %v4480 = vadd.f32 %v4179, %v4479
  %v4481 = vpop.f32.mrb[0].mxu0
  %v4482 = vpop.f32.mrb[0].mxu0
  %v4483 = vadd.f32 %v4179, %v4482
  %v4484 = vpop.f32.mrb[0].mxu0
  %4485 = vmatprep.mubr.bf16.mxu0 0
  %4486 = vmatmul.mubr.bf16.gmra.mrb[0].mxu0 %v4154
  %v4487 = vpop.f32.mrb[0].mxu0
  %v4488 = vadd.f32 %v4179, %v4487
  %v4489 = vpop.f32.mrb[0].mxu0
  %v4490 = vpop.f32.mrb[0].mxu0
  %v4491 = vadd.f32 %v4179, %v4490
  %v4492 = vpop.f32.mrb[0].mxu0
  %4493 = vmatprep.mubr.bf16.mxu0 0
  %4494 = vmatmul.mubr.bf16.gmra.mrb[0].mxu0 %v4155
  %v4495 = vpop.f32.mrb[0].mxu0
  %v4496 = vadd.f32 %v4179, %v4495
  %v4497 = vpop.f32.mrb[0].mxu0
  %v4498 = vpop.f32.mrb[0].mxu0
  %v4499 = vadd.f32 %v4179, %v4498
  %v4500 = vpop.f32.mrb[0].mxu0
  %4501 = vmatprep.mubr.bf16.mxu0 0
  %4502 = vmatmul.mubr.bf16.gmra.mrb[0].mxu0 %v4156
  %v4503 = vpop.f32.mrb[0].mxu0
  %v4504 = vadd.f32 %v4179, %v4503
  %v4505 = vpop.f32.mrb[0].mxu0
  %v4506 = vpop.f32.mrb[0].mxu0
  %v4507 = vadd.f32 %v4179, %v4506
  %v4508 = vpop.f32.mrb[0].mxu0
  %4509 = vmatprep.mubr.bf16.mxu0 0
  %4510 = vmatmul.mubr.bf16.gmra.mrb[0].mxu0 %v4157
  %v4511 = vpop.f32.mrb[0].mxu0
  %v4512 = vadd.f32 %v4179, %v4511
  %v4513 = vpop.f32.mrb[0].mxu0
  %v4514 = vpop.f32.mrb[0].mxu0
  %v4515 = vadd.f32 %v4179, %v4514
  %v4516 = vpop.f32.mrb[0].mxu0
  %4517 = vdwg.mxu0
  %v4518 = vmax.f32 %v4264, 0.0
  %v4519 = vmax.f32 %v4267, 0.0
  %v4520 = vmax.f32 %v4272, 0.0
  %v4521 = vmax.f32 %v4275, 0.0
  %v4522 = vmax.f32 %v4280, 0.0
  %v4523 = vmax.f32 %v4283, 0.0
  %v4524 = vmax.f32 %v4288, 0.0
  %v4525 = vmax.f32 %v4291, 0.0
  %v4526 = vmax.f32 %v4296, 0.0
  %v4527 = vmax.f32 %v4299, 0.0
  %v4528 = vmax.f32 %v4304, 0.0
  %v4529 = vmax.f32 %v4307, 0.0
  %v4530 = vmax.f32 %v4312, 0.0
  %v4531 = vmax.f32 %v4315, 0.0
  %v4532 = vmax.f32 %v4320, 0.0
  %v4533 = vmax.f32 %v4323, 0.0
  %v4534 = vmax.f32 %v4328, 0.0
  %v4535 = vmax.f32 %v4331, 0.0
  %v4536 = vmax.f32 %v4336, 0.0
  %v4537 = vmax.f32 %v4339, 0.0
  %v4538 = vmax.f32 %v4344, 0.0
  %v4539 = vmax.f32 %v4347, 0.0
  %v4540 = vmax.f32 %v4352, 0.0
  %v4541 = vmax.f32 %v4355, 0.0
  %v4542 = vmax.f32 %v4360, 0.0
  %v4543 = vmax.f32 %v4363, 0.0
  %v4544 = vmax.f32 %v4368, 0.0
  %v4545 = vmax.f32 %v4371, 0.0
  %v4546 = vmax.f32 %v4376, 0.0
  %v4547 = vmax.f32 %v4379, 0.0
  %v4548 = vmax.f32 %v4384, 0.0
  %v4549 = vmax.f32 %v4387, 0.0
  %v4550 = vmax.f32 %v4392, 0.0
  %v4551 = vmax.f32 %v4395, 0.0
  %v4552 = vmax.f32 %v4400, 0.0
  %v4553 = vmax.f32 %v4403, 0.0
  %v4554 = vmax.f32 %v4408, 0.0
  %v4555 = vmax.f32 %v4411, 0.0
  %v4556 = vmax.f32 %v4416, 0.0
  %v4557 = vmax.f32 %v4419, 0.0
  %v4558 = vmax.f32 %v4424, 0.0
  %v4559 = vmax.f32 %v4427, 0.0
  %v4560 = vmax.f32 %v4432, 0.0
  %v4561 = vmax.f32 %v4435, 0.0
  %v4562 = vmax.f32 %v4440, 0.0
  %v4563 = vmax.f32 %v4443, 0.0
  %v4564 = vmax.f32 %v4448, 0.0
  %v4565 = vmax.f32 %v4451, 0.0
  %v4566 = vmax.f32 %v4456, 0.0
  %v4567 = vmax.f32 %v4459, 0.0
  %v4568 = vmax.f32 %v4464, 0.0
  %v4569 = vmax.f32 %v4467, 0.0
  %v4570 = vmax.f32 %v4472, 0.0
  %v4571 = vmax.f32 %v4475, 0.0
  %v4572 = vmax.f32 %v4480, 0.0
  %v4573 = vmax.f32 %v4483, 0.0
  %v4574 = vmax.f32 %v4488, 0.0
  %v4575 = vmax.f32 %v4491, 0.0
  %v4576 = vmax.f32 %v4496, 0.0
  %v4577 = vmax.f32 %v4499, 0.0
  %v4578 = vmax.f32 %v4504, 0.0
  %v4579 = vmax.f32 %v4507, 0.0
  %v4580 = vmax.f32 %v4512, 0.0
  %v4581 = vmax.f32 %v4515, 0.0
  %v4582 = vpack.c.bf16 %v4519, %v4518
  %v4583 = vpack.c.bf16 %v4521, %v4520
  %v4584 = vpack.c.bf16 %v4523, %v4522
  %v4585 = vpack.c.bf16 %v4525, %v4524
  %v4586 = vpack.c.bf16 %v4527, %v4526
  %v4587 = vpack.c.bf16 %v4529, %v4528
  %v4588 = vpack.c.bf16 %v4531, %v4530
  %v4589 = vpack.c.bf16 %v4533, %v4532
  %v4590 = vpack.c.bf16 %v4535, %v4534
  %v4591 = vpack.c.bf16 %v4537, %v4536
  %v4592 = vpack.c.bf16 %v4539, %v4538
  %v4593 = vpack.c.bf16 %v4541, %v4540
  %v4594 = vpack.c.bf16 %v4543, %v4542
  %v4595 = vpack.c.bf16 %v4545, %v4544
  %v4596 = vpack.c.bf16 %v4547, %v4546
  %v4597 = vpack.c.bf16 %v4549, %v4548
  %v4598 = vpack.c.bf16 %v4551, %v4550
  %v4599 = vpack.c.bf16 %v4553, %v4552
  %v4600 = vpack.c.bf16 %v4555, %v4554
  %v4601 = vpack.c.bf16 %v4557, %v4556
  %v4602 = vpack.c.bf16 %v4559, %v4558
  %v4603 = vpack.c.bf16 %v4561, %v4560
  %v4604 = vpack.c.bf16 %v4563, %v4562
  %v4605 = vpack.c.bf16 %v4565, %v4564
  %v4606 = vpack.c.bf16 %v4567, %v4566
  %v4607 = vpack.c.bf16 %v4569, %v4568
  %v4608 = vpack.c.bf16 %v4571, %v4570
  %v4609 = vpack.c.bf16 %v4573, %v4572
  %v4610 = vpack.c.bf16 %v4575, %v4574
  %v4611 = vpack.c.bf16 %v4577, %v4576
  %v4612 = vpack.c.bf16 %v4579, %v4578
  %v4613 = vpack.c.bf16 %v4581, %v4580
  %4614 = vst [vmem:[#allocation4] sm:$0x8] 0
  %4615 = vst [vmem:[#allocation4 + $0x8] sm:$0x8] 0
  %4616 = vst [vmem:[#allocation4 + $0x10] sm:$0x8] 0
  %4617 = vst [vmem:[#allocation4 + $0x18] sm:$0x8] 0
  %4618 = vst [vmem:[#allocation4 + $0x20] sm:$0x8] 0
  %4619 = vst [vmem:[#allocation4 + $0x28] sm:$0x8] 0
  %4620 = vst [vmem:[#allocation4 + $0x30] sm:$0x8] 0
  %4621 = vst [vmem:[#allocation4 + $0x38] sm:$0x8] 0
  %4622 = vst [vmem:[#allocation4 + $0x40] sm:$0x8] 0
  %4623 = vst [vmem:[#allocation4 + $0x48] sm:$0x8] 0
  %4624 = vst [vmem:[#allocation4 + $0xa0] sm:$0x8] 0
  %4625 = vst [vmem:[#allocation4 + $0xa8] sm:$0x8] 0
  %4626 = vst [vmem:[#allocation4 + $0xb0] sm:$0x8] 0
  %4627 = vst [vmem:[#allocation4 + $0xb8] sm:$0x8] 0
  %4628 = vst [vmem:[#allocation4 + $0xc0] sm:$0x8] 0
  %4629 = vst [vmem:[#allocation4 + $0xc8] sm:$0x8] 0
  %4630 = vst [vmem:[#allocation4 + $0xd0] sm:$0x8] 0
  %4631 = vst [vmem:[#allocation4 + $0xd8] sm:$0x8] 0
  %4632 = vst [vmem:[#allocation4 + $0xe0] sm:$0x8] 0
  %4633 = vst [vmem:[#allocation4 + $0xe8] sm:$0x8] 0
  %4634 = vst [vmem:[#allocation4 + $0x50] sm:$0x10] 0
  %4635 = vst [vmem:[#allocation4 + $0x58] sm:$0x10] 0
  %4636 = vst [vmem:[#allocation4 + $0x60] sm:$0x10] 0
  %4637 = vst [vmem:[#allocation4 + $0x68] sm:$0x10] 0
  %4638 = vst [vmem:[#allocation4 + $0x70] sm:$0x10] 0
  %4639 = vst [vmem:[#allocation4 + $0x78] sm:$0x10] 0
  %4640 = vst [vmem:[#allocation4 + $0x80] sm:$0x10] 0
  %4641 = vst [vmem:[#allocation4 + $0x88] sm:$0x10] 0
  %4642 = vst [vmem:[#allocation4 + $0x90] sm:$0x10] 0
  %4643 = vst [vmem:[#allocation4 + $0x98] sm:$0x10] 0
  %4644 = vst [vmem:[#allocation4 + $0xf0] sm:$0x10] 0
  %4645 = vst [vmem:[#allocation4 + $0xf8] sm:$0x10] 0
  %4646 = vst [vmem:[#allocation4 + $0x100] sm:$0x10] 0
  %4647 = vst [vmem:[#allocation4 + $0x108] sm:$0x10] 0
  %4648 = vst [vmem:[#allocation4 + $0x110] sm:$0x10] 0
  %4649 = vst [vmem:[#allocation4 + $0x118] sm:$0x10] 0
  %4650 = vst [vmem:[#allocation4 + $0x120] sm:$0x10] 0
  %4651 = vst [vmem:[#allocation4 + $0x128] sm:$0x10] 0
  %4652 = vst [vmem:[#allocation4 + $0x130] sm:$0x10] 0
  %4653 = vst [vmem:[#allocation4 + $0x138] sm:$0x10] 0
  %4654 = vst [vmem:[#allocation4] sm:$0xf0] 0
  %4655 = vst [vmem:[#allocation4 + $0x50] sm:$0xf] 0
  %4656 = vst [vmem:[#allocation4 + $0xa0] sm:$0xf0] 0
  %4657 = vst [vmem:[#allocation4 + $0xf0] sm:$0xf] 0
  %4658 = vst [vmem:[#allocation4 + $0x48] sm:$0xf0] 0
  %4659 = vst [vmem:[#allocation4 + $0x98] sm:$0xf] 0
  %4660 = vst [vmem:[#allocation4 + $0xe8] sm:$0xf0] 0
  %4661 = vst [vmem:[#allocation4 + $0x138] sm:$0xf] 0
  %v4663 = vrot.slane %v4582, 4
  %vm4665 = vcmask 523268
  %4666 = vst.msk [vmem:[#allocation4 + $0x8] sm:$0xf0] %vm4665, %v4663
  %vm4667 = vcmask 519168
  %4668 = vst.msk [vmem:[#allocation4 + $0x58] sm:$0xf] %vm4667, %v4663
  %v4670 = vrot.slane %v4583, 4
  %s4672 = scalar_lea.vmem [#allocation4], 160
  %4673 = vst.msk [vmem:[%s4672 + $0x8] sm:$0xf0] %vm4665, %v4670
  %4674 = vst.msk [vmem:[%s4672 + $0x58] sm:$0xf] %vm4667, %v4670
  %v4676 = vrot.slane %v4584, 4
  %4677 = vrot.lane.b32.xlu0 %v4676, 64
  %v4678 = vpop.permute.xlu0 %4677
  %vm4680 = vcmask 1048068
  %4681 = vst.msk [vmem:[#allocation4 + $0x8] sm:$0xf0] %vm4680, %v4678
  %vm4682 = vcmask 1043968
  %4683 = vst.msk [vmem:[#allocation4 + $0x58] sm:$0xf] %vm4682, %v4678
  %v4685 = vrot.slane %v4585, 4
  %4686 = vrot.lane.b32.xlu0 %v4685, 64
  %v4687 = vpop.permute.xlu0 %4686
  %4689 = vst.msk [vmem:[%s4672 + $0x8] sm:$0xf0] %vm4680, %v4687
  %4690 = vst.msk [vmem:[%s4672 + $0x58] sm:$0xf] %vm4682, %v4687
  %v4692 = vrot.slane %v4586, 4
  %4694 = vst.msk [vmem:[#allocation4 + $0x10] sm:$0xf0] %vm4665, %v4692
  %4695 = vst.msk [vmem:[#allocation4 + $0x60] sm:$0xf] %vm4667, %v4692
  %v4697 = vrot.slane %v4587, 4
  %4699 = vst.msk [vmem:[%s4672 + $0x10] sm:$0xf0] %vm4665, %v4697
  %4700 = vst.msk [vmem:[%s4672 + $0x60] sm:$0xf] %vm4667, %v4697
  %v4702 = vrot.slane %v4588, 4
  %4703 = vrot.lane.b32.xlu0 %v4702, 64
  %v4704 = vpop.permute.xlu0 %4703
  %4706 = vst.msk [vmem:[#allocation4 + $0x10] sm:$0xf0] %vm4680, %v4704
  %4707 = vst.msk [vmem:[#allocation4 + $0x60] sm:$0xf] %vm4682, %v4704
  %v4709 = vrot.slane %v4589, 4
  %4710 = vrot.lane.b32.xlu0 %v4709, 64
  %v4711 = vpop.permute.xlu0 %4710
  %4713 = vst.msk [vmem:[%s4672 + $0x10] sm:$0xf0] %vm4680, %v4711
  %4714 = vst.msk [vmem:[%s4672 + $0x60] sm:$0xf] %vm4682, %v4711
  %v4716 = vrot.slane %v4590, 4
  %4718 = vst.msk [vmem:[#allocation4 + $0x18] sm:$0xf0] %vm4665, %v4716
  %4719 = vst.msk [vmem:[#allocation4 + $0x68] sm:$0xf] %vm4667, %v4716
  %v4721 = vrot.slane %v4591, 4
  %4723 = vst.msk [vmem:[%s4672 + $0x18] sm:$0xf0] %vm4665, %v4721
  %4724 = vst.msk [vmem:[%s4672 + $0x68] sm:$0xf] %vm4667, %v4721
  %v4726 = vrot.slane %v4592, 4
  %4727 = vrot.lane.b32.xlu0 %v4726, 64
  %v4728 = vpop.permute.xlu0 %4727
  %4730 = vst.msk [vmem:[#allocation4 + $0x18] sm:$0xf0] %vm4680, %v4728
  %4731 = vst.msk [vmem:[#allocation4 + $0x68] sm:$0xf] %vm4682, %v4728
  %v4733 = vrot.slane %v4593, 4
  %4734 = vrot.lane.b32.xlu0 %v4733, 64
  %v4735 = vpop.permute.xlu0 %4734
  %4737 = vst.msk [vmem:[%s4672 + $0x18] sm:$0xf0] %vm4680, %v4735
  %4738 = vst.msk [vmem:[%s4672 + $0x68] sm:$0xf] %vm4682, %v4735
  %v4740 = vrot.slane %v4594, 4
  %4742 = vst.msk [vmem:[#allocation4 + $0x20] sm:$0xf0] %vm4665, %v4740
  %4743 = vst.msk [vmem:[#allocation4 + $0x70] sm:$0xf] %vm4667, %v4740
  %v4745 = vrot.slane %v4595, 4
  %4747 = vst.msk [vmem:[%s4672 + $0x20] sm:$0xf0] %vm4665, %v4745
  %4748 = vst.msk [vmem:[%s4672 + $0x70] sm:$0xf] %vm4667, %v4745
  %v4750 = vrot.slane %v4596, 4
  %4751 = vrot.lane.b32.xlu0 %v4750, 64
  %v4752 = vpop.permute.xlu0 %4751
  %4754 = vst.msk [vmem:[#allocation4 + $0x20] sm:$0xf0] %vm4680, %v4752
  %4755 = vst.msk [vmem:[#allocation4 + $0x70] sm:$0xf] %vm4682, %v4752
  %v4757 = vrot.slane %v4597, 4
  %4758 = vrot.lane.b32.xlu0 %v4757, 64
  %v4759 = vpop.permute.xlu0 %4758
  %4761 = vst.msk [vmem:[%s4672 + $0x20] sm:$0xf0] %vm4680, %v4759
  %4762 = vst.msk [vmem:[%s4672 + $0x70] sm:$0xf] %vm4682, %v4759
  %v4764 = vrot.slane %v4598, 4
  %4766 = vst.msk [vmem:[#allocation4 + $0x28] sm:$0xf0] %vm4665, %v4764
  %4767 = vst.msk [vmem:[#allocation4 + $0x78] sm:$0xf] %vm4667, %v4764
  %v4769 = vrot.slane %v4599, 4
  %4771 = vst.msk [vmem:[%s4672 + $0x28] sm:$0xf0] %vm4665, %v4769
  %4772 = vst.msk [vmem:[%s4672 + $0x78] sm:$0xf] %vm4667, %v4769
  %v4774 = vrot.slane %v4600, 4
  %4775 = vrot.lane.b32.xlu0 %v4774, 64
  %v4776 = vpop.permute.xlu0 %4775
  %4778 = vst.msk [vmem:[#allocation4 + $0x28] sm:$0xf0] %vm4680, %v4776
  %4779 = vst.msk [vmem:[#allocation4 + $0x78] sm:$0xf] %vm4682, %v4776
  %v4781 = vrot.slane %v4601, 4
  %4782 = vrot.lane.b32.xlu0 %v4781, 64
  %v4783 = vpop.permute.xlu0 %4782
  %4785 = vst.msk [vmem:[%s4672 + $0x28] sm:$0xf0] %vm4680, %v4783
  %4786 = vst.msk [vmem:[%s4672 + $0x78] sm:$0xf] %vm4682, %v4783
  %v4788 = vrot.slane %v4602, 4
  %4790 = vst.msk [vmem:[#allocation4 + $0x30] sm:$0xf0] %vm4665, %v4788
  %4791 = vst.msk [vmem:[#allocation4 + $0x80] sm:$0xf] %vm4667, %v4788
  %v4793 = vrot.slane %v4603, 4
  %4795 = vst.msk [vmem:[%s4672 + $0x30] sm:$0xf0] %vm4665, %v4793
  %4796 = vst.msk [vmem:[%s4672 + $0x80] sm:$0xf] %vm4667, %v4793
  %v4798 = vrot.slane %v4604, 4
  %4799 = vrot.lane.b32.xlu0 %v4798, 64
  %v4800 = vpop.permute.xlu0 %4799
  %4802 = vst.msk [vmem:[#allocation4 + $0x30] sm:$0xf0] %vm4680, %v4800
  %4803 = vst.msk [vmem:[#allocation4 + $0x80] sm:$0xf] %vm4682, %v4800
  %v4805 = vrot.slane %v4605, 4
  %4806 = vrot.lane.b32.xlu0 %v4805, 64
  %v4807 = vpop.permute.xlu0 %4806
  %4809 = vst.msk [vmem:[%s4672 + $0x30] sm:$0xf0] %vm4680, %v4807
  %4810 = vst.msk [vmem:[%s4672 + $0x80] sm:$0xf] %vm4682, %v4807
  %v4812 = vrot.slane %v4606, 4
  %4814 = vst.msk [vmem:[#allocation4 + $0x38] sm:$0xf0] %vm4665, %v4812
  %4815 = vst.msk [vmem:[#allocation4 + $0x88] sm:$0xf] %vm4667, %v4812
  %v4817 = vrot.slane %v4607, 4
  %4819 = vst.msk [vmem:[%s4672 + $0x38] sm:$0xf0] %vm4665, %v4817
  %4820 = vst.msk [vmem:[%s4672 + $0x88] sm:$0xf] %vm4667, %v4817
  %v4822 = vrot.slane %v4608, 4
  %4823 = vrot.lane.b32.xlu0 %v4822, 64
  %v4824 = vpop.permute.xlu0 %4823
  %4826 = vst.msk [vmem:[#allocation4 + $0x38] sm:$0xf0] %vm4680, %v4824
  %4827 = vst.msk [vmem:[#allocation4 + $0x88] sm:$0xf] %vm4682, %v4824
  %v4829 = vrot.slane %v4609, 4
  %4830 = vrot.lane.b32.xlu0 %v4829, 64
  %v4831 = vpop.permute.xlu0 %4830
  %4833 = vst.msk [vmem:[%s4672 + $0x38] sm:$0xf0] %vm4680, %v4831
  %4834 = vst.msk [vmem:[%s4672 + $0x88] sm:$0xf] %vm4682, %v4831
  %v4836 = vrot.slane %v4610, 4
  %4838 = vst.msk [vmem:[#allocation4 + $0x40] sm:$0xf0] %vm4665, %v4836
  %4839 = vst.msk [vmem:[#allocation4 + $0x90] sm:$0xf] %vm4667, %v4836
  %v4841 = vrot.slane %v4611, 4
  %4843 = vst.msk [vmem:[%s4672 + $0x40] sm:$0xf0] %vm4665, %v4841
  %4844 = vst.msk [vmem:[%s4672 + $0x90] sm:$0xf] %vm4667, %v4841
  %v4846 = vrot.slane %v4612, 4
  %4847 = vrot.lane.b32.xlu0 %v4846, 64
  %v4848 = vpop.permute.xlu0 %4847
  %4850 = vst.msk [vmem:[#allocation4 + $0x40] sm:$0xf0] %vm4680, %v4848
  %4851 = vst.msk [vmem:[#allocation4 + $0x90] sm:$0xf] %vm4682, %v4848
  %v4853 = vrot.slane %v4613, 4
  %4854 = vrot.lane.b32.xlu0 %v4853, 64
  %v4855 = vpop.permute.xlu0 %4854
  %4857 = vst.msk [vmem:[%s4672 + $0x40] sm:$0xf0] %vm4680, %v4855
  %4858 = vst.msk [vmem:[%s4672 + $0x90] sm:$0xf] %vm4682, %v4855
  %v4859 = vld [vmem:[#allocation4] sm:$0xf8]
  %v4860 = vld [vmem:[#allocation4 + $0x8] sm:$0xf8]
  %v4861 = vld [vmem:[#allocation4 + $0x10] sm:$0xf8]
  %v4862 = vld [vmem:[#allocation4 + $0x18] sm:$0xf8]
  %v4863 = vld [vmem:[#allocation4 + $0x20] sm:$0xf8]
  %v4864 = vld [vmem:[#allocation4 + $0x28] sm:$0xf8]
  %v4865 = vld [vmem:[#allocation4 + $0x30] sm:$0xf8]
  %v4866 = vld [vmem:[#allocation4 + $0x38] sm:$0xf8]
  %v4867 = vld [vmem:[#allocation4 + $0x40] sm:$0xf8]
  %v4868 = vld [vmem:[#allocation4 + $0x48] sm:$0xf8]
  %v4869 = vld [vmem:[#allocation4 + $0x50] sm:$0x7]
  %v4870 = vld [vmem:[#allocation4 + $0x58] sm:$0x7]
  %v4871 = vld [vmem:[#allocation4 + $0x60] sm:$0x7]
  %v4872 = vld [vmem:[#allocation4 + $0x68] sm:$0x7]
  %v4873 = vld [vmem:[#allocation4 + $0x70] sm:$0x7]
  %v4874 = vld [vmem:[#allocation4 + $0x78] sm:$0x7]
  %v4875 = vld [vmem:[#allocation4 + $0x80] sm:$0x7]
  %v4876 = vld [vmem:[#allocation4 + $0x88] sm:$0x7]
  %v4877 = vld [vmem:[#allocation4 + $0x90] sm:$0x7]
  %v4878 = vld [vmem:[#allocation4 + $0x98] sm:$0x7]
  %v4879 = vld [vmem:[%s4672] sm:$0xf8]
  %v4880 = vld [vmem:[%s4672 + $0x8] sm:$0xf8]
  %v4881 = vld [vmem:[%s4672 + $0x10] sm:$0xf8]
  %v4882 = vld [vmem:[%s4672 + $0x18] sm:$0xf8]
  %v4883 = vld [vmem:[%s4672 + $0x20] sm:$0xf8]
  %v4884 = vld [vmem:[%s4672 + $0x28] sm:$0xf8]
  %v4885 = vld [vmem:[%s4672 + $0x30] sm:$0xf8]
  %v4886 = vld [vmem:[%s4672 + $0x38] sm:$0xf8]
  %v4887 = vld [vmem:[%s4672 + $0x40] sm:$0xf8]
  %v4888 = vld [vmem:[%s4672 + $0x48] sm:$0xf8]
  %v4889 = vld [vmem:[%s4672 + $0x50] sm:$0x7]
  %v4890 = vld [vmem:[%s4672 + $0x58] sm:$0x7]
  %v4891 = vld [vmem:[%s4672 + $0x60] sm:$0x7]
  %v4892 = vld [vmem:[%s4672 + $0x68] sm:$0x7]
  %v4893 = vld [vmem:[%s4672 + $0x70] sm:$0x7]
  %v4894 = vld [vmem:[%s4672 + $0x78] sm:$0x7]
  %v4895 = vld [vmem:[%s4672 + $0x80] sm:$0x7]
  %v4896 = vld [vmem:[%s4672 + $0x88] sm:$0x7]
  %v4897 = vld [vmem:[%s4672 + $0x90] sm:$0x7]
  %v4898 = vld [vmem:[%s4672 + $0x98] sm:$0x7]
  %vm4919 = vcmask 1044480
  %v4920 = vrot.slane %v4859, 3
  %v4921 = vrot.slane %v4869, 3
  %v4922 = vsel %vm4919, %v4920, %v4921
  %v4923 = vrot.slane %v4860, 3
  %v4924 = vrot.slane %v4870, 3
  %v4925 = vsel %vm4919, %v4923, %v4924
  %v4926 = vrot.slane %v4861, 3
  %v4927 = vrot.slane %v4871, 3
  %v4928 = vsel %vm4919, %v4926, %v4927
  %v4929 = vrot.slane %v4862, 3
  %v4930 = vrot.slane %v4872, 3
  %v4931 = vsel %vm4919, %v4929, %v4930
  %v4932 = vrot.slane %v4863, 3
  %v4933 = vrot.slane %v4873, 3
  %v4934 = vsel %vm4919, %v4932, %v4933
  %v4935 = vrot.slane %v4864, 3
  %v4936 = vrot.slane %v4874, 3
  %v4937 = vsel %vm4919, %v4935, %v4936
  %v4938 = vrot.slane %v4865, 3
  %v4939 = vrot.slane %v4875, 3
  %v4940 = vsel %vm4919, %v4938, %v4939
  %v4941 = vrot.slane %v4866, 3
  %v4942 = vrot.slane %v4876, 3
  %v4943 = vsel %vm4919, %v4941, %v4942
  %v4944 = vrot.slane %v4867, 3
  %v4945 = vrot.slane %v4877, 3
  %v4946 = vsel %vm4919, %v4944, %v4945
  %v4947 = vrot.slane %v4868, 3
  %v4948 = vrot.slane %v4878, 3
  %v4949 = vsel %vm4919, %v4947, %v4948
  %v4980 = vrot.slane %v4879, 3
  %v4981 = vrot.slane %v4889, 3
  %v4982 = vsel %vm4919, %v4980, %v4981
  %v4983 = vrot.slane %v4880, 3
  %v4984 = vrot.slane %v4890, 3
  %v4985 = vsel %vm4919, %v4983, %v4984
  %v4986 = vrot.slane %v4881, 3
  %v4987 = vrot.slane %v4891, 3
  %v4988 = vsel %vm4919, %v4986, %v4987
  %v4989 = vrot.slane %v4882, 3
  %v4990 = vrot.slane %v4892, 3
  %v4991 = vsel %vm4919, %v4989, %v4990
  %v4992 = vrot.slane %v4883, 3
  %v4993 = vrot.slane %v4893, 3
  %v4994 = vsel %vm4919, %v4992, %v4993
  %v4995 = vrot.slane %v4884, 3
  %v4996 = vrot.slane %v4894, 3
  %v4997 = vsel %vm4919, %v4995, %v4996
  %v4998 = vrot.slane %v4885, 3
  %v4999 = vrot.slane %v4895, 3
  %v5000 = vsel %vm4919, %v4998, %v4999
  %v5001 = vrot.slane %v4886, 3
  %v5002 = vrot.slane %v4896, 3
  %v5003 = vsel %vm4919, %v5001, %v5002
  %v5004 = vrot.slane %v4887, 3
  %v5005 = vrot.slane %v4897, 3
  %v5006 = vsel %vm4919, %v5004, %v5005
  %v5007 = vrot.slane %v4888, 3
  %v5008 = vrot.slane %v4898, 3
  %v5009 = vsel %vm4919, %v5007, %v5008
  %v5020 = vld [vmem:[%s5] sm:$0xf]
  %v5021 = vld [vmem:[%s5 + $0x4] sm:$0xf]
  %v5022 = vld [vmem:[%s5 + $0x8] sm:$0xf]
  %v5023 = vld [vmem:[%s5 + $0xc] sm:$0xf]
  %v5024 = vld [vmem:[%s5 + $0x10] sm:$0xf]
  %v5025 = vld [vmem:[%s5 + $0x14] sm:$0xf]
  %v5026 = vld [vmem:[%s5 + $0x18] sm:$0xf]
  %v5027 = vld [vmem:[%s5 + $0x1c] sm:$0xf]
  %v5028 = vld [vmem:[%s5 + $0x20] sm:$0xf]
  %v5029 = vld [vmem:[%s5 + $0x24] sm:$0xf]
  %v5030 = vld [vmem:[%s5 + $0x28] sm:$0xf]
  %v5031 = vld [vmem:[%s5 + $0x2c] sm:$0xf]
  %v5032 = vld [vmem:[%s5 + $0x30] sm:$0xf]
  %v5033 = vld [vmem:[%s5 + $0x34] sm:$0xf]
  %v5034 = vld [vmem:[%s5 + $0x38] sm:$0xf]
  %v5035 = vld [vmem:[%s5 + $0x3c] sm:$0xf]
  %v5036 = vld [vmem:[%s5 + $0x40] sm:$0xf]
  %v5037 = vld [vmem:[%s5 + $0x44] sm:$0xf]
  %v5038 = vld [vmem:[%s5 + $0x48] sm:$0xf]
  %v5039 = vld [vmem:[%s5 + $0x4c] sm:$0xf]
  %v5040 = vld [vmem:[%s5 + $0x50] sm:$0xf]
  %v5041 = vld [vmem:[%s5 + $0x54] sm:$0xf]
  %v5042 = vld [vmem:[%s5 + $0x58] sm:$0xf]
  %v5043 = vld [vmem:[%s5 + $0x5c] sm:$0xf]
  %v5044 = vld [vmem:[%s5 + $0x60] sm:$0xf]
  %v5045 = vld [vmem:[%s5 + $0x64] sm:$0xf]
  %v5046 = vld [vmem:[%s5 + $0x68] sm:$0xf]
  %v5047 = vld [vmem:[%s5 + $0x6c] sm:$0xf]
  %v5048 = vld [vmem:[%s5 + $0x70] sm:$0xf]
  %v5049 = vld [vmem:[%s5 + $0x74] sm:$0xf]
  %v5050 = vld [vmem:[%s5 + $0x78] sm:$0xf]
  %v5051 = vld [vmem:[%s5 + $0x7c] sm:$0xf]
  %v5052 = vld [vmem:[%s5 + $0x80] sm:$0xf]
  %v5053 = vld [vmem:[%s5 + $0x84] sm:$0xf]
  %v5054 = vld [vmem:[%s5 + $0x88] sm:$0xf]
  %v5055 = vld [vmem:[%s5 + $0x8c] sm:$0xf]
  %v5056 = vld [vmem:[%s5 + $0x90] sm:$0xf]
  %v5057 = vld [vmem:[%s5 + $0x94] sm:$0xf]
  %v5058 = vld [vmem:[%s5 + $0x98] sm:$0xf]
  %v5059 = vld [vmem:[%s5 + $0x9c] sm:$0xf]
  %v5060 = vld [vmem:[%s5 + $0xa0] sm:$0xf]
  %v5061 = vld [vmem:[%s5 + $0xa4] sm:$0xf]
  %v5062 = vld [vmem:[%s5 + $0xa8] sm:$0xf]
  %v5063 = vld [vmem:[%s5 + $0xac] sm:$0xf]
  %v5064 = vld [vmem:[%s5 + $0xb0] sm:$0xf]
  %v5065 = vld [vmem:[%s5 + $0xb4] sm:$0xf]
  %v5066 = vld [vmem:[%s5 + $0xb8] sm:$0xf]
  %v5067 = vld [vmem:[%s5 + $0xbc] sm:$0xf]
  %v5068 = vld [vmem:[%s5 + $0xc0] sm:$0xf]
  %v5069 = vld [vmem:[%s5 + $0xc4] sm:$0xf]
  %v5070 = vld [vmem:[%s5 + $0xc8] sm:$0xf]
  %v5071 = vld [vmem:[%s5 + $0xcc] sm:$0xf]
  %v5072 = vld [vmem:[%s5 + $0xd0] sm:$0xf]
  %v5073 = vld [vmem:[%s5 + $0xd4] sm:$0xf]
  %v5074 = vld [vmem:[%s5 + $0xd8] sm:$0xf]
  %v5075 = vld [vmem:[%s5 + $0xdc] sm:$0xf]
  %v5076 = vld [vmem:[%s5 + $0xe0] sm:$0xf]
  %v5077 = vld [vmem:[%s5 + $0xe4] sm:$0xf]
  %v5078 = vld [vmem:[%s5 + $0xe8] sm:$0xf]
  %v5079 = vld [vmem:[%s5 + $0xec] sm:$0xf]
  %v5080 = vld [vmem:[%s5 + $0xf0] sm:$0xf]
  %v5081 = vld [vmem:[%s5 + $0xf4] sm:$0xf]
  %v5082 = vld [vmem:[%s5 + $0xf8] sm:$0xf]
  %v5083 = vld [vmem:[%s5 + $0xfc] sm:$0xf]
  %v5084 = vld [vmem:[%s5 + $0x100] sm:$0xf]
  %v5085 = vld [vmem:[%s5 + $0x104] sm:$0xf]
  %v5086 = vld [vmem:[%s5 + $0x108] sm:$0xf]
  %v5087 = vld [vmem:[%s5 + $0x10c] sm:$0xf]
  %v5088 = vld [vmem:[%s5 + $0x110] sm:$0xf]
  %v5089 = vld [vmem:[%s5 + $0x114] sm:$0xf]
  %v5090 = vld [vmem:[%s5 + $0x118] sm:$0xf]
  %v5091 = vld [vmem:[%s5 + $0x11c] sm:$0xf]
  %v5092 = vld [vmem:[%s5 + $0x120] sm:$0xf]
  %v5093 = vld [vmem:[%s5 + $0x124] sm:$0xf]
  %v5094 = vld [vmem:[%s5 + $0x128] sm:$0xf]
  %v5095 = vld [vmem:[%s5 + $0x12c] sm:$0xf]
  %v5096 = vld [vmem:[%s5 + $0x130] sm:$0xf]
  %v5097 = vld [vmem:[%s5 + $0x134] sm:$0xf]
  %v5098 = vld [vmem:[%s5 + $0x138] sm:$0xf]
  %v5099 = vld [vmem:[%s5 + $0x13c] sm:$0xf]
  %v5100 = vld [vmem:[%s5 + $0x140] sm:$0xf]
  %v5101 = vld [vmem:[%s5 + $0x144] sm:$0xf]
  %v5102 = vld [vmem:[%s5 + $0x148] sm:$0xf]
  %v5103 = vld [vmem:[%s5 + $0x14c] sm:$0xf]
  %v5104 = vld [vmem:[%s5 + $0x150] sm:$0xf]
  %v5105 = vld [vmem:[%s5 + $0x154] sm:$0xf]
  %v5106 = vld [vmem:[%s5 + $0x158] sm:$0xf]
  %v5107 = vld [vmem:[%s5 + $0x15c] sm:$0xf]
  %v5108 = vld [vmem:[%s5 + $0x160] sm:$0xf]
  %v5109 = vld [vmem:[%s5 + $0x164] sm:$0xf]
  %v5110 = vld [vmem:[%s5 + $0x168] sm:$0xf]
  %v5111 = vld [vmem:[%s5 + $0x16c] sm:$0xf]
  %v5112 = vld [vmem:[%s5 + $0x170] sm:$0xf]
  %v5113 = vld [vmem:[%s5 + $0x174] sm:$0xf]
  %v5114 = vld [vmem:[%s5 + $0x178] sm:$0xf]
  %v5115 = vld [vmem:[%s5 + $0x17c] sm:$0xf]
  %v5116 = vld [vmem:[%s5 + $0x180] sm:$0xf]
  %v5117 = vld [vmem:[%s5 + $0x184] sm:$0xf]
  %v5118 = vld [vmem:[%s5 + $0x188] sm:$0xf]
  %v5119 = vld [vmem:[%s5 + $0x18c] sm:$0xf]
  %v5120 = vld [vmem:[%s5 + $0x190] sm:$0xf]
  %v5121 = vld [vmem:[%s5 + $0x194] sm:$0xf]
  %v5122 = vld [vmem:[%s5 + $0x198] sm:$0xf]
  %v5123 = vld [vmem:[%s5 + $0x19c] sm:$0xf]
  %v5124 = vld [vmem:[%s5 + $0x1a0] sm:$0xf]
  %v5125 = vld [vmem:[%s5 + $0x1a4] sm:$0xf]
  %v5126 = vld [vmem:[%s5 + $0x1a8] sm:$0xf]
  %v5127 = vld [vmem:[%s5 + $0x1ac] sm:$0xf]
  %v5128 = vld [vmem:[%s5 + $0x1b0] sm:$0xf]
  %v5129 = vld [vmem:[%s5 + $0x1b4] sm:$0xf]
  %v5130 = vld [vmem:[%s5 + $0x1b8] sm:$0xf]
  %v5131 = vld [vmem:[%s5 + $0x1bc] sm:$0xf]
  %v5132 = vld [vmem:[%s5 + $0x1c0] sm:$0xf]
  %v5133 = vld [vmem:[%s5 + $0x1c4] sm:$0xf]
  %v5134 = vld [vmem:[%s5 + $0x1c8] sm:$0xf]
  %v5135 = vld [vmem:[%s5 + $0x1cc] sm:$0xf]
  %v5136 = vld [vmem:[%s5 + $0x1d0] sm:$0xf]
  %v5137 = vld [vmem:[%s5 + $0x1d4] sm:$0xf]
  %v5138 = vld [vmem:[%s5 + $0x1d8] sm:$0xf]
  %v5139 = vld [vmem:[%s5 + $0x1dc] sm:$0xf]
  %v5140 = vld [vmem:[%s5 + $0x1e0] sm:$0xf]
  %v5141 = vld [vmem:[%s5 + $0x1e4] sm:$0xf]
  %v5142 = vld [vmem:[%s5 + $0x1e8] sm:$0xf]
  %v5143 = vld [vmem:[%s5 + $0x1ec] sm:$0xf]
  %v5144 = vld [vmem:[%s5 + $0x1f0] sm:$0xf]
  %v5145 = vld [vmem:[%s5 + $0x1f4] sm:$0xf]
  %v5146 = vld [vmem:[%s5 + $0x1f8] sm:$0xf]
  %v5147 = vld [vmem:[%s5 + $0x1fc] sm:$0xf]
  %v5148 = vld [vmem:[%s5 + $0x200] sm:$0xf]
  %v5149 = vld [vmem:[%s5 + $0x204] sm:$0xf]
  %v5150 = vld [vmem:[%s5 + $0x208] sm:$0xf]
  %v5151 = vld [vmem:[%s5 + $0x20c] sm:$0xf]
  %v5152 = vld [vmem:[%s5 + $0x210] sm:$0xf]
  %v5153 = vld [vmem:[%s5 + $0x214] sm:$0xf]
  %v5154 = vld [vmem:[%s5 + $0x218] sm:$0xf]
  %v5155 = vld [vmem:[%s5 + $0x21c] sm:$0xf]
  %v5156 = vld [vmem:[%s5 + $0x220] sm:$0xf]
  %v5157 = vld [vmem:[%s5 + $0x224] sm:$0xf]
  %v5158 = vld [vmem:[%s5 + $0x228] sm:$0xf]
  %v5159 = vld [vmem:[%s5 + $0x22c] sm:$0xf]
  %v5160 = vld [vmem:[%s5 + $0x230] sm:$0xf]
  %v5161 = vld [vmem:[%s5 + $0x234] sm:$0xf]
  %v5162 = vld [vmem:[%s5 + $0x238] sm:$0xf]
  %v5163 = vld [vmem:[%s5 + $0x23c] sm:$0xf]
  %v5164 = vld [vmem:[%s5 + $0x240] sm:$0xf]
  %v5165 = vld [vmem:[%s5 + $0x244] sm:$0xf]
  %v5166 = vld [vmem:[%s5 + $0x248] sm:$0xf]
  %v5167 = vld [vmem:[%s5 + $0x24c] sm:$0xf]
  %v5168 = vld [vmem:[%s5 + $0x250] sm:$0xf]
  %v5169 = vld [vmem:[%s5 + $0x254] sm:$0xf]
  %v5170 = vld [vmem:[%s5 + $0x258] sm:$0xf]
  %v5171 = vld [vmem:[%s5 + $0x25c] sm:$0xf]
  %v5172 = vld [vmem:[%s5 + $0x260] sm:$0xf]
  %v5173 = vld [vmem:[%s5 + $0x264] sm:$0xf]
  %v5174 = vld [vmem:[%s5 + $0x268] sm:$0xf]
  %v5175 = vld [vmem:[%s5 + $0x26c] sm:$0xf]
  %v5176 = vld [vmem:[%s5 + $0x270] sm:$0xf]
  %v5177 = vld [vmem:[%s5 + $0x274] sm:$0xf]
  %v5178 = vld [vmem:[%s5 + $0x278] sm:$0xf]
  %v5179 = vld [vmem:[%s5 + $0x27c] sm:$0xf]
  %v5180 = vld [vmem:[#allocation4 + $0x50] sm:$0xf]
  %v5181 = vld [vmem:[#allocation4 + $0x58] sm:$0xf]
  %v5182 = vld [vmem:[#allocation4 + $0x60] sm:$0xf]
  %v5183 = vld [vmem:[#allocation4 + $0x68] sm:$0xf]
  %v5184 = vld [vmem:[#allocation4 + $0x70] sm:$0xf]
  %v5185 = vld [vmem:[#allocation4 + $0x78] sm:$0xf]
  %v5186 = vld [vmem:[#allocation4 + $0x80] sm:$0xf]
  %v5187 = vld [vmem:[#allocation4 + $0x88] sm:$0xf]
  %v5188 = vld [vmem:[#allocation4 + $0x90] sm:$0xf]
  %v5189 = vld [vmem:[#allocation4 + $0x98] sm:$0xf]
  %v5190 = vld [vmem:[%s4672 + $0x50] sm:$0xf]
  %v5191 = vld [vmem:[%s4672 + $0x58] sm:$0xf]
  %v5192 = vld [vmem:[%s4672 + $0x60] sm:$0xf]
  %v5193 = vld [vmem:[%s4672 + $0x68] sm:$0xf]
  %v5194 = vld [vmem:[%s4672 + $0x70] sm:$0xf]
  %v5195 = vld [vmem:[%s4672 + $0x78] sm:$0xf]
  %v5196 = vld [vmem:[%s4672 + $0x80] sm:$0xf]
  %v5197 = vld [vmem:[%s4672 + $0x88] sm:$0xf]
  %v5198 = vld [vmem:[%s4672 + $0x90] sm:$0xf]
  %v5199 = vld [vmem:[%s4672 + $0x98] sm:$0xf]
  %vm5200 = vsmask.f32 4352
  %v5202 = vshrl.u32 %v4859, 16
  %v5204 = vrot.slane %v5202, 3
  %v5205 = vshll.u32 %v4859, 16
  %v5207 = vrot.slane %v5205, 4
  %v5208 = vor.u32 %v5204, %v5207
  %v5210 = vshrl.u32 %v5180, 16
  %v5212 = vrot.slane %v5210, 3
  %v5213 = vshll.u32 %v5180, 16
  %v5215 = vrot.slane %v5213, 4
  %v5216 = vor.u32 %v5212, %v5215
  %v5217 = vsel %vm5200, %v5208, %v5216
  %v5219 = vshrl.u32 %v4860, 16
  %v5221 = vrot.slane %v5219, 3
  %v5222 = vshll.u32 %v4860, 16
  %v5224 = vrot.slane %v5222, 4
  %v5225 = vor.u32 %v5221, %v5224
  %v5227 = vshrl.u32 %v5181, 16
  %v5229 = vrot.slane %v5227, 3
  %v5230 = vshll.u32 %v5181, 16
  %v5232 = vrot.slane %v5230, 4
  %v5233 = vor.u32 %v5229, %v5232
  %v5234 = vsel %vm5200, %v5225, %v5233
  %v5236 = vshrl.u32 %v4861, 16
  %v5238 = vrot.slane %v5236, 3
  %v5239 = vshll.u32 %v4861, 16
  %v5241 = vrot.slane %v5239, 4
  %v5242 = vor.u32 %v5238, %v5241
  %v5244 = vshrl.u32 %v5182, 16
  %v5246 = vrot.slane %v5244, 3
  %v5247 = vshll.u32 %v5182, 16
  %v5249 = vrot.slane %v5247, 4
  %v5250 = vor.u32 %v5246, %v5249
  %v5251 = vsel %vm5200, %v5242, %v5250
  %v5253 = vshrl.u32 %v4862, 16
  %v5255 = vrot.slane %v5253, 3
  %v5256 = vshll.u32 %v4862, 16
  %v5258 = vrot.slane %v5256, 4
  %v5259 = vor.u32 %v5255, %v5258
  %v5261 = vshrl.u32 %v5183, 16
  %v5263 = vrot.slane %v5261, 3
  %v5264 = vshll.u32 %v5183, 16
  %v5266 = vrot.slane %v5264, 4
  %v5267 = vor.u32 %v5263, %v5266
  %v5268 = vsel %vm5200, %v5259, %v5267
  %v5270 = vshrl.u32 %v4863, 16
  %v5272 = vrot.slane %v5270, 3
  %v5273 = vshll.u32 %v4863, 16
  %v5275 = vrot.slane %v5273, 4
  %v5276 = vor.u32 %v5272, %v5275
  %v5278 = vshrl.u32 %v5184, 16
  %v5280 = vrot.slane %v5278, 3
  %v5281 = vshll.u32 %v5184, 16
  %v5283 = vrot.slane %v5281, 4
  %v5284 = vor.u32 %v5280, %v5283
  %v5285 = vsel %vm5200, %v5276, %v5284
  %v5287 = vshrl.u32 %v4864, 16
  %v5289 = vrot.slane %v5287, 3
  %v5290 = vshll.u32 %v4864, 16
  %v5292 = vrot.slane %v5290, 4
  %v5293 = vor.u32 %v5289, %v5292
  %v5295 = vshrl.u32 %v5185, 16
  %v5297 = vrot.slane %v5295, 3
  %v5298 = vshll.u32 %v5185, 16
  %v5300 = vrot.slane %v5298, 4
  %v5301 = vor.u32 %v5297, %v5300
  %v5302 = vsel %vm5200, %v5293, %v5301
  %v5304 = vshrl.u32 %v4865, 16
  %v5306 = vrot.slane %v5304, 3
  %v5307 = vshll.u32 %v4865, 16
  %v5309 = vrot.slane %v5307, 4
  %v5310 = vor.u32 %v5306, %v5309
  %v5312 = vshrl.u32 %v5186, 16
  %v5314 = vrot.slane %v5312, 3
  %v5315 = vshll.u32 %v5186, 16
  %v5317 = vrot.slane %v5315, 4
  %v5318 = vor.u32 %v5314, %v5317
  %v5319 = vsel %vm5200, %v5310, %v5318
  %v5321 = vshrl.u32 %v4866, 16
  %v5323 = vrot.slane %v5321, 3
  %v5324 = vshll.u32 %v4866, 16
  %v5326 = vrot.slane %v5324, 4
  %v5327 = vor.u32 %v5323, %v5326
  %v5329 = vshrl.u32 %v5187, 16
  %v5331 = vrot.slane %v5329, 3
  %v5332 = vshll.u32 %v5187, 16
  %v5334 = vrot.slane %v5332, 4
  %v5335 = vor.u32 %v5331, %v5334
  %v5336 = vsel %vm5200, %v5327, %v5335
  %v5338 = vshrl.u32 %v4867, 16
  %v5340 = vrot.slane %v5338, 3
  %v5341 = vshll.u32 %v4867, 16
  %v5343 = vrot.slane %v5341, 4
  %v5344 = vor.u32 %v5340, %v5343
  %v5346 = vshrl.u32 %v5188, 16
  %v5348 = vrot.slane %v5346, 3
  %v5349 = vshll.u32 %v5188, 16
  %v5351 = vrot.slane %v5349, 4
  %v5352 = vor.u32 %v5348, %v5351
  %v5353 = vsel %vm5200, %v5344, %v5352
  %v5355 = vshrl.u32 %v4868, 16
  %v5357 = vrot.slane %v5355, 3
  %v5358 = vshll.u32 %v4868, 16
  %v5360 = vrot.slane %v5358, 4
  %v5361 = vor.u32 %v5357, %v5360
  %v5363 = vshrl.u32 %v5189, 16
  %v5365 = vrot.slane %v5363, 3
  %v5366 = vshll.u32 %v5189, 16
  %v5368 = vrot.slane %v5366, 4
  %v5369 = vor.u32 %v5365, %v5368
  %v5370 = vsel %vm5200, %v5361, %v5369
  %v5382 = vshrl.u32 %v4879, 16
  %v5384 = vrot.slane %v5382, 3
  %v5385 = vshll.u32 %v4879, 16
  %v5387 = vrot.slane %v5385, 4
  %v5388 = vor.u32 %v5384, %v5387
  %v5390 = vshrl.u32 %v5190, 16
  %v5392 = vrot.slane %v5390, 3
  %v5393 = vshll.u32 %v5190, 16
  %v5395 = vrot.slane %v5393, 4
  %v5396 = vor.u32 %v5392, %v5395
  %v5397 = vsel %vm5200, %v5388, %v5396
  %v5399 = vshrl.u32 %v4880, 16
  %v5401 = vrot.slane %v5399, 3
  %v5402 = vshll.u32 %v4880, 16
  %v5404 = vrot.slane %v5402, 4
  %v5405 = vor.u32 %v5401, %v5404
  %v5407 = vshrl.u32 %v5191, 16
  %v5409 = vrot.slane %v5407, 3
  %v5410 = vshll.u32 %v5191, 16
  %v5412 = vrot.slane %v5410, 4
  %v5413 = vor.u32 %v5409, %v5412
  %v5414 = vsel %vm5200, %v5405, %v5413
  %v5416 = vshrl.u32 %v4881, 16
  %v5418 = vrot.slane %v5416, 3
  %v5419 = vshll.u32 %v4881, 16
  %v5421 = vrot.slane %v5419, 4
  %v5422 = vor.u32 %v5418, %v5421
  %v5424 = vshrl.u32 %v5192, 16
  %v5426 = vrot.slane %v5424, 3
  %v5427 = vshll.u32 %v5192, 16
  %v5429 = vrot.slane %v5427, 4
  %v5430 = vor.u32 %v5426, %v5429
  %v5431 = vsel %vm5200, %v5422, %v5430
  %v5433 = vshrl.u32 %v4882, 16
  %v5435 = vrot.slane %v5433, 3
  %v5436 = vshll.u32 %v4882, 16
  %v5438 = vrot.slane %v5436, 4
  %v5439 = vor.u32 %v5435, %v5438
  %v5441 = vshrl.u32 %v5193, 16
  %v5443 = vrot.slane %v5441, 3
  %v5444 = vshll.u32 %v5193, 16
  %v5446 = vrot.slane %v5444, 4
  %v5447 = vor.u32 %v5443, %v5446
  %v5448 = vsel %vm5200, %v5439, %v5447
  %v5450 = vshrl.u32 %v4883, 16
  %v5452 = vrot.slane %v5450, 3
  %v5453 = vshll.u32 %v4883, 16
  %v5455 = vrot.slane %v5453, 4
  %v5456 = vor.u32 %v5452, %v5455
  %v5458 = vshrl.u32 %v5194, 16
  %v5460 = vrot.slane %v5458, 3
  %v5461 = vshll.u32 %v5194, 16
  %v5463 = vrot.slane %v5461, 4
  %v5464 = vor.u32 %v5460, %v5463
  %v5465 = vsel %vm5200, %v5456, %v5464
  %v5467 = vshrl.u32 %v4884, 16
  %v5469 = vrot.slane %v5467, 3
  %v5470 = vshll.u32 %v4884, 16
  %v5472 = vrot.slane %v5470, 4
  %v5473 = vor.u32 %v5469, %v5472
  %v5475 = vshrl.u32 %v5195, 16
  %v5477 = vrot.slane %v5475, 3
  %v5478 = vshll.u32 %v5195, 16
  %v5480 = vrot.slane %v5478, 4
  %v5481 = vor.u32 %v5477, %v5480
  %v5482 = vsel %vm5200, %v5473, %v5481
  %v5484 = vshrl.u32 %v4885, 16
  %v5486 = vrot.slane %v5484, 3
  %v5487 = vshll.u32 %v4885, 16
  %v5489 = vrot.slane %v5487, 4
  %v5490 = vor.u32 %v5486, %v5489
  %v5492 = vshrl.u32 %v5196, 16
  %v5494 = vrot.slane %v5492, 3
  %v5495 = vshll.u32 %v5196, 16
  %v5497 = vrot.slane %v5495, 4
  %v5498 = vor.u32 %v5494, %v5497
  %v5499 = vsel %vm5200, %v5490, %v5498
  %v5501 = vshrl.u32 %v4886, 16
  %v5503 = vrot.slane %v5501, 3
  %v5504 = vshll.u32 %v4886, 16
  %v5506 = vrot.slane %v5504, 4
  %v5507 = vor.u32 %v5503, %v5506
  %v5509 = vshrl.u32 %v5197, 16
  %v5511 = vrot.slane %v5509, 3
  %v5512 = vshll.u32 %v5197, 16
  %v5514 = vrot.slane %v5512, 4
  %v5515 = vor.u32 %v5511, %v5514
  %v5516 = vsel %vm5200, %v5507, %v5515
  %v5518 = vshrl.u32 %v4887, 16
  %v5520 = vrot.slane %v5518, 3
  %v5521 = vshll.u32 %v4887, 16
  %v5523 = vrot.slane %v5521, 4
  %v5524 = vor.u32 %v5520, %v5523
  %v5526 = vshrl.u32 %v5198, 16
  %v5528 = vrot.slane %v5526, 3
  %v5529 = vshll.u32 %v5198, 16
  %v5531 = vrot.slane %v5529, 4
  %v5532 = vor.u32 %v5528, %v5531
  %v5533 = vsel %vm5200, %v5524, %v5532
  %v5535 = vshrl.u32 %v4888, 16
  %v5537 = vrot.slane %v5535, 3
  %v5538 = vshll.u32 %v4888, 16
  %v5540 = vrot.slane %v5538, 4
  %v5541 = vor.u32 %v5537, %v5540
  %v5543 = vshrl.u32 %v5199, 16
  %v5545 = vrot.slane %v5543, 3
  %v5546 = vshll.u32 %v5199, 16
  %v5548 = vrot.slane %v5546, 4
  %v5549 = vor.u32 %v5545, %v5548
  %v5550 = vsel %vm5200, %v5541, %v5549
  %s5561 = scalar_lea.vmem %s5, 640
  %v5562 = vld [vmem:[%s5561] sm:$0xf]
  %v5563 = vld [vmem:[%s5561 + $0x4] sm:$0xf]
  %v5564 = vld [vmem:[%s5561 + $0x8] sm:$0xf]
  %v5565 = vld [vmem:[%s5561 + $0xc] sm:$0xf]
  %v5566 = vld [vmem:[%s5561 + $0x10] sm:$0xf]
  %v5567 = vld [vmem:[%s5561 + $0x14] sm:$0xf]
  %v5568 = vld [vmem:[%s5561 + $0x18] sm:$0xf]
  %v5569 = vld [vmem:[%s5561 + $0x1c] sm:$0xf]
  %v5570 = vld [vmem:[%s5561 + $0x20] sm:$0xf]
  %v5571 = vld [vmem:[%s5561 + $0x24] sm:$0xf]
  %v5572 = vld [vmem:[%s5561 + $0x28] sm:$0xf]
  %v5573 = vld [vmem:[%s5561 + $0x2c] sm:$0xf]
  %v5574 = vld [vmem:[%s5561 + $0x30] sm:$0xf]
  %v5575 = vld [vmem:[%s5561 + $0x34] sm:$0xf]
  %v5576 = vld [vmem:[%s5561 + $0x38] sm:$0xf]
  %v5577 = vld [vmem:[%s5561 + $0x3c] sm:$0xf]
  %v5578 = vld [vmem:[%s5561 + $0x40] sm:$0xf]
  %v5579 = vld [vmem:[%s5561 + $0x44] sm:$0xf]
  %v5580 = vld [vmem:[%s5561 + $0x48] sm:$0xf]
  %v5581 = vld [vmem:[%s5561 + $0x4c] sm:$0xf]
  %v5582 = vld [vmem:[%s5561 + $0x50] sm:$0xf]
  %v5583 = vld [vmem:[%s5561 + $0x54] sm:$0xf]
  %v5584 = vld [vmem:[%s5561 + $0x58] sm:$0xf]
  %v5585 = vld [vmem:[%s5561 + $0x5c] sm:$0xf]
  %v5586 = vld [vmem:[%s5561 + $0x60] sm:$0xf]
  %v5587 = vld [vmem:[%s5561 + $0x64] sm:$0xf]
  %v5588 = vld [vmem:[%s5561 + $0x68] sm:$0xf]
  %v5589 = vld [vmem:[%s5561 + $0x6c] sm:$0xf]
  %v5590 = vld [vmem:[%s5561 + $0x70] sm:$0xf]
  %v5591 = vld [vmem:[%s5561 + $0x74] sm:$0xf]
  %v5592 = vld [vmem:[%s5561 + $0x78] sm:$0xf]
  %v5593 = vld [vmem:[%s5561 + $0x7c] sm:$0xf]
  %v5594 = vld [vmem:[%s5561 + $0x80] sm:$0xf]
  %v5595 = vld [vmem:[%s5561 + $0x84] sm:$0xf]
  %v5596 = vld [vmem:[%s5561 + $0x88] sm:$0xf]
  %v5597 = vld [vmem:[%s5561 + $0x8c] sm:$0xf]
  %v5598 = vld [vmem:[%s5561 + $0x90] sm:$0xf]
  %v5599 = vld [vmem:[%s5561 + $0x94] sm:$0xf]
  %v5600 = vld [vmem:[%s5561 + $0x98] sm:$0xf]
  %v5601 = vld [vmem:[%s5561 + $0x9c] sm:$0xf]
  %v5602 = vld [vmem:[%s5561 + $0xa0] sm:$0xf]
  %v5603 = vld [vmem:[%s5561 + $0xa4] sm:$0xf]
  %v5604 = vld [vmem:[%s5561 + $0xa8] sm:$0xf]
  %v5605 = vld [vmem:[%s5561 + $0xac] sm:$0xf]
  %v5606 = vld [vmem:[%s5561 + $0xb0] sm:$0xf]
  %v5607 = vld [vmem:[%s5561 + $0xb4] sm:$0xf]
  %v5608 = vld [vmem:[%s5561 + $0xb8] sm:$0xf]
  %v5609 = vld [vmem:[%s5561 + $0xbc] sm:$0xf]
  %v5610 = vld [vmem:[%s5561 + $0xc0] sm:$0xf]
  %v5611 = vld [vmem:[%s5561 + $0xc4] sm:$0xf]
  %v5612 = vld [vmem:[%s5561 + $0xc8] sm:$0xf]
  %v5613 = vld [vmem:[%s5561 + $0xcc] sm:$0xf]
  %v5614 = vld [vmem:[%s5561 + $0xd0] sm:$0xf]
  %v5615 = vld [vmem:[%s5561 + $0xd4] sm:$0xf]
  %v5616 = vld [vmem:[%s5561 + $0xd8] sm:$0xf]
  %v5617 = vld [vmem:[%s5561 + $0xdc] sm:$0xf]
  %v5618 = vld [vmem:[%s5561 + $0xe0] sm:$0xf]
  %v5619 = vld [vmem:[%s5561 + $0xe4] sm:$0xf]
  %v5620 = vld [vmem:[%s5561 + $0xe8] sm:$0xf]
  %v5621 = vld [vmem:[%s5561 + $0xec] sm:$0xf]
  %v5622 = vld [vmem:[%s5561 + $0xf0] sm:$0xf]
  %v5623 = vld [vmem:[%s5561 + $0xf4] sm:$0xf]
  %v5624 = vld [vmem:[%s5561 + $0xf8] sm:$0xf]
  %v5625 = vld [vmem:[%s5561 + $0xfc] sm:$0xf]
  %v5626 = vld [vmem:[%s5561 + $0x100] sm:$0xf]
  %v5627 = vld [vmem:[%s5561 + $0x104] sm:$0xf]
  %v5628 = vld [vmem:[%s5561 + $0x108] sm:$0xf]
  %v5629 = vld [vmem:[%s5561 + $0x10c] sm:$0xf]
  %v5630 = vld [vmem:[%s5561 + $0x110] sm:$0xf]
  %v5631 = vld [vmem:[%s5561 + $0x114] sm:$0xf]
  %v5632 = vld [vmem:[%s5561 + $0x118] sm:$0xf]
  %v5633 = vld [vmem:[%s5561 + $0x11c] sm:$0xf]
  %v5634 = vld [vmem:[%s5561 + $0x120] sm:$0xf]
  %v5635 = vld [vmem:[%s5561 + $0x124] sm:$0xf]
  %v5636 = vld [vmem:[%s5561 + $0x128] sm:$0xf]
  %v5637 = vld [vmem:[%s5561 + $0x12c] sm:$0xf]
  %v5638 = vld [vmem:[%s5561 + $0x130] sm:$0xf]
  %v5639 = vld [vmem:[%s5561 + $0x134] sm:$0xf]
  %v5640 = vld [vmem:[%s5561 + $0x138] sm:$0xf]
  %v5641 = vld [vmem:[%s5561 + $0x13c] sm:$0xf]
  %v5642 = vld [vmem:[%s5561 + $0x140] sm:$0xf]
  %v5643 = vld [vmem:[%s5561 + $0x144] sm:$0xf]
  %v5644 = vld [vmem:[%s5561 + $0x148] sm:$0xf]
  %v5645 = vld [vmem:[%s5561 + $0x14c] sm:$0xf]
  %v5646 = vld [vmem:[%s5561 + $0x150] sm:$0xf]
  %v5647 = vld [vmem:[%s5561 + $0x154] sm:$0xf]
  %v5648 = vld [vmem:[%s5561 + $0x158] sm:$0xf]
  %v5649 = vld [vmem:[%s5561 + $0x15c] sm:$0xf]
  %v5650 = vld [vmem:[%s5561 + $0x160] sm:$0xf]
  %v5651 = vld [vmem:[%s5561 + $0x164] sm:$0xf]
  %v5652 = vld [vmem:[%s5561 + $0x168] sm:$0xf]
  %v5653 = vld [vmem:[%s5561 + $0x16c] sm:$0xf]
  %v5654 = vld [vmem:[%s5561 + $0x170] sm:$0xf]
  %v5655 = vld [vmem:[%s5561 + $0x174] sm:$0xf]
  %v5656 = vld [vmem:[%s5561 + $0x178] sm:$0xf]
  %v5657 = vld [vmem:[%s5561 + $0x17c] sm:$0xf]
  %v5658 = vld [vmem:[%s5561 + $0x180] sm:$0xf]
  %v5659 = vld [vmem:[%s5561 + $0x184] sm:$0xf]
  %v5660 = vld [vmem:[%s5561 + $0x188] sm:$0xf]
  %v5661 = vld [vmem:[%s5561 + $0x18c] sm:$0xf]
  %v5662 = vld [vmem:[%s5561 + $0x190] sm:$0xf]
  %v5663 = vld [vmem:[%s5561 + $0x194] sm:$0xf]
  %v5664 = vld [vmem:[%s5561 + $0x198] sm:$0xf]
  %v5665 = vld [vmem:[%s5561 + $0x19c] sm:$0xf]
  %v5666 = vld [vmem:[%s5561 + $0x1a0] sm:$0xf]
  %v5667 = vld [vmem:[%s5561 + $0x1a4] sm:$0xf]
  %v5668 = vld [vmem:[%s5561 + $0x1a8] sm:$0xf]
  %v5669 = vld [vmem:[%s5561 + $0x1ac] sm:$0xf]
  %v5670 = vld [vmem:[%s5561 + $0x1b0] sm:$0xf]
  %v5671 = vld [vmem:[%s5561 + $0x1b4] sm:$0xf]
  %v5672 = vld [vmem:[%s5561 + $0x1b8] sm:$0xf]
  %v5673 = vld [vmem:[%s5561 + $0x1bc] sm:$0xf]
  %v5674 = vld [vmem:[%s5561 + $0x1c0] sm:$0xf]
  %v5675 = vld [vmem:[%s5561 + $0x1c4] sm:$0xf]
  %v5676 = vld [vmem:[%s5561 + $0x1c8] sm:$0xf]
  %v5677 = vld [vmem:[%s5561 + $0x1cc] sm:$0xf]
  %v5678 = vld [vmem:[%s5561 + $0x1d0] sm:$0xf]
  %v5679 = vld [vmem:[%s5561 + $0x1d4] sm:$0xf]
  %v5680 = vld [vmem:[%s5561 + $0x1d8] sm:$0xf]
  %v5681 = vld [vmem:[%s5561 + $0x1dc] sm:$0xf]
  %v5682 = vld [vmem:[%s5561 + $0x1e0] sm:$0xf]
  %v5683 = vld [vmem:[%s5561 + $0x1e4] sm:$0xf]
  %v5684 = vld [vmem:[%s5561 + $0x1e8] sm:$0xf]
  %v5685 = vld [vmem:[%s5561 + $0x1ec] sm:$0xf]
  %v5686 = vld [vmem:[%s5561 + $0x1f0] sm:$0xf]
  %v5687 = vld [vmem:[%s5561 + $0x1f4] sm:$0xf]
  %v5688 = vld [vmem:[%s5561 + $0x1f8] sm:$0xf]
  %v5689 = vld [vmem:[%s5561 + $0x1fc] sm:$0xf]
  %v5690 = vld [vmem:[%s5561 + $0x200] sm:$0xf]
  %v5691 = vld [vmem:[%s5561 + $0x204] sm:$0xf]
  %v5692 = vld [vmem:[%s5561 + $0x208] sm:$0xf]
  %v5693 = vld [vmem:[%s5561 + $0x20c] sm:$0xf]
  %v5694 = vld [vmem:[%s5561 + $0x210] sm:$0xf]
  %v5695 = vld [vmem:[%s5561 + $0x214] sm:$0xf]
  %v5696 = vld [vmem:[%s5561 + $0x218] sm:$0xf]
  %v5697 = vld [vmem:[%s5561 + $0x21c] sm:$0xf]
  %v5698 = vld [vmem:[%s5561 + $0x220] sm:$0xf]
  %v5699 = vld [vmem:[%s5561 + $0x224] sm:$0xf]
  %v5700 = vld [vmem:[%s5561 + $0x228] sm:$0xf]
  %v5701 = vld [vmem:[%s5561 + $0x22c] sm:$0xf]
  %v5702 = vld [vmem:[%s5561 + $0x230] sm:$0xf]
  %v5703 = vld [vmem:[%s5561 + $0x234] sm:$0xf]
  %v5704 = vld [vmem:[%s5561 + $0x238] sm:$0xf]
  %v5705 = vld [vmem:[%s5561 + $0x23c] sm:$0xf]
  %v5706 = vld [vmem:[%s5561 + $0x240] sm:$0xf]
  %v5707 = vld [vmem:[%s5561 + $0x244] sm:$0xf]
  %v5708 = vld [vmem:[%s5561 + $0x248] sm:$0xf]
  %v5709 = vld [vmem:[%s5561 + $0x24c] sm:$0xf]
  %v5710 = vld [vmem:[%s5561 + $0x250] sm:$0xf]
  %v5711 = vld [vmem:[%s5561 + $0x254] sm:$0xf]
  %v5712 = vld [vmem:[%s5561 + $0x258] sm:$0xf]
  %v5713 = vld [vmem:[%s5561 + $0x25c] sm:$0xf]
  %v5714 = vld [vmem:[%s5561 + $0x260] sm:$0xf]
  %v5715 = vld [vmem:[%s5561 + $0x264] sm:$0xf]
  %v5716 = vld [vmem:[%s5561 + $0x268] sm:$0xf]
  %v5717 = vld [vmem:[%s5561 + $0x26c] sm:$0xf]
  %v5718 = vld [vmem:[%s5561 + $0x270] sm:$0xf]
  %v5719 = vld [vmem:[%s5561 + $0x274] sm:$0xf]
  %v5720 = vld [vmem:[%s5561 + $0x278] sm:$0xf]
  %v5721 = vld [vmem:[%s5561 + $0x27c] sm:$0xf]
  %v5882 = vunpack.c.l.b16 %v5562
  %v5883 = vunpack.c.l.b16 %v5563
  %v5884 = vunpack.c.l.b16 %v5564
  %v5885 = vunpack.c.l.b16 %v5565
  %v5886 = vunpack.c.l.b16 %v5566
  %v5887 = vunpack.c.l.b16 %v5567
  %v5888 = vunpack.c.l.b16 %v5568
  %v5889 = vunpack.c.l.b16 %v5569
  %v5890 = vunpack.c.l.b16 %v5570
  %v5891 = vunpack.c.l.b16 %v5571
  %v5892 = vunpack.c.l.b16 %v5572
  %v5893 = vunpack.c.l.b16 %v5573
  %v5894 = vunpack.c.l.b16 %v5574
  %v5895 = vunpack.c.l.b16 %v5575
  %v5896 = vunpack.c.l.b16 %v5576
  %v5897 = vunpack.c.l.b16 %v5577
  %v5898 = vunpack.c.l.b16 %v5578
  %v5899 = vunpack.c.l.b16 %v5579
  %v5900 = vunpack.c.l.b16 %v5580
  %v5901 = vunpack.c.l.b16 %v5581
  %v5902 = vunpack.c.l.b16 %v5582
  %v5903 = vunpack.c.l.b16 %v5583
  %v5904 = vunpack.c.l.b16 %v5584
  %v5905 = vunpack.c.l.b16 %v5585
  %v5906 = vunpack.c.l.b16 %v5586
  %v5907 = vunpack.c.l.b16 %v5587
  %v5908 = vunpack.c.l.b16 %v5588
  %v5909 = vunpack.c.l.b16 %v5589
  %v5910 = vunpack.c.l.b16 %v5590
  %v5911 = vunpack.c.l.b16 %v5591
  %v5912 = vunpack.c.l.b16 %v5592
  %v5913 = vunpack.c.l.b16 %v5593
  %v5914 = vunpack.c.l.b16 %v5594
  %v5915 = vunpack.c.l.b16 %v5595
  %v5916 = vunpack.c.l.b16 %v5596
  %v5917 = vunpack.c.l.b16 %v5597
  %v5918 = vunpack.c.l.b16 %v5598
  %v5919 = vunpack.c.l.b16 %v5599
  %v5920 = vunpack.c.l.b16 %v5600
  %v5921 = vunpack.c.l.b16 %v5601
  %v5922 = vunpack.c.l.b16 %v5602
  %v5923 = vunpack.c.l.b16 %v5603
  %v5924 = vunpack.c.l.b16 %v5604
  %v5925 = vunpack.c.l.b16 %v5605
  %v5926 = vunpack.c.l.b16 %v5606
  %v5927 = vunpack.c.l.b16 %v5607
  %v5928 = vunpack.c.l.b16 %v5608
  %v5929 = vunpack.c.l.b16 %v5609
  %v5930 = vunpack.c.l.b16 %v5610
  %v5931 = vunpack.c.l.b16 %v5611
  %v5932 = vunpack.c.l.b16 %v5612
  %v5933 = vunpack.c.l.b16 %v5613
  %v5934 = vunpack.c.l.b16 %v5614
  %v5935 = vunpack.c.l.b16 %v5615
  %v5936 = vunpack.c.l.b16 %v5616
  %v5937 = vunpack.c.l.b16 %v5617
  %v5938 = vunpack.c.l.b16 %v5618
  %v5939 = vunpack.c.l.b16 %v5619
  %v5940 = vunpack.c.l.b16 %v5620
  %v5941 = vunpack.c.l.b16 %v5621
  %v5942 = vunpack.c.l.b16 %v5622
  %v5943 = vunpack.c.l.b16 %v5623
  %v5944 = vunpack.c.l.b16 %v5624
  %v5945 = vunpack.c.l.b16 %v5625
  %v5946 = vunpack.c.l.b16 %v5626
  %v5947 = vunpack.c.l.b16 %v5627
  %v5948 = vunpack.c.l.b16 %v5628
  %v5949 = vunpack.c.l.b16 %v5629
  %v5950 = vunpack.c.l.b16 %v5630
  %v5951 = vunpack.c.l.b16 %v5631
  %v5952 = vunpack.c.l.b16 %v5632
  %v5953 = vunpack.c.l.b16 %v5633
  %v5954 = vunpack.c.l.b16 %v5634
  %v5955 = vunpack.c.l.b16 %v5635
  %v5956 = vunpack.c.l.b16 %v5636
  %v5957 = vunpack.c.l.b16 %v5637
  %v5958 = vunpack.c.l.b16 %v5638
  %v5959 = vunpack.c.l.b16 %v5639
  %v5960 = vunpack.c.l.b16 %v5640
  %v5961 = vunpack.c.l.b16 %v5641
  %v5962 = vunpack.c.l.b16 %v5642
  %v5963 = vunpack.c.l.b16 %v5643
  %v5964 = vunpack.c.l.b16 %v5644
  %v5965 = vunpack.c.l.b16 %v5645
  %v5966 = vunpack.c.l.b16 %v5646
  %v5967 = vunpack.c.l.b16 %v5647
  %v5968 = vunpack.c.l.b16 %v5648
  %v5969 = vunpack.c.l.b16 %v5649
  %v5970 = vunpack.c.l.b16 %v5650
  %v5971 = vunpack.c.l.b16 %v5651
  %v5972 = vunpack.c.l.b16 %v5652
  %v5973 = vunpack.c.l.b16 %v5653
  %v5974 = vunpack.c.l.b16 %v5654
  %v5975 = vunpack.c.l.b16 %v5655
  %v5976 = vunpack.c.l.b16 %v5656
  %v5977 = vunpack.c.l.b16 %v5657
  %v5978 = vunpack.c.l.b16 %v5658
  %v5979 = vunpack.c.l.b16 %v5659
  %v5980 = vunpack.c.l.b16 %v5660
  %v5981 = vunpack.c.l.b16 %v5661
  %v5982 = vunpack.c.l.b16 %v5662
  %v5983 = vunpack.c.l.b16 %v5663
  %v5984 = vunpack.c.l.b16 %v5664
  %v5985 = vunpack.c.l.b16 %v5665
  %v5986 = vunpack.c.l.b16 %v5666
  %v5987 = vunpack.c.l.b16 %v5667
  %v5988 = vunpack.c.l.b16 %v5668
  %v5989 = vunpack.c.l.b16 %v5669
  %v5990 = vunpack.c.l.b16 %v5670
  %v5991 = vunpack.c.l.b16 %v5671
  %v5992 = vunpack.c.l.b16 %v5672
  %v5993 = vunpack.c.l.b16 %v5673
  %v5994 = vunpack.c.l.b16 %v5674
  %v5995 = vunpack.c.l.b16 %v5675
  %v5996 = vunpack.c.l.b16 %v5676
  %v5997 = vunpack.c.l.b16 %v5677
  %v5998 = vunpack.c.l.b16 %v5678
  %v5999 = vunpack.c.l.b16 %v5679
  %v6000 = vunpack.c.l.b16 %v5680
  %v6001 = vunpack.c.l.b16 %v5681
  %v6002 = vunpack.c.l.b16 %v5682
  %v6003 = vunpack.c.l.b16 %v5683
  %v6004 = vunpack.c.l.b16 %v5684
  %v6005 = vunpack.c.l.b16 %v5685
  %v6006 = vunpack.c.l.b16 %v5686
  %v6007 = vunpack.c.l.b16 %v5687
  %v6008 = vunpack.c.l.b16 %v5688
  %v6009 = vunpack.c.l.b16 %v5689
  %v6010 = vunpack.c.l.b16 %v5690
  %v6011 = vunpack.c.l.b16 %v5691
  %v6012 = vunpack.c.l.b16 %v5692
  %v6013 = vunpack.c.l.b16 %v5693
  %v6014 = vunpack.c.l.b16 %v5694
  %v6015 = vunpack.c.l.b16 %v5695
  %v6016 = vunpack.c.l.b16 %v5696
  %v6017 = vunpack.c.l.b16 %v5697
  %v6018 = vunpack.c.l.b16 %v5698
  %v6019 = vunpack.c.l.b16 %v5699
  %v6020 = vunpack.c.l.b16 %v5700
  %v6021 = vunpack.c.l.b16 %v5701
  %v6022 = vunpack.c.l.b16 %v5702
  %v6023 = vunpack.c.l.b16 %v5703
  %v6024 = vunpack.c.l.b16 %v5704
  %v6025 = vunpack.c.l.b16 %v5705
  %v6026 = vunpack.c.l.b16 %v5706
  %v6027 = vunpack.c.l.b16 %v5707
  %v6028 = vunpack.c.l.b16 %v5708
  %v6029 = vunpack.c.l.b16 %v5709
  %v6030 = vunpack.c.l.b16 %v5710
  %v6031 = vunpack.c.l.b16 %v5711
  %v6032 = vunpack.c.l.b16 %v5712
  %v6033 = vunpack.c.l.b16 %v5713
  %v6034 = vunpack.c.l.b16 %v5714
  %v6035 = vunpack.c.l.b16 %v5715
  %v6036 = vunpack.c.l.b16 %v5716
  %v6037 = vunpack.c.l.b16 %v5717
  %v6038 = vunpack.c.l.b16 %v5718
  %v6039 = vunpack.c.l.b16 %v5719
  %v6040 = vunpack.c.l.b16 %v5720
  %v6041 = vunpack.c.l.b16 %v5721
  %v6042 = vpack.c.b16 %v5883, %v5882
  %v6043 = vpack.c.b16 %v5885, %v5884
  %v6044 = vpack.c.b16 %v5887, %v5886
  %v6045 = vpack.c.b16 %v5889, %v5888
  %v6046 = vpack.c.b16 %v5891, %v5890
  %v6047 = vpack.c.b16 %v5893, %v5892
  %v6048 = vpack.c.b16 %v5895, %v5894
  %v6049 = vpack.c.b16 %v5897, %v5896
  %v6050 = vpack.c.b16 %v5899, %v5898
  %v6051 = vpack.c.b16 %v5901, %v5900
  %v6052 = vpack.c.b16 %v5903, %v5902
  %v6053 = vpack.c.b16 %v5905, %v5904
  %v6054 = vpack.c.b16 %v5907, %v5906
  %v6055 = vpack.c.b16 %v5909, %v5908
  %v6056 = vpack.c.b16 %v5911, %v5910
  %v6057 = vpack.c.b16 %v5913, %v5912
  %v6058 = vpack.c.b16 %v5915, %v5914
  %v6059 = vpack.c.b16 %v5917, %v5916
  %v6060 = vpack.c.b16 %v5919, %v5918
  %v6061 = vpack.c.b16 %v5921, %v5920
  %v6062 = vpack.c.b16 %v5923, %v5922
  %v6063 = vpack.c.b16 %v5925, %v5924
  %v6064 = vpack.c.b16 %v5927, %v5926
  %v6065 = vpack.c.b16 %v5929, %v5928
  %v6066 = vpack.c.b16 %v5931, %v5930
  %v6067 = vpack.c.b16 %v5933, %v5932
  %v6068 = vpack.c.b16 %v5935, %v5934
  %v6069 = vpack.c.b16 %v5937, %v5936
  %v6070 = vpack.c.b16 %v5939, %v5938
  %v6071 = vpack.c.b16 %v5941, %v5940
  %v6072 = vpack.c.b16 %v5943, %v5942
  %v6073 = vpack.c.b16 %v5945, %v5944
  %v6074 = vpack.c.b16 %v5947, %v5946
  %v6075 = vpack.c.b16 %v5949, %v5948
  %v6076 = vpack.c.b16 %v5951, %v5950
  %v6077 = vpack.c.b16 %v5953, %v5952
  %v6078 = vpack.c.b16 %v5955, %v5954
  %v6079 = vpack.c.b16 %v5957, %v5956
  %v6080 = vpack.c.b16 %v5959, %v5958
  %v6081 = vpack.c.b16 %v5961, %v5960
  %v6082 = vpack.c.b16 %v5963, %v5962
  %v6083 = vpack.c.b16 %v5965, %v5964
  %v6084 = vpack.c.b16 %v5967, %v5966
  %v6085 = vpack.c.b16 %v5969, %v5968
  %v6086 = vpack.c.b16 %v5971, %v5970
  %v6087 = vpack.c.b16 %v5973, %v5972
  %v6088 = vpack.c.b16 %v5975, %v5974
  %v6089 = vpack.c.b16 %v5977, %v5976
  %v6090 = vpack.c.b16 %v5979, %v5978
  %v6091 = vpack.c.b16 %v5981, %v5980
  %v6092 = vpack.c.b16 %v5983, %v5982
  %v6093 = vpack.c.b16 %v5985, %v5984
  %v6094 = vpack.c.b16 %v5987, %v5986
  %v6095 = vpack.c.b16 %v5989, %v5988
  %v6096 = vpack.c.b16 %v5991, %v5990
  %v6097 = vpack.c.b16 %v5993, %v5992
  %v6098 = vpack.c.b16 %v5995, %v5994
  %v6099 = vpack.c.b16 %v5997, %v5996
  %v6100 = vpack.c.b16 %v5999, %v5998
  %v6101 = vpack.c.b16 %v6001, %v6000
  %v6102 = vpack.c.b16 %v6003, %v6002
  %v6103 = vpack.c.b16 %v6005, %v6004
  %v6104 = vpack.c.b16 %v6007, %v6006
  %v6105 = vpack.c.b16 %v6009, %v6008
  %v6106 = vpack.c.b16 %v6011, %v6010
  %v6107 = vpack.c.b16 %v6013, %v6012
  %v6108 = vpack.c.b16 %v6015, %v6014
  %v6109 = vpack.c.b16 %v6017, %v6016
  %v6110 = vpack.c.b16 %v6019, %v6018
  %v6111 = vpack.c.b16 %v6021, %v6020
  %v6112 = vpack.c.b16 %v6023, %v6022
  %v6113 = vpack.c.b16 %v6025, %v6024
  %v6114 = vpack.c.b16 %v6027, %v6026
  %v6115 = vpack.c.b16 %v6029, %v6028
  %v6116 = vpack.c.b16 %v6031, %v6030
  %v6117 = vpack.c.b16 %v6033, %v6032
  %v6118 = vpack.c.b16 %v6035, %v6034
  %v6119 = vpack.c.b16 %v6037, %v6036
  %v6120 = vpack.c.b16 %v6039, %v6038
  %v6121 = vpack.c.b16 %v6041, %v6040
  %6202 = vmatprep.subr.bf16.mxu0 0
  %6203 = vmatpush1.bf16.msra.mxu0 %v6042
  %6204 = vmatprep.subr.bf16.mxu0 0
  %6205 = vmatpush1.bf16.msra.mxu0 %v6043
  %6206 = vmatprep.subr.bf16.mxu0 0
  %6207 = vmatpush1.bf16.msra.mxu0 %v6044
  %6208 = vmatprep.subr.bf16.mxu0 0
  %6209 = vmatpush1.bf16.msra.mxu0 %v6045
  %6210 = vmatprep.subr.bf16.mxu0 0
  %6211 = vmatpush1.bf16.msra.mxu0 %v6046
  %6212 = vmatprep.subr.bf16.mxu0 0
  %6213 = vmatpush1.bf16.msra.mxu0 %v6047
  %6214 = vmatprep.subr.bf16.mxu0 0
  %6215 = vmatpush1.bf16.msra.mxu0 %v6048
  %6216 = vmatprep.subr.bf16.mxu0 0
  %6217 = vmatpush1.bf16.msra.mxu0 %v6049
  %6218 = vmatprep.subr.bf16.mxu0 0
  %6219 = vmatpush1.bf16.msra.mxu0 %v6050
  %6220 = vmatprep.subr.bf16.mxu0 0
  %6221 = vmatpush1.bf16.msra.mxu0 %v6051
  %6222 = vmatprep.subr.bf16.mxu0 0
  %6223 = vmatpush1.bf16.msra.mxu0 %v6052
  %6224 = vmatprep.subr.bf16.mxu0 0
  %6225 = vmatpush1.bf16.msra.mxu0 %v6053
  %6226 = vmatprep.subr.bf16.mxu0 0
  %6227 = vmatpush1.bf16.msra.mxu0 %v6054
  %6228 = vmatprep.subr.bf16.mxu0 0
  %6229 = vmatpush1.bf16.msra.mxu0 %v6055
  %6230 = vmatprep.subr.bf16.mxu0 0
  %6231 = vmatpush1.bf16.msra.mxu0 %v6056
  %6232 = vmatprep.subr.bf16.mxu0 0
  %6233 = vmatpush1.bf16.msra.mxu0 %v6057
  %6234 = vmatprep.mubr.bf16.mxu0 %v5234
  %6235 = vmatmul.mubr.bf16.gmra.mrb[0].mxu0 %v5217
  %v6236 = vpop.f32.mrb[0].mxu0
  %v6237 = vadd.f32 0.0, %v6236
  %v6238 = vpop.f32.mrb[0].mxu0
  %v6239 = vpop.f32.mrb[0].mxu0
  %v6240 = vadd.f32 0.0, %v6239
  %v6241 = vpop.f32.mrb[0].mxu0
  %6242 = vmatprep.mubr.bf16.mxu0 %v5414
  %6243 = vmatmul.mubr.bf16.gmra.mrb[0].mxu0 %v5397
  %v6244 = vpop.f32.mrb[0].mxu0
  %v6245 = vadd.f32 0.0, %v6244
  %v6246 = vpop.f32.mrb[0].mxu0
  %v6247 = vpop.f32.mrb[0].mxu0
  %v6248 = vadd.f32 0.0, %v6247
  %v6249 = vpop.f32.mrb[0].mxu0
  %6250 = vdwg.mxu0
  %6251 = vmatprep.subr.bf16.mxu0 0
  %6252 = vmatpush1.bf16.msra.mxu0 %v6058
  %6253 = vmatprep.subr.bf16.mxu0 0
  %6254 = vmatpush1.bf16.msra.mxu0 %v6059
  %6255 = vmatprep.subr.bf16.mxu0 0
  %6256 = vmatpush1.bf16.msra.mxu0 %v6060
  %6257 = vmatprep.subr.bf16.mxu0 0
  %6258 = vmatpush1.bf16.msra.mxu0 %v6061
  %6259 = vmatprep.subr.bf16.mxu0 0
  %6260 = vmatpush1.bf16.msra.mxu0 %v6062
  %6261 = vmatprep.subr.bf16.mxu0 0
  %6262 = vmatpush1.bf16.msra.mxu0 %v6063
  %6263 = vmatprep.subr.bf16.mxu0 0
  %6264 = vmatpush1.bf16.msra.mxu0 %v6064
  %6265 = vmatprep.subr.bf16.mxu0 0
  %6266 = vmatpush1.bf16.msra.mxu0 %v6065
  %6267 = vmatprep.subr.bf16.mxu0 0
  %6268 = vmatpush1.bf16.msra.mxu0 %v6066
  %6269 = vmatprep.subr.bf16.mxu0 0
  %6270 = vmatpush1.bf16.msra.mxu0 %v6067
  %6271 = vmatprep.subr.bf16.mxu0 0
  %6272 = vmatpush1.bf16.msra.mxu0 %v6068
  %6273 = vmatprep.subr.bf16.mxu0 0
  %6274 = vmatpush1.bf16.msra.mxu0 %v6069
  %6275 = vmatprep.subr.bf16.mxu0 0
  %6276 = vmatpush1.bf16.msra.mxu0 %v6070
  %6277 = vmatprep.subr.bf16.mxu0 0
  %6278 = vmatpush1.bf16.msra.mxu0 %v6071
  %6279 = vmatprep.subr.bf16.mxu0 0
  %6280 = vmatpush1.bf16.msra.mxu0 %v6072
  %6281 = vmatprep.subr.bf16.mxu0 0
  %6282 = vmatpush1.bf16.msra.mxu0 %v6073
  %6283 = vmatprep.mubr.bf16.mxu0 %v5268
  %6284 = vmatmul.mubr.bf16.gmra.mrb[0].mxu0 %v5251
  %v6285 = vpop.f32.mrb[0].mxu0
  %v6286 = vadd.f32 %v6237, %v6285
  %v6287 = vpop.f32.mrb[0].mxu0
  %v6288 = vpop.f32.mrb[0].mxu0
  %v6289 = vadd.f32 %v6240, %v6288
  %v6290 = vpop.f32.mrb[0].mxu0
  %6291 = vmatprep.mubr.bf16.mxu0 %v5448
  %6292 = vmatmul.mubr.bf16.gmra.mrb[0].mxu0 %v5431
  %v6293 = vpop.f32.mrb[0].mxu0
  %v6294 = vadd.f32 %v6245, %v6293
  %v6295 = vpop.f32.mrb[0].mxu0
  %v6296 = vpop.f32.mrb[0].mxu0
  %v6297 = vadd.f32 %v6248, %v6296
  %v6298 = vpop.f32.mrb[0].mxu0
  %6299 = vdwg.mxu0
  %6300 = vmatprep.subr.bf16.mxu0 0
  %6301 = vmatpush1.bf16.msra.mxu0 %v6074
  %6302 = vmatprep.subr.bf16.mxu0 0
  %6303 = vmatpush1.bf16.msra.mxu0 %v6075
  %6304 = vmatprep.subr.bf16.mxu0 0
  %6305 = vmatpush1.bf16.msra.mxu0 %v6076
  %6306 = vmatprep.subr.bf16.mxu0 0
  %6307 = vmatpush1.bf16.msra.mxu0 %v6077
  %6308 = vmatprep.subr.bf16.mxu0 0
  %6309 = vmatpush1.bf16.msra.mxu0 %v6078
  %6310 = vmatprep.subr.bf16.mxu0 0
  %6311 = vmatpush1.bf16.msra.mxu0 %v6079
  %6312 = vmatprep.subr.bf16.mxu0 0
  %6313 = vmatpush1.bf16.msra.mxu0 %v6080
  %6314 = vmatprep.subr.bf16.mxu0 0
  %6315 = vmatpush1.bf16.msra.mxu0 %v6081
  %6316 = vmatprep.subr.bf16.mxu0 0
  %6317 = vmatpush1.bf16.msra.mxu0 %v6082
  %6318 = vmatprep.subr.bf16.mxu0 0
  %6319 = vmatpush1.bf16.msra.mxu0 %v6083
  %6320 = vmatprep.subr.bf16.mxu0 0
  %6321 = vmatpush1.bf16.msra.mxu0 %v6084
  %6322 = vmatprep.subr.bf16.mxu0 0
  %6323 = vmatpush1.bf16.msra.mxu0 %v6085
  %6324 = vmatprep.subr.bf16.mxu0 0
  %6325 = vmatpush1.bf16.msra.mxu0 %v6086
  %6326 = vmatprep.subr.bf16.mxu0 0
  %6327 = vmatpush1.bf16.msra.mxu0 %v6087
  %6328 = vmatprep.subr.bf16.mxu0 0
  %6329 = vmatpush1.bf16.msra.mxu0 %v6088
  %6330 = vmatprep.subr.bf16.mxu0 0
  %6331 = vmatpush1.bf16.msra.mxu0 %v6089
  %6332 = vmatprep.mubr.bf16.mxu0 %v5302
  %6333 = vmatmul.mubr.bf16.gmra.mrb[0].mxu0 %v5285
  %v6334 = vpop.f32.mrb[0].mxu0
  %v6335 = vadd.f32 %v6286, %v6334
  %v6336 = vpop.f32.mrb[0].mxu0
  %v6337 = vpop.f32.mrb[0].mxu0
  %v6338 = vadd.f32 %v6289, %v6337
  %v6339 = vpop.f32.mrb[0].mxu0
  %6340 = vmatprep.mubr.bf16.mxu0 %v5482
  %6341 = vmatmul.mubr.bf16.gmra.mrb[0].mxu0 %v5465
  %v6342 = vpop.f32.mrb[0].mxu0
  %v6343 = vadd.f32 %v6294, %v6342
  %v6344 = vpop.f32.mrb[0].mxu0
  %v6345 = vpop.f32.mrb[0].mxu0
  %v6346 = vadd.f32 %v6297, %v6345
  %v6347 = vpop.f32.mrb[0].mxu0
  %6348 = vdwg.mxu0
  %6349 = vmatprep.subr.bf16.mxu0 0
  %6350 = vmatpush1.bf16.msra.mxu0 %v6090
  %6351 = vmatprep.subr.bf16.mxu0 0
  %6352 = vmatpush1.bf16.msra.mxu0 %v6091
  %6353 = vmatprep.subr.bf16.mxu0 0
  %6354 = vmatpush1.bf16.msra.mxu0 %v6092
  %6355 = vmatprep.subr.bf16.mxu0 0
  %6356 = vmatpush1.bf16.msra.mxu0 %v6093
  %6357 = vmatprep.subr.bf16.mxu0 0
  %6358 = vmatpush1.bf16.msra.mxu0 %v6094
  %6359 = vmatprep.subr.bf16.mxu0 0
  %6360 = vmatpush1.bf16.msra.mxu0 %v6095
  %6361 = vmatprep.subr.bf16.mxu0 0
  %6362 = vmatpush1.bf16.msra.mxu0 %v6096
  %6363 = vmatprep.subr.bf16.mxu0 0
  %6364 = vmatpush1.bf16.msra.mxu0 %v6097
  %6365 = vmatprep.subr.bf16.mxu0 0
  %6366 = vmatpush1.bf16.msra.mxu0 %v6098
  %6367 = vmatprep.subr.bf16.mxu0 0
  %6368 = vmatpush1.bf16.msra.mxu0 %v6099
  %6369 = vmatprep.subr.bf16.mxu0 0
  %6370 = vmatpush1.bf16.msra.mxu0 %v6100
  %6371 = vmatprep.subr.bf16.mxu0 0
  %6372 = vmatpush1.bf16.msra.mxu0 %v6101
  %6373 = vmatprep.subr.bf16.mxu0 0
  %6374 = vmatpush1.bf16.msra.mxu0 %v6102
  %6375 = vmatprep.subr.bf16.mxu0 0
  %6376 = vmatpush1.bf16.msra.mxu0 %v6103
  %6377 = vmatprep.subr.bf16.mxu0 0
  %6378 = vmatpush1.bf16.msra.mxu0 %v6104
  %6379 = vmatprep.subr.bf16.mxu0 0
  %6380 = vmatpush1.bf16.msra.mxu0 %v6105
  %6381 = vmatprep.mubr.bf16.mxu0 %v5336
  %6382 = vmatmul.mubr.bf16.gmra.mrb[0].mxu0 %v5319
  %v6383 = vpop.f32.mrb[0].mxu0
  %v6384 = vadd.f32 %v6335, %v6383
  %v6385 = vpop.f32.mrb[0].mxu0
  %v6386 = vpop.f32.mrb[0].mxu0
  %v6387 = vadd.f32 %v6338, %v6386
  %v6388 = vpop.f32.mrb[0].mxu0
  %6389 = vmatprep.mubr.bf16.mxu0 %v5516
  %6390 = vmatmul.mubr.bf16.gmra.mrb[0].mxu0 %v5499
  %v6391 = vpop.f32.mrb[0].mxu0
  %v6392 = vadd.f32 %v6343, %v6391
  %v6393 = vpop.f32.mrb[0].mxu0
  %v6394 = vpop.f32.mrb[0].mxu0
  %v6395 = vadd.f32 %v6346, %v6394
  %v6396 = vpop.f32.mrb[0].mxu0
  %6397 = vdwg.mxu0
  %6398 = vmatprep.subr.bf16.mxu0 0
  %6399 = vmatpush1.bf16.msra.mxu0 %v6106
  %6400 = vmatprep.subr.bf16.mxu0 0
  %6401 = vmatpush1.bf16.msra.mxu0 %v6107
  %6402 = vmatprep.subr.bf16.mxu0 0
  %6403 = vmatpush1.bf16.msra.mxu0 %v6108
  %6404 = vmatprep.subr.bf16.mxu0 0
  %6405 = vmatpush1.bf16.msra.mxu0 %v6109
  %6406 = vmatprep.subr.bf16.mxu0 0
  %6407 = vmatpush1.bf16.msra.mxu0 %v6110
  %6408 = vmatprep.subr.bf16.mxu0 0
  %6409 = vmatpush1.bf16.msra.mxu0 %v6111
  %6410 = vmatprep.subr.bf16.mxu0 0
  %6411 = vmatpush1.bf16.msra.mxu0 %v6112
  %6412 = vmatprep.subr.bf16.mxu0 0
  %6413 = vmatpush1.bf16.msra.mxu0 %v6113
  %6414 = vmatprep.subr.bf16.mxu0 0
  %6415 = vmatpush1.bf16.msra.mxu0 %v6114
  %6416 = vmatprep.subr.bf16.mxu0 0
  %6417 = vmatpush1.bf16.msra.mxu0 %v6115
  %6418 = vmatprep.subr.bf16.mxu0 0
  %6419 = vmatpush1.bf16.msra.mxu0 %v6116
  %6420 = vmatprep.subr.bf16.mxu0 0
  %6421 = vmatpush1.bf16.msra.mxu0 %v6117
  %6422 = vmatprep.subr.bf16.mxu0 0
  %6423 = vmatpush1.bf16.msra.mxu0 %v6118
  %6424 = vmatprep.subr.bf16.mxu0 0
  %6425 = vmatpush1.bf16.msra.mxu0 %v6119
  %6426 = vmatprep.subr.bf16.mxu0 0
  %6427 = vmatpush1.bf16.msra.mxu0 %v6120
  %6428 = vmatprep.subr.bf16.mxu0 0
  %6429 = vmatpush1.bf16.msra.mxu0 %v6121
  %6430 = vmatprep.mubr.bf16.mxu0 %v5370
  %6431 = vmatmul.mubr.bf16.gmra.mrb[0].mxu0 %v5353
  %v6432 = vpop.f32.mrb[0].mxu0
  %v6433 = vadd.f32 %v6384, %v6432
  %v6434 = vpop.f32.mrb[0].mxu0
  %v6435 = vpop.f32.mrb[0].mxu0
  %v6436 = vadd.f32 %v6387, %v6435
  %v6437 = vpop.f32.mrb[0].mxu0
  %6438 = vmatprep.mubr.bf16.mxu0 %v5550
  %6439 = vmatmul.mubr.bf16.gmra.mrb[0].mxu0 %v5533
  %v6440 = vpop.f32.mrb[0].mxu0
  %v6441 = vadd.f32 %v6392, %v6440
  %v6442 = vpop.f32.mrb[0].mxu0
  %v6443 = vpop.f32.mrb[0].mxu0
  %v6444 = vadd.f32 %v6395, %v6443
  %v6445 = vpop.f32.mrb[0].mxu0
  %6446 = vdwg.mxu0
  %v6607 = vunpack.c.l.b16 %v5020
  %v6608 = vunpack.c.l.b16 %v5021
  %v6609 = vunpack.c.l.b16 %v5022
  %v6610 = vunpack.c.l.b16 %v5023
  %v6611 = vunpack.c.l.b16 %v5024
  %v6612 = vunpack.c.l.b16 %v5025
  %v6613 = vunpack.c.l.b16 %v5026
  %v6614 = vunpack.c.l.b16 %v5027
  %v6615 = vunpack.c.l.b16 %v5028
  %v6616 = vunpack.c.l.b16 %v5029
  %v6617 = vunpack.c.l.b16 %v5030
  %v6618 = vunpack.c.l.b16 %v5031
  %v6619 = vunpack.c.l.b16 %v5032
  %v6620 = vunpack.c.l.b16 %v5033
  %v6621 = vunpack.c.l.b16 %v5034
  %v6622 = vunpack.c.l.b16 %v5035
  %v6623 = vunpack.c.l.b16 %v5036
  %v6624 = vunpack.c.l.b16 %v5037
  %v6625 = vunpack.c.l.b16 %v5038
  %v6626 = vunpack.c.l.b16 %v5039
  %v6627 = vunpack.c.l.b16 %v5040
  %v6628 = vunpack.c.l.b16 %v5041
  %v6629 = vunpack.c.l.b16 %v5042
  %v6630 = vunpack.c.l.b16 %v5043
  %v6631 = vunpack.c.l.b16 %v5044
  %v6632 = vunpack.c.l.b16 %v5045
  %v6633 = vunpack.c.l.b16 %v5046
  %v6634 = vunpack.c.l.b16 %v5047
  %v6635 = vunpack.c.l.b16 %v5048
  %v6636 = vunpack.c.l.b16 %v5049
  %v6637 = vunpack.c.l.b16 %v5050
  %v6638 = vunpack.c.l.b16 %v5051
  %v6639 = vunpack.c.l.b16 %v5052
  %v6640 = vunpack.c.l.b16 %v5053
  %v6641 = vunpack.c.l.b16 %v5054
  %v6642 = vunpack.c.l.b16 %v5055
  %v6643 = vunpack.c.l.b16 %v5056
  %v6644 = vunpack.c.l.b16 %v5057
  %v6645 = vunpack.c.l.b16 %v5058
  %v6646 = vunpack.c.l.b16 %v5059
  %v6647 = vunpack.c.l.b16 %v5060
  %v6648 = vunpack.c.l.b16 %v5061
  %v6649 = vunpack.c.l.b16 %v5062
  %v6650 = vunpack.c.l.b16 %v5063
  %v6651 = vunpack.c.l.b16 %v5064
  %v6652 = vunpack.c.l.b16 %v5065
  %v6653 = vunpack.c.l.b16 %v5066
  %v6654 = vunpack.c.l.b16 %v5067
  %v6655 = vunpack.c.l.b16 %v5068
  %v6656 = vunpack.c.l.b16 %v5069
  %v6657 = vunpack.c.l.b16 %v5070
  %v6658 = vunpack.c.l.b16 %v5071
  %v6659 = vunpack.c.l.b16 %v5072
  %v6660 = vunpack.c.l.b16 %v5073
  %v6661 = vunpack.c.l.b16 %v5074
  %v6662 = vunpack.c.l.b16 %v5075
  %v6663 = vunpack.c.l.b16 %v5076
  %v6664 = vunpack.c.l.b16 %v5077
  %v6665 = vunpack.c.l.b16 %v5078
  %v6666 = vunpack.c.l.b16 %v5079
  %v6667 = vunpack.c.l.b16 %v5080
  %v6668 = vunpack.c.l.b16 %v5081
  %v6669 = vunpack.c.l.b16 %v5082
  %v6670 = vunpack.c.l.b16 %v5083
  %v6671 = vunpack.c.l.b16 %v5084
  %v6672 = vunpack.c.l.b16 %v5085
  %v6673 = vunpack.c.l.b16 %v5086
  %v6674 = vunpack.c.l.b16 %v5087
  %v6675 = vunpack.c.l.b16 %v5088
  %v6676 = vunpack.c.l.b16 %v5089
  %v6677 = vunpack.c.l.b16 %v5090
  %v6678 = vunpack.c.l.b16 %v5091
  %v6679 = vunpack.c.l.b16 %v5092
  %v6680 = vunpack.c.l.b16 %v5093
  %v6681 = vunpack.c.l.b16 %v5094
  %v6682 = vunpack.c.l.b16 %v5095
  %v6683 = vunpack.c.l.b16 %v5096
  %v6684 = vunpack.c.l.b16 %v5097
  %v6685 = vunpack.c.l.b16 %v5098
  %v6686 = vunpack.c.l.b16 %v5099
  %v6687 = vunpack.c.l.b16 %v5100
  %v6688 = vunpack.c.l.b16 %v5101
  %v6689 = vunpack.c.l.b16 %v5102
  %v6690 = vunpack.c.l.b16 %v5103
  %v6691 = vunpack.c.l.b16 %v5104
  %v6692 = vunpack.c.l.b16 %v5105
  %v6693 = vunpack.c.l.b16 %v5106
  %v6694 = vunpack.c.l.b16 %v5107
  %v6695 = vunpack.c.l.b16 %v5108
  %v6696 = vunpack.c.l.b16 %v5109
  %v6697 = vunpack.c.l.b16 %v5110
  %v6698 = vunpack.c.l.b16 %v5111
  %v6699 = vunpack.c.l.b16 %v5112
  %v6700 = vunpack.c.l.b16 %v5113
  %v6701 = vunpack.c.l.b16 %v5114
  %v6702 = vunpack.c.l.b16 %v5115
  %v6703 = vunpack.c.l.b16 %v5116
  %v6704 = vunpack.c.l.b16 %v5117
  %v6705 = vunpack.c.l.b16 %v5118
  %v6706 = vunpack.c.l.b16 %v5119
  %v6707 = vunpack.c.l.b16 %v5120
  %v6708 = vunpack.c.l.b16 %v5121
  %v6709 = vunpack.c.l.b16 %v5122
  %v6710 = vunpack.c.l.b16 %v5123
  %v6711 = vunpack.c.l.b16 %v5124
  %v6712 = vunpack.c.l.b16 %v5125
  %v6713 = vunpack.c.l.b16 %v5126
  %v6714 = vunpack.c.l.b16 %v5127
  %v6715 = vunpack.c.l.b16 %v5128
  %v6716 = vunpack.c.l.b16 %v5129
  %v6717 = vunpack.c.l.b16 %v5130
  %v6718 = vunpack.c.l.b16 %v5131
  %v6719 = vunpack.c.l.b16 %v5132
  %v6720 = vunpack.c.l.b16 %v5133
  %v6721 = vunpack.c.l.b16 %v5134
  %v6722 = vunpack.c.l.b16 %v5135
  %v6723 = vunpack.c.l.b16 %v5136
  %v6724 = vunpack.c.l.b16 %v5137
  %v6725 = vunpack.c.l.b16 %v5138
  %v6726 = vunpack.c.l.b16 %v5139
  %v6727 = vunpack.c.l.b16 %v5140
  %v6728 = vunpack.c.l.b16 %v5141
  %v6729 = vunpack.c.l.b16 %v5142
  %v6730 = vunpack.c.l.b16 %v5143
  %v6731 = vunpack.c.l.b16 %v5144
  %v6732 = vunpack.c.l.b16 %v5145
  %v6733 = vunpack.c.l.b16 %v5146
  %v6734 = vunpack.c.l.b16 %v5147
  %v6735 = vunpack.c.l.b16 %v5148
  %v6736 = vunpack.c.l.b16 %v5149
  %v6737 = vunpack.c.l.b16 %v5150
  %v6738 = vunpack.c.l.b16 %v5151
  %v6739 = vunpack.c.l.b16 %v5152
  %v6740 = vunpack.c.l.b16 %v5153
  %v6741 = vunpack.c.l.b16 %v5154
  %v6742 = vunpack.c.l.b16 %v5155
  %v6743 = vunpack.c.l.b16 %v5156
  %v6744 = vunpack.c.l.b16 %v5157
  %v6745 = vunpack.c.l.b16 %v5158
  %v6746 = vunpack.c.l.b16 %v5159
  %v6747 = vunpack.c.l.b16 %v5160
  %v6748 = vunpack.c.l.b16 %v5161
  %v6749 = vunpack.c.l.b16 %v5162
  %v6750 = vunpack.c.l.b16 %v5163
  %v6751 = vunpack.c.l.b16 %v5164
  %v6752 = vunpack.c.l.b16 %v5165
  %v6753 = vunpack.c.l.b16 %v5166
  %v6754 = vunpack.c.l.b16 %v5167
  %v6755 = vunpack.c.l.b16 %v5168
  %v6756 = vunpack.c.l.b16 %v5169
  %v6757 = vunpack.c.l.b16 %v5170
  %v6758 = vunpack.c.l.b16 %v5171
  %v6759 = vunpack.c.l.b16 %v5172
  %v6760 = vunpack.c.l.b16 %v5173
  %v6761 = vunpack.c.l.b16 %v5174
  %v6762 = vunpack.c.l.b16 %v5175
  %v6763 = vunpack.c.l.b16 %v5176
  %v6764 = vunpack.c.l.b16 %v5177
  %v6765 = vunpack.c.l.b16 %v5178
  %v6766 = vunpack.c.l.b16 %v5179
  %v6767 = vpack.c.b16 %v6608, %v6607
  %v6768 = vpack.c.b16 %v6610, %v6609
  %v6769 = vpack.c.b16 %v6612, %v6611
  %v6770 = vpack.c.b16 %v6614, %v6613
  %v6771 = vpack.c.b16 %v6616, %v6615
  %v6772 = vpack.c.b16 %v6618, %v6617
  %v6773 = vpack.c.b16 %v6620, %v6619
  %v6774 = vpack.c.b16 %v6622, %v6621
  %v6775 = vpack.c.b16 %v6624, %v6623
  %v6776 = vpack.c.b16 %v6626, %v6625
  %v6777 = vpack.c.b16 %v6628, %v6627
  %v6778 = vpack.c.b16 %v6630, %v6629
  %v6779 = vpack.c.b16 %v6632, %v6631
  %v6780 = vpack.c.b16 %v6634, %v6633
  %v6781 = vpack.c.b16 %v6636, %v6635
  %v6782 = vpack.c.b16 %v6638, %v6637
  %v6783 = vpack.c.b16 %v6640, %v6639
  %v6784 = vpack.c.b16 %v6642, %v6641
  %v6785 = vpack.c.b16 %v6644, %v6643
  %v6786 = vpack.c.b16 %v6646, %v6645
  %v6787 = vpack.c.b16 %v6648, %v6647
  %v6788 = vpack.c.b16 %v6650, %v6649
  %v6789 = vpack.c.b16 %v6652, %v6651
  %v6790 = vpack.c.b16 %v6654, %v6653
  %v6791 = vpack.c.b16 %v6656, %v6655
  %v6792 = vpack.c.b16 %v6658, %v6657
  %v6793 = vpack.c.b16 %v6660, %v6659
  %v6794 = vpack.c.b16 %v6662, %v6661
  %v6795 = vpack.c.b16 %v6664, %v6663
  %v6796 = vpack.c.b16 %v6666, %v6665
  %v6797 = vpack.c.b16 %v6668, %v6667
  %v6798 = vpack.c.b16 %v6670, %v6669
  %v6799 = vpack.c.b16 %v6672, %v6671
  %v6800 = vpack.c.b16 %v6674, %v6673
  %v6801 = vpack.c.b16 %v6676, %v6675
  %v6802 = vpack.c.b16 %v6678, %v6677
  %v6803 = vpack.c.b16 %v6680, %v6679
  %v6804 = vpack.c.b16 %v6682, %v6681
  %v6805 = vpack.c.b16 %v6684, %v6683
  %v6806 = vpack.c.b16 %v6686, %v6685
  %v6807 = vpack.c.b16 %v6688, %v6687
  %v6808 = vpack.c.b16 %v6690, %v6689
  %v6809 = vpack.c.b16 %v6692, %v6691
  %v6810 = vpack.c.b16 %v6694, %v6693
  %v6811 = vpack.c.b16 %v6696, %v6695
  %v6812 = vpack.c.b16 %v6698, %v6697
  %v6813 = vpack.c.b16 %v6700, %v6699
  %v6814 = vpack.c.b16 %v6702, %v6701
  %v6815 = vpack.c.b16 %v6704, %v6703
  %v6816 = vpack.c.b16 %v6706, %v6705
  %v6817 = vpack.c.b16 %v6708, %v6707
  %v6818 = vpack.c.b16 %v6710, %v6709
  %v6819 = vpack.c.b16 %v6712, %v6711
  %v6820 = vpack.c.b16 %v6714, %v6713
  %v6821 = vpack.c.b16 %v6716, %v6715
  %v6822 = vpack.c.b16 %v6718, %v6717
  %v6823 = vpack.c.b16 %v6720, %v6719
  %v6824 = vpack.c.b16 %v6722, %v6721
  %v6825 = vpack.c.b16 %v6724, %v6723
  %v6826 = vpack.c.b16 %v6726, %v6725
  %v6827 = vpack.c.b16 %v6728, %v6727
  %v6828 = vpack.c.b16 %v6730, %v6729
  %v6829 = vpack.c.b16 %v6732, %v6731
  %v6830 = vpack.c.b16 %v6734, %v6733
  %v6831 = vpack.c.b16 %v6736, %v6735
  %v6832 = vpack.c.b16 %v6738, %v6737
  %v6833 = vpack.c.b16 %v6740, %v6739
  %v6834 = vpack.c.b16 %v6742, %v6741
  %v6835 = vpack.c.b16 %v6744, %v6743
  %v6836 = vpack.c.b16 %v6746, %v6745
  %v6837 = vpack.c.b16 %v6748, %v6747
  %v6838 = vpack.c.b16 %v6750, %v6749
  %v6839 = vpack.c.b16 %v6752, %v6751
  %v6840 = vpack.c.b16 %v6754, %v6753
  %v6841 = vpack.c.b16 %v6756, %v6755
  %v6842 = vpack.c.b16 %v6758, %v6757
  %v6843 = vpack.c.b16 %v6760, %v6759
  %v6844 = vpack.c.b16 %v6762, %v6761
  %v6845 = vpack.c.b16 %v6764, %v6763
  %v6846 = vpack.c.b16 %v6766, %v6765
  %6927 = vmatprep.subr.bf16.mxu0 0
  %6928 = vmatpush1.bf16.msra.mxu0 %v6767
  %6929 = vmatprep.subr.bf16.mxu0 0
  %6930 = vmatpush1.bf16.msra.mxu0 %v6768
  %6931 = vmatprep.subr.bf16.mxu0 0
  %6932 = vmatpush1.bf16.msra.mxu0 %v6769
  %6933 = vmatprep.subr.bf16.mxu0 0
  %6934 = vmatpush1.bf16.msra.mxu0 %v6770
  %6935 = vmatprep.subr.bf16.mxu0 0
  %6936 = vmatpush1.bf16.msra.mxu0 %v6771
  %6937 = vmatprep.subr.bf16.mxu0 0
  %6938 = vmatpush1.bf16.msra.mxu0 %v6772
  %6939 = vmatprep.subr.bf16.mxu0 0
  %6940 = vmatpush1.bf16.msra.mxu0 %v6773
  %6941 = vmatprep.subr.bf16.mxu0 0
  %6942 = vmatpush1.bf16.msra.mxu0 %v6774
  %6943 = vmatprep.subr.bf16.mxu0 0
  %6944 = vmatpush1.bf16.msra.mxu0 %v6775
  %6945 = vmatprep.subr.bf16.mxu0 0
  %6946 = vmatpush1.bf16.msra.mxu0 %v6776
  %6947 = vmatprep.subr.bf16.mxu0 0
  %6948 = vmatpush1.bf16.msra.mxu0 %v6777
  %6949 = vmatprep.subr.bf16.mxu0 0
  %6950 = vmatpush1.bf16.msra.mxu0 %v6778
  %6951 = vmatprep.subr.bf16.mxu0 0
  %6952 = vmatpush1.bf16.msra.mxu0 %v6779
  %6953 = vmatprep.subr.bf16.mxu0 0
  %6954 = vmatpush1.bf16.msra.mxu0 %v6780
  %6955 = vmatprep.subr.bf16.mxu0 0
  %6956 = vmatpush1.bf16.msra.mxu0 %v6781
  %6957 = vmatprep.subr.bf16.mxu0 0
  %6958 = vmatpush1.bf16.msra.mxu0 %v6782
  %6959 = vmatprep.mubr.bf16.mxu0 %v4925
  %6960 = vmatmul.mubr.bf16.gmra.mrb[0].mxu0 %v4922
  %v6961 = vpop.f32.mrb[0].mxu0
  %v6962 = vadd.f32 %v6433, %v6961
  %v6963 = vpop.f32.mrb[0].mxu0
  %v6964 = vpop.f32.mrb[0].mxu0
  %v6965 = vadd.f32 %v6436, %v6964
  %v6966 = vpop.f32.mrb[0].mxu0
  %6967 = vmatprep.mubr.bf16.mxu0 %v4985
  %6968 = vmatmul.mubr.bf16.gmra.mrb[0].mxu0 %v4982
  %v6969 = vpop.f32.mrb[0].mxu0
  %v6970 = vadd.f32 %v6441, %v6969
  %v6971 = vpop.f32.mrb[0].mxu0
  %v6972 = vpop.f32.mrb[0].mxu0
  %v6973 = vadd.f32 %v6444, %v6972
  %v6974 = vpop.f32.mrb[0].mxu0
  %6975 = vdwg.mxu0
  %6976 = vmatprep.subr.bf16.mxu0 0
  %6977 = vmatpush1.bf16.msra.mxu0 %v6783
  %6978 = vmatprep.subr.bf16.mxu0 0
  %6979 = vmatpush1.bf16.msra.mxu0 %v6784
  %6980 = vmatprep.subr.bf16.mxu0 0
  %6981 = vmatpush1.bf16.msra.mxu0 %v6785
  %6982 = vmatprep.subr.bf16.mxu0 0
  %6983 = vmatpush1.bf16.msra.mxu0 %v6786
  %6984 = vmatprep.subr.bf16.mxu0 0
  %6985 = vmatpush1.bf16.msra.mxu0 %v6787
  %6986 = vmatprep.subr.bf16.mxu0 0
  %6987 = vmatpush1.bf16.msra.mxu0 %v6788
  %6988 = vmatprep.subr.bf16.mxu0 0
  %6989 = vmatpush1.bf16.msra.mxu0 %v6789
  %6990 = vmatprep.subr.bf16.mxu0 0
  %6991 = vmatpush1.bf16.msra.mxu0 %v6790
  %6992 = vmatprep.subr.bf16.mxu0 0
  %6993 = vmatpush1.bf16.msra.mxu0 %v6791
  %6994 = vmatprep.subr.bf16.mxu0 0
  %6995 = vmatpush1.bf16.msra.mxu0 %v6792
  %6996 = vmatprep.subr.bf16.mxu0 0
  %6997 = vmatpush1.bf16.msra.mxu0 %v6793
  %6998 = vmatprep.subr.bf16.mxu0 0
  %6999 = vmatpush1.bf16.msra.mxu0 %v6794
  %7000 = vmatprep.subr.bf16.mxu0 0
  %7001 = vmatpush1.bf16.msra.mxu0 %v6795
  %7002 = vmatprep.subr.bf16.mxu0 0
  %7003 = vmatpush1.bf16.msra.mxu0 %v6796
  %7004 = vmatprep.subr.bf16.mxu0 0
  %7005 = vmatpush1.bf16.msra.mxu0 %v6797
  %7006 = vmatprep.subr.bf16.mxu0 0
  %7007 = vmatpush1.bf16.msra.mxu0 %v6798
  %7008 = vmatprep.mubr.bf16.mxu0 %v4931
  %7009 = vmatmul.mubr.bf16.gmra.mrb[0].mxu0 %v4928
  %v7010 = vpop.f32.mrb[0].mxu0
  %v7011 = vadd.f32 %v6962, %v7010
  %v7012 = vpop.f32.mrb[0].mxu0
  %v7013 = vpop.f32.mrb[0].mxu0
  %v7014 = vadd.f32 %v6965, %v7013
  %v7015 = vpop.f32.mrb[0].mxu0
  %7016 = vmatprep.mubr.bf16.mxu0 %v4991
  %7017 = vmatmul.mubr.bf16.gmra.mrb[0].mxu0 %v4988
  %v7018 = vpop.f32.mrb[0].mxu0
  %v7019 = vadd.f32 %v6970, %v7018
  %v7020 = vpop.f32.mrb[0].mxu0
  %v7021 = vpop.f32.mrb[0].mxu0
  %v7022 = vadd.f32 %v6973, %v7021
  %v7023 = vpop.f32.mrb[0].mxu0
  %7024 = vdwg.mxu0
  %7025 = vmatprep.subr.bf16.mxu0 0
  %7026 = vmatpush1.bf16.msra.mxu0 %v6799
  %7027 = vmatprep.subr.bf16.mxu0 0
  %7028 = vmatpush1.bf16.msra.mxu0 %v6800
  %7029 = vmatprep.subr.bf16.mxu0 0
  %7030 = vmatpush1.bf16.msra.mxu0 %v6801
  %7031 = vmatprep.subr.bf16.mxu0 0
  %7032 = vmatpush1.bf16.msra.mxu0 %v6802
  %7033 = vmatprep.subr.bf16.mxu0 0
  %7034 = vmatpush1.bf16.msra.mxu0 %v6803
  %7035 = vmatprep.subr.bf16.mxu0 0
  %7036 = vmatpush1.bf16.msra.mxu0 %v6804
  %7037 = vmatprep.subr.bf16.mxu0 0
  %7038 = vmatpush1.bf16.msra.mxu0 %v6805
  %7039 = vmatprep.subr.bf16.mxu0 0
  %7040 = vmatpush1.bf16.msra.mxu0 %v6806
  %7041 = vmatprep.subr.bf16.mxu0 0
  %7042 = vmatpush1.bf16.msra.mxu0 %v6807
  %7043 = vmatprep.subr.bf16.mxu0 0
  %7044 = vmatpush1.bf16.msra.mxu0 %v6808
  %7045 = vmatprep.subr.bf16.mxu0 0
  %7046 = vmatpush1.bf16.msra.mxu0 %v6809
  %7047 = vmatprep.subr.bf16.mxu0 0
  %7048 = vmatpush1.bf16.msra.mxu0 %v6810
  %7049 = vmatprep.subr.bf16.mxu0 0
  %7050 = vmatpush1.bf16.msra.mxu0 %v6811
  %7051 = vmatprep.subr.bf16.mxu0 0
  %7052 = vmatpush1.bf16.msra.mxu0 %v6812
  %7053 = vmatprep.subr.bf16.mxu0 0
  %7054 = vmatpush1.bf16.msra.mxu0 %v6813
  %7055 = vmatprep.subr.bf16.mxu0 0
  %7056 = vmatpush1.bf16.msra.mxu0 %v6814
  %7057 = vmatprep.mubr.bf16.mxu0 %v4937
  %7058 = vmatmul.mubr.bf16.gmra.mrb[0].mxu0 %v4934
  %v7059 = vpop.f32.mrb[0].mxu0
  %v7060 = vadd.f32 %v7011, %v7059
  %v7061 = vpop.f32.mrb[0].mxu0
  %v7062 = vpop.f32.mrb[0].mxu0
  %v7063 = vadd.f32 %v7014, %v7062
  %v7064 = vpop.f32.mrb[0].mxu0
  %7065 = vmatprep.mubr.bf16.mxu0 %v4997
  %7066 = vmatmul.mubr.bf16.gmra.mrb[0].mxu0 %v4994
  %v7067 = vpop.f32.mrb[0].mxu0
  %v7068 = vadd.f32 %v7019, %v7067
  %v7069 = vpop.f32.mrb[0].mxu0
  %v7070 = vpop.f32.mrb[0].mxu0
  %v7071 = vadd.f32 %v7022, %v7070
  %v7072 = vpop.f32.mrb[0].mxu0
  %7073 = vdwg.mxu0
  %7074 = vmatprep.subr.bf16.mxu0 0
  %7075 = vmatpush1.bf16.msra.mxu0 %v6815
  %7076 = vmatprep.subr.bf16.mxu0 0
  %7077 = vmatpush1.bf16.msra.mxu0 %v6816
  %7078 = vmatprep.subr.bf16.mxu0 0
  %7079 = vmatpush1.bf16.msra.mxu0 %v6817
  %7080 = vmatprep.subr.bf16.mxu0 0
  %7081 = vmatpush1.bf16.msra.mxu0 %v6818
  %7082 = vmatprep.subr.bf16.mxu0 0
  %7083 = vmatpush1.bf16.msra.mxu0 %v6819
  %7084 = vmatprep.subr.bf16.mxu0 0
  %7085 = vmatpush1.bf16.msra.mxu0 %v6820
  %7086 = vmatprep.subr.bf16.mxu0 0
  %7087 = vmatpush1.bf16.msra.mxu0 %v6821
  %7088 = vmatprep.subr.bf16.mxu0 0
  %7089 = vmatpush1.bf16.msra.mxu0 %v6822
  %7090 = vmatprep.subr.bf16.mxu0 0
  %7091 = vmatpush1.bf16.msra.mxu0 %v6823
  %7092 = vmatprep.subr.bf16.mxu0 0
  %7093 = vmatpush1.bf16.msra.mxu0 %v6824
  %7094 = vmatprep.subr.bf16.mxu0 0
  %7095 = vmatpush1.bf16.msra.mxu0 %v6825
  %7096 = vmatprep.subr.bf16.mxu0 0
  %7097 = vmatpush1.bf16.msra.mxu0 %v6826
  %7098 = vmatprep.subr.bf16.mxu0 0
  %7099 = vmatpush1.bf16.msra.mxu0 %v6827
  %7100 = vmatprep.subr.bf16.mxu0 0
  %7101 = vmatpush1.bf16.msra.mxu0 %v6828
  %7102 = vmatprep.subr.bf16.mxu0 0
  %7103 = vmatpush1.bf16.msra.mxu0 %v6829
  %7104 = vmatprep.subr.bf16.mxu0 0
  %7105 = vmatpush1.bf16.msra.mxu0 %v6830
  %7106 = vmatprep.mubr.bf16.mxu0 %v4943
  %7107 = vmatmul.mubr.bf16.gmra.mrb[0].mxu0 %v4940
  %v7108 = vpop.f32.mrb[0].mxu0
  %v7109 = vadd.f32 %v7060, %v7108
  %v7110 = vpop.f32.mrb[0].mxu0
  %v7111 = vpop.f32.mrb[0].mxu0
  %v7112 = vadd.f32 %v7063, %v7111
  %v7113 = vpop.f32.mrb[0].mxu0
  %7114 = vmatprep.mubr.bf16.mxu0 %v5003
  %7115 = vmatmul.mubr.bf16.gmra.mrb[0].mxu0 %v5000
  %v7116 = vpop.f32.mrb[0].mxu0
  %v7117 = vadd.f32 %v7068, %v7116
  %v7118 = vpop.f32.mrb[0].mxu0
  %v7119 = vpop.f32.mrb[0].mxu0
  %v7120 = vadd.f32 %v7071, %v7119
  %v7121 = vpop.f32.mrb[0].mxu0
  %7122 = vdwg.mxu0
  %7123 = vmatprep.subr.bf16.mxu0 0
  %7124 = vmatpush1.bf16.msra.mxu0 %v6831
  %7125 = vmatprep.subr.bf16.mxu0 0
  %7126 = vmatpush1.bf16.msra.mxu0 %v6832
  %7127 = vmatprep.subr.bf16.mxu0 0
  %7128 = vmatpush1.bf16.msra.mxu0 %v6833
  %7129 = vmatprep.subr.bf16.mxu0 0
  %7130 = vmatpush1.bf16.msra.mxu0 %v6834
  %7131 = vmatprep.subr.bf16.mxu0 0
  %7132 = vmatpush1.bf16.msra.mxu0 %v6835
  %7133 = vmatprep.subr.bf16.mxu0 0
  %7134 = vmatpush1.bf16.msra.mxu0 %v6836
  %7135 = vmatprep.subr.bf16.mxu0 0
  %7136 = vmatpush1.bf16.msra.mxu0 %v6837
  %7137 = vmatprep.subr.bf16.mxu0 0
  %7138 = vmatpush1.bf16.msra.mxu0 %v6838
  %7139 = vmatprep.subr.bf16.mxu0 0
  %7140 = vmatpush1.bf16.msra.mxu0 %v6839
  %7141 = vmatprep.subr.bf16.mxu0 0
  %7142 = vmatpush1.bf16.msra.mxu0 %v6840
  %7143 = vmatprep.subr.bf16.mxu0 0
  %7144 = vmatpush1.bf16.msra.mxu0 %v6841
  %7145 = vmatprep.subr.bf16.mxu0 0
  %7146 = vmatpush1.bf16.msra.mxu0 %v6842
  %7147 = vmatprep.subr.bf16.mxu0 0
  %7148 = vmatpush1.bf16.msra.mxu0 %v6843
  %7149 = vmatprep.subr.bf16.mxu0 0
  %7150 = vmatpush1.bf16.msra.mxu0 %v6844
  %7151 = vmatprep.subr.bf16.mxu0 0
  %7152 = vmatpush1.bf16.msra.mxu0 %v6845
  %7153 = vmatprep.subr.bf16.mxu0 0
  %7154 = vmatpush1.bf16.msra.mxu0 %v6846
  %7155 = vmatprep.mubr.bf16.mxu0 %v4949
  %7156 = vmatmul.mubr.bf16.gmra.mrb[0].mxu0 %v4946
  %v7157 = vpop.f32.mrb[0].mxu0
  %v7158 = vadd.f32 %v7109, %v7157
  %v7159 = vpop.f32.mrb[0].mxu0
  %v7160 = vpop.f32.mrb[0].mxu0
  %v7161 = vadd.f32 %v7112, %v7160
  %v7162 = vpop.f32.mrb[0].mxu0
  %7163 = vmatprep.mubr.bf16.mxu0 %v5009
  %7164 = vmatmul.mubr.bf16.gmra.mrb[0].mxu0 %v5006
  %v7165 = vpop.f32.mrb[0].mxu0
  %v7166 = vadd.f32 %v7117, %v7165
  %v7167 = vpop.f32.mrb[0].mxu0
  %v7168 = vpop.f32.mrb[0].mxu0
  %v7169 = vadd.f32 %v7120, %v7168
  %v7170 = vpop.f32.mrb[0].mxu0
  %7171 = vdwg.mxu0
  %v7172 = vld [vmem:[#allocation4] sm:$0xf0]
  %v7173 = vld [vmem:[#allocation4 + $0x8] sm:$0xf0]
  %v7174 = vld [vmem:[#allocation4 + $0x10] sm:$0xf0]
  %v7175 = vld [vmem:[#allocation4 + $0x18] sm:$0xf0]
  %v7176 = vld [vmem:[#allocation4 + $0x20] sm:$0xf0]
  %v7177 = vld [vmem:[#allocation4 + $0x28] sm:$0xf0]
  %v7178 = vld [vmem:[#allocation4 + $0x30] sm:$0xf0]
  %v7179 = vld [vmem:[#allocation4 + $0x38] sm:$0xf0]
  %v7180 = vld [vmem:[#allocation4 + $0x40] sm:$0xf0]
  %v7181 = vld [vmem:[#allocation4 + $0x48] sm:$0xf0]
  %v7182 = vld [vmem:[%s4672] sm:$0xf0]
  %v7183 = vld [vmem:[%s4672 + $0x8] sm:$0xf0]
  %v7184 = vld [vmem:[%s4672 + $0x10] sm:$0xf0]
  %v7185 = vld [vmem:[%s4672 + $0x18] sm:$0xf0]
  %v7186 = vld [vmem:[%s4672 + $0x20] sm:$0xf0]
  %v7187 = vld [vmem:[%s4672 + $0x28] sm:$0xf0]
  %v7188 = vld [vmem:[%s4672 + $0x30] sm:$0xf0]
  %v7189 = vld [vmem:[%s4672 + $0x38] sm:$0xf0]
  %v7190 = vld [vmem:[%s4672 + $0x40] sm:$0xf0]
  %v7191 = vld [vmem:[%s4672 + $0x48] sm:$0xf0]
  %vm7212 = vcmask 1043456
  %v7213 = vrot.slane %v7172, 4
  %v7214 = vrot.slane %v5180, 4
  %v7215 = vsel %vm7212, %v7213, %v7214
  %v7216 = vrot.slane %v7173, 4
  %v7217 = vrot.slane %v5181, 4
  %v7218 = vsel %vm7212, %v7216, %v7217
  %v7219 = vrot.slane %v7174, 4
  %v7220 = vrot.slane %v5182, 4
  %v7221 = vsel %vm7212, %v7219, %v7220
  %v7222 = vrot.slane %v7175, 4
  %v7223 = vrot.slane %v5183, 4
  %v7224 = vsel %vm7212, %v7222, %v7223
  %v7225 = vrot.slane %v7176, 4
  %v7226 = vrot.slane %v5184, 4
  %v7227 = vsel %vm7212, %v7225, %v7226
  %v7228 = vrot.slane %v7177, 4
  %v7229 = vrot.slane %v5185, 4
  %v7230 = vsel %vm7212, %v7228, %v7229
  %v7231 = vrot.slane %v7178, 4
  %v7232 = vrot.slane %v5186, 4
  %v7233 = vsel %vm7212, %v7231, %v7232
  %v7234 = vrot.slane %v7179, 4
  %v7235 = vrot.slane %v5187, 4
  %v7236 = vsel %vm7212, %v7234, %v7235
  %v7237 = vrot.slane %v7180, 4
  %v7238 = vrot.slane %v5188, 4
  %v7239 = vsel %vm7212, %v7237, %v7238
  %v7240 = vrot.slane %v7181, 4
  %v7241 = vrot.slane %v5189, 4
  %v7242 = vsel %vm7212, %v7240, %v7241
  %v7273 = vrot.slane %v7182, 4
  %v7274 = vrot.slane %v5190, 4
  %v7275 = vsel %vm7212, %v7273, %v7274
  %v7276 = vrot.slane %v7183, 4
  %v7277 = vrot.slane %v5191, 4
  %v7278 = vsel %vm7212, %v7276, %v7277
  %v7279 = vrot.slane %v7184, 4
  %v7280 = vrot.slane %v5192, 4
  %v7281 = vsel %vm7212, %v7279, %v7280
  %v7282 = vrot.slane %v7185, 4
  %v7283 = vrot.slane %v5193, 4
  %v7284 = vsel %vm7212, %v7282, %v7283
  %v7285 = vrot.slane %v7186, 4
  %v7286 = vrot.slane %v5194, 4
  %v7287 = vsel %vm7212, %v7285, %v7286
  %v7288 = vrot.slane %v7187, 4
  %v7289 = vrot.slane %v5195, 4
  %v7290 = vsel %vm7212, %v7288, %v7289
  %v7291 = vrot.slane %v7188, 4
  %v7292 = vrot.slane %v5196, 4
  %v7293 = vsel %vm7212, %v7291, %v7292
  %v7294 = vrot.slane %v7189, 4
  %v7295 = vrot.slane %v5197, 4
  %v7296 = vsel %vm7212, %v7294, %v7295
  %v7297 = vrot.slane %v7190, 4
  %v7298 = vrot.slane %v5198, 4
  %v7299 = vsel %vm7212, %v7297, %v7298
  %v7300 = vrot.slane %v7191, 4
  %v7301 = vrot.slane %v5199, 4
  %v7302 = vsel %vm7212, %v7300, %v7301
  %s7313 = scalar_lea.vmem %s5, 1280
  %v7314 = vld [vmem:[%s7313] sm:$0xf]
  %v7315 = vld [vmem:[%s7313 + $0x4] sm:$0xf]
  %v7316 = vld [vmem:[%s7313 + $0x8] sm:$0xf]
  %v7317 = vld [vmem:[%s7313 + $0xc] sm:$0xf]
  %v7318 = vld [vmem:[%s7313 + $0x10] sm:$0xf]
  %v7319 = vld [vmem:[%s7313 + $0x14] sm:$0xf]
  %v7320 = vld [vmem:[%s7313 + $0x18] sm:$0xf]
  %v7321 = vld [vmem:[%s7313 + $0x1c] sm:$0xf]
  %v7322 = vld [vmem:[%s7313 + $0x20] sm:$0xf]
  %v7323 = vld [vmem:[%s7313 + $0x24] sm:$0xf]
  %v7324 = vld [vmem:[%s7313 + $0x28] sm:$0xf]
  %v7325 = vld [vmem:[%s7313 + $0x2c] sm:$0xf]
  %v7326 = vld [vmem:[%s7313 + $0x30] sm:$0xf]
  %v7327 = vld [vmem:[%s7313 + $0x34] sm:$0xf]
  %v7328 = vld [vmem:[%s7313 + $0x38] sm:$0xf]
  %v7329 = vld [vmem:[%s7313 + $0x3c] sm:$0xf]
  %v7330 = vld [vmem:[%s7313 + $0x40] sm:$0xf]
  %v7331 = vld [vmem:[%s7313 + $0x44] sm:$0xf]
  %v7332 = vld [vmem:[%s7313 + $0x48] sm:$0xf]
  %v7333 = vld [vmem:[%s7313 + $0x4c] sm:$0xf]
  %v7334 = vld [vmem:[%s7313 + $0x50] sm:$0xf]
  %v7335 = vld [vmem:[%s7313 + $0x54] sm:$0xf]
  %v7336 = vld [vmem:[%s7313 + $0x58] sm:$0xf]
  %v7337 = vld [vmem:[%s7313 + $0x5c] sm:$0xf]
  %v7338 = vld [vmem:[%s7313 + $0x60] sm:$0xf]
  %v7339 = vld [vmem:[%s7313 + $0x64] sm:$0xf]
  %v7340 = vld [vmem:[%s7313 + $0x68] sm:$0xf]
  %v7341 = vld [vmem:[%s7313 + $0x6c] sm:$0xf]
  %v7342 = vld [vmem:[%s7313 + $0x70] sm:$0xf]
  %v7343 = vld [vmem:[%s7313 + $0x74] sm:$0xf]
  %v7344 = vld [vmem:[%s7313 + $0x78] sm:$0xf]
  %v7345 = vld [vmem:[%s7313 + $0x7c] sm:$0xf]
  %v7346 = vld [vmem:[%s7313 + $0x80] sm:$0xf]
  %v7347 = vld [vmem:[%s7313 + $0x84] sm:$0xf]
  %v7348 = vld [vmem:[%s7313 + $0x88] sm:$0xf]
  %v7349 = vld [vmem:[%s7313 + $0x8c] sm:$0xf]
  %v7350 = vld [vmem:[%s7313 + $0x90] sm:$0xf]
  %v7351 = vld [vmem:[%s7313 + $0x94] sm:$0xf]
  %v7352 = vld [vmem:[%s7313 + $0x98] sm:$0xf]
  %v7353 = vld [vmem:[%s7313 + $0x9c] sm:$0xf]
  %v7354 = vld [vmem:[%s7313 + $0xa0] sm:$0xf]
  %v7355 = vld [vmem:[%s7313 + $0xa4] sm:$0xf]
  %v7356 = vld [vmem:[%s7313 + $0xa8] sm:$0xf]
  %v7357 = vld [vmem:[%s7313 + $0xac] sm:$0xf]
  %v7358 = vld [vmem:[%s7313 + $0xb0] sm:$0xf]
  %v7359 = vld [vmem:[%s7313 + $0xb4] sm:$0xf]
  %v7360 = vld [vmem:[%s7313 + $0xb8] sm:$0xf]
  %v7361 = vld [vmem:[%s7313 + $0xbc] sm:$0xf]
  %v7362 = vld [vmem:[%s7313 + $0xc0] sm:$0xf]
  %v7363 = vld [vmem:[%s7313 + $0xc4] sm:$0xf]
  %v7364 = vld [vmem:[%s7313 + $0xc8] sm:$0xf]
  %v7365 = vld [vmem:[%s7313 + $0xcc] sm:$0xf]
  %v7366 = vld [vmem:[%s7313 + $0xd0] sm:$0xf]
  %v7367 = vld [vmem:[%s7313 + $0xd4] sm:$0xf]
  %v7368 = vld [vmem:[%s7313 + $0xd8] sm:$0xf]
  %v7369 = vld [vmem:[%s7313 + $0xdc] sm:$0xf]
  %v7370 = vld [vmem:[%s7313 + $0xe0] sm:$0xf]
  %v7371 = vld [vmem:[%s7313 + $0xe4] sm:$0xf]
  %v7372 = vld [vmem:[%s7313 + $0xe8] sm:$0xf]
  %v7373 = vld [vmem:[%s7313 + $0xec] sm:$0xf]
  %v7374 = vld [vmem:[%s7313 + $0xf0] sm:$0xf]
  %v7375 = vld [vmem:[%s7313 + $0xf4] sm:$0xf]
  %v7376 = vld [vmem:[%s7313 + $0xf8] sm:$0xf]
  %v7377 = vld [vmem:[%s7313 + $0xfc] sm:$0xf]
  %v7378 = vld [vmem:[%s7313 + $0x100] sm:$0xf]
  %v7379 = vld [vmem:[%s7313 + $0x104] sm:$0xf]
  %v7380 = vld [vmem:[%s7313 + $0x108] sm:$0xf]
  %v7381 = vld [vmem:[%s7313 + $0x10c] sm:$0xf]
  %v7382 = vld [vmem:[%s7313 + $0x110] sm:$0xf]
  %v7383 = vld [vmem:[%s7313 + $0x114] sm:$0xf]
  %v7384 = vld [vmem:[%s7313 + $0x118] sm:$0xf]
  %v7385 = vld [vmem:[%s7313 + $0x11c] sm:$0xf]
  %v7386 = vld [vmem:[%s7313 + $0x120] sm:$0xf]
  %v7387 = vld [vmem:[%s7313 + $0x124] sm:$0xf]
  %v7388 = vld [vmem:[%s7313 + $0x128] sm:$0xf]
  %v7389 = vld [vmem:[%s7313 + $0x12c] sm:$0xf]
  %v7390 = vld [vmem:[%s7313 + $0x130] sm:$0xf]
  %v7391 = vld [vmem:[%s7313 + $0x134] sm:$0xf]
  %v7392 = vld [vmem:[%s7313 + $0x138] sm:$0xf]
  %v7393 = vld [vmem:[%s7313 + $0x13c] sm:$0xf]
  %v7394 = vld [vmem:[%s7313 + $0x140] sm:$0xf]
  %v7395 = vld [vmem:[%s7313 + $0x144] sm:$0xf]
  %v7396 = vld [vmem:[%s7313 + $0x148] sm:$0xf]
  %v7397 = vld [vmem:[%s7313 + $0x14c] sm:$0xf]
  %v7398 = vld [vmem:[%s7313 + $0x150] sm:$0xf]
  %v7399 = vld [vmem:[%s7313 + $0x154] sm:$0xf]
  %v7400 = vld [vmem:[%s7313 + $0x158] sm:$0xf]
  %v7401 = vld [vmem:[%s7313 + $0x15c] sm:$0xf]
  %v7402 = vld [vmem:[%s7313 + $0x160] sm:$0xf]
  %v7403 = vld [vmem:[%s7313 + $0x164] sm:$0xf]
  %v7404 = vld [vmem:[%s7313 + $0x168] sm:$0xf]
  %v7405 = vld [vmem:[%s7313 + $0x16c] sm:$0xf]
  %v7406 = vld [vmem:[%s7313 + $0x170] sm:$0xf]
  %v7407 = vld [vmem:[%s7313 + $0x174] sm:$0xf]
  %v7408 = vld [vmem:[%s7313 + $0x178] sm:$0xf]
  %v7409 = vld [vmem:[%s7313 + $0x17c] sm:$0xf]
  %v7410 = vld [vmem:[%s7313 + $0x180] sm:$0xf]
  %v7411 = vld [vmem:[%s7313 + $0x184] sm:$0xf]
  %v7412 = vld [vmem:[%s7313 + $0x188] sm:$0xf]
  %v7413 = vld [vmem:[%s7313 + $0x18c] sm:$0xf]
  %v7414 = vld [vmem:[%s7313 + $0x190] sm:$0xf]
  %v7415 = vld [vmem:[%s7313 + $0x194] sm:$0xf]
  %v7416 = vld [vmem:[%s7313 + $0x198] sm:$0xf]
  %v7417 = vld [vmem:[%s7313 + $0x19c] sm:$0xf]
  %v7418 = vld [vmem:[%s7313 + $0x1a0] sm:$0xf]
  %v7419 = vld [vmem:[%s7313 + $0x1a4] sm:$0xf]
  %v7420 = vld [vmem:[%s7313 + $0x1a8] sm:$0xf]
  %v7421 = vld [vmem:[%s7313 + $0x1ac] sm:$0xf]
  %v7422 = vld [vmem:[%s7313 + $0x1b0] sm:$0xf]
  %v7423 = vld [vmem:[%s7313 + $0x1b4] sm:$0xf]
  %v7424 = vld [vmem:[%s7313 + $0x1b8] sm:$0xf]
  %v7425 = vld [vmem:[%s7313 + $0x1bc] sm:$0xf]
  %v7426 = vld [vmem:[%s7313 + $0x1c0] sm:$0xf]
  %v7427 = vld [vmem:[%s7313 + $0x1c4] sm:$0xf]
  %v7428 = vld [vmem:[%s7313 + $0x1c8] sm:$0xf]
  %v7429 = vld [vmem:[%s7313 + $0x1cc] sm:$0xf]
  %v7430 = vld [vmem:[%s7313 + $0x1d0] sm:$0xf]
  %v7431 = vld [vmem:[%s7313 + $0x1d4] sm:$0xf]
  %v7432 = vld [vmem:[%s7313 + $0x1d8] sm:$0xf]
  %v7433 = vld [vmem:[%s7313 + $0x1dc] sm:$0xf]
  %v7434 = vld [vmem:[%s7313 + $0x1e0] sm:$0xf]
  %v7435 = vld [vmem:[%s7313 + $0x1e4] sm:$0xf]
  %v7436 = vld [vmem:[%s7313 + $0x1e8] sm:$0xf]
  %v7437 = vld [vmem:[%s7313 + $0x1ec] sm:$0xf]
  %v7438 = vld [vmem:[%s7313 + $0x1f0] sm:$0xf]
  %v7439 = vld [vmem:[%s7313 + $0x1f4] sm:$0xf]
  %v7440 = vld [vmem:[%s7313 + $0x1f8] sm:$0xf]
  %v7441 = vld [vmem:[%s7313 + $0x1fc] sm:$0xf]
  %v7442 = vld [vmem:[%s7313 + $0x200] sm:$0xf]
  %v7443 = vld [vmem:[%s7313 + $0x204] sm:$0xf]
  %v7444 = vld [vmem:[%s7313 + $0x208] sm:$0xf]
  %v7445 = vld [vmem:[%s7313 + $0x20c] sm:$0xf]
  %v7446 = vld [vmem:[%s7313 + $0x210] sm:$0xf]
  %v7447 = vld [vmem:[%s7313 + $0x214] sm:$0xf]
  %v7448 = vld [vmem:[%s7313 + $0x218] sm:$0xf]
  %v7449 = vld [vmem:[%s7313 + $0x21c] sm:$0xf]
  %v7450 = vld [vmem:[%s7313 + $0x220] sm:$0xf]
  %v7451 = vld [vmem:[%s7313 + $0x224] sm:$0xf]
  %v7452 = vld [vmem:[%s7313 + $0x228] sm:$0xf]
  %v7453 = vld [vmem:[%s7313 + $0x22c] sm:$0xf]
  %v7454 = vld [vmem:[%s7313 + $0x230] sm:$0xf]
  %v7455 = vld [vmem:[%s7313 + $0x234] sm:$0xf]
  %v7456 = vld [vmem:[%s7313 + $0x238] sm:$0xf]
  %v7457 = vld [vmem:[%s7313 + $0x23c] sm:$0xf]
  %v7458 = vld [vmem:[%s7313 + $0x240] sm:$0xf]
  %v7459 = vld [vmem:[%s7313 + $0x244] sm:$0xf]
  %v7460 = vld [vmem:[%s7313 + $0x248] sm:$0xf]
  %v7461 = vld [vmem:[%s7313 + $0x24c] sm:$0xf]
  %v7462 = vld [vmem:[%s7313 + $0x250] sm:$0xf]
  %v7463 = vld [vmem:[%s7313 + $0x254] sm:$0xf]
  %v7464 = vld [vmem:[%s7313 + $0x258] sm:$0xf]
  %v7465 = vld [vmem:[%s7313 + $0x25c] sm:$0xf]
  %v7466 = vld [vmem:[%s7313 + $0x260] sm:$0xf]
  %v7467 = vld [vmem:[%s7313 + $0x264] sm:$0xf]
  %v7468 = vld [vmem:[%s7313 + $0x268] sm:$0xf]
  %v7469 = vld [vmem:[%s7313 + $0x26c] sm:$0xf]
  %v7470 = vld [vmem:[%s7313 + $0x270] sm:$0xf]
  %v7471 = vld [vmem:[%s7313 + $0x274] sm:$0xf]
  %v7472 = vld [vmem:[%s7313 + $0x278] sm:$0xf]
  %v7473 = vld [vmem:[%s7313 + $0x27c] sm:$0xf]
  %v7634 = vunpack.c.l.b16 %v7314
  %v7635 = vunpack.c.l.b16 %v7315
  %v7636 = vunpack.c.l.b16 %v7316
  %v7637 = vunpack.c.l.b16 %v7317
  %v7638 = vunpack.c.l.b16 %v7318
  %v7639 = vunpack.c.l.b16 %v7319
  %v7640 = vunpack.c.l.b16 %v7320
  %v7641 = vunpack.c.l.b16 %v7321
  %v7642 = vunpack.c.l.b16 %v7322
  %v7643 = vunpack.c.l.b16 %v7323
  %v7644 = vunpack.c.l.b16 %v7324
  %v7645 = vunpack.c.l.b16 %v7325
  %v7646 = vunpack.c.l.b16 %v7326
  %v7647 = vunpack.c.l.b16 %v7327
  %v7648 = vunpack.c.l.b16 %v7328
  %v7649 = vunpack.c.l.b16 %v7329
  %v7650 = vunpack.c.l.b16 %v7330
  %v7651 = vunpack.c.l.b16 %v7331
  %v7652 = vunpack.c.l.b16 %v7332
  %v7653 = vunpack.c.l.b16 %v7333
  %v7654 = vunpack.c.l.b16 %v7334
  %v7655 = vunpack.c.l.b16 %v7335
  %v7656 = vunpack.c.l.b16 %v7336
  %v7657 = vunpack.c.l.b16 %v7337
  %v7658 = vunpack.c.l.b16 %v7338
  %v7659 = vunpack.c.l.b16 %v7339
  %v7660 = vunpack.c.l.b16 %v7340
  %v7661 = vunpack.c.l.b16 %v7341
  %v7662 = vunpack.c.l.b16 %v7342
  %v7663 = vunpack.c.l.b16 %v7343
  %v7664 = vunpack.c.l.b16 %v7344
  %v7665 = vunpack.c.l.b16 %v7345
  %v7666 = vunpack.c.l.b16 %v7346
  %v7667 = vunpack.c.l.b16 %v7347
  %v7668 = vunpack.c.l.b16 %v7348
  %v7669 = vunpack.c.l.b16 %v7349
  %v7670 = vunpack.c.l.b16 %v7350
  %v7671 = vunpack.c.l.b16 %v7351
  %v7672 = vunpack.c.l.b16 %v7352
  %v7673 = vunpack.c.l.b16 %v7353
  %v7674 = vunpack.c.l.b16 %v7354
  %v7675 = vunpack.c.l.b16 %v7355
  %v7676 = vunpack.c.l.b16 %v7356
  %v7677 = vunpack.c.l.b16 %v7357
  %v7678 = vunpack.c.l.b16 %v7358
  %v7679 = vunpack.c.l.b16 %v7359
  %v7680 = vunpack.c.l.b16 %v7360
  %v7681 = vunpack.c.l.b16 %v7361
  %v7682 = vunpack.c.l.b16 %v7362
  %v7683 = vunpack.c.l.b16 %v7363
  %v7684 = vunpack.c.l.b16 %v7364
  %v7685 = vunpack.c.l.b16 %v7365
  %v7686 = vunpack.c.l.b16 %v7366
  %v7687 = vunpack.c.l.b16 %v7367
  %v7688 = vunpack.c.l.b16 %v7368
  %v7689 = vunpack.c.l.b16 %v7369
  %v7690 = vunpack.c.l.b16 %v7370
  %v7691 = vunpack.c.l.b16 %v7371
  %v7692 = vunpack.c.l.b16 %v7372
  %v7693 = vunpack.c.l.b16 %v7373
  %v7694 = vunpack.c.l.b16 %v7374
  %v7695 = vunpack.c.l.b16 %v7375
  %v7696 = vunpack.c.l.b16 %v7376
  %v7697 = vunpack.c.l.b16 %v7377
  %v7698 = vunpack.c.l.b16 %v7378
  %v7699 = vunpack.c.l.b16 %v7379
  %v7700 = vunpack.c.l.b16 %v7380
  %v7701 = vunpack.c.l.b16 %v7381
  %v7702 = vunpack.c.l.b16 %v7382
  %v7703 = vunpack.c.l.b16 %v7383
  %v7704 = vunpack.c.l.b16 %v7384
  %v7705 = vunpack.c.l.b16 %v7385
  %v7706 = vunpack.c.l.b16 %v7386
  %v7707 = vunpack.c.l.b16 %v7387
  %v7708 = vunpack.c.l.b16 %v7388
  %v7709 = vunpack.c.l.b16 %v7389
  %v7710 = vunpack.c.l.b16 %v7390
  %v7711 = vunpack.c.l.b16 %v7391
  %v7712 = vunpack.c.l.b16 %v7392
  %v7713 = vunpack.c.l.b16 %v7393
  %v7714 = vunpack.c.l.b16 %v7394
  %v7715 = vunpack.c.l.b16 %v7395
  %v7716 = vunpack.c.l.b16 %v7396
  %v7717 = vunpack.c.l.b16 %v7397
  %v7718 = vunpack.c.l.b16 %v7398
  %v7719 = vunpack.c.l.b16 %v7399
  %v7720 = vunpack.c.l.b16 %v7400
  %v7721 = vunpack.c.l.b16 %v7401
  %v7722 = vunpack.c.l.b16 %v7402
  %v7723 = vunpack.c.l.b16 %v7403
  %v7724 = vunpack.c.l.b16 %v7404
  %v7725 = vunpack.c.l.b16 %v7405
  %v7726 = vunpack.c.l.b16 %v7406
  %v7727 = vunpack.c.l.b16 %v7407
  %v7728 = vunpack.c.l.b16 %v7408
  %v7729 = vunpack.c.l.b16 %v7409
  %v7730 = vunpack.c.l.b16 %v7410
  %v7731 = vunpack.c.l.b16 %v7411
  %v7732 = vunpack.c.l.b16 %v7412
  %v7733 = vunpack.c.l.b16 %v7413
  %v7734 = vunpack.c.l.b16 %v7414
  %v7735 = vunpack.c.l.b16 %v7415
  %v7736 = vunpack.c.l.b16 %v7416
  %v7737 = vunpack.c.l.b16 %v7417
  %v7738 = vunpack.c.l.b16 %v7418
  %v7739 = vunpack.c.l.b16 %v7419
  %v7740 = vunpack.c.l.b16 %v7420
  %v7741 = vunpack.c.l.b16 %v7421
  %v7742 = vunpack.c.l.b16 %v7422
  %v7743 = vunpack.c.l.b16 %v7423
  %v7744 = vunpack.c.l.b16 %v7424
  %v7745 = vunpack.c.l.b16 %v7425
  %v7746 = vunpack.c.l.b16 %v7426
  %v7747 = vunpack.c.l.b16 %v7427
  %v7748 = vunpack.c.l.b16 %v7428
  %v7749 = vunpack.c.l.b16 %v7429
  %v7750 = vunpack.c.l.b16 %v7430
  %v7751 = vunpack.c.l.b16 %v7431
  %v7752 = vunpack.c.l.b16 %v7432
  %v7753 = vunpack.c.l.b16 %v7433
  %v7754 = vunpack.c.l.b16 %v7434
  %v7755 = vunpack.c.l.b16 %v7435
  %v7756 = vunpack.c.l.b16 %v7436
  %v7757 = vunpack.c.l.b16 %v7437
  %v7758 = vunpack.c.l.b16 %v7438
  %v7759 = vunpack.c.l.b16 %v7439
  %v7760 = vunpack.c.l.b16 %v7440
  %v7761 = vunpack.c.l.b16 %v7441
  %v7762 = vunpack.c.l.b16 %v7442
  %v7763 = vunpack.c.l.b16 %v7443
  %v7764 = vunpack.c.l.b16 %v7444
  %v7765 = vunpack.c.l.b16 %v7445
  %v7766 = vunpack.c.l.b16 %v7446
  %v7767 = vunpack.c.l.b16 %v7447
  %v7768 = vunpack.c.l.b16 %v7448
  %v7769 = vunpack.c.l.b16 %v7449
  %v7770 = vunpack.c.l.b16 %v7450
  %v7771 = vunpack.c.l.b16 %v7451
  %v7772 = vunpack.c.l.b16 %v7452
  %v7773 = vunpack.c.l.b16 %v7453
  %v7774 = vunpack.c.l.b16 %v7454
  %v7775 = vunpack.c.l.b16 %v7455
  %v7776 = vunpack.c.l.b16 %v7456
  %v7777 = vunpack.c.l.b16 %v7457
  %v7778 = vunpack.c.l.b16 %v7458
  %v7779 = vunpack.c.l.b16 %v7459
  %v7780 = vunpack.c.l.b16 %v7460
  %v7781 = vunpack.c.l.b16 %v7461
  %v7782 = vunpack.c.l.b16 %v7462
  %v7783 = vunpack.c.l.b16 %v7463
  %v7784 = vunpack.c.l.b16 %v7464
  %v7785 = vunpack.c.l.b16 %v7465
  %v7786 = vunpack.c.l.b16 %v7466
  %v7787 = vunpack.c.l.b16 %v7467
  %v7788 = vunpack.c.l.b16 %v7468
  %v7789 = vunpack.c.l.b16 %v7469
  %v7790 = vunpack.c.l.b16 %v7470
  %v7791 = vunpack.c.l.b16 %v7471
  %v7792 = vunpack.c.l.b16 %v7472
  %v7793 = vunpack.c.l.b16 %v7473
  %v7794 = vpack.c.b16 %v7635, %v7634
  %v7795 = vpack.c.b16 %v7637, %v7636
  %v7796 = vpack.c.b16 %v7639, %v7638
  %v7797 = vpack.c.b16 %v7641, %v7640
  %v7798 = vpack.c.b16 %v7643, %v7642
  %v7799 = vpack.c.b16 %v7645, %v7644
  %v7800 = vpack.c.b16 %v7647, %v7646
  %v7801 = vpack.c.b16 %v7649, %v7648
  %v7802 = vpack.c.b16 %v7651, %v7650
  %v7803 = vpack.c.b16 %v7653, %v7652
  %v7804 = vpack.c.b16 %v7655, %v7654
  %v7805 = vpack.c.b16 %v7657, %v7656
  %v7806 = vpack.c.b16 %v7659, %v7658
  %v7807 = vpack.c.b16 %v7661, %v7660
  %v7808 = vpack.c.b16 %v7663, %v7662
  %v7809 = vpack.c.b16 %v7665, %v7664
  %v7810 = vpack.c.b16 %v7667, %v7666
  %v7811 = vpack.c.b16 %v7669, %v7668
  %v7812 = vpack.c.b16 %v7671, %v7670
  %v7813 = vpack.c.b16 %v7673, %v7672
  %v7814 = vpack.c.b16 %v7675, %v7674
  %v7815 = vpack.c.b16 %v7677, %v7676
  %v7816 = vpack.c.b16 %v7679, %v7678
  %v7817 = vpack.c.b16 %v7681, %v7680
  %v7818 = vpack.c.b16 %v7683, %v7682
  %v7819 = vpack.c.b16 %v7685, %v7684
  %v7820 = vpack.c.b16 %v7687, %v7686
  %v7821 = vpack.c.b16 %v7689, %v7688
  %v7822 = vpack.c.b16 %v7691, %v7690
  %v7823 = vpack.c.b16 %v7693, %v7692
  %v7824 = vpack.c.b16 %v7695, %v7694
  %v7825 = vpack.c.b16 %v7697, %v7696
  %v7826 = vpack.c.b16 %v7699, %v7698
  %v7827 = vpack.c.b16 %v7701, %v7700
  %v7828 = vpack.c.b16 %v7703, %v7702
  %v7829 = vpack.c.b16 %v7705, %v7704
  %v7830 = vpack.c.b16 %v7707, %v7706
  %v7831 = vpack.c.b16 %v7709, %v7708
  %v7832 = vpack.c.b16 %v7711, %v7710
  %v7833 = vpack.c.b16 %v7713, %v7712
  %v7834 = vpack.c.b16 %v7715, %v7714
  %v7835 = vpack.c.b16 %v7717, %v7716
  %v7836 = vpack.c.b16 %v7719, %v7718
  %v7837 = vpack.c.b16 %v7721, %v7720
  %v7838 = vpack.c.b16 %v7723, %v7722
  %v7839 = vpack.c.b16 %v7725, %v7724
  %v7840 = vpack.c.b16 %v7727, %v7726
  %v7841 = vpack.c.b16 %v7729, %v7728
  %v7842 = vpack.c.b16 %v7731, %v7730
  %v7843 = vpack.c.b16 %v7733, %v7732
  %v7844 = vpack.c.b16 %v7735, %v7734
  %v7845 = vpack.c.b16 %v7737, %v7736
  %v7846 = vpack.c.b16 %v7739, %v7738
  %v7847 = vpack.c.b16 %v7741, %v7740
  %v7848 = vpack.c.b16 %v7743, %v7742
  %v7849 = vpack.c.b16 %v7745, %v7744
  %v7850 = vpack.c.b16 %v7747, %v7746
  %v7851 = vpack.c.b16 %v7749, %v7748
  %v7852 = vpack.c.b16 %v7751, %v7750
  %v7853 = vpack.c.b16 %v7753, %v7752
  %v7854 = vpack.c.b16 %v7755, %v7754
  %v7855 = vpack.c.b16 %v7757, %v7756
  %v7856 = vpack.c.b16 %v7759, %v7758
  %v7857 = vpack.c.b16 %v7761, %v7760
  %v7858 = vpack.c.b16 %v7763, %v7762
  %v7859 = vpack.c.b16 %v7765, %v7764
  %v7860 = vpack.c.b16 %v7767, %v7766
  %v7861 = vpack.c.b16 %v7769, %v7768
  %v7862 = vpack.c.b16 %v7771, %v7770
  %v7863 = vpack.c.b16 %v7773, %v7772
  %v7864 = vpack.c.b16 %v7775, %v7774
  %v7865 = vpack.c.b16 %v7777, %v7776
  %v7866 = vpack.c.b16 %v7779, %v7778
  %v7867 = vpack.c.b16 %v7781, %v7780
  %v7868 = vpack.c.b16 %v7783, %v7782
  %v7869 = vpack.c.b16 %v7785, %v7784
  %v7870 = vpack.c.b16 %v7787, %v7786
  %v7871 = vpack.c.b16 %v7789, %v7788
  %v7872 = vpack.c.b16 %v7791, %v7790
  %v7873 = vpack.c.b16 %v7793, %v7792
  %7954 = vmatprep.subr.bf16.mxu0 0
  %7955 = vmatpush1.bf16.msra.mxu0 %v7794
  %7956 = vmatprep.subr.bf16.mxu0 0
  %7957 = vmatpush1.bf16.msra.mxu0 %v7795
  %7958 = vmatprep.subr.bf16.mxu0 0
  %7959 = vmatpush1.bf16.msra.mxu0 %v7796
  %7960 = vmatprep.subr.bf16.mxu0 0
  %7961 = vmatpush1.bf16.msra.mxu0 %v7797
  %7962 = vmatprep.subr.bf16.mxu0 0
  %7963 = vmatpush1.bf16.msra.mxu0 %v7798
  %7964 = vmatprep.subr.bf16.mxu0 0
  %7965 = vmatpush1.bf16.msra.mxu0 %v7799
  %7966 = vmatprep.subr.bf16.mxu0 0
  %7967 = vmatpush1.bf16.msra.mxu0 %v7800
  %7968 = vmatprep.subr.bf16.mxu0 0
  %7969 = vmatpush1.bf16.msra.mxu0 %v7801
  %7970 = vmatprep.subr.bf16.mxu0 0
  %7971 = vmatpush1.bf16.msra.mxu0 %v7802
  %7972 = vmatprep.subr.bf16.mxu0 0
  %7973 = vmatpush1.bf16.msra.mxu0 %v7803
  %7974 = vmatprep.subr.bf16.mxu0 0
  %7975 = vmatpush1.bf16.msra.mxu0 %v7804
  %7976 = vmatprep.subr.bf16.mxu0 0
  %7977 = vmatpush1.bf16.msra.mxu0 %v7805
  %7978 = vmatprep.subr.bf16.mxu0 0
  %7979 = vmatpush1.bf16.msra.mxu0 %v7806
  %7980 = vmatprep.subr.bf16.mxu0 0
  %7981 = vmatpush1.bf16.msra.mxu0 %v7807
  %7982 = vmatprep.subr.bf16.mxu0 0
  %7983 = vmatpush1.bf16.msra.mxu0 %v7808
  %7984 = vmatprep.subr.bf16.mxu0 0
  %7985 = vmatpush1.bf16.msra.mxu0 %v7809
  %7986 = vmatprep.mubr.bf16.mxu0 %v7218
  %7987 = vmatmul.mubr.bf16.gmra.mrb[0].mxu0 %v7215
  %v7988 = vpop.f32.mrb[0].mxu0
  %v7989 = vadd.f32 0.0, %v7988
  %v7990 = vpop.f32.mrb[0].mxu0
  %v7991 = vpop.f32.mrb[0].mxu0
  %v7992 = vadd.f32 0.0, %v7991
  %v7993 = vpop.f32.mrb[0].mxu0
  %7994 = vmatprep.mubr.bf16.mxu0 %v7278
  %7995 = vmatmul.mubr.bf16.gmra.mrb[0].mxu0 %v7275
  %v7996 = vpop.f32.mrb[0].mxu0
  %v7997 = vadd.f32 0.0, %v7996
  %v7998 = vpop.f32.mrb[0].mxu0
  %v7999 = vpop.f32.mrb[0].mxu0
  %v8000 = vadd.f32 0.0, %v7999
  %v8001 = vpop.f32.mrb[0].mxu0
  %8002 = vdwg.mxu0
  %8003 = vmatprep.subr.bf16.mxu0 0
  %8004 = vmatpush1.bf16.msra.mxu0 %v7810
  %8005 = vmatprep.subr.bf16.mxu0 0
  %8006 = vmatpush1.bf16.msra.mxu0 %v7811
  %8007 = vmatprep.subr.bf16.mxu0 0
  %8008 = vmatpush1.bf16.msra.mxu0 %v7812
  %8009 = vmatprep.subr.bf16.mxu0 0
  %8010 = vmatpush1.bf16.msra.mxu0 %v7813
  %8011 = vmatprep.subr.bf16.mxu0 0
  %8012 = vmatpush1.bf16.msra.mxu0 %v7814
  %8013 = vmatprep.subr.bf16.mxu0 0
  %8014 = vmatpush1.bf16.msra.mxu0 %v7815
  %8015 = vmatprep.subr.bf16.mxu0 0
  %8016 = vmatpush1.bf16.msra.mxu0 %v7816
  %8017 = vmatprep.subr.bf16.mxu0 0
  %8018 = vmatpush1.bf16.msra.mxu0 %v7817
  %8019 = vmatprep.subr.bf16.mxu0 0
  %8020 = vmatpush1.bf16.msra.mxu0 %v7818
  %8021 = vmatprep.subr.bf16.mxu0 0
  %8022 = vmatpush1.bf16.msra.mxu0 %v7819
  %8023 = vmatprep.subr.bf16.mxu0 0
  %8024 = vmatpush1.bf16.msra.mxu0 %v7820
  %8025 = vmatprep.subr.bf16.mxu0 0
  %8026 = vmatpush1.bf16.msra.mxu0 %v7821
  %8027 = vmatprep.subr.bf16.mxu0 0
  %8028 = vmatpush1.bf16.msra.mxu0 %v7822
  %8029 = vmatprep.subr.bf16.mxu0 0
  %8030 = vmatpush1.bf16.msra.mxu0 %v7823
  %8031 = vmatprep.subr.bf16.mxu0 0
  %8032 = vmatpush1.bf16.msra.mxu0 %v7824
  %8033 = vmatprep.subr.bf16.mxu0 0
  %8034 = vmatpush1.bf16.msra.mxu0 %v7825
  %8035 = vmatprep.mubr.bf16.mxu0 %v7224
  %8036 = vmatmul.mubr.bf16.gmra.mrb[0].mxu0 %v7221
  %v8037 = vpop.f32.mrb[0].mxu0
  %v8038 = vadd.f32 %v7989, %v8037
  %v8039 = vpop.f32.mrb[0].mxu0
  %v8040 = vpop.f32.mrb[0].mxu0
  %v8041 = vadd.f32 %v7992, %v8040
  %v8042 = vpop.f32.mrb[0].mxu0
  %8043 = vmatprep.mubr.bf16.mxu0 %v7284
  %8044 = vmatmul.mubr.bf16.gmra.mrb[0].mxu0 %v7281
  %v8045 = vpop.f32.mrb[0].mxu0
  %v8046 = vadd.f32 %v7997, %v8045
  %v8047 = vpop.f32.mrb[0].mxu0
  %v8048 = vpop.f32.mrb[0].mxu0
  %v8049 = vadd.f32 %v8000, %v8048
  %v8050 = vpop.f32.mrb[0].mxu0
  %8051 = vdwg.mxu0
  %8052 = vmatprep.subr.bf16.mxu0 0
  %8053 = vmatpush1.bf16.msra.mxu0 %v7826
  %8054 = vmatprep.subr.bf16.mxu0 0
  %8055 = vmatpush1.bf16.msra.mxu0 %v7827
  %8056 = vmatprep.subr.bf16.mxu0 0
  %8057 = vmatpush1.bf16.msra.mxu0 %v7828
  %8058 = vmatprep.subr.bf16.mxu0 0
  %8059 = vmatpush1.bf16.msra.mxu0 %v7829
  %8060 = vmatprep.subr.bf16.mxu0 0
  %8061 = vmatpush1.bf16.msra.mxu0 %v7830
  %8062 = vmatprep.subr.bf16.mxu0 0
  %8063 = vmatpush1.bf16.msra.mxu0 %v7831
  %8064 = vmatprep.subr.bf16.mxu0 0
  %8065 = vmatpush1.bf16.msra.mxu0 %v7832
  %8066 = vmatprep.subr.bf16.mxu0 0
  %8067 = vmatpush1.bf16.msra.mxu0 %v7833
  %8068 = vmatprep.subr.bf16.mxu0 0
  %8069 = vmatpush1.bf16.msra.mxu0 %v7834
  %8070 = vmatprep.subr.bf16.mxu0 0
  %8071 = vmatpush1.bf16.msra.mxu0 %v7835
  %8072 = vmatprep.subr.bf16.mxu0 0
  %8073 = vmatpush1.bf16.msra.mxu0 %v7836
  %8074 = vmatprep.subr.bf16.mxu0 0
  %8075 = vmatpush1.bf16.msra.mxu0 %v7837
  %8076 = vmatprep.subr.bf16.mxu0 0
  %8077 = vmatpush1.bf16.msra.mxu0 %v7838
  %8078 = vmatprep.subr.bf16.mxu0 0
  %8079 = vmatpush1.bf16.msra.mxu0 %v7839
  %8080 = vmatprep.subr.bf16.mxu0 0
  %8081 = vmatpush1.bf16.msra.mxu0 %v7840
  %8082 = vmatprep.subr.bf16.mxu0 0
  %8083 = vmatpush1.bf16.msra.mxu0 %v7841
  %8084 = vmatprep.mubr.bf16.mxu0 %v7230
  %8085 = vmatmul.mubr.bf16.gmra.mrb[0].mxu0 %v7227
  %v8086 = vpop.f32.mrb[0].mxu0
  %v8087 = vadd.f32 %v8038, %v8086
  %v8088 = vpop.f32.mrb[0].mxu0
  %v8089 = vpop.f32.mrb[0].mxu0
  %v8090 = vadd.f32 %v8041, %v8089
  %v8091 = vpop.f32.mrb[0].mxu0
  %8092 = vmatprep.mubr.bf16.mxu0 %v7290
  %8093 = vmatmul.mubr.bf16.gmra.mrb[0].mxu0 %v7287
  %v8094 = vpop.f32.mrb[0].mxu0
  %v8095 = vadd.f32 %v8046, %v8094
  %v8096 = vpop.f32.mrb[0].mxu0
  %v8097 = vpop.f32.mrb[0].mxu0
  %v8098 = vadd.f32 %v8049, %v8097
  %v8099 = vpop.f32.mrb[0].mxu0
  %8100 = vdwg.mxu0
  %8101 = vmatprep.subr.bf16.mxu0 0
  %8102 = vmatpush1.bf16.msra.mxu0 %v7842
  %8103 = vmatprep.subr.bf16.mxu0 0
  %8104 = vmatpush1.bf16.msra.mxu0 %v7843
  %8105 = vmatprep.subr.bf16.mxu0 0
  %8106 = vmatpush1.bf16.msra.mxu0 %v7844
  %8107 = vmatprep.subr.bf16.mxu0 0
  %8108 = vmatpush1.bf16.msra.mxu0 %v7845
  %8109 = vmatprep.subr.bf16.mxu0 0
  %8110 = vmatpush1.bf16.msra.mxu0 %v7846
  %8111 = vmatprep.subr.bf16.mxu0 0
  %8112 = vmatpush1.bf16.msra.mxu0 %v7847
  %8113 = vmatprep.subr.bf16.mxu0 0
  %8114 = vmatpush1.bf16.msra.mxu0 %v7848
  %8115 = vmatprep.subr.bf16.mxu0 0
  %8116 = vmatpush1.bf16.msra.mxu0 %v7849
  %8117 = vmatprep.subr.bf16.mxu0 0
  %8118 = vmatpush1.bf16.msra.mxu0 %v7850
  %8119 = vmatprep.subr.bf16.mxu0 0
  %8120 = vmatpush1.bf16.msra.mxu0 %v7851
  %8121 = vmatprep.subr.bf16.mxu0 0
  %8122 = vmatpush1.bf16.msra.mxu0 %v7852
  %8123 = vmatprep.subr.bf16.mxu0 0
  %8124 = vmatpush1.bf16.msra.mxu0 %v7853
  %8125 = vmatprep.subr.bf16.mxu0 0
  %8126 = vmatpush1.bf16.msra.mxu0 %v7854
  %8127 = vmatprep.subr.bf16.mxu0 0
  %8128 = vmatpush1.bf16.msra.mxu0 %v7855
  %8129 = vmatprep.subr.bf16.mxu0 0
  %8130 = vmatpush1.bf16.msra.mxu0 %v7856
  %8131 = vmatprep.subr.bf16.mxu0 0
  %8132 = vmatpush1.bf16.msra.mxu0 %v7857
  %8133 = vmatprep.mubr.bf16.mxu0 %v7236
  %8134 = vmatmul.mubr.bf16.gmra.mrb[0].mxu0 %v7233
  %v8135 = vpop.f32.mrb[0].mxu0
  %v8136 = vadd.f32 %v8087, %v8135
  %v8137 = vpop.f32.mrb[0].mxu0
  %v8138 = vpop.f32.mrb[0].mxu0
  %v8139 = vadd.f32 %v8090, %v8138
  %v8140 = vpop.f32.mrb[0].mxu0
  %8141 = vmatprep.mubr.bf16.mxu0 %v7296
  %8142 = vmatmul.mubr.bf16.gmra.mrb[0].mxu0 %v7293
  %v8143 = vpop.f32.mrb[0].mxu0
  %v8144 = vadd.f32 %v8095, %v8143
  %v8145 = vpop.f32.mrb[0].mxu0
  %v8146 = vpop.f32.mrb[0].mxu0
  %v8147 = vadd.f32 %v8098, %v8146
  %v8148 = vpop.f32.mrb[0].mxu0
  %8149 = vdwg.mxu0
  %8150 = vmatprep.subr.bf16.mxu0 0
  %8151 = vmatpush1.bf16.msra.mxu0 %v7858
  %8152 = vmatprep.subr.bf16.mxu0 0
  %8153 = vmatpush1.bf16.msra.mxu0 %v7859
  %8154 = vmatprep.subr.bf16.mxu0 0
  %8155 = vmatpush1.bf16.msra.mxu0 %v7860
  %8156 = vmatprep.subr.bf16.mxu0 0
  %8157 = vmatpush1.bf16.msra.mxu0 %v7861
  %8158 = vmatprep.subr.bf16.mxu0 0
  %8159 = vmatpush1.bf16.msra.mxu0 %v7862
  %8160 = vmatprep.subr.bf16.mxu0 0
  %8161 = vmatpush1.bf16.msra.mxu0 %v7863
  %8162 = vmatprep.subr.bf16.mxu0 0
  %8163 = vmatpush1.bf16.msra.mxu0 %v7864
  %8164 = vmatprep.subr.bf16.mxu0 0
  %8165 = vmatpush1.bf16.msra.mxu0 %v7865
  %8166 = vmatprep.subr.bf16.mxu0 0
  %8167 = vmatpush1.bf16.msra.mxu0 %v7866
  %8168 = vmatprep.subr.bf16.mxu0 0
  %8169 = vmatpush1.bf16.msra.mxu0 %v7867
  %8170 = vmatprep.subr.bf16.mxu0 0
  %8171 = vmatpush1.bf16.msra.mxu0 %v7868
  %8172 = vmatprep.subr.bf16.mxu0 0
  %8173 = vmatpush1.bf16.msra.mxu0 %v7869
  %8174 = vmatprep.subr.bf16.mxu0 0
  %8175 = vmatpush1.bf16.msra.mxu0 %v7870
  %8176 = vmatprep.subr.bf16.mxu0 0
  %8177 = vmatpush1.bf16.msra.mxu0 %v7871
  %8178 = vmatprep.subr.bf16.mxu0 0
  %8179 = vmatpush1.bf16.msra.mxu0 %v7872
  %8180 = vmatprep.subr.bf16.mxu0 0
  %8181 = vmatpush1.bf16.msra.mxu0 %v7873
  %8182 = vmatprep.mubr.bf16.mxu0 %v7242
  %8183 = vmatmul.mubr.bf16.gmra.mrb[0].mxu0 %v7239
  %v8184 = vpop.f32.mrb[0].mxu0
  %v8185 = vadd.f32 %v8136, %v8184
  %v8186 = vpop.f32.mrb[0].mxu0
  %v8187 = vpop.f32.mrb[0].mxu0
  %v8188 = vadd.f32 %v8139, %v8187
  %v8189 = vpop.f32.mrb[0].mxu0
  %8190 = vmatprep.mubr.bf16.mxu0 %v7302
  %8191 = vmatmul.mubr.bf16.gmra.mrb[0].mxu0 %v7299
  %v8192 = vpop.f32.mrb[0].mxu0
  %v8193 = vadd.f32 %v8144, %v8192
  %v8194 = vpop.f32.mrb[0].mxu0
  %v8195 = vpop.f32.mrb[0].mxu0
  %v8196 = vadd.f32 %v8147, %v8195
  %v8197 = vpop.f32.mrb[0].mxu0
  %8198 = vdwg.mxu0
  %v8199 = vadd.f32 %v7158, %v8185
  %v8200 = vadd.f32 %v7161, %v8188
  %v8201 = vadd.f32 %v7166, %v8193
  %v8202 = vadd.f32 %v7169, %v8196
  %v8203 = vld [vmem:[#allocation4 + $0x50] sm:$0x1f]
  %v8204 = vld [vmem:[#allocation4 + $0x58] sm:$0x1f]
  %v8205 = vld [vmem:[#allocation4 + $0x60] sm:$0x1f]
  %v8206 = vld [vmem:[#allocation4 + $0x68] sm:$0x1f]
  %v8207 = vld [vmem:[#allocation4 + $0x70] sm:$0x1f]
  %v8208 = vld [vmem:[#allocation4 + $0x78] sm:$0x1f]
  %v8209 = vld [vmem:[#allocation4 + $0x80] sm:$0x1f]
  %v8210 = vld [vmem:[#allocation4 + $0x88] sm:$0x1f]
  %v8211 = vld [vmem:[#allocation4 + $0x90] sm:$0x1f]
  %v8212 = vld [vmem:[#allocation4 + $0x98] sm:$0x1f]
  %v8213 = vld [vmem:[%s4672 + $0x50] sm:$0x1f]
  %v8214 = vld [vmem:[%s4672 + $0x58] sm:$0x1f]
  %v8215 = vld [vmem:[%s4672 + $0x60] sm:$0x1f]
  %v8216 = vld [vmem:[%s4672 + $0x68] sm:$0x1f]
  %v8217 = vld [vmem:[%s4672 + $0x70] sm:$0x1f]
  %v8218 = vld [vmem:[%s4672 + $0x78] sm:$0x1f]
  %v8219 = vld [vmem:[%s4672 + $0x80] sm:$0x1f]
  %v8220 = vld [vmem:[%s4672 + $0x88] sm:$0x1f]
  %v8221 = vld [vmem:[%s4672 + $0x90] sm:$0x1f]
  %v8222 = vld [vmem:[%s4672 + $0x98] sm:$0x1f]
  %vm8223 = vsmask.f32 3328
  %v8225 = vshrl.u32 %v7172, 16
  %v8227 = vrot.slane %v8225, 4
  %v8228 = vshll.u32 %v7172, 16
  %v8230 = vrot.slane %v8228, 5
  %v8231 = vor.u32 %v8227, %v8230
  %v8233 = vshrl.u32 %v8203, 16
  %v8235 = vrot.slane %v8233, 4
  %v8236 = vshll.u32 %v8203, 16
  %v8238 = vrot.slane %v8236, 5
  %v8239 = vor.u32 %v8235, %v8238
  %v8240 = vsel %vm8223, %v8231, %v8239
  %v8242 = vshrl.u32 %v7173, 16
  %v8244 = vrot.slane %v8242, 4
  %v8245 = vshll.u32 %v7173, 16
  %v8247 = vrot.slane %v8245, 5
  %v8248 = vor.u32 %v8244, %v8247
  %v8250 = vshrl.u32 %v8204, 16
  %v8252 = vrot.slane %v8250, 4
  %v8253 = vshll.u32 %v8204, 16
  %v8255 = vrot.slane %v8253, 5
  %v8256 = vor.u32 %v8252, %v8255
  %v8257 = vsel %vm8223, %v8248, %v8256
  %v8259 = vshrl.u32 %v7174, 16
  %v8261 = vrot.slane %v8259, 4
  %v8262 = vshll.u32 %v7174, 16
  %v8264 = vrot.slane %v8262, 5
  %v8265 = vor.u32 %v8261, %v8264
  %v8267 = vshrl.u32 %v8205, 16
  %v8269 = vrot.slane %v8267, 4
  %v8270 = vshll.u32 %v8205, 16
  %v8272 = vrot.slane %v8270, 5
  %v8273 = vor.u32 %v8269, %v8272
  %v8274 = vsel %vm8223, %v8265, %v8273
  %v8276 = vshrl.u32 %v7175, 16
  %v8278 = vrot.slane %v8276, 4
  %v8279 = vshll.u32 %v7175, 16
  %v8281 = vrot.slane %v8279, 5
  %v8282 = vor.u32 %v8278, %v8281
  %v8284 = vshrl.u32 %v8206, 16
  %v8286 = vrot.slane %v8284, 4
  %v8287 = vshll.u32 %v8206, 16
  %v8289 = vrot.slane %v8287, 5
  %v8290 = vor.u32 %v8286, %v8289
  %v8291 = vsel %vm8223, %v8282, %v8290
  %v8293 = vshrl.u32 %v7176, 16
  %v8295 = vrot.slane %v8293, 4
  %v8296 = vshll.u32 %v7176, 16
  %v8298 = vrot.slane %v8296, 5
  %v8299 = vor.u32 %v8295, %v8298
  %v8301 = vshrl.u32 %v8207, 16
  %v8303 = vrot.slane %v8301, 4
  %v8304 = vshll.u32 %v8207, 16
  %v8306 = vrot.slane %v8304, 5
  %v8307 = vor.u32 %v8303, %v8306
  %v8308 = vsel %vm8223, %v8299, %v8307
  %v8310 = vshrl.u32 %v7177, 16
  %v8312 = vrot.slane %v8310, 4
  %v8313 = vshll.u32 %v7177, 16
  %v8315 = vrot.slane %v8313, 5
  %v8316 = vor.u32 %v8312, %v8315
  %v8318 = vshrl.u32 %v8208, 16
  %v8320 = vrot.slane %v8318, 4
  %v8321 = vshll.u32 %v8208, 16
  %v8323 = vrot.slane %v8321, 5
  %v8324 = vor.u32 %v8320, %v8323
  %v8325 = vsel %vm8223, %v8316, %v8324
  %v8327 = vshrl.u32 %v7178, 16
  %v8329 = vrot.slane %v8327, 4
  %v8330 = vshll.u32 %v7178, 16
  %v8332 = vrot.slane %v8330, 5
  %v8333 = vor.u32 %v8329, %v8332
  %v8335 = vshrl.u32 %v8209, 16
  %v8337 = vrot.slane %v8335, 4
  %v8338 = vshll.u32 %v8209, 16
  %v8340 = vrot.slane %v8338, 5
  %v8341 = vor.u32 %v8337, %v8340
  %v8342 = vsel %vm8223, %v8333, %v8341
  %v8344 = vshrl.u32 %v7179, 16
  %v8346 = vrot.slane %v8344, 4
  %v8347 = vshll.u32 %v7179, 16
  %v8349 = vrot.slane %v8347, 5
  %v8350 = vor.u32 %v8346, %v8349
  %v8352 = vshrl.u32 %v8210, 16
  %v8354 = vrot.slane %v8352, 4
  %v8355 = vshll.u32 %v8210, 16
  %v8357 = vrot.slane %v8355, 5
  %v8358 = vor.u32 %v8354, %v8357
  %v8359 = vsel %vm8223, %v8350, %v8358
  %v8361 = vshrl.u32 %v7180, 16
  %v8363 = vrot.slane %v8361, 4
  %v8364 = vshll.u32 %v7180, 16
  %v8366 = vrot.slane %v8364, 5
  %v8367 = vor.u32 %v8363, %v8366
  %v8369 = vshrl.u32 %v8211, 16
  %v8371 = vrot.slane %v8369, 4
  %v8372 = vshll.u32 %v8211, 16
  %v8374 = vrot.slane %v8372, 5
  %v8375 = vor.u32 %v8371, %v8374
  %v8376 = vsel %vm8223, %v8367, %v8375
  %v8378 = vshrl.u32 %v7181, 16
  %v8380 = vrot.slane %v8378, 4
  %v8381 = vshll.u32 %v7181, 16
  %v8383 = vrot.slane %v8381, 5
  %v8384 = vor.u32 %v8380, %v8383
  %v8386 = vshrl.u32 %v8212, 16
  %v8388 = vrot.slane %v8386, 4
  %v8389 = vshll.u32 %v8212, 16
  %v8391 = vrot.slane %v8389, 5
  %v8392 = vor.u32 %v8388, %v8391
  %v8393 = vsel %vm8223, %v8384, %v8392
  %v8405 = vshrl.u32 %v7182, 16
  %v8407 = vrot.slane %v8405, 4
  %v8408 = vshll.u32 %v7182, 16
  %v8410 = vrot.slane %v8408, 5
  %v8411 = vor.u32 %v8407, %v8410
  %v8413 = vshrl.u32 %v8213, 16
  %v8415 = vrot.slane %v8413, 4
  %v8416 = vshll.u32 %v8213, 16
  %v8418 = vrot.slane %v8416, 5
  %v8419 = vor.u32 %v8415, %v8418
  %v8420 = vsel %vm8223, %v8411, %v8419
  %v8422 = vshrl.u32 %v7183, 16
  %v8424 = vrot.slane %v8422, 4
  %v8425 = vshll.u32 %v7183, 16
  %v8427 = vrot.slane %v8425, 5
  %v8428 = vor.u32 %v8424, %v8427
  %v8430 = vshrl.u32 %v8214, 16
  %v8432 = vrot.slane %v8430, 4
  %v8433 = vshll.u32 %v8214, 16
  %v8435 = vrot.slane %v8433, 5
  %v8436 = vor.u32 %v8432, %v8435
  %v8437 = vsel %vm8223, %v8428, %v8436
  %v8439 = vshrl.u32 %v7184, 16
  %v8441 = vrot.slane %v8439, 4
  %v8442 = vshll.u32 %v7184, 16
  %v8444 = vrot.slane %v8442, 5
  %v8445 = vor.u32 %v8441, %v8444
  %v8447 = vshrl.u32 %v8215, 16
  %v8449 = vrot.slane %v8447, 4
  %v8450 = vshll.u32 %v8215, 16
  %v8452 = vrot.slane %v8450, 5
  %v8453 = vor.u32 %v8449, %v8452
  %v8454 = vsel %vm8223, %v8445, %v8453
  %v8456 = vshrl.u32 %v7185, 16
  %v8458 = vrot.slane %v8456, 4
  %v8459 = vshll.u32 %v7185, 16
  %v8461 = vrot.slane %v8459, 5
  %v8462 = vor.u32 %v8458, %v8461
  %v8464 = vshrl.u32 %v8216, 16
  %v8466 = vrot.slane %v8464, 4
  %v8467 = vshll.u32 %v8216, 16
  %v8469 = vrot.slane %v8467, 5
  %v8470 = vor.u32 %v8466, %v8469
  %v8471 = vsel %vm8223, %v8462, %v8470
  %v8473 = vshrl.u32 %v7186, 16
  %v8475 = vrot.slane %v8473, 4
  %v8476 = vshll.u32 %v7186, 16
  %v8478 = vrot.slane %v8476, 5
  %v8479 = vor.u32 %v8475, %v8478
  %v8481 = vshrl.u32 %v8217, 16
  %v8483 = vrot.slane %v8481, 4
  %v8484 = vshll.u32 %v8217, 16
  %v8486 = vrot.slane %v8484, 5
  %v8487 = vor.u32 %v8483, %v8486
  %v8488 = vsel %vm8223, %v8479, %v8487
  %v8490 = vshrl.u32 %v7187, 16
  %v8492 = vrot.slane %v8490, 4
  %v8493 = vshll.u32 %v7187, 16
  %v8495 = vrot.slane %v8493, 5
  %v8496 = vor.u32 %v8492, %v8495
  %v8498 = vshrl.u32 %v8218, 16
  %v8500 = vrot.slane %v8498, 4
  %v8501 = vshll.u32 %v8218, 16
  %v8503 = vrot.slane %v8501, 5
  %v8504 = vor.u32 %v8500, %v8503
  %v8505 = vsel %vm8223, %v8496, %v8504
  %v8507 = vshrl.u32 %v7188, 16
  %v8509 = vrot.slane %v8507, 4
  %v8510 = vshll.u32 %v7188, 16
  %v8512 = vrot.slane %v8510, 5
  %v8513 = vor.u32 %v8509, %v8512
  %v8515 = vshrl.u32 %v8219, 16
  %v8517 = vrot.slane %v8515, 4
  %v8518 = vshll.u32 %v8219, 16
  %v8520 = vrot.slane %v8518, 5
  %v8521 = vor.u32 %v8517, %v8520
  %v8522 = vsel %vm8223, %v8513, %v8521
  %v8524 = vshrl.u32 %v7189, 16
  %v8526 = vrot.slane %v8524, 4
  %v8527 = vshll.u32 %v7189, 16
  %v8529 = vrot.slane %v8527, 5
  %v8530 = vor.u32 %v8526, %v8529
  %v8532 = vshrl.u32 %v8220, 16
  %v8534 = vrot.slane %v8532, 4
  %v8535 = vshll.u32 %v8220, 16
  %v8537 = vrot.slane %v8535, 5
  %v8538 = vor.u32 %v8534, %v8537
  %v8539 = vsel %vm8223, %v8530, %v8538
  %v8541 = vshrl.u32 %v7190, 16
  %v8543 = vrot.slane %v8541, 4
  %v8544 = vshll.u32 %v7190, 16
  %v8546 = vrot.slane %v8544, 5
  %v8547 = vor.u32 %v8543, %v8546
  %v8549 = vshrl.u32 %v8221, 16
  %v8551 = vrot.slane %v8549, 4
  %v8552 = vshll.u32 %v8221, 16
  %v8554 = vrot.slane %v8552, 5
  %v8555 = vor.u32 %v8551, %v8554
  %v8556 = vsel %vm8223, %v8547, %v8555
  %v8558 = vshrl.u32 %v7191, 16
  %v8560 = vrot.slane %v8558, 4
  %v8561 = vshll.u32 %v7191, 16
  %v8563 = vrot.slane %v8561, 5
  %v8564 = vor.u32 %v8560, %v8563
  %v8566 = vshrl.u32 %v8222, 16
  %v8568 = vrot.slane %v8566, 4
  %v8569 = vshll.u32 %v8222, 16
  %v8571 = vrot.slane %v8569, 5
  %v8572 = vor.u32 %v8568, %v8571
  %v8573 = vsel %vm8223, %v8564, %v8572
  %s8584 = scalar_lea.vmem %s5, 1920
  %v8585 = vld [vmem:[%s8584] sm:$0xf]
  %v8586 = vld [vmem:[%s8584 + $0x4] sm:$0xf]
  %v8587 = vld [vmem:[%s8584 + $0x8] sm:$0xf]
  %v8588 = vld [vmem:[%s8584 + $0xc] sm:$0xf]
  %v8589 = vld [vmem:[%s8584 + $0x10] sm:$0xf]
  %v8590 = vld [vmem:[%s8584 + $0x14] sm:$0xf]
  %v8591 = vld [vmem:[%s8584 + $0x18] sm:$0xf]
  %v8592 = vld [vmem:[%s8584 + $0x1c] sm:$0xf]
  %v8593 = vld [vmem:[%s8584 + $0x20] sm:$0xf]
  %v8594 = vld [vmem:[%s8584 + $0x24] sm:$0xf]
  %v8595 = vld [vmem:[%s8584 + $0x28] sm:$0xf]
  %v8596 = vld [vmem:[%s8584 + $0x2c] sm:$0xf]
  %v8597 = vld [vmem:[%s8584 + $0x30] sm:$0xf]
  %v8598 = vld [vmem:[%s8584 + $0x34] sm:$0xf]
  %v8599 = vld [vmem:[%s8584 + $0x38] sm:$0xf]
  %v8600 = vld [vmem:[%s8584 + $0x3c] sm:$0xf]
  %v8601 = vld [vmem:[%s8584 + $0x40] sm:$0xf]
  %v8602 = vld [vmem:[%s8584 + $0x44] sm:$0xf]
  %v8603 = vld [vmem:[%s8584 + $0x48] sm:$0xf]
  %v8604 = vld [vmem:[%s8584 + $0x4c] sm:$0xf]
  %v8605 = vld [vmem:[%s8584 + $0x50] sm:$0xf]
  %v8606 = vld [vmem:[%s8584 + $0x54] sm:$0xf]
  %v8607 = vld [vmem:[%s8584 + $0x58] sm:$0xf]
  %v8608 = vld [vmem:[%s8584 + $0x5c] sm:$0xf]
  %v8609 = vld [vmem:[%s8584 + $0x60] sm:$0xf]
  %v8610 = vld [vmem:[%s8584 + $0x64] sm:$0xf]
  %v8611 = vld [vmem:[%s8584 + $0x68] sm:$0xf]
  %v8612 = vld [vmem:[%s8584 + $0x6c] sm:$0xf]
  %v8613 = vld [vmem:[%s8584 + $0x70] sm:$0xf]
  %v8614 = vld [vmem:[%s8584 + $0x74] sm:$0xf]
  %v8615 = vld [vmem:[%s8584 + $0x78] sm:$0xf]
  %v8616 = vld [vmem:[%s8584 + $0x7c] sm:$0xf]
  %v8617 = vld [vmem:[%s8584 + $0x80] sm:$0xf]
  %v8618 = vld [vmem:[%s8584 + $0x84] sm:$0xf]
  %v8619 = vld [vmem:[%s8584 + $0x88] sm:$0xf]
  %v8620 = vld [vmem:[%s8584 + $0x8c] sm:$0xf]
  %v8621 = vld [vmem:[%s8584 + $0x90] sm:$0xf]
  %v8622 = vld [vmem:[%s8584 + $0x94] sm:$0xf]
  %v8623 = vld [vmem:[%s8584 + $0x98] sm:$0xf]
  %v8624 = vld [vmem:[%s8584 + $0x9c] sm:$0xf]
  %v8625 = vld [vmem:[%s8584 + $0xa0] sm:$0xf]
  %v8626 = vld [vmem:[%s8584 + $0xa4] sm:$0xf]
  %v8627 = vld [vmem:[%s8584 + $0xa8] sm:$0xf]
  %v8628 = vld [vmem:[%s8584 + $0xac] sm:$0xf]
  %v8629 = vld [vmem:[%s8584 + $0xb0] sm:$0xf]
  %v8630 = vld [vmem:[%s8584 + $0xb4] sm:$0xf]
  %v8631 = vld [vmem:[%s8584 + $0xb8] sm:$0xf]
  %v8632 = vld [vmem:[%s8584 + $0xbc] sm:$0xf]
  %v8633 = vld [vmem:[%s8584 + $0xc0] sm:$0xf]
  %v8634 = vld [vmem:[%s8584 + $0xc4] sm:$0xf]
  %v8635 = vld [vmem:[%s8584 + $0xc8] sm:$0xf]
  %v8636 = vld [vmem:[%s8584 + $0xcc] sm:$0xf]
  %v8637 = vld [vmem:[%s8584 + $0xd0] sm:$0xf]
  %v8638 = vld [vmem:[%s8584 + $0xd4] sm:$0xf]
  %v8639 = vld [vmem:[%s8584 + $0xd8] sm:$0xf]
  %v8640 = vld [vmem:[%s8584 + $0xdc] sm:$0xf]
  %v8641 = vld [vmem:[%s8584 + $0xe0] sm:$0xf]
  %v8642 = vld [vmem:[%s8584 + $0xe4] sm:$0xf]
  %v8643 = vld [vmem:[%s8584 + $0xe8] sm:$0xf]
  %v8644 = vld [vmem:[%s8584 + $0xec] sm:$0xf]
  %v8645 = vld [vmem:[%s8584 + $0xf0] sm:$0xf]
  %v8646 = vld [vmem:[%s8584 + $0xf4] sm:$0xf]
  %v8647 = vld [vmem:[%s8584 + $0xf8] sm:$0xf]
  %v8648 = vld [vmem:[%s8584 + $0xfc] sm:$0xf]
  %v8649 = vld [vmem:[%s8584 + $0x100] sm:$0xf]
  %v8650 = vld [vmem:[%s8584 + $0x104] sm:$0xf]
  %v8651 = vld [vmem:[%s8584 + $0x108] sm:$0xf]
  %v8652 = vld [vmem:[%s8584 + $0x10c] sm:$0xf]
  %v8653 = vld [vmem:[%s8584 + $0x110] sm:$0xf]
  %v8654 = vld [vmem:[%s8584 + $0x114] sm:$0xf]
  %v8655 = vld [vmem:[%s8584 + $0x118] sm:$0xf]
  %v8656 = vld [vmem:[%s8584 + $0x11c] sm:$0xf]
  %v8657 = vld [vmem:[%s8584 + $0x120] sm:$0xf]
  %v8658 = vld [vmem:[%s8584 + $0x124] sm:$0xf]
  %v8659 = vld [vmem:[%s8584 + $0x128] sm:$0xf]
  %v8660 = vld [vmem:[%s8584 + $0x12c] sm:$0xf]
  %v8661 = vld [vmem:[%s8584 + $0x130] sm:$0xf]
  %v8662 = vld [vmem:[%s8584 + $0x134] sm:$0xf]
  %v8663 = vld [vmem:[%s8584 + $0x138] sm:$0xf]
  %v8664 = vld [vmem:[%s8584 + $0x13c] sm:$0xf]
  %v8665 = vld [vmem:[%s8584 + $0x140] sm:$0xf]
  %v8666 = vld [vmem:[%s8584 + $0x144] sm:$0xf]
  %v8667 = vld [vmem:[%s8584 + $0x148] sm:$0xf]
  %v8668 = vld [vmem:[%s8584 + $0x14c] sm:$0xf]
  %v8669 = vld [vmem:[%s8584 + $0x150] sm:$0xf]
  %v8670 = vld [vmem:[%s8584 + $0x154] sm:$0xf]
  %v8671 = vld [vmem:[%s8584 + $0x158] sm:$0xf]
  %v8672 = vld [vmem:[%s8584 + $0x15c] sm:$0xf]
  %v8673 = vld [vmem:[%s8584 + $0x160] sm:$0xf]
  %v8674 = vld [vmem:[%s8584 + $0x164] sm:$0xf]
  %v8675 = vld [vmem:[%s8584 + $0x168] sm:$0xf]
  %v8676 = vld [vmem:[%s8584 + $0x16c] sm:$0xf]
  %v8677 = vld [vmem:[%s8584 + $0x170] sm:$0xf]
  %v8678 = vld [vmem:[%s8584 + $0x174] sm:$0xf]
  %v8679 = vld [vmem:[%s8584 + $0x178] sm:$0xf]
  %v8680 = vld [vmem:[%s8584 + $0x17c] sm:$0xf]
  %v8681 = vld [vmem:[%s8584 + $0x180] sm:$0xf]
  %v8682 = vld [vmem:[%s8584 + $0x184] sm:$0xf]
  %v8683 = vld [vmem:[%s8584 + $0x188] sm:$0xf]
  %v8684 = vld [vmem:[%s8584 + $0x18c] sm:$0xf]
  %v8685 = vld [vmem:[%s8584 + $0x190] sm:$0xf]
  %v8686 = vld [vmem:[%s8584 + $0x194] sm:$0xf]
  %v8687 = vld [vmem:[%s8584 + $0x198] sm:$0xf]
  %v8688 = vld [vmem:[%s8584 + $0x19c] sm:$0xf]
  %v8689 = vld [vmem:[%s8584 + $0x1a0] sm:$0xf]
  %v8690 = vld [vmem:[%s8584 + $0x1a4] sm:$0xf]
  %v8691 = vld [vmem:[%s8584 + $0x1a8] sm:$0xf]
  %v8692 = vld [vmem:[%s8584 + $0x1ac] sm:$0xf]
  %v8693 = vld [vmem:[%s8584 + $0x1b0] sm:$0xf]
  %v8694 = vld [vmem:[%s8584 + $0x1b4] sm:$0xf]
  %v8695 = vld [vmem:[%s8584 + $0x1b8] sm:$0xf]
  %v8696 = vld [vmem:[%s8584 + $0x1bc] sm:$0xf]
  %v8697 = vld [vmem:[%s8584 + $0x1c0] sm:$0xf]
  %v8698 = vld [vmem:[%s8584 + $0x1c4] sm:$0xf]
  %v8699 = vld [vmem:[%s8584 + $0x1c8] sm:$0xf]
  %v8700 = vld [vmem:[%s8584 + $0x1cc] sm:$0xf]
  %v8701 = vld [vmem:[%s8584 + $0x1d0] sm:$0xf]
  %v8702 = vld [vmem:[%s8584 + $0x1d4] sm:$0xf]
  %v8703 = vld [vmem:[%s8584 + $0x1d8] sm:$0xf]
  %v8704 = vld [vmem:[%s8584 + $0x1dc] sm:$0xf]
  %v8705 = vld [vmem:[%s8584 + $0x1e0] sm:$0xf]
  %v8706 = vld [vmem:[%s8584 + $0x1e4] sm:$0xf]
  %v8707 = vld [vmem:[%s8584 + $0x1e8] sm:$0xf]
  %v8708 = vld [vmem:[%s8584 + $0x1ec] sm:$0xf]
  %v8709 = vld [vmem:[%s8584 + $0x1f0] sm:$0xf]
  %v8710 = vld [vmem:[%s8584 + $0x1f4] sm:$0xf]
  %v8711 = vld [vmem:[%s8584 + $0x1f8] sm:$0xf]
  %v8712 = vld [vmem:[%s8584 + $0x1fc] sm:$0xf]
  %v8713 = vld [vmem:[%s8584 + $0x200] sm:$0xf]
  %v8714 = vld [vmem:[%s8584 + $0x204] sm:$0xf]
  %v8715 = vld [vmem:[%s8584 + $0x208] sm:$0xf]
  %v8716 = vld [vmem:[%s8584 + $0x20c] sm:$0xf]
  %v8717 = vld [vmem:[%s8584 + $0x210] sm:$0xf]
  %v8718 = vld [vmem:[%s8584 + $0x214] sm:$0xf]
  %v8719 = vld [vmem:[%s8584 + $0x218] sm:$0xf]
  %v8720 = vld [vmem:[%s8584 + $0x21c] sm:$0xf]
  %v8721 = vld [vmem:[%s8584 + $0x220] sm:$0xf]
  %v8722 = vld [vmem:[%s8584 + $0x224] sm:$0xf]
  %v8723 = vld [vmem:[%s8584 + $0x228] sm:$0xf]
  %v8724 = vld [vmem:[%s8584 + $0x22c] sm:$0xf]
  %v8725 = vld [vmem:[%s8584 + $0x230] sm:$0xf]
  %v8726 = vld [vmem:[%s8584 + $0x234] sm:$0xf]
  %v8727 = vld [vmem:[%s8584 + $0x238] sm:$0xf]
  %v8728 = vld [vmem:[%s8584 + $0x23c] sm:$0xf]
  %v8729 = vld [vmem:[%s8584 + $0x240] sm:$0xf]
  %v8730 = vld [vmem:[%s8584 + $0x244] sm:$0xf]
  %v8731 = vld [vmem:[%s8584 + $0x248] sm:$0xf]
  %v8732 = vld [vmem:[%s8584 + $0x24c] sm:$0xf]
  %v8733 = vld [vmem:[%s8584 + $0x250] sm:$0xf]
  %v8734 = vld [vmem:[%s8584 + $0x254] sm:$0xf]
  %v8735 = vld [vmem:[%s8584 + $0x258] sm:$0xf]
  %v8736 = vld [vmem:[%s8584 + $0x25c] sm:$0xf]
  %v8737 = vld [vmem:[%s8584 + $0x260] sm:$0xf]
  %v8738 = vld [vmem:[%s8584 + $0x264] sm:$0xf]
  %v8739 = vld [vmem:[%s8584 + $0x268] sm:$0xf]
  %v8740 = vld [vmem:[%s8584 + $0x26c] sm:$0xf]
  %v8741 = vld [vmem:[%s8584 + $0x270] sm:$0xf]
  %v8742 = vld [vmem:[%s8584 + $0x274] sm:$0xf]
  %v8743 = vld [vmem:[%s8584 + $0x278] sm:$0xf]
  %v8744 = vld [vmem:[%s8584 + $0x27c] sm:$0xf]
  %v8905 = vunpack.c.l.b16 %v8585
  %v8906 = vunpack.c.l.b16 %v8586
  %v8907 = vunpack.c.l.b16 %v8587
  %v8908 = vunpack.c.l.b16 %v8588
  %v8909 = vunpack.c.l.b16 %v8589
  %v8910 = vunpack.c.l.b16 %v8590
  %v8911 = vunpack.c.l.b16 %v8591
  %v8912 = vunpack.c.l.b16 %v8592
  %v8913 = vunpack.c.l.b16 %v8593
  %v8914 = vunpack.c.l.b16 %v8594
  %v8915 = vunpack.c.l.b16 %v8595
  %v8916 = vunpack.c.l.b16 %v8596
  %v8917 = vunpack.c.l.b16 %v8597
  %v8918 = vunpack.c.l.b16 %v8598
  %v8919 = vunpack.c.l.b16 %v8599
  %v8920 = vunpack.c.l.b16 %v8600
  %v8921 = vunpack.c.l.b16 %v8601
  %v8922 = vunpack.c.l.b16 %v8602
  %v8923 = vunpack.c.l.b16 %v8603
  %v8924 = vunpack.c.l.b16 %v8604
  %v8925 = vunpack.c.l.b16 %v8605
  %v8926 = vunpack.c.l.b16 %v8606
  %v8927 = vunpack.c.l.b16 %v8607
  %v8928 = vunpack.c.l.b16 %v8608
  %v8929 = vunpack.c.l.b16 %v8609
  %v8930 = vunpack.c.l.b16 %v8610
  %v8931 = vunpack.c.l.b16 %v8611
  %v8932 = vunpack.c.l.b16 %v8612
  %v8933 = vunpack.c.l.b16 %v8613
  %v8934 = vunpack.c.l.b16 %v8614
  %v8935 = vunpack.c.l.b16 %v8615
  %v8936 = vunpack.c.l.b16 %v8616
  %v8937 = vunpack.c.l.b16 %v8617
  %v8938 = vunpack.c.l.b16 %v8618
  %v8939 = vunpack.c.l.b16 %v8619
  %v8940 = vunpack.c.l.b16 %v8620
  %v8941 = vunpack.c.l.b16 %v8621
  %v8942 = vunpack.c.l.b16 %v8622
  %v8943 = vunpack.c.l.b16 %v8623
  %v8944 = vunpack.c.l.b16 %v8624
  %v8945 = vunpack.c.l.b16 %v8625
  %v8946 = vunpack.c.l.b16 %v8626
  %v8947 = vunpack.c.l.b16 %v8627
  %v8948 = vunpack.c.l.b16 %v8628
  %v8949 = vunpack.c.l.b16 %v8629
  %v8950 = vunpack.c.l.b16 %v8630
  %v8951 = vunpack.c.l.b16 %v8631
  %v8952 = vunpack.c.l.b16 %v8632
  %v8953 = vunpack.c.l.b16 %v8633
  %v8954 = vunpack.c.l.b16 %v8634
  %v8955 = vunpack.c.l.b16 %v8635
  %v8956 = vunpack.c.l.b16 %v8636
  %v8957 = vunpack.c.l.b16 %v8637
  %v8958 = vunpack.c.l.b16 %v8638
  %v8959 = vunpack.c.l.b16 %v8639
  %v8960 = vunpack.c.l.b16 %v8640
  %v8961 = vunpack.c.l.b16 %v8641
  %v8962 = vunpack.c.l.b16 %v8642
  %v8963 = vunpack.c.l.b16 %v8643
  %v8964 = vunpack.c.l.b16 %v8644
  %v8965 = vunpack.c.l.b16 %v8645
  %v8966 = vunpack.c.l.b16 %v8646
  %v8967 = vunpack.c.l.b16 %v8647
  %v8968 = vunpack.c.l.b16 %v8648
  %v8969 = vunpack.c.l.b16 %v8649
  %v8970 = vunpack.c.l.b16 %v8650
  %v8971 = vunpack.c.l.b16 %v8651
  %v8972 = vunpack.c.l.b16 %v8652
  %v8973 = vunpack.c.l.b16 %v8653
  %v8974 = vunpack.c.l.b16 %v8654
  %v8975 = vunpack.c.l.b16 %v8655
  %v8976 = vunpack.c.l.b16 %v8656
  %v8977 = vunpack.c.l.b16 %v8657
  %v8978 = vunpack.c.l.b16 %v8658
  %v8979 = vunpack.c.l.b16 %v8659
  %v8980 = vunpack.c.l.b16 %v8660
  %v8981 = vunpack.c.l.b16 %v8661
  %v8982 = vunpack.c.l.b16 %v8662
  %v8983 = vunpack.c.l.b16 %v8663
  %v8984 = vunpack.c.l.b16 %v8664
  %v8985 = vunpack.c.l.b16 %v8665
  %v8986 = vunpack.c.l.b16 %v8666
  %v8987 = vunpack.c.l.b16 %v8667
  %v8988 = vunpack.c.l.b16 %v8668
  %v8989 = vunpack.c.l.b16 %v8669
  %v8990 = vunpack.c.l.b16 %v8670
  %v8991 = vunpack.c.l.b16 %v8671
  %v8992 = vunpack.c.l.b16 %v8672
  %v8993 = vunpack.c.l.b16 %v8673
  %v8994 = vunpack.c.l.b16 %v8674
  %v8995 = vunpack.c.l.b16 %v8675
  %v8996 = vunpack.c.l.b16 %v8676
  %v8997 = vunpack.c.l.b16 %v8677
  %v8998 = vunpack.c.l.b16 %v8678
  %v8999 = vunpack.c.l.b16 %v8679
  %v9000 = vunpack.c.l.b16 %v8680
  %v9001 = vunpack.c.l.b16 %v8681
  %v9002 = vunpack.c.l.b16 %v8682
  %v9003 = vunpack.c.l.b16 %v8683
  %v9004 = vunpack.c.l.b16 %v8684
  %v9005 = vunpack.c.l.b16 %v8685
  %v9006 = vunpack.c.l.b16 %v8686
  %v9007 = vunpack.c.l.b16 %v8687
  %v9008 = vunpack.c.l.b16 %v8688
  %v9009 = vunpack.c.l.b16 %v8689
  %v9010 = vunpack.c.l.b16 %v8690
  %v9011 = vunpack.c.l.b16 %v8691
  %v9012 = vunpack.c.l.b16 %v8692
  %v9013 = vunpack.c.l.b16 %v8693
  %v9014 = vunpack.c.l.b16 %v8694
  %v9015 = vunpack.c.l.b16 %v8695
  %v9016 = vunpack.c.l.b16 %v8696
  %v9017 = vunpack.c.l.b16 %v8697
  %v9018 = vunpack.c.l.b16 %v8698
  %v9019 = vunpack.c.l.b16 %v8699
  %v9020 = vunpack.c.l.b16 %v8700
  %v9021 = vunpack.c.l.b16 %v8701
  %v9022 = vunpack.c.l.b16 %v8702
  %v9023 = vunpack.c.l.b16 %v8703
  %v9024 = vunpack.c.l.b16 %v8704
  %v9025 = vunpack.c.l.b16 %v8705
  %v9026 = vunpack.c.l.b16 %v8706
  %v9027 = vunpack.c.l.b16 %v8707
  %v9028 = vunpack.c.l.b16 %v8708
  %v9029 = vunpack.c.l.b16 %v8709
  %v9030 = vunpack.c.l.b16 %v8710
  %v9031 = vunpack.c.l.b16 %v8711
  %v9032 = vunpack.c.l.b16 %v8712
  %v9033 = vunpack.c.l.b16 %v8713
  %v9034 = vunpack.c.l.b16 %v8714
  %v9035 = vunpack.c.l.b16 %v8715
  %v9036 = vunpack.c.l.b16 %v8716
  %v9037 = vunpack.c.l.b16 %v8717
  %v9038 = vunpack.c.l.b16 %v8718
  %v9039 = vunpack.c.l.b16 %v8719
  %v9040 = vunpack.c.l.b16 %v8720
  %v9041 = vunpack.c.l.b16 %v8721
  %v9042 = vunpack.c.l.b16 %v8722
  %v9043 = vunpack.c.l.b16 %v8723
  %v9044 = vunpack.c.l.b16 %v8724
  %v9045 = vunpack.c.l.b16 %v8725
  %v9046 = vunpack.c.l.b16 %v8726
  %v9047 = vunpack.c.l.b16 %v8727
  %v9048 = vunpack.c.l.b16 %v8728
  %v9049 = vunpack.c.l.b16 %v8729
  %v9050 = vunpack.c.l.b16 %v8730
  %v9051 = vunpack.c.l.b16 %v8731
  %v9052 = vunpack.c.l.b16 %v8732
  %v9053 = vunpack.c.l.b16 %v8733
  %v9054 = vunpack.c.l.b16 %v8734
  %v9055 = vunpack.c.l.b16 %v8735
  %v9056 = vunpack.c.l.b16 %v8736
  %v9057 = vunpack.c.l.b16 %v8737
  %v9058 = vunpack.c.l.b16 %v8738
  %v9059 = vunpack.c.l.b16 %v8739
  %v9060 = vunpack.c.l.b16 %v8740
  %v9061 = vunpack.c.l.b16 %v8741
  %v9062 = vunpack.c.l.b16 %v8742
  %v9063 = vunpack.c.l.b16 %v8743
  %v9064 = vunpack.c.l.b16 %v8744
  %v9065 = vpack.c.b16 %v8906, %v8905
  %v9066 = vpack.c.b16 %v8908, %v8907
  %v9067 = vpack.c.b16 %v8910, %v8909
  %v9068 = vpack.c.b16 %v8912, %v8911
  %v9069 = vpack.c.b16 %v8914, %v8913
  %v9070 = vpack.c.b16 %v8916, %v8915
  %v9071 = vpack.c.b16 %v8918, %v8917
  %v9072 = vpack.c.b16 %v8920, %v8919
  %v9073 = vpack.c.b16 %v8922, %v8921
  %v9074 = vpack.c.b16 %v8924, %v8923
  %v9075 = vpack.c.b16 %v8926, %v8925
  %v9076 = vpack.c.b16 %v8928, %v8927
  %v9077 = vpack.c.b16 %v8930, %v8929
  %v9078 = vpack.c.b16 %v8932, %v8931
  %v9079 = vpack.c.b16 %v8934, %v8933
  %v9080 = vpack.c.b16 %v8936, %v8935
  %v9081 = vpack.c.b16 %v8938, %v8937
  %v9082 = vpack.c.b16 %v8940, %v8939
  %v9083 = vpack.c.b16 %v8942, %v8941
  %v9084 = vpack.c.b16 %v8944, %v8943
  %v9085 = vpack.c.b16 %v8946, %v8945
  %v9086 = vpack.c.b16 %v8948, %v8947
  %v9087 = vpack.c.b16 %v8950, %v8949
  %v9088 = vpack.c.b16 %v8952, %v8951
  %v9089 = vpack.c.b16 %v8954, %v8953
  %v9090 = vpack.c.b16 %v8956, %v8955
  %v9091 = vpack.c.b16 %v8958, %v8957
  %v9092 = vpack.c.b16 %v8960, %v8959
  %v9093 = vpack.c.b16 %v8962, %v8961
  %v9094 = vpack.c.b16 %v8964, %v8963
  %v9095 = vpack.c.b16 %v8966, %v8965
  %v9096 = vpack.c.b16 %v8968, %v8967
  %v9097 = vpack.c.b16 %v8970, %v8969
  %v9098 = vpack.c.b16 %v8972, %v8971
  %v9099 = vpack.c.b16 %v8974, %v8973
  %v9100 = vpack.c.b16 %v8976, %v8975
  %v9101 = vpack.c.b16 %v8978, %v8977
  %v9102 = vpack.c.b16 %v8980, %v8979
  %v9103 = vpack.c.b16 %v8982, %v8981
  %v9104 = vpack.c.b16 %v8984, %v8983
  %v9105 = vpack.c.b16 %v8986, %v8985
  %v9106 = vpack.c.b16 %v8988, %v8987
  %v9107 = vpack.c.b16 %v8990, %v8989
  %v9108 = vpack.c.b16 %v8992, %v8991
  %v9109 = vpack.c.b16 %v8994, %v8993
  %v9110 = vpack.c.b16 %v8996, %v8995
  %v9111 = vpack.c.b16 %v8998, %v8997
  %v9112 = vpack.c.b16 %v9000, %v8999
  %v9113 = vpack.c.b16 %v9002, %v9001
  %v9114 = vpack.c.b16 %v9004, %v9003
  %v9115 = vpack.c.b16 %v9006, %v9005
  %v9116 = vpack.c.b16 %v9008, %v9007
  %v9117 = vpack.c.b16 %v9010, %v9009
  %v9118 = vpack.c.b16 %v9012, %v9011
  %v9119 = vpack.c.b16 %v9014, %v9013
  %v9120 = vpack.c.b16 %v9016, %v9015
  %v9121 = vpack.c.b16 %v9018, %v9017
  %v9122 = vpack.c.b16 %v9020, %v9019
  %v9123 = vpack.c.b16 %v9022, %v9021
  %v9124 = vpack.c.b16 %v9024, %v9023
  %v9125 = vpack.c.b16 %v9026, %v9025
  %v9126 = vpack.c.b16 %v9028, %v9027
  %v9127 = vpack.c.b16 %v9030, %v9029
  %v9128 = vpack.c.b16 %v9032, %v9031
  %v9129 = vpack.c.b16 %v9034, %v9033
  %v9130 = vpack.c.b16 %v9036, %v9035
  %v9131 = vpack.c.b16 %v9038, %v9037
  %v9132 = vpack.c.b16 %v9040, %v9039
  %v9133 = vpack.c.b16 %v9042, %v9041
  %v9134 = vpack.c.b16 %v9044, %v9043
  %v9135 = vpack.c.b16 %v9046, %v9045
  %v9136 = vpack.c.b16 %v9048, %v9047
  %v9137 = vpack.c.b16 %v9050, %v9049
  %v9138 = vpack.c.b16 %v9052, %v9051
  %v9139 = vpack.c.b16 %v9054, %v9053
  %v9140 = vpack.c.b16 %v9056, %v9055
  %v9141 = vpack.c.b16 %v9058, %v9057
  %v9142 = vpack.c.b16 %v9060, %v9059
  %v9143 = vpack.c.b16 %v9062, %v9061
  %v9144 = vpack.c.b16 %v9064, %v9063
  %9225 = vmatprep.subr.bf16.mxu0 0
  %9226 = vmatpush1.bf16.msra.mxu0 %v9065
  %9227 = vmatprep.subr.bf16.mxu0 0
  %9228 = vmatpush1.bf16.msra.mxu0 %v9066
  %9229 = vmatprep.subr.bf16.mxu0 0
  %9230 = vmatpush1.bf16.msra.mxu0 %v9067
  %9231 = vmatprep.subr.bf16.mxu0 0
  %9232 = vmatpush1.bf16.msra.mxu0 %v9068
  %9233 = vmatprep.subr.bf16.mxu0 0
  %9234 = vmatpush1.bf16.msra.mxu0 %v9069
  %9235 = vmatprep.subr.bf16.mxu0 0
  %9236 = vmatpush1.bf16.msra.mxu0 %v9070
  %9237 = vmatprep.subr.bf16.mxu0 0
  %9238 = vmatpush1.bf16.msra.mxu0 %v9071
  %9239 = vmatprep.subr.bf16.mxu0 0
  %9240 = vmatpush1.bf16.msra.mxu0 %v9072
  %9241 = vmatprep.subr.bf16.mxu0 0
  %9242 = vmatpush1.bf16.msra.mxu0 %v9073
  %9243 = vmatprep.subr.bf16.mxu0 0
  %9244 = vmatpush1.bf16.msra.mxu0 %v9074
  %9245 = vmatprep.subr.bf16.mxu0 0
  %9246 = vmatpush1.bf16.msra.mxu0 %v9075
  %9247 = vmatprep.subr.bf16.mxu0 0
  %9248 = vmatpush1.bf16.msra.mxu0 %v9076
  %9249 = vmatprep.subr.bf16.mxu0 0
  %9250 = vmatpush1.bf16.msra.mxu0 %v9077
  %9251 = vmatprep.subr.bf16.mxu0 0
  %9252 = vmatpush1.bf16.msra.mxu0 %v9078
  %9253 = vmatprep.subr.bf16.mxu0 0
  %9254 = vmatpush1.bf16.msra.mxu0 %v9079
  %9255 = vmatprep.subr.bf16.mxu0 0
  %9256 = vmatpush1.bf16.msra.mxu0 %v9080
  %9257 = vmatprep.mubr.bf16.mxu0 %v8257
  %9258 = vmatmul.mubr.bf16.gmra.mrb[0].mxu0 %v8240
  %v9259 = vpop.f32.mrb[0].mxu0
  %v9260 = vadd.f32 0.0, %v9259
  %v9261 = vpop.f32.mrb[0].mxu0
  %v9262 = vpop.f32.mrb[0].mxu0
  %v9263 = vadd.f32 0.0, %v9262
  %v9264 = vpop.f32.mrb[0].mxu0
  %9265 = vmatprep.mubr.bf16.mxu0 %v8437
  %9266 = vmatmul.mubr.bf16.gmra.mrb[0].mxu0 %v8420
  %v9267 = vpop.f32.mrb[0].mxu0
  %v9268 = vadd.f32 0.0, %v9267
  %v9269 = vpop.f32.mrb[0].mxu0
  %v9270 = vpop.f32.mrb[0].mxu0
  %v9271 = vadd.f32 0.0, %v9270
  %v9272 = vpop.f32.mrb[0].mxu0
  %9273 = vdwg.mxu0
  %9274 = vmatprep.subr.bf16.mxu0 0
  %9275 = vmatpush1.bf16.msra.mxu0 %v9081
  %9276 = vmatprep.subr.bf16.mxu0 0
  %9277 = vmatpush1.bf16.msra.mxu0 %v9082
  %9278 = vmatprep.subr.bf16.mxu0 0
  %9279 = vmatpush1.bf16.msra.mxu0 %v9083
  %9280 = vmatprep.subr.bf16.mxu0 0
  %9281 = vmatpush1.bf16.msra.mxu0 %v9084
  %9282 = vmatprep.subr.bf16.mxu0 0
  %9283 = vmatpush1.bf16.msra.mxu0 %v9085
  %9284 = vmatprep.subr.bf16.mxu0 0
  %9285 = vmatpush1.bf16.msra.mxu0 %v9086
  %9286 = vmatprep.subr.bf16.mxu0 0
  %9287 = vmatpush1.bf16.msra.mxu0 %v9087
  %9288 = vmatprep.subr.bf16.mxu0 0
  %9289 = vmatpush1.bf16.msra.mxu0 %v9088
  %9290 = vmatprep.subr.bf16.mxu0 0
  %9291 = vmatpush1.bf16.msra.mxu0 %v9089
  %9292 = vmatprep.subr.bf16.mxu0 0
  %9293 = vmatpush1.bf16.msra.mxu0 %v9090
  %9294 = vmatprep.subr.bf16.mxu0 0
  %9295 = vmatpush1.bf16.msra.mxu0 %v9091
  %9296 = vmatprep.subr.bf16.mxu0 0
  %9297 = vmatpush1.bf16.msra.mxu0 %v9092
  %9298 = vmatprep.subr.bf16.mxu0 0
  %9299 = vmatpush1.bf16.msra.mxu0 %v9093
  %9300 = vmatprep.subr.bf16.mxu0 0
  %9301 = vmatpush1.bf16.msra.mxu0 %v9094
  %9302 = vmatprep.subr.bf16.mxu0 0
  %9303 = vmatpush1.bf16.msra.mxu0 %v9095
  %9304 = vmatprep.subr.bf16.mxu0 0
  %9305 = vmatpush1.bf16.msra.mxu0 %v9096
  %9306 = vmatprep.mubr.bf16.mxu0 %v8291
  %9307 = vmatmul.mubr.bf16.gmra.mrb[0].mxu0 %v8274
  %v9308 = vpop.f32.mrb[0].mxu0
  %v9309 = vadd.f32 %v9260, %v9308
  %v9310 = vpop.f32.mrb[0].mxu0
  %v9311 = vpop.f32.mrb[0].mxu0
  %v9312 = vadd.f32 %v9263, %v9311
  %v9313 = vpop.f32.mrb[0].mxu0
  %9314 = vmatprep.mubr.bf16.mxu0 %v8471
  %9315 = vmatmul.mubr.bf16.gmra.mrb[0].mxu0 %v8454
  %v9316 = vpop.f32.mrb[0].mxu0
  %v9317 = vadd.f32 %v9268, %v9316
  %v9318 = vpop.f32.mrb[0].mxu0
  %v9319 = vpop.f32.mrb[0].mxu0
  %v9320 = vadd.f32 %v9271, %v9319
  %v9321 = vpop.f32.mrb[0].mxu0
  %9322 = vdwg.mxu0
  %9323 = vmatprep.subr.bf16.mxu0 0
  %9324 = vmatpush1.bf16.msra.mxu0 %v9097
  %9325 = vmatprep.subr.bf16.mxu0 0
  %9326 = vmatpush1.bf16.msra.mxu0 %v9098
  %9327 = vmatprep.subr.bf16.mxu0 0
  %9328 = vmatpush1.bf16.msra.mxu0 %v9099
  %9329 = vmatprep.subr.bf16.mxu0 0
  %9330 = vmatpush1.bf16.msra.mxu0 %v9100
  %9331 = vmatprep.subr.bf16.mxu0 0
  %9332 = vmatpush1.bf16.msra.mxu0 %v9101
  %9333 = vmatprep.subr.bf16.mxu0 0
  %9334 = vmatpush1.bf16.msra.mxu0 %v9102
  %9335 = vmatprep.subr.bf16.mxu0 0
  %9336 = vmatpush1.bf16.msra.mxu0 %v9103
  %9337 = vmatprep.subr.bf16.mxu0 0
  %9338 = vmatpush1.bf16.msra.mxu0 %v9104
  %9339 = vmatprep.subr.bf16.mxu0 0
  %9340 = vmatpush1.bf16.msra.mxu0 %v9105
  %9341 = vmatprep.subr.bf16.mxu0 0
  %9342 = vmatpush1.bf16.msra.mxu0 %v9106
  %9343 = vmatprep.subr.bf16.mxu0 0
  %9344 = vmatpush1.bf16.msra.mxu0 %v9107
  %9345 = vmatprep.subr.bf16.mxu0 0
  %9346 = vmatpush1.bf16.msra.mxu0 %v9108
  %9347 = vmatprep.subr.bf16.mxu0 0
  %9348 = vmatpush1.bf16.msra.mxu0 %v9109
  %9349 = vmatprep.subr.bf16.mxu0 0
  %9350 = vmatpush1.bf16.msra.mxu0 %v9110
  %9351 = vmatprep.subr.bf16.mxu0 0
  %9352 = vmatpush1.bf16.msra.mxu0 %v9111
  %9353 = vmatprep.subr.bf16.mxu0 0
  %9354 = vmatpush1.bf16.msra.mxu0 %v9112
  %9355 = vmatprep.mubr.bf16.mxu0 %v8325
  %9356 = vmatmul.mubr.bf16.gmra.mrb[0].mxu0 %v8308
  %v9357 = vpop.f32.mrb[0].mxu0
  %v9358 = vadd.f32 %v9309, %v9357
  %v9359 = vpop.f32.mrb[0].mxu0
  %v9360 = vpop.f32.mrb[0].mxu0
  %v9361 = vadd.f32 %v9312, %v9360
  %v9362 = vpop.f32.mrb[0].mxu0
  %9363 = vmatprep.mubr.bf16.mxu0 %v8505
  %9364 = vmatmul.mubr.bf16.gmra.mrb[0].mxu0 %v8488
  %v9365 = vpop.f32.mrb[0].mxu0
  %v9366 = vadd.f32 %v9317, %v9365
  %v9367 = vpop.f32.mrb[0].mxu0
  %v9368 = vpop.f32.mrb[0].mxu0
  %v9369 = vadd.f32 %v9320, %v9368
  %v9370 = vpop.f32.mrb[0].mxu0
  %9371 = vdwg.mxu0
  %9372 = vmatprep.subr.bf16.mxu0 0
  %9373 = vmatpush1.bf16.msra.mxu0 %v9113
  %9374 = vmatprep.subr.bf16.mxu0 0
  %9375 = vmatpush1.bf16.msra.mxu0 %v9114
  %9376 = vmatprep.subr.bf16.mxu0 0
  %9377 = vmatpush1.bf16.msra.mxu0 %v9115
  %9378 = vmatprep.subr.bf16.mxu0 0
  %9379 = vmatpush1.bf16.msra.mxu0 %v9116
  %9380 = vmatprep.subr.bf16.mxu0 0
  %9381 = vmatpush1.bf16.msra.mxu0 %v9117
  %9382 = vmatprep.subr.bf16.mxu0 0
  %9383 = vmatpush1.bf16.msra.mxu0 %v9118
  %9384 = vmatprep.subr.bf16.mxu0 0
  %9385 = vmatpush1.bf16.msra.mxu0 %v9119
  %9386 = vmatprep.subr.bf16.mxu0 0
  %9387 = vmatpush1.bf16.msra.mxu0 %v9120
  %9388 = vmatprep.subr.bf16.mxu0 0
  %9389 = vmatpush1.bf16.msra.mxu0 %v9121
  %9390 = vmatprep.subr.bf16.mxu0 0
  %9391 = vmatpush1.bf16.msra.mxu0 %v9122
  %9392 = vmatprep.subr.bf16.mxu0 0
  %9393 = vmatpush1.bf16.msra.mxu0 %v9123
  %9394 = vmatprep.subr.bf16.mxu0 0
  %9395 = vmatpush1.bf16.msra.mxu0 %v9124
  %9396 = vmatprep.subr.bf16.mxu0 0
  %9397 = vmatpush1.bf16.msra.mxu0 %v9125
  %9398 = vmatprep.subr.bf16.mxu0 0
  %9399 = vmatpush1.bf16.msra.mxu0 %v9126
  %9400 = vmatprep.subr.bf16.mxu0 0
  %9401 = vmatpush1.bf16.msra.mxu0 %v9127
  %9402 = vmatprep.subr.bf16.mxu0 0
  %9403 = vmatpush1.bf16.msra.mxu0 %v9128
  %9404 = vmatprep.mubr.bf16.mxu0 %v8359
  %9405 = vmatmul.mubr.bf16.gmra.mrb[0].mxu0 %v8342
  %v9406 = vpop.f32.mrb[0].mxu0
  %v9407 = vadd.f32 %v9358, %v9406
  %v9408 = vpop.f32.mrb[0].mxu0
  %v9409 = vpop.f32.mrb[0].mxu0
  %v9410 = vadd.f32 %v9361, %v9409
  %v9411 = vpop.f32.mrb[0].mxu0
  %9412 = vmatprep.mubr.bf16.mxu0 %v8539
  %9413 = vmatmul.mubr.bf16.gmra.mrb[0].mxu0 %v8522
  %v9414 = vpop.f32.mrb[0].mxu0
  %v9415 = vadd.f32 %v9366, %v9414
  %v9416 = vpop.f32.mrb[0].mxu0
  %v9417 = vpop.f32.mrb[0].mxu0
  %v9418 = vadd.f32 %v9369, %v9417
  %v9419 = vpop.f32.mrb[0].mxu0
  %9420 = vdwg.mxu0
  %9421 = vmatprep.subr.bf16.mxu0 0
  %9422 = vmatpush1.bf16.msra.mxu0 %v9129
  %9423 = vmatprep.subr.bf16.mxu0 0
  %9424 = vmatpush1.bf16.msra.mxu0 %v9130
  %9425 = vmatprep.subr.bf16.mxu0 0
  %9426 = vmatpush1.bf16.msra.mxu0 %v9131
  %9427 = vmatprep.subr.bf16.mxu0 0
  %9428 = vmatpush1.bf16.msra.mxu0 %v9132
  %9429 = vmatprep.subr.bf16.mxu0 0
  %9430 = vmatpush1.bf16.msra.mxu0 %v9133
  %9431 = vmatprep.subr.bf16.mxu0 0
  %9432 = vmatpush1.bf16.msra.mxu0 %v9134
  %9433 = vmatprep.subr.bf16.mxu0 0
  %9434 = vmatpush1.bf16.msra.mxu0 %v9135
  %9435 = vmatprep.subr.bf16.mxu0 0
  %9436 = vmatpush1.bf16.msra.mxu0 %v9136
  %9437 = vmatprep.subr.bf16.mxu0 0
  %9438 = vmatpush1.bf16.msra.mxu0 %v9137
  %9439 = vmatprep.subr.bf16.mxu0 0
  %9440 = vmatpush1.bf16.msra.mxu0 %v9138
  %9441 = vmatprep.subr.bf16.mxu0 0
  %9442 = vmatpush1.bf16.msra.mxu0 %v9139
  %9443 = vmatprep.subr.bf16.mxu0 0
  %9444 = vmatpush1.bf16.msra.mxu0 %v9140
  %9445 = vmatprep.subr.bf16.mxu0 0
  %9446 = vmatpush1.bf16.msra.mxu0 %v9141
  %9447 = vmatprep.subr.bf16.mxu0 0
  %9448 = vmatpush1.bf16.msra.mxu0 %v9142
  %9449 = vmatprep.subr.bf16.mxu0 0
  %9450 = vmatpush1.bf16.msra.mxu0 %v9143
  %9451 = vmatprep.subr.bf16.mxu0 0
  %9452 = vmatpush1.bf16.msra.mxu0 %v9144
  %9453 = vmatprep.mubr.bf16.mxu0 %v8393
  %9454 = vmatmul.mubr.bf16.gmra.mrb[0].mxu0 %v8376
  %v9455 = vpop.f32.mrb[0].mxu0
  %v9456 = vadd.f32 %v9407, %v9455
  %v9457 = vpop.f32.mrb[0].mxu0
  %v9458 = vpop.f32.mrb[0].mxu0
  %v9459 = vadd.f32 %v9410, %v9458
  %v9460 = vpop.f32.mrb[0].mxu0
  %9461 = vmatprep.mubr.bf16.mxu0 %v8573
  %9462 = vmatmul.mubr.bf16.gmra.mrb[0].mxu0 %v8556
  %v9463 = vpop.f32.mrb[0].mxu0
  %v9464 = vadd.f32 %v9415, %v9463
  %v9465 = vpop.f32.mrb[0].mxu0
  %v9466 = vpop.f32.mrb[0].mxu0
  %v9467 = vadd.f32 %v9418, %v9466
  %v9468 = vpop.f32.mrb[0].mxu0
  %9469 = vdwg.mxu0
  %v9470 = vadd.f32 %v8199, %v9456
  %v9471 = vadd.f32 %v8200, %v9459
  %v9472 = vadd.f32 %v8201, %v9464
  %v9473 = vadd.f32 %v8202, %v9467
  %v9474 = vld [vmem:[#allocation4] sm:$0xe0]
  %v9475 = vld [vmem:[#allocation4 + $0x8] sm:$0xe0]
  %v9476 = vld [vmem:[#allocation4 + $0x10] sm:$0xe0]
  %v9477 = vld [vmem:[#allocation4 + $0x18] sm:$0xe0]
  %v9478 = vld [vmem:[#allocation4 + $0x20] sm:$0xe0]
  %v9479 = vld [vmem:[#allocation4 + $0x28] sm:$0xe0]
  %v9480 = vld [vmem:[#allocation4 + $0x30] sm:$0xe0]
  %v9481 = vld [vmem:[#allocation4 + $0x38] sm:$0xe0]
  %v9482 = vld [vmem:[#allocation4 + $0x40] sm:$0xe0]
  %v9483 = vld [vmem:[#allocation4 + $0x48] sm:$0xe0]
  %v9484 = vld [vmem:[%s4672] sm:$0xe0]
  %v9485 = vld [vmem:[%s4672 + $0x8] sm:$0xe0]
  %v9486 = vld [vmem:[%s4672 + $0x10] sm:$0xe0]
  %v9487 = vld [vmem:[%s4672 + $0x18] sm:$0xe0]
  %v9488 = vld [vmem:[%s4672 + $0x20] sm:$0xe0]
  %v9489 = vld [vmem:[%s4672 + $0x28] sm:$0xe0]
  %v9490 = vld [vmem:[%s4672 + $0x30] sm:$0xe0]
  %v9491 = vld [vmem:[%s4672 + $0x38] sm:$0xe0]
  %v9492 = vld [vmem:[%s4672 + $0x40] sm:$0xe0]
  %v9493 = vld [vmem:[%s4672 + $0x48] sm:$0xe0]
  %vm9514 = vcmask 1042432
  %v9515 = vrot.slane %v9474, 5
  %v9516 = vrot.slane %v8203, 5
  %v9517 = vsel %vm9514, %v9515, %v9516
  %v9518 = vrot.slane %v9475, 5
  %v9519 = vrot.slane %v8204, 5
  %v9520 = vsel %vm9514, %v9518, %v9519
  %v9521 = vrot.slane %v9476, 5
  %v9522 = vrot.slane %v8205, 5
  %v9523 = vsel %vm9514, %v9521, %v9522
  %v9524 = vrot.slane %v9477, 5
  %v9525 = vrot.slane %v8206, 5
  %v9526 = vsel %vm9514, %v9524, %v9525
  %v9527 = vrot.slane %v9478, 5
  %v9528 = vrot.slane %v8207, 5
  %v9529 = vsel %vm9514, %v9527, %v9528
  %v9530 = vrot.slane %v9479, 5
  %v9531 = vrot.slane %v8208, 5
  %v9532 = vsel %vm9514, %v9530, %v9531
  %v9533 = vrot.slane %v9480, 5
  %v9534 = vrot.slane %v8209, 5
  %v9535 = vsel %vm9514, %v9533, %v9534
  %v9536 = vrot.slane %v9481, 5
  %v9537 = vrot.slane %v8210, 5
  %v9538 = vsel %vm9514, %v9536, %v9537
  %v9539 = vrot.slane %v9482, 5
  %v9540 = vrot.slane %v8211, 5
  %v9541 = vsel %vm9514, %v9539, %v9540
  %v9542 = vrot.slane %v9483, 5
  %v9543 = vrot.slane %v8212, 5
  %v9544 = vsel %vm9514, %v9542, %v9543
  %v9575 = vrot.slane %v9484, 5
  %v9576 = vrot.slane %v8213, 5
  %v9577 = vsel %vm9514, %v9575, %v9576
  %v9578 = vrot.slane %v9485, 5
  %v9579 = vrot.slane %v8214, 5
  %v9580 = vsel %vm9514, %v9578, %v9579
  %v9581 = vrot.slane %v9486, 5
  %v9582 = vrot.slane %v8215, 5
  %v9583 = vsel %vm9514, %v9581, %v9582
  %v9584 = vrot.slane %v9487, 5
  %v9585 = vrot.slane %v8216, 5
  %v9586 = vsel %vm9514, %v9584, %v9585
  %v9587 = vrot.slane %v9488, 5
  %v9588 = vrot.slane %v8217, 5
  %v9589 = vsel %vm9514, %v9587, %v9588
  %v9590 = vrot.slane %v9489, 5
  %v9591 = vrot.slane %v8218, 5
  %v9592 = vsel %vm9514, %v9590, %v9591
  %v9593 = vrot.slane %v9490, 5
  %v9594 = vrot.slane %v8219, 5
  %v9595 = vsel %vm9514, %v9593, %v9594
  %v9596 = vrot.slane %v9491, 5
  %v9597 = vrot.slane %v8220, 5
  %v9598 = vsel %vm9514, %v9596, %v9597
  %v9599 = vrot.slane %v9492, 5
  %v9600 = vrot.slane %v8221, 5
  %v9601 = vsel %vm9514, %v9599, %v9600
  %v9602 = vrot.slane %v9493, 5
  %v9603 = vrot.slane %v8222, 5
  %v9604 = vsel %vm9514, %v9602, %v9603
  %s9615 = scalar_lea.vmem %s5, 2560
  %v9616 = vld [vmem:[%s9615] sm:$0xf]
  %v9617 = vld [vmem:[%s9615 + $0x4] sm:$0xf]
  %v9618 = vld [vmem:[%s9615 + $0x8] sm:$0xf]
  %v9619 = vld [vmem:[%s9615 + $0xc] sm:$0xf]
  %v9620 = vld [vmem:[%s9615 + $0x10] sm:$0xf]
  %v9621 = vld [vmem:[%s9615 + $0x14] sm:$0xf]
  %v9622 = vld [vmem:[%s9615 + $0x18] sm:$0xf]
  %v9623 = vld [vmem:[%s9615 + $0x1c] sm:$0xf]
  %v9624 = vld [vmem:[%s9615 + $0x20] sm:$0xf]
  %v9625 = vld [vmem:[%s9615 + $0x24] sm:$0xf]
  %v9626 = vld [vmem:[%s9615 + $0x28] sm:$0xf]
  %v9627 = vld [vmem:[%s9615 + $0x2c] sm:$0xf]
  %v9628 = vld [vmem:[%s9615 + $0x30] sm:$0xf]
  %v9629 = vld [vmem:[%s9615 + $0x34] sm:$0xf]
  %v9630 = vld [vmem:[%s9615 + $0x38] sm:$0xf]
  %v9631 = vld [vmem:[%s9615 + $0x3c] sm:$0xf]
  %v9632 = vld [vmem:[%s9615 + $0x40] sm:$0xf]
  %v9633 = vld [vmem:[%s9615 + $0x44] sm:$0xf]
  %v9634 = vld [vmem:[%s9615 + $0x48] sm:$0xf]
  %v9635 = vld [vmem:[%s9615 + $0x4c] sm:$0xf]
  %v9636 = vld [vmem:[%s9615 + $0x50] sm:$0xf]
  %v9637 = vld [vmem:[%s9615 + $0x54] sm:$0xf]
  %v9638 = vld [vmem:[%s9615 + $0x58] sm:$0xf]
  %v9639 = vld [vmem:[%s9615 + $0x5c] sm:$0xf]
  %v9640 = vld [vmem:[%s9615 + $0x60] sm:$0xf]
  %v9641 = vld [vmem:[%s9615 + $0x64] sm:$0xf]
  %v9642 = vld [vmem:[%s9615 + $0x68] sm:$0xf]
  %v9643 = vld [vmem:[%s9615 + $0x6c] sm:$0xf]
  %v9644 = vld [vmem:[%s9615 + $0x70] sm:$0xf]
  %v9645 = vld [vmem:[%s9615 + $0x74] sm:$0xf]
  %v9646 = vld [vmem:[%s9615 + $0x78] sm:$0xf]
  %v9647 = vld [vmem:[%s9615 + $0x7c] sm:$0xf]
  %v9648 = vld [vmem:[%s9615 + $0x80] sm:$0xf]
  %v9649 = vld [vmem:[%s9615 + $0x84] sm:$0xf]
  %v9650 = vld [vmem:[%s9615 + $0x88] sm:$0xf]
  %v9651 = vld [vmem:[%s9615 + $0x8c] sm:$0xf]
  %v9652 = vld [vmem:[%s9615 + $0x90] sm:$0xf]
  %v9653 = vld [vmem:[%s9615 + $0x94] sm:$0xf]
  %v9654 = vld [vmem:[%s9615 + $0x98] sm:$0xf]
  %v9655 = vld [vmem:[%s9615 + $0x9c] sm:$0xf]
  %v9656 = vld [vmem:[%s9615 + $0xa0] sm:$0xf]
  %v9657 = vld [vmem:[%s9615 + $0xa4] sm:$0xf]
  %v9658 = vld [vmem:[%s9615 + $0xa8] sm:$0xf]
  %v9659 = vld [vmem:[%s9615 + $0xac] sm:$0xf]
  %v9660 = vld [vmem:[%s9615 + $0xb0] sm:$0xf]
  %v9661 = vld [vmem:[%s9615 + $0xb4] sm:$0xf]
  %v9662 = vld [vmem:[%s9615 + $0xb8] sm:$0xf]
  %v9663 = vld [vmem:[%s9615 + $0xbc] sm:$0xf]
  %v9664 = vld [vmem:[%s9615 + $0xc0] sm:$0xf]
  %v9665 = vld [vmem:[%s9615 + $0xc4] sm:$0xf]
  %v9666 = vld [vmem:[%s9615 + $0xc8] sm:$0xf]
  %v9667 = vld [vmem:[%s9615 + $0xcc] sm:$0xf]
  %v9668 = vld [vmem:[%s9615 + $0xd0] sm:$0xf]
  %v9669 = vld [vmem:[%s9615 + $0xd4] sm:$0xf]
  %v9670 = vld [vmem:[%s9615 + $0xd8] sm:$0xf]
  %v9671 = vld [vmem:[%s9615 + $0xdc] sm:$0xf]
  %v9672 = vld [vmem:[%s9615 + $0xe0] sm:$0xf]
  %v9673 = vld [vmem:[%s9615 + $0xe4] sm:$0xf]
  %v9674 = vld [vmem:[%s9615 + $0xe8] sm:$0xf]
  %v9675 = vld [vmem:[%s9615 + $0xec] sm:$0xf]
  %v9676 = vld [vmem:[%s9615 + $0xf0] sm:$0xf]
  %v9677 = vld [vmem:[%s9615 + $0xf4] sm:$0xf]
  %v9678 = vld [vmem:[%s9615 + $0xf8] sm:$0xf]
  %v9679 = vld [vmem:[%s9615 + $0xfc] sm:$0xf]
  %v9680 = vld [vmem:[%s9615 + $0x100] sm:$0xf]
  %v9681 = vld [vmem:[%s9615 + $0x104] sm:$0xf]
  %v9682 = vld [vmem:[%s9615 + $0x108] sm:$0xf]
  %v9683 = vld [vmem:[%s9615 + $0x10c] sm:$0xf]
  %v9684 = vld [vmem:[%s9615 + $0x110] sm:$0xf]
  %v9685 = vld [vmem:[%s9615 + $0x114] sm:$0xf]
  %v9686 = vld [vmem:[%s9615 + $0x118] sm:$0xf]
  %v9687 = vld [vmem:[%s9615 + $0x11c] sm:$0xf]
  %v9688 = vld [vmem:[%s9615 + $0x120] sm:$0xf]
  %v9689 = vld [vmem:[%s9615 + $0x124] sm:$0xf]
  %v9690 = vld [vmem:[%s9615 + $0x128] sm:$0xf]
  %v9691 = vld [vmem:[%s9615 + $0x12c] sm:$0xf]
  %v9692 = vld [vmem:[%s9615 + $0x130] sm:$0xf]
  %v9693 = vld [vmem:[%s9615 + $0x134] sm:$0xf]
  %v9694 = vld [vmem:[%s9615 + $0x138] sm:$0xf]
  %v9695 = vld [vmem:[%s9615 + $0x13c] sm:$0xf]
  %v9696 = vld [vmem:[%s9615 + $0x140] sm:$0xf]
  %v9697 = vld [vmem:[%s9615 + $0x144] sm:$0xf]
  %v9698 = vld [vmem:[%s9615 + $0x148] sm:$0xf]
  %v9699 = vld [vmem:[%s9615 + $0x14c] sm:$0xf]
  %v9700 = vld [vmem:[%s9615 + $0x150] sm:$0xf]
  %v9701 = vld [vmem:[%s9615 + $0x154] sm:$0xf]
  %v9702 = vld [vmem:[%s9615 + $0x158] sm:$0xf]
  %v9703 = vld [vmem:[%s9615 + $0x15c] sm:$0xf]
  %v9704 = vld [vmem:[%s9615 + $0x160] sm:$0xf]
  %v9705 = vld [vmem:[%s9615 + $0x164] sm:$0xf]
  %v9706 = vld [vmem:[%s9615 + $0x168] sm:$0xf]
  %v9707 = vld [vmem:[%s9615 + $0x16c] sm:$0xf]
  %v9708 = vld [vmem:[%s9615 + $0x170] sm:$0xf]
  %v9709 = vld [vmem:[%s9615 + $0x174] sm:$0xf]
  %v9710 = vld [vmem:[%s9615 + $0x178] sm:$0xf]
  %v9711 = vld [vmem:[%s9615 + $0x17c] sm:$0xf]
  %v9712 = vld [vmem:[%s9615 + $0x180] sm:$0xf]
  %v9713 = vld [vmem:[%s9615 + $0x184] sm:$0xf]
  %v9714 = vld [vmem:[%s9615 + $0x188] sm:$0xf]
  %v9715 = vld [vmem:[%s9615 + $0x18c] sm:$0xf]
  %v9716 = vld [vmem:[%s9615 + $0x190] sm:$0xf]
  %v9717 = vld [vmem:[%s9615 + $0x194] sm:$0xf]
  %v9718 = vld [vmem:[%s9615 + $0x198] sm:$0xf]
  %v9719 = vld [vmem:[%s9615 + $0x19c] sm:$0xf]
  %v9720 = vld [vmem:[%s9615 + $0x1a0] sm:$0xf]
  %v9721 = vld [vmem:[%s9615 + $0x1a4] sm:$0xf]
  %v9722 = vld [vmem:[%s9615 + $0x1a8] sm:$0xf]
  %v9723 = vld [vmem:[%s9615 + $0x1ac] sm:$0xf]
  %v9724 = vld [vmem:[%s9615 + $0x1b0] sm:$0xf]
  %v9725 = vld [vmem:[%s9615 + $0x1b4] sm:$0xf]
  %v9726 = vld [vmem:[%s9615 + $0x1b8] sm:$0xf]
  %v9727 = vld [vmem:[%s9615 + $0x1bc] sm:$0xf]
  %v9728 = vld [vmem:[%s9615 + $0x1c0] sm:$0xf]
  %v9729 = vld [vmem:[%s9615 + $0x1c4] sm:$0xf]
  %v9730 = vld [vmem:[%s9615 + $0x1c8] sm:$0xf]
  %v9731 = vld [vmem:[%s9615 + $0x1cc] sm:$0xf]
  %v9732 = vld [vmem:[%s9615 + $0x1d0] sm:$0xf]
  %v9733 = vld [vmem:[%s9615 + $0x1d4] sm:$0xf]
  %v9734 = vld [vmem:[%s9615 + $0x1d8] sm:$0xf]
  %v9735 = vld [vmem:[%s9615 + $0x1dc] sm:$0xf]
  %v9736 = vld [vmem:[%s9615 + $0x1e0] sm:$0xf]
  %v9737 = vld [vmem:[%s9615 + $0x1e4] sm:$0xf]
  %v9738 = vld [vmem:[%s9615 + $0x1e8] sm:$0xf]
  %v9739 = vld [vmem:[%s9615 + $0x1ec] sm:$0xf]
  %v9740 = vld [vmem:[%s9615 + $0x1f0] sm:$0xf]
  %v9741 = vld [vmem:[%s9615 + $0x1f4] sm:$0xf]
  %v9742 = vld [vmem:[%s9615 + $0x1f8] sm:$0xf]
  %v9743 = vld [vmem:[%s9615 + $0x1fc] sm:$0xf]
  %v9744 = vld [vmem:[%s9615 + $0x200] sm:$0xf]
  %v9745 = vld [vmem:[%s9615 + $0x204] sm:$0xf]
  %v9746 = vld [vmem:[%s9615 + $0x208] sm:$0xf]
  %v9747 = vld [vmem:[%s9615 + $0x20c] sm:$0xf]
  %v9748 = vld [vmem:[%s9615 + $0x210] sm:$0xf]
  %v9749 = vld [vmem:[%s9615 + $0x214] sm:$0xf]
  %v9750 = vld [vmem:[%s9615 + $0x218] sm:$0xf]
  %v9751 = vld [vmem:[%s9615 + $0x21c] sm:$0xf]
  %v9752 = vld [vmem:[%s9615 + $0x220] sm:$0xf]
  %v9753 = vld [vmem:[%s9615 + $0x224] sm:$0xf]
  %v9754 = vld [vmem:[%s9615 + $0x228] sm:$0xf]
  %v9755 = vld [vmem:[%s9615 + $0x22c] sm:$0xf]
  %v9756 = vld [vmem:[%s9615 + $0x230] sm:$0xf]
  %v9757 = vld [vmem:[%s9615 + $0x234] sm:$0xf]
  %v9758 = vld [vmem:[%s9615 + $0x238] sm:$0xf]
  %v9759 = vld [vmem:[%s9615 + $0x23c] sm:$0xf]
  %v9760 = vld [vmem:[%s9615 + $0x240] sm:$0xf]
  %v9761 = vld [vmem:[%s9615 + $0x244] sm:$0xf]
  %v9762 = vld [vmem:[%s9615 + $0x248] sm:$0xf]
  %v9763 = vld [vmem:[%s9615 + $0x24c] sm:$0xf]
  %v9764 = vld [vmem:[%s9615 + $0x250] sm:$0xf]
  %v9765 = vld [vmem:[%s9615 + $0x254] sm:$0xf]
  %v9766 = vld [vmem:[%s9615 + $0x258] sm:$0xf]
  %v9767 = vld [vmem:[%s9615 + $0x25c] sm:$0xf]
  %v9768 = vld [vmem:[%s9615 + $0x260] sm:$0xf]
  %v9769 = vld [vmem:[%s9615 + $0x264] sm:$0xf]
  %v9770 = vld [vmem:[%s9615 + $0x268] sm:$0xf]
  %v9771 = vld [vmem:[%s9615 + $0x26c] sm:$0xf]
  %v9772 = vld [vmem:[%s9615 + $0x270] sm:$0xf]
  %v9773 = vld [vmem:[%s9615 + $0x274] sm:$0xf]
  %v9774 = vld [vmem:[%s9615 + $0x278] sm:$0xf]
  %v9775 = vld [vmem:[%s9615 + $0x27c] sm:$0xf]
  %v9936 = vunpack.c.l.b16 %v9616
  %v9937 = vunpack.c.l.b16 %v9617
  %v9938 = vunpack.c.l.b16 %v9618
  %v9939 = vunpack.c.l.b16 %v9619
  %v9940 = vunpack.c.l.b16 %v9620
  %v9941 = vunpack.c.l.b16 %v9621
  %v9942 = vunpack.c.l.b16 %v9622
  %v9943 = vunpack.c.l.b16 %v9623
  %v9944 = vunpack.c.l.b16 %v9624
  %v9945 = vunpack.c.l.b16 %v9625
  %v9946 = vunpack.c.l.b16 %v9626
  %v9947 = vunpack.c.l.b16 %v9627
  %v9948 = vunpack.c.l.b16 %v9628
  %v9949 = vunpack.c.l.b16 %v9629
  %v9950 = vunpack.c.l.b16 %v9630
  %v9951 = vunpack.c.l.b16 %v9631
  %v9952 = vunpack.c.l.b16 %v9632
  %v9953 = vunpack.c.l.b16 %v9633
  %v9954 = vunpack.c.l.b16 %v9634
  %v9955 = vunpack.c.l.b16 %v9635
  %v9956 = vunpack.c.l.b16 %v9636
  %v9957 = vunpack.c.l.b16 %v9637
  %v9958 = vunpack.c.l.b16 %v9638
  %v9959 = vunpack.c.l.b16 %v9639
  %v9960 = vunpack.c.l.b16 %v9640
  %v9961 = vunpack.c.l.b16 %v9641
  %v9962 = vunpack.c.l.b16 %v9642
  %v9963 = vunpack.c.l.b16 %v9643
  %v9964 = vunpack.c.l.b16 %v9644
  %v9965 = vunpack.c.l.b16 %v9645
  %v9966 = vunpack.c.l.b16 %v9646
  %v9967 = vunpack.c.l.b16 %v9647
  %v9968 = vunpack.c.l.b16 %v9648
  %v9969 = vunpack.c.l.b16 %v9649
  %v9970 = vunpack.c.l.b16 %v9650
  %v9971 = vunpack.c.l.b16 %v9651
  %v9972 = vunpack.c.l.b16 %v9652
  %v9973 = vunpack.c.l.b16 %v9653
  %v9974 = vunpack.c.l.b16 %v9654
  %v9975 = vunpack.c.l.b16 %v9655
  %v9976 = vunpack.c.l.b16 %v9656
  %v9977 = vunpack.c.l.b16 %v9657
  %v9978 = vunpack.c.l.b16 %v9658
  %v9979 = vunpack.c.l.b16 %v9659
  %v9980 = vunpack.c.l.b16 %v9660
  %v9981 = vunpack.c.l.b16 %v9661
  %v9982 = vunpack.c.l.b16 %v9662
  %v9983 = vunpack.c.l.b16 %v9663
  %v9984 = vunpack.c.l.b16 %v9664
  %v9985 = vunpack.c.l.b16 %v9665
  %v9986 = vunpack.c.l.b16 %v9666
  %v9987 = vunpack.c.l.b16 %v9667
  %v9988 = vunpack.c.l.b16 %v9668
  %v9989 = vunpack.c.l.b16 %v9669
  %v9990 = vunpack.c.l.b16 %v9670
  %v9991 = vunpack.c.l.b16 %v9671
  %v9992 = vunpack.c.l.b16 %v9672
  %v9993 = vunpack.c.l.b16 %v9673
  %v9994 = vunpack.c.l.b16 %v9674
  %v9995 = vunpack.c.l.b16 %v9675
  %v9996 = vunpack.c.l.b16 %v9676
  %v9997 = vunpack.c.l.b16 %v9677
  %v9998 = vunpack.c.l.b16 %v9678
  %v9999 = vunpack.c.l.b16 %v9679
  %v10000 = vunpack.c.l.b16 %v9680
  %v10001 = vunpack.c.l.b16 %v9681
  %v10002 = vunpack.c.l.b16 %v9682
  %v10003 = vunpack.c.l.b16 %v9683
  %v10004 = vunpack.c.l.b16 %v9684
  %v10005 = vunpack.c.l.b16 %v9685
  %v10006 = vunpack.c.l.b16 %v9686
  %v10007 = vunpack.c.l.b16 %v9687
  %v10008 = vunpack.c.l.b16 %v9688
  %v10009 = vunpack.c.l.b16 %v9689
  %v10010 = vunpack.c.l.b16 %v9690
  %v10011 = vunpack.c.l.b16 %v9691
  %v10012 = vunpack.c.l.b16 %v9692
  %v10013 = vunpack.c.l.b16 %v9693
  %v10014 = vunpack.c.l.b16 %v9694
  %v10015 = vunpack.c.l.b16 %v9695
  %v10016 = vunpack.c.l.b16 %v9696
  %v10017 = vunpack.c.l.b16 %v9697
  %v10018 = vunpack.c.l.b16 %v9698
  %v10019 = vunpack.c.l.b16 %v9699
  %v10020 = vunpack.c.l.b16 %v9700
  %v10021 = vunpack.c.l.b16 %v9701
  %v10022 = vunpack.c.l.b16 %v9702
  %v10023 = vunpack.c.l.b16 %v9703
  %v10024 = vunpack.c.l.b16 %v9704
  %v10025 = vunpack.c.l.b16 %v9705
  %v10026 = vunpack.c.l.b16 %v9706
  %v10027 = vunpack.c.l.b16 %v9707
  %v10028 = vunpack.c.l.b16 %v9708
  %v10029 = vunpack.c.l.b16 %v9709
  %v10030 = vunpack.c.l.b16 %v9710
  %v10031 = vunpack.c.l.b16 %v9711
  %v10032 = vunpack.c.l.b16 %v9712
  %v10033 = vunpack.c.l.b16 %v9713
  %v10034 = vunpack.c.l.b16 %v9714
  %v10035 = vunpack.c.l.b16 %v9715
  %v10036 = vunpack.c.l.b16 %v9716
  %v10037 = vunpack.c.l.b16 %v9717
  %v10038 = vunpack.c.l.b16 %v9718
  %v10039 = vunpack.c.l.b16 %v9719
  %v10040 = vunpack.c.l.b16 %v9720
  %v10041 = vunpack.c.l.b16 %v9721
  %v10042 = vunpack.c.l.b16 %v9722
  %v10043 = vunpack.c.l.b16 %v9723
  %v10044 = vunpack.c.l.b16 %v9724
  %v10045 = vunpack.c.l.b16 %v9725
  %v10046 = vunpack.c.l.b16 %v9726
  %v10047 = vunpack.c.l.b16 %v9727
  %v10048 = vunpack.c.l.b16 %v9728
  %v10049 = vunpack.c.l.b16 %v9729
  %v10050 = vunpack.c.l.b16 %v9730
  %v10051 = vunpack.c.l.b16 %v9731
  %v10052 = vunpack.c.l.b16 %v9732
  %v10053 = vunpack.c.l.b16 %v9733
  %v10054 = vunpack.c.l.b16 %v9734
  %v10055 = vunpack.c.l.b16 %v9735
  %v10056 = vunpack.c.l.b16 %v9736
  %v10057 = vunpack.c.l.b16 %v9737
  %v10058 = vunpack.c.l.b16 %v9738
  %v10059 = vunpack.c.l.b16 %v9739
  %v10060 = vunpack.c.l.b16 %v9740
  %v10061 = vunpack.c.l.b16 %v9741
  %v10062 = vunpack.c.l.b16 %v9742
  %v10063 = vunpack.c.l.b16 %v9743
  %v10064 = vunpack.c.l.b16 %v9744
  %v10065 = vunpack.c.l.b16 %v9745
  %v10066 = vunpack.c.l.b16 %v9746
  %v10067 = vunpack.c.l.b16 %v9747
  %v10068 = vunpack.c.l.b16 %v9748
  %v10069 = vunpack.c.l.b16 %v9749
  %v10070 = vunpack.c.l.b16 %v9750
  %v10071 = vunpack.c.l.b16 %v9751
  %v10072 = vunpack.c.l.b16 %v9752
  %v10073 = vunpack.c.l.b16 %v9753
  %v10074 = vunpack.c.l.b16 %v9754
  %v10075 = vunpack.c.l.b16 %v9755
  %v10076 = vunpack.c.l.b16 %v9756
  %v10077 = vunpack.c.l.b16 %v9757
  %v10078 = vunpack.c.l.b16 %v9758
  %v10079 = vunpack.c.l.b16 %v9759
  %v10080 = vunpack.c.l.b16 %v9760
  %v10081 = vunpack.c.l.b16 %v9761
  %v10082 = vunpack.c.l.b16 %v9762
  %v10083 = vunpack.c.l.b16 %v9763
  %v10084 = vunpack.c.l.b16 %v9764
  %v10085 = vunpack.c.l.b16 %v9765
  %v10086 = vunpack.c.l.b16 %v9766
  %v10087 = vunpack.c.l.b16 %v9767
  %v10088 = vunpack.c.l.b16 %v9768
  %v10089 = vunpack.c.l.b16 %v9769
  %v10090 = vunpack.c.l.b16 %v9770
  %v10091 = vunpack.c.l.b16 %v9771
  %v10092 = vunpack.c.l.b16 %v9772
  %v10093 = vunpack.c.l.b16 %v9773
  %v10094 = vunpack.c.l.b16 %v9774
  %v10095 = vunpack.c.l.b16 %v9775
  %v10096 = vpack.c.b16 %v9937, %v9936
  %v10097 = vpack.c.b16 %v9939, %v9938
  %v10098 = vpack.c.b16 %v9941, %v9940
  %v10099 = vpack.c.b16 %v9943, %v9942
  %v10100 = vpack.c.b16 %v9945, %v9944
  %v10101 = vpack.c.b16 %v9947, %v9946
  %v10102 = vpack.c.b16 %v9949, %v9948
  %v10103 = vpack.c.b16 %v9951, %v9950
  %v10104 = vpack.c.b16 %v9953, %v9952
  %v10105 = vpack.c.b16 %v9955, %v9954
  %v10106 = vpack.c.b16 %v9957, %v9956
  %v10107 = vpack.c.b16 %v9959, %v9958
  %v10108 = vpack.c.b16 %v9961, %v9960
  %v10109 = vpack.c.b16 %v9963, %v9962
  %v10110 = vpack.c.b16 %v9965, %v9964
  %v10111 = vpack.c.b16 %v9967, %v9966
  %v10112 = vpack.c.b16 %v9969, %v9968
  %v10113 = vpack.c.b16 %v9971, %v9970
  %v10114 = vpack.c.b16 %v9973, %v9972
  %v10115 = vpack.c.b16 %v9975, %v9974
  %v10116 = vpack.c.b16 %v9977, %v9976
  %v10117 = vpack.c.b16 %v9979, %v9978
  %v10118 = vpack.c.b16 %v9981, %v9980
  %v10119 = vpack.c.b16 %v9983, %v9982
  %v10120 = vpack.c.b16 %v9985, %v9984
  %v10121 = vpack.c.b16 %v9987, %v9986
  %v10122 = vpack.c.b16 %v9989, %v9988
  %v10123 = vpack.c.b16 %v9991, %v9990
  %v10124 = vpack.c.b16 %v9993, %v9992
  %v10125 = vpack.c.b16 %v9995, %v9994
  %v10126 = vpack.c.b16 %v9997, %v9996
  %v10127 = vpack.c.b16 %v9999, %v9998
  %v10128 = vpack.c.b16 %v10001, %v10000
  %v10129 = vpack.c.b16 %v10003, %v10002
  %v10130 = vpack.c.b16 %v10005, %v10004
  %v10131 = vpack.c.b16 %v10007, %v10006
  %v10132 = vpack.c.b16 %v10009, %v10008
  %v10133 = vpack.c.b16 %v10011, %v10010
  %v10134 = vpack.c.b16 %v10013, %v10012
  %v10135 = vpack.c.b16 %v10015, %v10014
  %v10136 = vpack.c.b16 %v10017, %v10016
  %v10137 = vpack.c.b16 %v10019, %v10018
  %v10138 = vpack.c.b16 %v10021, %v10020
  %v10139 = vpack.c.b16 %v10023, %v10022
  %v10140 = vpack.c.b16 %v10025, %v10024
  %v10141 = vpack.c.b16 %v10027, %v10026
  %v10142 = vpack.c.b16 %v10029, %v10028
  %v10143 = vpack.c.b16 %v10031, %v10030
  %v10144 = vpack.c.b16 %v10033, %v10032
  %v10145 = vpack.c.b16 %v10035, %v10034
  %v10146 = vpack.c.b16 %v10037, %v10036
  %v10147 = vpack.c.b16 %v10039, %v10038
  %v10148 = vpack.c.b16 %v10041, %v10040
  %v10149 = vpack.c.b16 %v10043, %v10042
  %v10150 = vpack.c.b16 %v10045, %v10044
  %v10151 = vpack.c.b16 %v10047, %v10046
  %v10152 = vpack.c.b16 %v10049, %v10048
  %v10153 = vpack.c.b16 %v10051, %v10050
  %v10154 = vpack.c.b16 %v10053, %v10052
  %v10155 = vpack.c.b16 %v10055, %v10054
  %v10156 = vpack.c.b16 %v10057, %v10056
  %v10157 = vpack.c.b16 %v10059, %v10058
  %v10158 = vpack.c.b16 %v10061, %v10060
  %v10159 = vpack.c.b16 %v10063, %v10062
  %v10160 = vpack.c.b16 %v10065, %v10064
  %v10161 = vpack.c.b16 %v10067, %v10066
  %v10162 = vpack.c.b16 %v10069, %v10068
  %v10163 = vpack.c.b16 %v10071, %v10070
  %v10164 = vpack.c.b16 %v10073, %v10072
  %v10165 = vpack.c.b16 %v10075, %v10074
  %v10166 = vpack.c.b16 %v10077, %v10076
  %v10167 = vpack.c.b16 %v10079, %v10078
  %v10168 = vpack.c.b16 %v10081, %v10080
  %v10169 = vpack.c.b16 %v10083, %v10082
  %v10170 = vpack.c.b16 %v10085, %v10084
  %v10171 = vpack.c.b16 %v10087, %v10086
  %v10172 = vpack.c.b16 %v10089, %v10088
  %v10173 = vpack.c.b16 %v10091, %v10090
  %v10174 = vpack.c.b16 %v10093, %v10092
  %v10175 = vpack.c.b16 %v10095, %v10094
  %10256 = vmatprep.subr.bf16.mxu0 0
  %10257 = vmatpush1.bf16.msra.mxu0 %v10096
  %10258 = vmatprep.subr.bf16.mxu0 0
  %10259 = vmatpush1.bf16.msra.mxu0 %v10097
  %10260 = vmatprep.subr.bf16.mxu0 0
  %10261 = vmatpush1.bf16.msra.mxu0 %v10098
  %10262 = vmatprep.subr.bf16.mxu0 0
  %10263 = vmatpush1.bf16.msra.mxu0 %v10099
  %10264 = vmatprep.subr.bf16.mxu0 0
  %10265 = vmatpush1.bf16.msra.mxu0 %v10100
  %10266 = vmatprep.subr.bf16.mxu0 0
  %10267 = vmatpush1.bf16.msra.mxu0 %v10101
  %10268 = vmatprep.subr.bf16.mxu0 0
  %10269 = vmatpush1.bf16.msra.mxu0 %v10102
  %10270 = vmatprep.subr.bf16.mxu0 0
  %10271 = vmatpush1.bf16.msra.mxu0 %v10103
  %10272 = vmatprep.subr.bf16.mxu0 0
  %10273 = vmatpush1.bf16.msra.mxu0 %v10104
  %10274 = vmatprep.subr.bf16.mxu0 0
  %10275 = vmatpush1.bf16.msra.mxu0 %v10105
  %10276 = vmatprep.subr.bf16.mxu0 0
  %10277 = vmatpush1.bf16.msra.mxu0 %v10106
  %10278 = vmatprep.subr.bf16.mxu0 0
  %10279 = vmatpush1.bf16.msra.mxu0 %v10107
  %10280 = vmatprep.subr.bf16.mxu0 0
  %10281 = vmatpush1.bf16.msra.mxu0 %v10108
  %10282 = vmatprep.subr.bf16.mxu0 0
  %10283 = vmatpush1.bf16.msra.mxu0 %v10109
  %10284 = vmatprep.subr.bf16.mxu0 0
  %10285 = vmatpush1.bf16.msra.mxu0 %v10110
  %10286 = vmatprep.subr.bf16.mxu0 0
  %10287 = vmatpush1.bf16.msra.mxu0 %v10111
  %10288 = vmatprep.mubr.bf16.mxu0 %v9520
  %10289 = vmatmul.mubr.bf16.gmra.mrb[0].mxu0 %v9517
  %v10290 = vpop.f32.mrb[0].mxu0
  %v10291 = vadd.f32 0.0, %v10290
  %v10292 = vpop.f32.mrb[0].mxu0
  %v10293 = vpop.f32.mrb[0].mxu0
  %v10294 = vadd.f32 0.0, %v10293
  %v10295 = vpop.f32.mrb[0].mxu0
  %10296 = vmatprep.mubr.bf16.mxu0 %v9580
  %10297 = vmatmul.mubr.bf16.gmra.mrb[0].mxu0 %v9577
  %v10298 = vpop.f32.mrb[0].mxu0
  %v10299 = vadd.f32 0.0, %v10298
  %v10300 = vpop.f32.mrb[0].mxu0
  %v10301 = vpop.f32.mrb[0].mxu0
  %v10302 = vadd.f32 0.0, %v10301
  %v10303 = vpop.f32.mrb[0].mxu0
  %10304 = vdwg.mxu0
  %10305 = vmatprep.subr.bf16.mxu0 0
  %10306 = vmatpush1.bf16.msra.mxu0 %v10112
  %10307 = vmatprep.subr.bf16.mxu0 0
  %10308 = vmatpush1.bf16.msra.mxu0 %v10113
  %10309 = vmatprep.subr.bf16.mxu0 0
  %10310 = vmatpush1.bf16.msra.mxu0 %v10114
  %10311 = vmatprep.subr.bf16.mxu0 0
  %10312 = vmatpush1.bf16.msra.mxu0 %v10115
  %10313 = vmatprep.subr.bf16.mxu0 0
  %10314 = vmatpush1.bf16.msra.mxu0 %v10116
  %10315 = vmatprep.subr.bf16.mxu0 0
  %10316 = vmatpush1.bf16.msra.mxu0 %v10117
  %10317 = vmatprep.subr.bf16.mxu0 0
  %10318 = vmatpush1.bf16.msra.mxu0 %v10118
  %10319 = vmatprep.subr.bf16.mxu0 0
  %10320 = vmatpush1.bf16.msra.mxu0 %v10119
  %10321 = vmatprep.subr.bf16.mxu0 0
  %10322 = vmatpush1.bf16.msra.mxu0 %v10120
  %10323 = vmatprep.subr.bf16.mxu0 0
  %10324 = vmatpush1.bf16.msra.mxu0 %v10121
  %10325 = vmatprep.subr.bf16.mxu0 0
  %10326 = vmatpush1.bf16.msra.mxu0 %v10122
  %10327 = vmatprep.subr.bf16.mxu0 0
  %10328 = vmatpush1.bf16.msra.mxu0 %v10123
  %10329 = vmatprep.subr.bf16.mxu0 0
  %10330 = vmatpush1.bf16.msra.mxu0 %v10124
  %10331 = vmatprep.subr.bf16.mxu0 0
  %10332 = vmatpush1.bf16.msra.mxu0 %v10125
  %10333 = vmatprep.subr.bf16.mxu0 0
  %10334 = vmatpush1.bf16.msra.mxu0 %v10126
  %10335 = vmatprep.subr.bf16.mxu0 0
  %10336 = vmatpush1.bf16.msra.mxu0 %v10127
  %10337 = vmatprep.mubr.bf16.mxu0 %v9526
  %10338 = vmatmul.mubr.bf16.gmra.mrb[0].mxu0 %v9523
  %v10339 = vpop.f32.mrb[0].mxu0
  %v10340 = vadd.f32 %v10291, %v10339
  %v10341 = vpop.f32.mrb[0].mxu0
  %v10342 = vpop.f32.mrb[0].mxu0
  %v10343 = vadd.f32 %v10294, %v10342
  %v10344 = vpop.f32.mrb[0].mxu0
  %10345 = vmatprep.mubr.bf16.mxu0 %v9586
  %10346 = vmatmul.mubr.bf16.gmra.mrb[0].mxu0 %v9583
  %v10347 = vpop.f32.mrb[0].mxu0
  %v10348 = vadd.f32 %v10299, %v10347
  %v10349 = vpop.f32.mrb[0].mxu0
  %v10350 = vpop.f32.mrb[0].mxu0
  %v10351 = vadd.f32 %v10302, %v10350
  %v10352 = vpop.f32.mrb[0].mxu0
  %10353 = vdwg.mxu0
  %10354 = vmatprep.subr.bf16.mxu0 0
  %10355 = vmatpush1.bf16.msra.mxu0 %v10128
  %10356 = vmatprep.subr.bf16.mxu0 0
  %10357 = vmatpush1.bf16.msra.mxu0 %v10129
  %10358 = vmatprep.subr.bf16.mxu0 0
  %10359 = vmatpush1.bf16.msra.mxu0 %v10130
  %10360 = vmatprep.subr.bf16.mxu0 0
  %10361 = vmatpush1.bf16.msra.mxu0 %v10131
  %10362 = vmatprep.subr.bf16.mxu0 0
  %10363 = vmatpush1.bf16.msra.mxu0 %v10132
  %10364 = vmatprep.subr.bf16.mxu0 0
  %10365 = vmatpush1.bf16.msra.mxu0 %v10133
  %10366 = vmatprep.subr.bf16.mxu0 0
  %10367 = vmatpush1.bf16.msra.mxu0 %v10134
  %10368 = vmatprep.subr.bf16.mxu0 0
  %10369 = vmatpush1.bf16.msra.mxu0 %v10135
  %10370 = vmatprep.subr.bf16.mxu0 0
  %10371 = vmatpush1.bf16.msra.mxu0 %v10136
  %10372 = vmatprep.subr.bf16.mxu0 0
  %10373 = vmatpush1.bf16.msra.mxu0 %v10137
  %10374 = vmatprep.subr.bf16.mxu0 0
  %10375 = vmatpush1.bf16.msra.mxu0 %v10138
  %10376 = vmatprep.subr.bf16.mxu0 0
  %10377 = vmatpush1.bf16.msra.mxu0 %v10139
  %10378 = vmatprep.subr.bf16.mxu0 0
  %10379 = vmatpush1.bf16.msra.mxu0 %v10140
  %10380 = vmatprep.subr.bf16.mxu0 0
  %10381 = vmatpush1.bf16.msra.mxu0 %v10141
  %10382 = vmatprep.subr.bf16.mxu0 0
  %10383 = vmatpush1.bf16.msra.mxu0 %v10142
  %10384 = vmatprep.subr.bf16.mxu0 0
  %10385 = vmatpush1.bf16.msra.mxu0 %v10143
  %10386 = vmatprep.mubr.bf16.mxu0 %v9532
  %10387 = vmatmul.mubr.bf16.gmra.mrb[0].mxu0 %v9529
  %v10388 = vpop.f32.mrb[0].mxu0
  %v10389 = vadd.f32 %v10340, %v10388
  %v10390 = vpop.f32.mrb[0].mxu0
  %v10391 = vpop.f32.mrb[0].mxu0
  %v10392 = vadd.f32 %v10343, %v10391
  %v10393 = vpop.f32.mrb[0].mxu0
  %10394 = vmatprep.mubr.bf16.mxu0 %v9592
  %10395 = vmatmul.mubr.bf16.gmra.mrb[0].mxu0 %v9589
  %v10396 = vpop.f32.mrb[0].mxu0
  %v10397 = vadd.f32 %v10348, %v10396
  %v10398 = vpop.f32.mrb[0].mxu0
  %v10399 = vpop.f32.mrb[0].mxu0
  %v10400 = vadd.f32 %v10351, %v10399
  %v10401 = vpop.f32.mrb[0].mxu0
  %10402 = vdwg.mxu0
  %10403 = vmatprep.subr.bf16.mxu0 0
  %10404 = vmatpush1.bf16.msra.mxu0 %v10144
  %10405 = vmatprep.subr.bf16.mxu0 0
  %10406 = vmatpush1.bf16.msra.mxu0 %v10145
  %10407 = vmatprep.subr.bf16.mxu0 0
  %10408 = vmatpush1.bf16.msra.mxu0 %v10146
  %10409 = vmatprep.subr.bf16.mxu0 0
  %10410 = vmatpush1.bf16.msra.mxu0 %v10147
  %10411 = vmatprep.subr.bf16.mxu0 0
  %10412 = vmatpush1.bf16.msra.mxu0 %v10148
  %10413 = vmatprep.subr.bf16.mxu0 0
  %10414 = vmatpush1.bf16.msra.mxu0 %v10149
  %10415 = vmatprep.subr.bf16.mxu0 0
  %10416 = vmatpush1.bf16.msra.mxu0 %v10150
  %10417 = vmatprep.subr.bf16.mxu0 0
  %10418 = vmatpush1.bf16.msra.mxu0 %v10151
  %10419 = vmatprep.subr.bf16.mxu0 0
  %10420 = vmatpush1.bf16.msra.mxu0 %v10152
  %10421 = vmatprep.subr.bf16.mxu0 0
  %10422 = vmatpush1.bf16.msra.mxu0 %v10153
  %10423 = vmatprep.subr.bf16.mxu0 0
  %10424 = vmatpush1.bf16.msra.mxu0 %v10154
  %10425 = vmatprep.subr.bf16.mxu0 0
  %10426 = vmatpush1.bf16.msra.mxu0 %v10155
  %10427 = vmatprep.subr.bf16.mxu0 0
  %10428 = vmatpush1.bf16.msra.mxu0 %v10156
  %10429 = vmatprep.subr.bf16.mxu0 0
  %10430 = vmatpush1.bf16.msra.mxu0 %v10157
  %10431 = vmatprep.subr.bf16.mxu0 0
  %10432 = vmatpush1.bf16.msra.mxu0 %v10158
  %10433 = vmatprep.subr.bf16.mxu0 0
  %10434 = vmatpush1.bf16.msra.mxu0 %v10159
  %10435 = vmatprep.mubr.bf16.mxu0 %v9538
  %10436 = vmatmul.mubr.bf16.gmra.mrb[0].mxu0 %v9535
  %v10437 = vpop.f32.mrb[0].mxu0
  %v10438 = vadd.f32 %v10389, %v10437
  %v10439 = vpop.f32.mrb[0].mxu0
  %v10440 = vpop.f32.mrb[0].mxu0
  %v10441 = vadd.f32 %v10392, %v10440
  %v10442 = vpop.f32.mrb[0].mxu0
  %10443 = vmatprep.mubr.bf16.mxu0 %v9598
  %10444 = vmatmul.mubr.bf16.gmra.mrb[0].mxu0 %v9595
  %v10445 = vpop.f32.mrb[0].mxu0
  %v10446 = vadd.f32 %v10397, %v10445
  %v10447 = vpop.f32.mrb[0].mxu0
  %v10448 = vpop.f32.mrb[0].mxu0
  %v10449 = vadd.f32 %v10400, %v10448
  %v10450 = vpop.f32.mrb[0].mxu0
  %10451 = vdwg.mxu0
  %10452 = vmatprep.subr.bf16.mxu0 0
  %10453 = vmatpush1.bf16.msra.mxu0 %v10160
  %10454 = vmatprep.subr.bf16.mxu0 0
  %10455 = vmatpush1.bf16.msra.mxu0 %v10161
  %10456 = vmatprep.subr.bf16.mxu0 0
  %10457 = vmatpush1.bf16.msra.mxu0 %v10162
  %10458 = vmatprep.subr.bf16.mxu0 0
  %10459 = vmatpush1.bf16.msra.mxu0 %v10163
  %10460 = vmatprep.subr.bf16.mxu0 0
  %10461 = vmatpush1.bf16.msra.mxu0 %v10164
  %10462 = vmatprep.subr.bf16.mxu0 0
  %10463 = vmatpush1.bf16.msra.mxu0 %v10165
  %10464 = vmatprep.subr.bf16.mxu0 0
  %10465 = vmatpush1.bf16.msra.mxu0 %v10166
  %10466 = vmatprep.subr.bf16.mxu0 0
  %10467 = vmatpush1.bf16.msra.mxu0 %v10167
  %10468 = vmatprep.subr.bf16.mxu0 0
  %10469 = vmatpush1.bf16.msra.mxu0 %v10168
  %10470 = vmatprep.subr.bf16.mxu0 0
  %10471 = vmatpush1.bf16.msra.mxu0 %v10169
  %10472 = vmatprep.subr.bf16.mxu0 0
  %10473 = vmatpush1.bf16.msra.mxu0 %v10170
  %10474 = vmatprep.subr.bf16.mxu0 0
  %10475 = vmatpush1.bf16.msra.mxu0 %v10171
  %10476 = vmatprep.subr.bf16.mxu0 0
  %10477 = vmatpush1.bf16.msra.mxu0 %v10172
  %10478 = vmatprep.subr.bf16.mxu0 0
  %10479 = vmatpush1.bf16.msra.mxu0 %v10173
  %10480 = vmatprep.subr.bf16.mxu0 0
  %10481 = vmatpush1.bf16.msra.mxu0 %v10174
  %10482 = vmatprep.subr.bf16.mxu0 0
  %10483 = vmatpush1.bf16.msra.mxu0 %v10175
  %10484 = vmatprep.mubr.bf16.mxu0 %v9544
  %10485 = vmatmul.mubr.bf16.gmra.mrb[0].mxu0 %v9541
  %v10486 = vpop.f32.mrb[0].mxu0
  %v10487 = vadd.f32 %v10438, %v10486
  %v10488 = vpop.f32.mrb[0].mxu0
  %v10489 = vpop.f32.mrb[0].mxu0
  %v10490 = vadd.f32 %v10441, %v10489
  %v10491 = vpop.f32.mrb[0].mxu0
  %10492 = vmatprep.mubr.bf16.mxu0 %v9604
  %10493 = vmatmul.mubr.bf16.gmra.mrb[0].mxu0 %v9601
  %v10494 = vpop.f32.mrb[0].mxu0
  %v10495 = vadd.f32 %v10446, %v10494
  %v10496 = vpop.f32.mrb[0].mxu0
  %v10497 = vpop.f32.mrb[0].mxu0
  %v10498 = vadd.f32 %v10449, %v10497
  %v10499 = vpop.f32.mrb[0].mxu0
  %10500 = vdwg.mxu0
  %v10501 = vadd.f32 %v9470, %v10487
  %v10502 = vadd.f32 %v9471, %v10490
  %v10503 = vadd.f32 %v9472, %v10495
  %v10504 = vadd.f32 %v9473, %v10498
  %v10505 = vld [vmem:[%s6] sm:$0x1]
  %v10507 = vlaneseq
  %v10508 = vshrl.u32 %v10507, 7
  %v10509 = vsub.s32 0, %v10508
  %v10510 = vrot.slane %v10505, %v10509
  %v10512 = vadd.f32 %v10501, %v10510
  %v10513 = vadd.f32 %v10502, %v10510
  %v10514 = vadd.f32 %v10503, %v10510
  %v10515 = vadd.f32 %v10504, %v10510
  %vm10516 = vcmask 261120
  %10517 = vst.msk [vmem:[%s7] sm:$0xff] %vm10516, %v10512
  %10518 = vst.msk [vmem:[%s7 + $0x8] sm:$0xff] %vm10516, %v10513
  %s10519 = scalar_lea.vmem %s7, 16
  %10520 = vst.msk [vmem:[%s10519] sm:$0xff] %vm10516, %v10514
  %10521 = vst.msk [vmem:[%s10519 + $0x8] sm:$0xff] %vm10516, %v10515
  // Predicated region
  $region30: #{srcnn_w128_forward.1} parent=0 // pred_check
    _
  $region31: #{srcnn_w128_forward.1} parent=0 // pred_check_branch
    %10523 = sbr.rel (0) target = $region33
  $region32: #{srcnn_w128_forward.1} parent=0 // pred_region
    _
  $region33: #{srcnn_w128_forward.1} parent=0 // pred_fallthru
    _
  // Predicated region
  $region34: #{srcnn_w128_forward.1} parent=0 // pred_check
    _
  $region35: #{srcnn_w128_forward.1} parent=0 // pred_check_branch
    %10525 = sbr.rel (0) target = $region37
  $region36: #{srcnn_w128_forward.1} parent=0 // pred_region
    _
  $region37: #{srcnn_w128_forward.1} parent=0 // pred_fallthru
    _

</llo_original>
